<compile_context>
chip_gen: v7x
topology: tpu7x:2x2x1
jax: 0.10.0
libtpu: 0.0.40
codegen_flags: <defaults>
</compile_context>

<pallas_src>
import functools

import jax
import jax.numpy as jnp
from jax import lax
from jax.experimental import pallas as pl
from jax.experimental.pallas import tpu as pltpu

BN_EPS = 1e-5


def _apply_activation(z, activation):
    if activation == "relu":
        return jnp.maximum(z, 0.0)
    if activation == "leaky_relu":
        return jnp.where(z > 0, z, 0.01 * z)
    if activation == "tanh":
        return jnp.tanh(z)
    return z


# ----------------------------------------------------------------------------
# Single-program fused kernel: per-t GCN stacks -> batched gate projection ->
# sequential LSTM recurrence -> future-prediction step
# ----------------------------------------------------------------------------
def gcrn_kernel(a_ref, x_ref, w0_ref, b0_ref, w1_ref, b1_ref,
                wih_ref, whh_ref, bg_ref, o_ref, *,
                num_layers, activation, hidden, n_main):
    H = hidden
    N = o_ref.shape[0]

    # --- phase 1: L-layer GCN per main timestep (BN folded into W/b) --------
    zs = []
    for t in range(n_main):
        a = a_ref[t]                               # [N, N] normalized adjacency
        z = x_ref[t]                               # [N, CIN]
        for i in range(num_layers):
            if i == 0:
                w = w0_ref[t]                      # [CIN, H]
                b = b0_ref[t]                      # [1, H]
            else:
                w = w1_ref[t, i - 1]               # [H, H]
                b = b1_ref[t, i - 1]               # [1, H]
            z = jnp.dot(a, jnp.dot(z, w, preferred_element_type=jnp.float32),
                        preferred_element_type=jnp.float32) + b
            z = _apply_activation(z, activation)
        zs.append(z)

    # --- phase 2: batched non-recurrent gate projection for all main steps --
    z_all = jnp.concatenate(zs, axis=0)            # [(T-1)*N, H]
    gx_all = jnp.dot(z_all, wih_ref[...],
                     preferred_element_type=jnp.float32) + bg_ref[...]

    # Constant gate masks (hoisted out of the time loop). PyTorch gate order
    # is (i, f, g, o); only the g block needs tanh = 2*sigmoid(2x) - 1.
    lane = lax.broadcasted_iota(jnp.int32, (N, 4 * H), 1)
    is_g = (lane >= 2 * H) & (lane < 3 * H)
    g_scale = jnp.where(is_g, 2.0, 1.0).astype(jnp.float32)
    g_off = jnp.where(is_g, -1.0, 0.0).astype(jnp.float32)

    def lstm_cell(gates, c_prev):
        s = jax.nn.sigmoid(gates * g_scale)        # single EUP pass, 4H lanes
        act = s * g_scale + g_off                  # g lanes -> tanh, rest -> sigmoid
        i_g = act[:, 0:H]
        f_g = act[:, H:2 * H]
        g_g = act[:, 2 * H:3 * H]
        o_g = act[:, 3 * H:4 * H]
        c_new = f_g * c_prev + i_g * g_g
        h_new = o_g * jnp.tanh(c_new)
        return h_new, c_new

    # --- phase 3: sequential LSTM recurrence over the main timesteps --------
    whh = whh_ref[...]                             # [H, 4H]
    h = jnp.zeros((N, H), jnp.float32)
    c = jnp.zeros((N, H), jnp.float32)
    for t in range(n_main):
        gates = gx_all[t * N:(t + 1) * N, :] + jnp.dot(
            h, whh, preferred_element_type=jnp.float32)
        h, c = lstm_cell(gates, c)
        o_ref[:, t * H:(t + 1) * H] = h            # VMEM-resident output block

    # --- phase 4: future-prediction step: input = h_last, state = (0, c) ----
    # h0 = 0, so the recurrent h @ W_hh term is skipped entirely.
    gates_fut = jnp.dot(h, wih_ref[...],
                        preferred_element_type=jnp.float32) + bg_ref[...]
    h_fut, _ = lstm_cell(gates_fut, c)
    o_ref[:, n_main * H:(n_main + 1) * H] = h_fut
    # The full [N, T*H] block (T*H = 128 lanes here) is written back to HBM
    # once, lane-dense, after the kernel body completes.


# ----------------------------------------------------------------------------
# Glue (plain JAX): GCN normalization, BN-fold, parameter packing, pallas_call
# ----------------------------------------------------------------------------
def build_norm_adj(edge_index, num_nodes):
    """D^-1/2 (A + I) D^-1/2 as a dense [N, N] matrix (edge flows src -> dst)."""
    src, dst = edge_index[0], edge_index[1]
    a = jnp.zeros((num_nodes, num_nodes), jnp.float32)
    a = a.at[dst, src].add(1.0)
    a = a + jnp.eye(num_nodes, dtype=jnp.float32)     # add_self_loops
    deg = jnp.sum(a, axis=1)
    dinv = jax.lax.rsqrt(jnp.maximum(deg, 1e-12))
    return a * dinv[:, None] * dinv[None, :]


def gcrn_forward(x_seq, edge_index_seq, params, num_layers, activation):
    # TODO(synk): F.dropout with training=True has no deterministic eval
    # semantics; forward here is eval-mode (dropout inactive, BN running stats).
    T, N, CIN = x_seq.shape
    L = num_layers
    TM = T - 1                                         # main (GCN) timesteps
    w_ih = params["lstm"]["w_ih"]                      # [4H, H]
    w_hh = params["lstm"]["w_hh"]                      # [4H, H]
    H = w_hh.shape[1]

    # Normalized adjacency only for the TM used timesteps (the module's
    # trailing convs for t = T-1 are never evaluated).
    a_seq = jnp.stack([build_norm_adj(edge_index_seq[t], N) for t in range(TM)])
    x_main = x_seq[:TM]

    # Fold eval-mode BatchNorm into the conv weights / biases:
    #   BN(A(XW)+b) = A(X (W*s)) + (b*s + (beta - mean*s)),  s = gamma*rsqrt(var+eps)
    scales, shifts = [], []
    for i in range(L):
        gamma, beta, mean, var = params["bns"][i]
        s = gamma * lax.rsqrt(var + BN_EPS)
        scales.append(s)
        shifts.append(beta - mean * s)

    convs = params["convs"]
    w0_seq = jnp.stack([convs[t * L][0] * scales[0][None, :]
                        for t in range(TM)])                               # [TM,CIN,H]
    b0_seq = jnp.stack([(convs[t * L][1] * scales[0] + shifts[0]).reshape(1, H)
                        for t in range(TM)])                               # [TM,1,H]
    n_hi = max(L - 1, 1)
    if L > 1:
        w1_seq = jnp.stack([jnp.stack([convs[t * L + i][0] * scales[i][None, :]
                                       for i in range(1, L)])
                            for t in range(TM)])                           # [TM,L-1,H,H]
        b1_seq = jnp.stack([jnp.stack([(convs[t * L + i][1] * scales[i]
                                        + shifts[i]).reshape(1, H)
                                       for i in range(1, L)])
                            for t in range(TM)])                           # [TM,L-1,1,H]
    else:
        w1_seq = jnp.zeros((TM, 1, H, H), jnp.float32)                     # never read
        b1_seq = jnp.zeros((TM, 1, 1, H), jnp.float32)

    wih_t = w_ih.T                                                         # [H,4H]
    whh_t = w_hh.T                                                         # [H,4H]
    bgate = (params["lstm"]["b_ih"] + params["lstm"]["b_hh"]).reshape(1, 4 * H)

    f32 = lambda v: v.astype(jnp.float32)
    full = lambda shape: pl.BlockSpec(shape, lambda i, _s=shape: (0,) * len(_s))

    out_flat = pl.pallas_call(
        functools.partial(gcrn_kernel, num_layers=L, activation=activation,
                          hidden=H, n_main=TM),
        out_shape=jax.ShapeDtypeStruct((N, T * H), jnp.float32),
        grid=(1,),
        in_specs=[
            full((TM, N, N)), full((TM, N, CIN)),
            full((TM, CIN, H)), full((TM, 1, H)),
            full((TM, n_hi, H, H)), full((TM, n_hi, 1, H)),
            full((H, 4 * H)), full((H, 4 * H)), full((1, 4 * H)),
        ],
        out_specs=full((N, T * H)),
        compiler_params=pltpu.CompilerParams(
            dimension_semantics=("arbitrary",)),
    )(f32(a_seq), f32(x_main), f32(w0_seq), f32(b0_seq), f32(w1_seq), f32(b1_seq),
      f32(wih_t), f32(whh_t), f32(bgate))

    h_all = out_flat.reshape(N, T, H).transpose(1, 0, 2)   # [T, N, H]
    return [h_all[t] for t in range(T)]


# ----------------------------------------------------------------------------
# Pure-JAX reference (for correctness check; BN kept explicit here so the
# host-side BN-fold is validated against it)
# ----------------------------------------------------------------------------
def ref_lstm(x_seq, h0, c0, w_ih, w_hh, b):
    h, c = h0, c0
    H = h.shape[-1]
    hs = []
    for t in range(x_seq.shape[0]):
        gates = x_seq[t] @ w_ih.T + h @ w_hh.T + b
        i = jax.nn.sigmoid(gates[:, :H])
        f = jax.nn.sigmoid(gates[:, H:2 * H])
        g = jnp.tanh(gates[:, 2 * H:3 * H])
        o = jax.nn.sigmoid(gates[:, 3 * H:])
        c = f * c + i * g
        h = o * jnp.tanh(c)
        hs.append(h)
    return jnp.stack(hs), h, c


def ref_forward(x_seq, edge_index_seq, params, num_layers, activation):
    T, N, _ = x_seq.shape
    H = params["lstm"]["w_hh"].shape[1]
    z_list = []
    for t in range(T - 1):
        a_norm = build_norm_adj(edge_index_seq[t], N)
        z = x_seq[t]
        for i in range(num_layers):
            w, b = params["convs"][t * num_layers + i]
            gamma, beta, mean, var = params["bns"][i]
            z = a_norm @ (z @ w) + b
            z = (z - mean) * jax.lax.rsqrt(var + BN_EPS) * gamma + beta
            z = _apply_activation(z, activation)
        z_list.append(z)
    z_stack = jnp.stack(z_list, 0)
    b_all = params["lstm"]["b_ih"] + params["lstm"]["b_hh"]
    zeros = jnp.zeros((N, H), jnp.float32)
    h_seq, h_last, c_last = ref_lstm(z_stack, zeros, zeros,
                                     params["lstm"]["w_ih"],
                                     params["lstm"]["w_hh"], b_all)
    outs = [h_seq[i] for i in range(T - 1)]
    h_fut, _, _ = ref_lstm(h_last[None], jnp.zeros_like(c_last), c_last,
                           params["lstm"]["w_ih"], params["lstm"]["w_hh"], b_all)
    outs.append(h_fut[0])
    return outs


# ----------------------------------------------------------------------------
# Main
# ----------------------------------------------------------------------------
if __name__ == "__main__":
    jax.config.update("jax_default_matmul_precision", "highest")
    # NOTE: bf16 operands (perf suggestion for v6e/v7x) not adopted here to
    # preserve the 2e-4 correctness tolerance against the f32 reference.

    T, N, CIN, H, NUM_LAYERS = 4, 16, 8, 32, 2
    ACTIVATION = "relu"

    key = jax.random.PRNGKey(0)
    keys = iter(jax.random.split(key, 128))
    nrm = lambda shp, s=0.1: s * jax.random.normal(next(keys), shp, jnp.float32)
    uni = lambda shp: jax.random.uniform(next(keys), shp, jnp.float32, 0.5, 1.5)

    # GCNConv weights: T * NUM_LAYERS layers (first of each t: CIN -> H, rest H -> H)
    convs = []
    for t in range(T):
        for i in range(NUM_LAYERS):
            cin = CIN if i == 0 else H
            convs.append((nrm((cin, H)), nrm((H,))))
    # BatchNorm1d params (eval: stored running stats), reused across timesteps
    bns = [(uni((H,)), nrm((H,)), nrm((H,)), uni((H,))) for _ in range(NUM_LAYERS)]
    # Single-layer LSTM (input_size=H, hidden_size=H), PyTorch gate order i,f,g,o
    lstm = dict(w_ih=nrm((4 * H, H)), w_hh=nrm((4 * H, H)),
                b_ih=nrm((4 * H,)), b_hh=nrm((4 * H,)))
    params = dict(convs=convs, bns=bns, lstm=lstm)

    # Inputs: node features per timestep + deterministic symmetric edge lists
    x_seq = jax.random.normal(next(keys), (T, N, CIN), jnp.float32)
    edge_list = []
    for t in range(T):
        i = jnp.arange(N)
        n1 = (i + 1) % N
        n2 = (i + 2 + t) % N
        src = jnp.concatenate([i, n1, i, n2])
        dst = jnp.concatenate([n1, i, n2, i])
        edge_list.append(jnp.stack([src, dst], 0))
    edge_index_seq = jnp.stack(edge_list, 0)       # [T, 2, 4N]

    outs = gcrn_forward(x_seq, edge_index_seq, params, NUM_LAYERS, ACTIVATION)
    outs = [jax.block_until_ready(o) for o in outs]

    refs = ref_forward(x_seq, edge_index_seq, params, NUM_LAYERS, ACTIVATION)
    for got, want in zip(outs, refs):
        assert got.shape == want.shape == (N, H)
        assert jnp.allclose(got, want, atol=2e-4, rtol=2e-4), \
            float(jnp.max(jnp.abs(got - want)))

    print("KERNEL_OK")
</pallas_src>

<mosaic_0001>
module attributes {stable_mosaic.version = 11 : i64} {
  func.func @gcrn_kernel(%arg0: i32, %arg1: memref<3x16x16xf32, #tpu.memory_space<vmem>>, %arg2: memref<3x16x8xf32, #tpu.memory_space<vmem>>, %arg3: memref<3x8x32xf32, #tpu.memory_space<vmem>>, %arg4: memref<3x1x32xf32, #tpu.memory_space<vmem>>, %arg5: memref<3x1x32x32xf32, #tpu.memory_space<vmem>>, %arg6: memref<3x1x1x32xf32, #tpu.memory_space<vmem>>, %arg7: memref<32x128xf32, #tpu.memory_space<vmem>>, %arg8: memref<32x128xf32, #tpu.memory_space<vmem>>, %arg9: memref<1x128xf32, #tpu.memory_space<vmem>>, %arg10: memref<16x128xf32, #tpu.memory_space<vmem>>) attributes {dimension_semantics = [#tpu.dimension_semantics<arbitrary>], iteration_bounds = array<i64: 1>, scalar_prefetch = 0 : i64, scratch_operands = 0 : i64, tpu.core_type = #tpu.core_type<tc>, window_params = [{pipeline_mode = #tpu.pipeline_mode<synchronous>, transform_indices = @transform_0, window_bounds = array<i64: 3, 16, 16>}, {pipeline_mode = #tpu.pipeline_mode<synchronous>, transform_indices = @transform_1, window_bounds = array<i64: 3, 16, 8>}, {pipeline_mode = #tpu.pipeline_mode<synchronous>, transform_indices = @transform_2, window_bounds = array<i64: 3, 8, 32>}, {pipeline_mode = #tpu.pipeline_mode<synchronous>, transform_indices = @transform_3, window_bounds = array<i64: 3, 1, 32>}, {pipeline_mode = #tpu.pipeline_mode<synchronous>, transform_indices = @transform_4, window_bounds = array<i64: 3, 1, 32, 32>}, {pipeline_mode = #tpu.pipeline_mode<synchronous>, transform_indices = @transform_5, window_bounds = array<i64: 3, 1, 1, 32>}, {pipeline_mode = #tpu.pipeline_mode<synchronous>, transform_indices = @transform_6, window_bounds = array<i64: 32, 128>}, {pipeline_mode = #tpu.pipeline_mode<synchronous>, transform_indices = @transform_7, window_bounds = array<i64: 32, 128>}, {pipeline_mode = #tpu.pipeline_mode<synchronous>, transform_indices = @transform_8, window_bounds = array<i64: 1, 128>}, {pipeline_mode = #tpu.pipeline_mode<synchronous>, transform_indices = @transform_9, window_bounds = array<i64: 16, 128>}]} {
    %c0 = arith.constant 0 : index
    %c0_0 = arith.constant 0 : index
    %c0_1 = arith.constant 0 : index
    %0 = vector.load %arg1[%c0, %c0_0, %c0_1] : memref<3x16x16xf32, #tpu.memory_space<vmem>>, vector<1x16x16xf32>
    %1 = vector.shape_cast %0 : vector<1x16x16xf32> to vector<16x16xf32>
    %c0_2 = arith.constant 0 : index
    %c0_3 = arith.constant 0 : index
    %c0_4 = arith.constant 0 : index
    %2 = vector.load %arg2[%c0_2, %c0_3, %c0_4] : memref<3x16x8xf32, #tpu.memory_space<vmem>>, vector<1x16x8xf32>
    %3 = vector.shape_cast %2 : vector<1x16x8xf32> to vector<16x8xf32>
    %c0_5 = arith.constant 0 : index
    %c0_6 = arith.constant 0 : index
    %c0_7 = arith.constant 0 : index
    %4 = vector.load %arg3[%c0_5, %c0_6, %c0_7] : memref<3x8x32xf32, #tpu.memory_space<vmem>>, vector<1x8x32xf32>
    %5 = vector.shape_cast %4 : vector<1x8x32xf32> to vector<8x32xf32>
    %c0_8 = arith.constant 0 : index
    %c0_9 = arith.constant 0 : index
    %c0_10 = arith.constant 0 : index
    %6 = vector.load %arg4[%c0_8, %c0_9, %c0_10] : memref<3x1x32xf32, #tpu.memory_space<vmem>>, vector<1x1x32xf32>
    %7 = vector.shape_cast %6 : vector<1x1x32xf32> to vector<1x32xf32>
    %cst = arith.constant dense<0.000000e+00> : vector<16x32xf32>
    %8 = tpu.matmul %3, %5, %cst {dimension_numbers = #tpu.dot_dimension_numbers<[1], [0], [0], [1], [0, 0, 1, 1], [], []>, precision = #tpu.contract_precision<fp32>} : vector<16x8xf32>, vector<8x32xf32>, vector<16x32xf32> -> vector<16x32xf32>
    %cst_11 = arith.constant dense<0.000000e+00> : vector<16x32xf32>
    %9 = tpu.matmul %1, %8, %cst_11 {dimension_numbers = #tpu.dot_dimension_numbers<[1], [0], [0], [1], [0, 0, 1, 1], [], []>, precision = #tpu.contract_precision<fp32>} : vector<16x16xf32>, vector<16x32xf32>, vector<16x32xf32> -> vector<16x32xf32>
    %10 = vector.broadcast %7 : vector<1x32xf32> to vector<16x32xf32>
    %11 = arith.addf %9, %10 : vector<16x32xf32>
    %cst_12 = arith.constant 0.000000e+00 : f32
    %12 = vector.broadcast %cst_12 : f32 to vector<16x32xf32>
    %13 = arith.maximumf %11, %12 : vector<16x32xf32>
    %c0_13 = arith.constant 0 : index
    %c0_14 = arith.constant 0 : index
    %c0_15 = arith.constant 0 : index
    %c0_16 = arith.constant 0 : index
    %14 = vector.load %arg5[%c0_13, %c0_14, %c0_15, %c0_16] : memref<3x1x32x32xf32, #tpu.memory_space<vmem>>, vector<1x1x32x32xf32>
    %15 = vector.shape_cast %14 : vector<1x1x32x32xf32> to vector<32x32xf32>
    %c0_17 = arith.constant 0 : index
    %c0_18 = arith.constant 0 : index
    %c0_19 = arith.constant 0 : index
    %c0_20 = arith.constant 0 : index
    %16 = vector.load %arg6[%c0_17, %c0_18, %c0_19, %c0_20] : memref<3x1x1x32xf32, #tpu.memory_space<vmem>>, vector<1x1x1x32xf32>
    %17 = vector.shape_cast %16 : vector<1x1x1x32xf32> to vector<1x32xf32>
    %cst_21 = arith.constant dense<0.000000e+00> : vector<16x32xf32>
    %18 = tpu.matmul %13, %15, %cst_21 {dimension_numbers = #tpu.dot_dimension_numbers<[1], [0], [0], [1], [0, 0, 1, 1], [], []>, precision = #tpu.contract_precision<fp32>} : vector<16x32xf32>, vector<32x32xf32>, vector<16x32xf32> -> vector<16x32xf32>
    %cst_22 = arith.constant dense<0.000000e+00> : vector<16x32xf32>
    %19 = tpu.matmul %1, %18, %cst_22 {dimension_numbers = #tpu.dot_dimension_numbers<[1], [0], [0], [1], [0, 0, 1, 1], [], []>, precision = #tpu.contract_precision<fp32>} : vector<16x16xf32>, vector<16x32xf32>, vector<16x32xf32> -> vector<16x32xf32>
    %20 = vector.broadcast %17 : vector<1x32xf32> to vector<16x32xf32>
    %21 = arith.addf %19, %20 : vector<16x32xf32>
    %cst_23 = arith.constant 0.000000e+00 : f32
    %22 = vector.broadcast %cst_23 : f32 to vector<16x32xf32>
    %23 = arith.maximumf %21, %22 : vector<16x32xf32>
    %c1 = arith.constant 1 : index
    %c0_24 = arith.constant 0 : index
    %c0_25 = arith.constant 0 : index
    %24 = vector.load %arg1[%c1, %c0_24, %c0_25] : memref<3x16x16xf32, #tpu.memory_space<vmem>>, vector<1x16x16xf32>
    %25 = vector.shape_cast %24 : vector<1x16x16xf32> to vector<16x16xf32>
    %c1_26 = arith.constant 1 : index
    %c0_27 = arith.constant 0 : index
    %c0_28 = arith.constant 0 : index
    %26 = vector.load %arg2[%c1_26, %c0_27, %c0_28] : memref<3x16x8xf32, #tpu.memory_space<vmem>>, vector<1x16x8xf32>
    %27 = vector.shape_cast %26 : vector<1x16x8xf32> to vector<16x8xf32>
    %c1_29 = arith.constant 1 : index
    %c0_30 = arith.constant 0 : index
    %c0_31 = arith.constant 0 : index
    %28 = vector.load %arg3[%c1_29, %c0_30, %c0_31] : memref<3x8x32xf32, #tpu.memory_space<vmem>>, vector<1x8x32xf32>
    %29 = vector.shape_cast %28 : vector<1x8x32xf32> to vector<8x32xf32>
    %c1_32 = arith.constant 1 : index
    %c0_33 = arith.constant 0 : index
    %c0_34 = arith.constant 0 : index
    %30 = vector.load %arg4[%c1_32, %c0_33, %c0_34] : memref<3x1x32xf32, #tpu.memory_space<vmem>>, vector<1x1x32xf32>
    %31 = vector.shape_cast %30 : vector<1x1x32xf32> to vector<1x32xf32>
    %cst_35 = arith.constant dense<0.000000e+00> : vector<16x32xf32>
    %32 = tpu.matmul %27, %29, %cst_35 {dimension_numbers = #tpu.dot_dimension_numbers<[1], [0], [0], [1], [0, 0, 1, 1], [], []>, precision = #tpu.contract_precision<fp32>} : vector<16x8xf32>, vector<8x32xf32>, vector<16x32xf32> -> vector<16x32xf32>
    %cst_36 = arith.constant dense<0.000000e+00> : vector<16x32xf32>
    %33 = tpu.matmul %25, %32, %cst_36 {dimension_numbers = #tpu.dot_dimension_numbers<[1], [0], [0], [1], [0, 0, 1, 1], [], []>, precision = #tpu.contract_precision<fp32>} : vector<16x16xf32>, vector<16x32xf32>, vector<16x32xf32> -> vector<16x32xf32>
    %34 = vector.broadcast %31 : vector<1x32xf32> to vector<16x32xf32>
    %35 = arith.addf %33, %34 : vector<16x32xf32>
    %cst_37 = arith.constant 0.000000e+00 : f32
    %36 = vector.broadcast %cst_37 : f32 to vector<16x32xf32>
    %37 = arith.maximumf %35, %36 : vector<16x32xf32>
    %c1_38 = arith.constant 1 : index
    %c0_39 = arith.constant 0 : index
    %c0_40 = arith.constant 0 : index
    %c0_41 = arith.constant 0 : index
    %38 = vector.load %arg5[%c1_38, %c0_39, %c0_40, %c0_41] : memref<3x1x32x32xf32, #tpu.memory_space<vmem>>, vector<1x1x32x32xf32>
    %39 = vector.shape_cast %38 : vector<1x1x32x32xf32> to vector<32x32xf32>
    %c1_42 = arith.constant 1 : index
    %c0_43 = arith.constant 0 : index
    %c0_44 = arith.constant 0 : index
    %c0_45 = arith.constant 0 : index
    %40 = vector.load %arg6[%c1_42, %c0_43, %c0_44, %c0_45] : memref<3x1x1x32xf32, #tpu.memory_space<vmem>>, vector<1x1x1x32xf32>
    %41 = vector.shape_cast %40 : vector<1x1x1x32xf32> to vector<1x32xf32>
    %cst_46 = arith.constant dense<0.000000e+00> : vector<16x32xf32>
    %42 = tpu.matmul %37, %39, %cst_46 {dimension_numbers = #tpu.dot_dimension_numbers<[1], [0], [0], [1], [0, 0, 1, 1], [], []>, precision = #tpu.contract_precision<fp32>} : vector<16x32xf32>, vector<32x32xf32>, vector<16x32xf32> -> vector<16x32xf32>
    %cst_47 = arith.constant dense<0.000000e+00> : vector<16x32xf32>
    %43 = tpu.matmul %25, %42, %cst_47 {dimension_numbers = #tpu.dot_dimension_numbers<[1], [0], [0], [1], [0, 0, 1, 1], [], []>, precision = #tpu.contract_precision<fp32>} : vector<16x16xf32>, vector<16x32xf32>, vector<16x32xf32> -> vector<16x32xf32>
    %44 = vector.broadcast %41 : vector<1x32xf32> to vector<16x32xf32>
    %45 = arith.addf %43, %44 : vector<16x32xf32>
    %cst_48 = arith.constant 0.000000e+00 : f32
    %46 = vector.broadcast %cst_48 : f32 to vector<16x32xf32>
    %47 = arith.maximumf %45, %46 : vector<16x32xf32>
    %c2 = arith.constant 2 : index
    %c0_49 = arith.constant 0 : index
    %c0_50 = arith.constant 0 : index
    %48 = vector.load %arg1[%c2, %c0_49, %c0_50] : memref<3x16x16xf32, #tpu.memory_space<vmem>>, vector<1x16x16xf32>
    %49 = vector.shape_cast %48 : vector<1x16x16xf32> to vector<16x16xf32>
    %c2_51 = arith.constant 2 : index
    %c0_52 = arith.constant 0 : index
    %c0_53 = arith.constant 0 : index
    %50 = vector.load %arg2[%c2_51, %c0_52, %c0_53] : memref<3x16x8xf32, #tpu.memory_space<vmem>>, vector<1x16x8xf32>
    %51 = vector.shape_cast %50 : vector<1x16x8xf32> to vector<16x8xf32>
    %c2_54 = arith.constant 2 : index
    %c0_55 = arith.constant 0 : index
    %c0_56 = arith.constant 0 : index
    %52 = vector.load %arg3[%c2_54, %c0_55, %c0_56] : memref<3x8x32xf32, #tpu.memory_space<vmem>>, vector<1x8x32xf32>
    %53 = vector.shape_cast %52 : vector<1x8x32xf32> to vector<8x32xf32>
    %c2_57 = arith.constant 2 : index
    %c0_58 = arith.constant 0 : index
    %c0_59 = arith.constant 0 : index
    %54 = vector.load %arg4[%c2_57, %c0_58, %c0_59] : memref<3x1x32xf32, #tpu.memory_space<vmem>>, vector<1x1x32xf32>
    %55 = vector.shape_cast %54 : vector<1x1x32xf32> to vector<1x32xf32>
    %cst_60 = arith.constant dense<0.000000e+00> : vector<16x32xf32>
    %56 = tpu.matmul %51, %53, %cst_60 {dimension_numbers = #tpu.dot_dimension_numbers<[1], [0], [0], [1], [0, 0, 1, 1], [], []>, precision = #tpu.contract_precision<fp32>} : vector<16x8xf32>, vector<8x32xf32>, vector<16x32xf32> -> vector<16x32xf32>
    %cst_61 = arith.constant dense<0.000000e+00> : vector<16x32xf32>
    %57 = tpu.matmul %49, %56, %cst_61 {dimension_numbers = #tpu.dot_dimension_numbers<[1], [0], [0], [1], [0, 0, 1, 1], [], []>, precision = #tpu.contract_precision<fp32>} : vector<16x16xf32>, vector<16x32xf32>, vector<16x32xf32> -> vector<16x32xf32>
    %58 = vector.broadcast %55 : vector<1x32xf32> to vector<16x32xf32>
    %59 = arith.addf %57, %58 : vector<16x32xf32>
    %cst_62 = arith.constant 0.000000e+00 : f32
    %60 = vector.broadcast %cst_62 : f32 to vector<16x32xf32>
    %61 = arith.maximumf %59, %60 : vector<16x32xf32>
    %c2_63 = arith.constant 2 : index
    %c0_64 = arith.constant 0 : index
    %c0_65 = arith.constant 0 : index
    %c0_66 = arith.constant 0 : index
    %62 = vector.load %arg5[%c2_63, %c0_64, %c0_65, %c0_66] : memref<3x1x32x32xf32, #tpu.memory_space<vmem>>, vector<1x1x32x32xf32>
    %63 = vector.shape_cast %62 : vector<1x1x32x32xf32> to vector<32x32xf32>
    %c2_67 = arith.constant 2 : index
    %c0_68 = arith.constant 0 : index
    %c0_69 = arith.constant 0 : index
    %c0_70 = arith.constant 0 : index
    %64 = vector.load %arg6[%c2_67, %c0_68, %c0_69, %c0_70] : memref<3x1x1x32xf32, #tpu.memory_space<vmem>>, vector<1x1x1x32xf32>
    %65 = vector.shape_cast %64 : vector<1x1x1x32xf32> to vector<1x32xf32>
    %cst_71 = arith.constant dense<0.000000e+00> : vector<16x32xf32>
    %66 = tpu.matmul %61, %63, %cst_71 {dimension_numbers = #tpu.dot_dimension_numbers<[1], [0], [0], [1], [0, 0, 1, 1], [], []>, precision = #tpu.contract_precision<fp32>} : vector<16x32xf32>, vector<32x32xf32>, vector<16x32xf32> -> vector<16x32xf32>
    %cst_72 = arith.constant dense<0.000000e+00> : vector<16x32xf32>
    %67 = tpu.matmul %49, %66, %cst_72 {dimension_numbers = #tpu.dot_dimension_numbers<[1], [0], [0], [1], [0, 0, 1, 1], [], []>, precision = #tpu.contract_precision<fp32>} : vector<16x16xf32>, vector<16x32xf32>, vector<16x32xf32> -> vector<16x32xf32>
    %68 = vector.broadcast %65 : vector<1x32xf32> to vector<16x32xf32>
    %69 = arith.addf %67, %68 : vector<16x32xf32>
    %cst_73 = arith.constant 0.000000e+00 : f32
    %70 = vector.broadcast %cst_73 : f32 to vector<16x32xf32>
    %71 = arith.maximumf %69, %70 : vector<16x32xf32>
    %72 = tpu.concatenate %23, %47, %71 in 0 : vector<16x32xf32>, vector<16x32xf32>, vector<16x32xf32> -> vector<48x32xf32>
    %c0_74 = arith.constant 0 : index
    %c0_75 = arith.constant 0 : index
    %73 = vector.load %arg7[%c0_74, %c0_75] : memref<32x128xf32, #tpu.memory_space<vmem>>, vector<32x128xf32>
    %cst_76 = arith.constant dense<0.000000e+00> : vector<48x128xf32>
    %74 = tpu.matmul %72, %73, %cst_76 {dimension_numbers = #tpu.dot_dimension_numbers<[1], [0], [0], [1], [0, 0, 1, 1], [], []>, precision = #tpu.contract_precision<fp32>} : vector<48x32xf32>, vector<32x128xf32>, vector<48x128xf32> -> vector<48x128xf32>
    %c0_77 = arith.constant 0 : index
    %c0_78 = arith.constant 0 : index
    %75 = vector.load %arg9[%c0_77, %c0_78] : memref<1x128xf32, #tpu.memory_space<vmem>>, vector<1x128xf32>
    %76 = vector.broadcast %75 : vector<1x128xf32> to vector<48x128xf32>
    %77 = arith.addf %74, %76 : vector<48x128xf32>
    %78 = tpu.iota {dimensions = array<i32: 1>} : vector<16x128xi32>
    %c64_i32 = arith.constant 64 : i32
    %79 = vector.broadcast %c64_i32 : i32 to vector<16x128xi32>
    %80 = arith.cmpi sge, %78, %79 : vector<16x128xi32>
    %c96_i32 = arith.constant 96 : i32
    %81 = vector.broadcast %c96_i32 : i32 to vector<16x128xi32>
    %82 = arith.cmpi slt, %78, %81 : vector<16x128xi32>
    %83 = arith.andi %80, %82 : vector<16x128xi1>
    %cst_79 = arith.constant 2.000000e+00 : f32
    %cst_80 = arith.constant 1.000000e+00 : f32
    %84 = vector.broadcast %cst_79 : f32 to vector<16x128xf32>
    %85 = vector.broadcast %cst_80 : f32 to vector<16x128xf32>
    %86 = arith.select %83, %84, %85 : vector<16x128xi1>, vector<16x128xf32>
    %cst_81 = arith.constant -1.000000e+00 : f32
    %cst_82 = arith.constant 0.000000e+00 : f32
    %87 = vector.broadcast %cst_81 : f32 to vector<16x128xf32>
    %88 = vector.broadcast %cst_82 : f32 to vector<16x128xf32>
    %89 = arith.select %83, %87, %88 : vector<16x128xi1>, vector<16x128xf32>
    %c0_83 = arith.constant 0 : index
    %c0_84 = arith.constant 0 : index
    %90 = vector.load %arg8[%c0_83, %c0_84] : memref<32x128xf32, #tpu.memory_space<vmem>>, vector<32x128xf32>
    %cst_85 = arith.constant 0.000000e+00 : f32
    %91 = vector.broadcast %cst_85 : f32 to vector<16x32xf32>
    %cst_86 = arith.constant 0.000000e+00 : f32
    %92 = vector.broadcast %cst_86 : f32 to vector<16x32xf32>
    %93 = vector.extract_strided_slice %77 {offsets = [0, 0], sizes = [16, 128], strides = [1, 1]} : vector<48x128xf32> to vector<16x128xf32>
    %cst_87 = arith.constant dense<0.000000e+00> : vector<16x128xf32>
    %94 = tpu.matmul %91, %90, %cst_87 {dimension_numbers = #tpu.dot_dimension_numbers<[1], [0], [0], [1], [0, 0, 1, 1], [], []>, precision = #tpu.contract_precision<fp32>} : vector<16x32xf32>, vector<32x128xf32>, vector<16x128xf32> -> vector<16x128xf32>
    %95 = arith.addf %93, %94 : vector<16x128xf32>
    %96 = arith.mulf %95, %86 : vector<16x128xf32>
    %97 = arith.negf %96 : vector<16x128xf32>
    %98 = math.exp %97 : vector<16x128xf32>
    %cst_88 = arith.constant 1.000000e+00 : f32
    %99 = vector.broadcast %cst_88 : f32 to vector<16x128xf32>
    %100 = arith.addf %99, %98 : vector<16x128xf32>
    %101 = arith.divf %99, %100 : vector<16x128xf32>
    %102 = arith.mulf %101, %86 : vector<16x128xf32>
    %103 = arith.addf %102, %89 : vector<16x128xf32>
    %104 = vector.extract_strided_slice %103 {offsets = [0, 0], sizes = [16, 32], strides = [1, 1]} : vector<16x128xf32> to vector<16x32xf32>
    %105 = vector.extract_strided_slice %103 {offsets = [0, 32], sizes = [16, 32], strides = [1, 1]} : vector<16x128xf32> to vector<16x32xf32>
    %106 = vector.extract_strided_slice %103 {offsets = [0, 64], sizes = [16, 32], strides = [1, 1]} : vector<16x128xf32> to vector<16x32xf32>
    %107 = vector.extract_strided_slice %103 {offsets = [0, 96], sizes = [16, 32], strides = [1, 1]} : vector<16x128xf32> to vector<16x32xf32>
    %108 = arith.mulf %105, %92 : vector<16x32xf32>
    %109 = arith.mulf %104, %106 : vector<16x32xf32>
    %110 = arith.addf %108, %109 : vector<16x32xf32>
    %111 = math.tanh %110 : vector<16x32xf32>
    %112 = arith.mulf %107, %111 : vector<16x32xf32>
    %c0_89 = arith.constant 0 : index
    %c0_90 = arith.constant 0 : index
    %113 = vector.load %arg10[%c0_89, %c0_90] : memref<16x128xf32, #tpu.memory_space<vmem>>, vector<16x32xf32>
    tpu.vector_store %arg10[%c0_89, %c0_90], %112 {strides = array<i32>} : memref<16x128xf32, #tpu.memory_space<vmem>>, vector<16x32xf32>,
    %114 = vector.extract_strided_slice %77 {offsets = [16, 0], sizes = [16, 128], strides = [1, 1]} : vector<48x128xf32> to vector<16x128xf32>
    %cst_91 = arith.constant dense<0.000000e+00> : vector<16x128xf32>
    %115 = tpu.matmul %112, %90, %cst_91 {dimension_numbers = #tpu.dot_dimension_numbers<[1], [0], [0], [1], [0, 0, 1, 1], [], []>, precision = #tpu.contract_precision<fp32>} : vector<16x32xf32>, vector<32x128xf32>, vector<16x128xf32> -> vector<16x128xf32>
    %116 = arith.addf %114, %115 : vector<16x128xf32>
    %117 = arith.mulf %116, %86 : vector<16x128xf32>
    %118 = arith.negf %117 : vector<16x128xf32>
    %119 = math.exp %118 : vector<16x128xf32>
    %cst_92 = arith.constant 1.000000e+00 : f32
    %120 = vector.broadcast %cst_92 : f32 to vector<16x128xf32>
    %121 = arith.addf %120, %119 : vector<16x128xf32>
    %122 = arith.divf %120, %121 : vector<16x128xf32>
    %123 = arith.mulf %122, %86 : vector<16x128xf32>
    %124 = arith.addf %123, %89 : vector<16x128xf32>
    %125 = vector.extract_strided_slice %124 {offsets = [0, 0], sizes = [16, 32], strides = [1, 1]} : vector<16x128xf32> to vector<16x32xf32>
    %126 = vector.extract_strided_slice %124 {offsets = [0, 32], sizes = [16, 32], strides = [1, 1]} : vector<16x128xf32> to vector<16x32xf32>
    %127 = vector.extract_strided_slice %124 {offsets = [0, 64], sizes = [16, 32], strides = [1, 1]} : vector<16x128xf32> to vector<16x32xf32>
    %128 = vector.extract_strided_slice %124 {offsets = [0, 96], sizes = [16, 32], strides = [1, 1]} : vector<16x128xf32> to vector<16x32xf32>
    %129 = arith.mulf %126, %110 : vector<16x32xf32>
    %130 = arith.mulf %125, %127 : vector<16x32xf32>
    %131 = arith.addf %129, %130 : vector<16x32xf32>
    %132 = math.tanh %131 : vector<16x32xf32>
    %133 = arith.mulf %128, %132 : vector<16x32xf32>
    %c0_93 = arith.constant 0 : index
    %c32 = arith.constant 32 : index
    %134 = vector.load %arg10[%c0_93, %c32] : memref<16x128xf32, #tpu.memory_space<vmem>>, vector<16x32xf32>
    tpu.vector_store %arg10[%c0_93, %c32], %133 {strides = array<i32>} : memref<16x128xf32, #tpu.memory_space<vmem>>, vector<16x32xf32>,
    %135 = vector.extract_strided_slice %77 {offsets = [32, 0], sizes = [16, 128], strides = [1, 1]} : vector<48x128xf32> to vector<16x128xf32>
    %cst_94 = arith.constant dense<0.000000e+00> : vector<16x128xf32>
    %136 = tpu.matmul %133, %90, %cst_94 {dimension_numbers = #tpu.dot_dimension_numbers<[1], [0], [0], [1], [0, 0, 1, 1], [], []>, precision = #tpu.contract_precision<fp32>} : vector<16x32xf32>, vector<32x128xf32>, vector<16x128xf32> -> vector<16x128xf32>
    %137 = arith.addf %135, %136 : vector<16x128xf32>
    %138 = arith.mulf %137, %86 : vector<16x128xf32>
    %139 = arith.negf %138 : vector<16x128xf32>
    %140 = math.exp %139 : vector<16x128xf32>
    %cst_95 = arith.constant 1.000000e+00 : f32
    %141 = vector.broadcast %cst_95 : f32 to vector<16x128xf32>
    %142 = arith.addf %141, %140 : vector<16x128xf32>
    %143 = arith.divf %141, %142 : vector<16x128xf32>
    %144 = arith.mulf %143, %86 : vector<16x128xf32>
    %145 = arith.addf %144, %89 : vector<16x128xf32>
    %146 = vector.extract_strided_slice %145 {offsets = [0, 0], sizes = [16, 32], strides = [1, 1]} : vector<16x128xf32> to vector<16x32xf32>
    %147 = vector.extract_strided_slice %145 {offsets = [0, 32], sizes = [16, 32], strides = [1, 1]} : vector<16x128xf32> to vector<16x32xf32>
    %148 = vector.extract_strided_slice %145 {offsets = [0, 64], sizes = [16, 32], strides = [1, 1]} : vector<16x128xf32> to vector<16x32xf32>
    %149 = vector.extract_strided_slice %145 {offsets = [0, 96], sizes = [16, 32], strides = [1, 1]} : vector<16x128xf32> to vector<16x32xf32>
    %150 = arith.mulf %147, %131 : vector<16x32xf32>
    %151 = arith.mulf %146, %148 : vector<16x32xf32>
    %152 = arith.addf %150, %151 : vector<16x32xf32>
    %153 = math.tanh %152 : vector<16x32xf32>
    %154 = arith.mulf %149, %153 : vector<16x32xf32>
    %c0_96 = arith.constant 0 : index
    %c64 = arith.constant 64 : index
    %155 = vector.load %arg10[%c0_96, %c64] : memref<16x128xf32, #tpu.memory_space<vmem>>, vector<16x32xf32>
    tpu.vector_store %arg10[%c0_96, %c64], %154 {strides = array<i32>} : memref<16x128xf32, #tpu.memory_space<vmem>>, vector<16x32xf32>,
    %c0_97 = arith.constant 0 : index
    %c0_98 = arith.constant 0 : index
    %156 = vector.load %arg7[%c0_97, %c0_98] : memref<32x128xf32, #tpu.memory_space<vmem>>, vector<32x128xf32>
    %cst_99 = arith.constant dense<0.000000e+00> : vector<16x128xf32>
    %157 = tpu.matmul %154, %156, %cst_99 {dimension_numbers = #tpu.dot_dimension_numbers<[1], [0], [0], [1], [0, 0, 1, 1], [], []>, precision = #tpu.contract_precision<fp32>} : vector<16x32xf32>, vector<32x128xf32>, vector<16x128xf32> -> vector<16x128xf32>
    %c0_100 = arith.constant 0 : index
    %c0_101 = arith.constant 0 : index
    %158 = vector.load %arg9[%c0_100, %c0_101] : memref<1x128xf32, #tpu.memory_space<vmem>>, vector<1x128xf32>
    %159 = vector.broadcast %158 : vector<1x128xf32> to vector<16x128xf32>
    %160 = arith.addf %157, %159 : vector<16x128xf32>
    %161 = arith.mulf %160, %86 : vector<16x128xf32>
    %162 = arith.negf %161 : vector<16x128xf32>
    %163 = math.exp %162 : vector<16x128xf32>
    %cst_102 = arith.constant 1.000000e+00 : f32
    %164 = vector.broadcast %cst_102 : f32 to vector<16x128xf32>
    %165 = arith.addf %164, %163 : vector<16x128xf32>
    %166 = arith.divf %164, %165 : vector<16x128xf32>
    %167 = arith.mulf %166, %86 : vector<16x128xf32>
    %168 = arith.addf %167, %89 : vector<16x128xf32>
    %169 = vector.extract_strided_slice %168 {offsets = [0, 0], sizes = [16, 32], strides = [1, 1]} : vector<16x128xf32> to vector<16x32xf32>
    %170 = vector.extract_strided_slice %168 {offsets = [0, 32], sizes = [16, 32], strides = [1, 1]} : vector<16x128xf32> to vector<16x32xf32>
    %171 = vector.extract_strided_slice %168 {offsets = [0, 64], sizes = [16, 32], strides = [1, 1]} : vector<16x128xf32> to vector<16x32xf32>
    %172 = vector.extract_strided_slice %168 {offsets = [0, 96], sizes = [16, 32], strides = [1, 1]} : vector<16x128xf32> to vector<16x32xf32>
    %173 = arith.mulf %170, %152 : vector<16x32xf32>
    %174 = arith.mulf %169, %171 : vector<16x32xf32>
    %175 = arith.addf %173, %174 : vector<16x32xf32>
    %176 = math.tanh %175 : vector<16x32xf32>
    %177 = arith.mulf %172, %176 : vector<16x32xf32>
    %c0_103 = arith.constant 0 : index
    %c96 = arith.constant 96 : index
    %178 = vector.load %arg10[%c0_103, %c96] : memref<16x128xf32, #tpu.memory_space<vmem>>, vector<16x32xf32>
    tpu.vector_store %arg10[%c0_103, %c96], %177 {strides = array<i32>} : memref<16x128xf32, #tpu.memory_space<vmem>>, vector<16x32xf32>,
    return
  }
  func.func @transform_0(%arg0: i32) -> (i32, i32, i32) {
    %c0_i32 = arith.constant 0 : i32
    %c0_i32_0 = arith.constant 0 : i32
    %c0_i32_1 = arith.constant 0 : i32
    %c0_i32_2 = arith.constant 0 : i32
    return %c0_i32, %c0_i32_0, %c0_i32_1 : i32, i32, i32
  }
  func.func @transform_1(%arg0: i32) -> (i32, i32, i32) {
    %c0_i32 = arith.constant 0 : i32
    %c0_i32_0 = arith.constant 0 : i32
    %c0_i32_1 = arith.constant 0 : i32
    %c0_i32_2 = arith.constant 0 : i32
    return %c0_i32, %c0_i32_0, %c0_i32_1 : i32, i32, i32
  }
  func.func @transform_2(%arg0: i32) -> (i32, i32, i32) {
    %c0_i32 = arith.constant 0 : i32
    %c0_i32_0 = arith.constant 0 : i32
    %c0_i32_1 = arith.constant 0 : i32
    %c0_i32_2 = arith.constant 0 : i32
    return %c0_i32, %c0_i32_0, %c0_i32_1 : i32, i32, i32
  }
  func.func @transform_3(%arg0: i32) -> (i32, i32, i32) {
    %c0_i32 = arith.constant 0 : i32
    %c0_i32_0 = arith.constant 0 : i32
    %c0_i32_1 = arith.constant 0 : i32
    %c0_i32_2 = arith.constant 0 : i32
    return %c0_i32, %c0_i32_0, %c0_i32_1 : i32, i32, i32
  }
  func.func @transform_4(%arg0: i32) -> (i32, i32, i32, i32) {
    %c0_i32 = arith.constant 0 : i32
    %c0_i32_0 = arith.constant 0 : i32
    %c0_i32_1 = arith.constant 0 : i32
    %c0_i32_2 = arith.constant 0 : i32
    %c0_i32_3 = arith.constant 0 : i32
    return %c0_i32, %c0_i32_0, %c0_i32_1, %c0_i32_2 : i32, i32, i32, i32
  }
  func.func @transform_5(%arg0: i32) -> (i32, i32, i32, i32) {
    %c0_i32 = arith.constant 0 : i32
    %c0_i32_0 = arith.constant 0 : i32
    %c0_i32_1 = arith.constant 0 : i32
    %c0_i32_2 = arith.constant 0 : i32
    %c0_i32_3 = arith.constant 0 : i32
    return %c0_i32, %c0_i32_0, %c0_i32_1, %c0_i32_2 : i32, i32, i32, i32
  }
  func.func @transform_6(%arg0: i32) -> (i32, i32) {
    %c0_i32 = arith.constant 0 : i32
    %c0_i32_0 = arith.constant 0 : i32
    %c0_i32_1 = arith.constant 0 : i32
    return %c0_i32, %c0_i32_0 : i32, i32
  }
  func.func @transform_7(%arg0: i32) -> (i32, i32) {
    %c0_i32 = arith.constant 0 : i32
    %c0_i32_0 = arith.constant 0 : i32
    %c0_i32_1 = arith.constant 0 : i32
    return %c0_i32, %c0_i32_0 : i32, i32
  }
  func.func @transform_8(%arg0: i32) -> (i32, i32) {
    %c0_i32 = arith.constant 0 : i32
    %c0_i32_0 = arith.constant 0 : i32
    %c0_i32_1 = arith.constant 0 : i32
    return %c0_i32, %c0_i32_0 : i32, i32
  }
  func.func @transform_9(%arg0: i32) -> (i32, i32) {
    %c0_i32 = arith.constant 0 : i32
    %c0_i32_0 = arith.constant 0 : i32
    %c0_i32_1 = arith.constant 0 : i32
    return %c0_i32, %c0_i32_0 : i32, i32
  }
}

</mosaic_0001>

<llo_original>
// kernel: tpu_custom_call.1
$region0: #{tpu_custom_call.1}
  #allocation0 [shape = 'u32[]', space=smem, size = 0x4, offset = 0x4, fixed_abs, tag = 'smem constant byte address 0x4 - core index']
  #allocation1 [shape = 'u32[144,128]{1,0:T(1,128)}', space=vmem, size = 0x12000, scoped, tag = 'internal scratch']
  %s0 = inlined_call_operand.vmem [shape: f32[3,16,16], index: 0, kind: input, shape index: {}]
  %s1 = inlined_call_operand.vmem [shape: f32[3,16,8], index: 1, kind: input, shape index: {}]
  %s2 = inlined_call_operand.hbm [shape: f32[3,8,32], index: 2, kind: input, shape index: {}]
  %s3 = inlined_call_operand.vmem [shape: f32[3,1,32], index: 3, kind: input, shape index: {}]
  %s4 = inlined_call_operand.hbm [shape: f32[3,1,32,32], index: 4, kind: input, shape index: {}]
  %s5 = inlined_call_operand.vmem [shape: f32[3,1,1,32], index: 5, kind: input, shape index: {}]
  %s6 = inlined_call_operand.vmem [shape: f32[32,128], index: 6, kind: input, shape index: {}]
  %s7 = inlined_call_operand.hbm [shape: f32[32,128], index: 7, kind: input, shape index: {}]
  %s8 = inlined_call_operand.vmem [shape: f32[1,128], index: 8, kind: input, shape index: {}]
  %s9 = inlined_call_operand.hbm [shape: f32[16,128], index: 9, kind: output, shape index: {}]
  %s10 = sld [smem:[#allocation0]]
  $region58: #{tpu_custom_call.1} parent=0
    _
  %s12 = ssub.s32 1, %s10
  %s13 = scalar_select 0, %s12, %s10
  $region1: #{tpu_custom_call.1} parent=0
    #allocation2 [shape = 'u8[12288]{0}', space=vmem, size = 0x3000, scoped, tag = 'input window, operand 2, single buffered']
    #allocation3 [shape = 's32[1]{0}', space=sflag, size = 0x4, scoped, tag = 'scoped memory for tpu_custom_call.1']
    #allocation4 [shape = 's32[1]{0}', space=sflag, size = 0x4, scoped, tag = 'scoped memory for tpu_custom_call.1']
    #allocation5 [shape = 'u8[49152]{0}', space=vmem, size = 0xc000, scoped, tag = 'input window, operand 4, single buffered']
    #allocation6 [shape = 's32[1]{0}', space=sflag, size = 0x4, scoped, tag = 'scoped memory for tpu_custom_call.1']
    #allocation7 [shape = 'u8[16384]{0}', space=vmem, size = 0x4000, scoped, tag = 'input window, operand 7, single buffered']
    #allocation8 [shape = 'u8[8192]{0}', space=vmem, size = 0x2000, scoped, tag = 'output window, operand 0, single buffered']
    %14 = vsyncpa [#allocation3], 0
    %15 = vsyncpa [#allocation6], 0
    %16 = vsyncpa [#allocation4], 0
    // Predicated region
    $region2: #{tpu_custom_call.1} parent=1 // pred_check
      _
    $region3: #{tpu_custom_call.1} parent=1 // pred_check_branch
      %18 = sbr.rel (0) target = $region5
    $region4: #{tpu_custom_call.1} parent=1 // pred_region
      _
    $region5: #{tpu_custom_call.1} parent=1 // pred_fallthru
      _
    // Predicated region
    $region6: #{tpu_custom_call.1} parent=1 // pred_check
      _
    $region7: #{tpu_custom_call.1} parent=1 // pred_check_branch
      %20 = sbr.rel (0) target = $region9
    $region8: #{tpu_custom_call.1} parent=1 // pred_region
      _
    $region9: #{tpu_custom_call.1} parent=1 // pred_fallthru
      _
    // Predicated region
    $region10: #{tpu_custom_call.1} parent=1 // pred_check
      _
    $region11: #{tpu_custom_call.1} parent=1 // pred_check_branch
      %22 = sbr.rel (0) target = $region13
    $region12: #{tpu_custom_call.1} parent=1 // pred_region
      %s24 = ssub.s32 384, 384
      %25 = vsyncadd [#allocation3], %s24
      %s26 = sshll.u32 [#allocation2], 4
      %s27 = int_to_ptr.vmem [resolvable:$true] %s26
      %32 = dma.hbm_to_vmem [thread:$0]  %s2, 384, %s27, [#allocation3], 128, 128, 8
    $region13: #{tpu_custom_call.1} parent=1 // pred_fallthru
      _
    // Predicated region
    $region14: #{tpu_custom_call.1} parent=1 // pred_check
      _
    $region15: #{tpu_custom_call.1} parent=1 // pred_check_branch
      %34 = sbr.rel (0) target = $region17
    $region16: #{tpu_custom_call.1} parent=1 // pred_region
      _
    $region17: #{tpu_custom_call.1} parent=1 // pred_fallthru
      _
    // Predicated region
    $region18: #{tpu_custom_call.1} parent=1 // pred_check
      _
    $region19: #{tpu_custom_call.1} parent=1 // pred_check_branch
      %36 = sbr.rel (0) target = $region21
    $region20: #{tpu_custom_call.1} parent=1 // pred_region
      %s38 = ssub.s32 1536, 1536
      %39 = vsyncadd [#allocation6], %s38
      %s40 = sshll.u32 [#allocation5], 4
      %s41 = int_to_ptr.vmem [resolvable:$true] %s40
      %46 = dma.hbm_to_vmem [thread:$0]  %s4, 1536, %s41, [#allocation6], 128, 128, 8
    $region21: #{tpu_custom_call.1} parent=1 // pred_fallthru
      _
    // Predicated region
    $region22: #{tpu_custom_call.1} parent=1 // pred_check
      _
    $region23: #{tpu_custom_call.1} parent=1 // pred_check_branch
      %48 = sbr.rel (0) target = $region25
    $region24: #{tpu_custom_call.1} parent=1 // pred_region
      _
    $region25: #{tpu_custom_call.1} parent=1 // pred_fallthru
      _
    // Predicated region
    $region26: #{tpu_custom_call.1} parent=1 // pred_check
      _
    $region27: #{tpu_custom_call.1} parent=1 // pred_check_branch
      %50 = sbr.rel (0) target = $region29
    $region28: #{tpu_custom_call.1} parent=1 // pred_region
      _
    $region29: #{tpu_custom_call.1} parent=1 // pred_fallthru
      _
    // Predicated region
    $region30: #{tpu_custom_call.1} parent=1 // pred_check
      _
    $region31: #{tpu_custom_call.1} parent=1 // pred_check_branch
      %52 = sbr.rel (0) target = $region33
    $region32: #{tpu_custom_call.1} parent=1 // pred_region
      %s54 = ssub.s32 512, 512
      %55 = vsyncadd [#allocation6], %s54
      %s56 = sshll.u32 [#allocation7], 4
      %s57 = int_to_ptr.vmem [resolvable:$true] %s56
      %62 = dma.hbm_to_vmem [thread:$0]  %s7, 512, %s57, [#allocation6], 128, 128, 8
    $region33: #{tpu_custom_call.1} parent=1 // pred_fallthru
      _
    // Predicated region
    $region34: #{tpu_custom_call.1} parent=1 // pred_check
      _
    $region35: #{tpu_custom_call.1} parent=1 // pred_check_branch
      %64 = sbr.rel (0) target = $region37
    $region36: #{tpu_custom_call.1} parent=1 // pred_region
      _
    $region37: #{tpu_custom_call.1} parent=1 // pred_fallthru
      _
    // Predicated region
    $region38: #{tpu_custom_call.1} parent=1 // pred_check
      _
    $region39: #{tpu_custom_call.1} parent=1 // pred_check_branch
      %66 = sbr.rel (0) target = $region41
    $region40: #{tpu_custom_call.1} parent=1 // pred_region
      %67 = dma.done [#allocation3], 384
    $region41: #{tpu_custom_call.1} parent=1 // pred_fallthru
      _
    // Predicated region
    $region42: #{tpu_custom_call.1} parent=1 // pred_check
      _
    $region43: #{tpu_custom_call.1} parent=1 // pred_check_branch
      %69 = sbr.rel (0) target = $region45
    $region44: #{tpu_custom_call.1} parent=1 // pred_region
      %70 = dma.done [#allocation6], 1536
    $region45: #{tpu_custom_call.1} parent=1 // pred_fallthru
      _
    // Predicated region
    $region46: #{tpu_custom_call.1} parent=1 // pred_check
      _
    $region47: #{tpu_custom_call.1} parent=1 // pred_check_branch
      %72 = sbr.rel (0) target = $region49
    $region48: #{tpu_custom_call.1} parent=1 // pred_region
      %73 = dma.done [#allocation6], 512
    $region49: #{tpu_custom_call.1} parent=1 // pred_fallthru
      _
    %v74 = vld [vmem:[%s0] sm:$0xff]
    %v75 = vld [vmem:[%s0 + $0x8] sm:$0xff]
    %v76 = vld [vmem:[%s1] sm:$0xff]
    %v77 = vld [vmem:[%s1 + $0x8] sm:$0xff]
    %v78 = vld [vmem:[#allocation2] sm:$0xff]
    %v79 = vld [vmem:[%s3] sm:$0x1]
    %vm80 = vcmask 64512
    %v82 = vsel %vm80, %v76, 0
    %v85 = vsel %vm80, %v77, 0
    %87 = vmatprep.subr.mxu0 0.0
    %v88 = vand.u32 %v78, 4294901760
    %89 = vmatpush1.msra.mxu0 %v88
    %90 = vmatprep.subr.mxu0 0.0
    %91 = vmatpush1.msra.mxu0 0.0
    %92 = vmatprep.subr.mxu0 0.0
    %93 = vmatpush1.msra.mxu0 0.0
    %94 = vmatprep.subr.mxu0 0.0
    %95 = vmatpush1.msra.mxu0 0.0
    %96 = vmatprep.subr.mxu0 0.0
    %97 = vmatpush1.msra.mxu0 0.0
    %98 = vmatprep.subr.mxu0 0.0
    %99 = vmatpush1.msra.mxu0 0.0
    %100 = vmatprep.subr.mxu0 0.0
    %101 = vmatpush1.msra.mxu0 0.0
    %102 = vmatprep.subr.mxu0 0.0
    %103 = vmatpush1.msra.mxu0 0.0
    %104 = vmatprep.subr.mxu0 0.0
    %105 = vmatpush1.msra.mxu0 0.0
    %106 = vmatprep.subr.mxu0 0.0
    %107 = vmatpush1.msra.mxu0 0.0
    %108 = vmatprep.subr.mxu0 0.0
    %109 = vmatpush1.msra.mxu0 0.0
    %110 = vmatprep.subr.mxu0 0.0
    %111 = vmatpush1.msra.mxu0 0.0
    %112 = vmatprep.subr.mxu0 0.0
    %113 = vmatpush1.msra.mxu0 0.0
    %114 = vmatprep.subr.mxu0 0.0
    %115 = vmatpush1.msra.mxu0 0.0
    %116 = vmatprep.subr.mxu0 0.0
    %117 = vmatpush1.msra.mxu0 0.0
    %118 = vmatprep.subr.mxu0 0.0
    %119 = vmatpush1.msra.mxu0 0.0
    %120 = vmatprep.subr.mxu0 0.0
    %121 = vmatpush1.msra.mxu0 0.0
    %122 = vmatprep.subr.mxu0 0.0
    %123 = vmatpush1.msra.mxu0 0.0
    %124 = vmatprep.subr.mxu0 0.0
    %125 = vmatpush1.msra.mxu0 0.0
    %126 = vmatprep.subr.mxu0 0.0
    %127 = vmatpush1.msra.mxu0 0.0
    %128 = vmatprep.subr.mxu0 0.0
    %129 = vmatpush1.msra.mxu0 0.0
    %130 = vmatprep.subr.mxu0 0.0
    %131 = vmatpush1.msra.mxu0 0.0
    %132 = vmatprep.subr.mxu0 0.0
    %133 = vmatpush1.msra.mxu0 0.0
    %134 = vmatprep.subr.mxu0 0.0
    %135 = vmatpush1.msra.mxu0 0.0
    %136 = vmatprep.subr.mxu0 0.0
    %137 = vmatpush1.msra.mxu0 0.0
    %138 = vmatprep.subr.mxu0 0.0
    %139 = vmatpush1.msra.mxu0 0.0
    %140 = vmatprep.subr.mxu0 0.0
    %141 = vmatpush1.msra.mxu0 0.0
    %142 = vmatprep.subr.mxu0 0.0
    %143 = vmatpush1.msra.mxu0 0.0
    %144 = vmatprep.subr.mxu0 0.0
    %145 = vmatpush1.msra.mxu0 0.0
    %146 = vmatprep.subr.mxu0 0.0
    %147 = vmatpush1.msra.mxu0 0.0
    %148 = vmatprep.subr.mxu0 0.0
    %149 = vmatpush1.msra.mxu0 0.0
    %150 = vmatprep.subr.mxu0 0.0
    %151 = vmatpush1.msra.mxu0 0.0
    %152 = vmatprep.mubr.f32.mxu0 0.0
    %v153 = vand.u32 %v82, 4294901760
    %v154 = vsub.f32 %v82, %v153
    %v155 = vand.u32 %v154, 4294901760
    %v156 = vsub.f32 %v154, %v155
    %v157 = vand.u32 %v156, 4294901760
    %158 = vmatmul.mubr.f32.gmra.mrb[0].mxu0 %v157
    %v159 = vpop.f32.mrb[0].mxu0
    %v160 = vadd.f32 0.0, %v159
    %v161 = vpop.f32.mrb[0].mxu0
    %162 = vmatprep.mubr.f32.mxu0 0.0
    %v163 = vand.u32 %v85, 4294901760
    %v164 = vsub.f32 %v85, %v163
    %v165 = vand.u32 %v164, 4294901760
    %v166 = vsub.f32 %v164, %v165
    %v167 = vand.u32 %v166, 4294901760
    %168 = vmatmul.mubr.f32.gmra.mrb[0].mxu0 %v167
    %v169 = vpop.f32.mrb[0].mxu0
    %v170 = vadd.f32 0.0, %v169
    %v171 = vpop.f32.mrb[0].mxu0
    %172 = vdwg.mxu0
    %173 = vmatprep.subr.mxu0 0.0
    %v174 = vand.u32 %v78, 4294901760
    %v175 = vsub.f32 %v78, %v174
    %v176 = vand.u32 %v175, 4294901760
    %v177 = vsub.f32 %v175, %v176
    %v178 = vand.u32 %v177, 4294901760
    %179 = vmatpush1.msra.mxu0 %v178
    %180 = vmatprep.subr.mxu0 0.0
    %181 = vmatpush1.msra.mxu0 0.0
    %182 = vmatprep.subr.mxu0 0.0
    %183 = vmatpush1.msra.mxu0 0.0
    %184 = vmatprep.subr.mxu0 0.0
    %185 = vmatpush1.msra.mxu0 0.0
    %186 = vmatprep.subr.mxu0 0.0
    %187 = vmatpush1.msra.mxu0 0.0
    %188 = vmatprep.subr.mxu0 0.0
    %189 = vmatpush1.msra.mxu0 0.0
    %190 = vmatprep.subr.mxu0 0.0
    %191 = vmatpush1.msra.mxu0 0.0
    %192 = vmatprep.subr.mxu0 0.0
    %193 = vmatpush1.msra.mxu0 0.0
    %194 = vmatprep.subr.mxu0 0.0
    %195 = vmatpush1.msra.mxu0 0.0
    %196 = vmatprep.subr.mxu0 0.0
    %197 = vmatpush1.msra.mxu0 0.0
    %198 = vmatprep.subr.mxu0 0.0
    %199 = vmatpush1.msra.mxu0 0.0
    %200 = vmatprep.subr.mxu0 0.0
    %201 = vmatpush1.msra.mxu0 0.0
    %202 = vmatprep.subr.mxu0 0.0
    %203 = vmatpush1.msra.mxu0 0.0
    %204 = vmatprep.subr.mxu0 0.0
    %205 = vmatpush1.msra.mxu0 0.0
    %206 = vmatprep.subr.mxu0 0.0
    %207 = vmatpush1.msra.mxu0 0.0
    %208 = vmatprep.subr.mxu0 0.0
    %209 = vmatpush1.msra.mxu0 0.0
    %210 = vmatprep.subr.mxu0 0.0
    %211 = vmatpush1.msra.mxu0 0.0
    %212 = vmatprep.subr.mxu0 0.0
    %213 = vmatpush1.msra.mxu0 0.0
    %214 = vmatprep.subr.mxu0 0.0
    %215 = vmatpush1.msra.mxu0 0.0
    %216 = vmatprep.subr.mxu0 0.0
    %217 = vmatpush1.msra.mxu0 0.0
    %218 = vmatprep.subr.mxu0 0.0
    %219 = vmatpush1.msra.mxu0 0.0
    %220 = vmatprep.subr.mxu0 0.0
    %221 = vmatpush1.msra.mxu0 0.0
    %222 = vmatprep.subr.mxu0 0.0
    %223 = vmatpush1.msra.mxu0 0.0
    %224 = vmatprep.subr.mxu0 0.0
    %225 = vmatpush1.msra.mxu0 0.0
    %226 = vmatprep.subr.mxu0 0.0
    %227 = vmatpush1.msra.mxu0 0.0
    %228 = vmatprep.subr.mxu0 0.0
    %229 = vmatpush1.msra.mxu0 0.0
    %230 = vmatprep.subr.mxu0 0.0
    %231 = vmatpush1.msra.mxu0 0.0
    %232 = vmatprep.subr.mxu0 0.0
    %233 = vmatpush1.msra.mxu0 0.0
    %234 = vmatprep.subr.mxu0 0.0
    %235 = vmatpush1.msra.mxu0 0.0
    %236 = vmatprep.subr.mxu0 0.0
    %237 = vmatpush1.msra.mxu0 0.0
    %238 = vmatprep.subr.mxu0 0.0
    %239 = vmatpush1.msra.mxu0 0.0
    %240 = vmatprep.subr.mxu0 0.0
    %241 = vmatpush1.msra.mxu0 0.0
    %242 = vmatprep.mubr.f32.mxu0 0.0
    %v243 = vand.u32 %v82, 4294901760
    %244 = vmatmul.mubr.f32.gmra.mrb[0].mxu0 %v243
    %v245 = vpop.f32.mrb[0].mxu0
    %v246 = vadd.f32 %v160, %v245
    %v247 = vpop.f32.mrb[0].mxu0
    %248 = vmatprep.mubr.f32.mxu0 0.0
    %v249 = vand.u32 %v85, 4294901760
    %250 = vmatmul.mubr.f32.gmra.mrb[0].mxu0 %v249
    %v251 = vpop.f32.mrb[0].mxu0
    %v252 = vadd.f32 %v170, %v251
    %v253 = vpop.f32.mrb[0].mxu0
    %254 = vdwg.mxu0
    %255 = vmatprep.subr.mxu0 0.0
    %v256 = vand.u32 %v78, 4294901760
    %v257 = vsub.f32 %v78, %v256
    %258 = vmatpush1.msra.mxu0 %v257
    %259 = vmatprep.subr.mxu0 0.0
    %260 = vmatpush1.msra.mxu0 0.0
    %261 = vmatprep.subr.mxu0 0.0
    %262 = vmatpush1.msra.mxu0 0.0
    %263 = vmatprep.subr.mxu0 0.0
    %264 = vmatpush1.msra.mxu0 0.0
    %265 = vmatprep.subr.mxu0 0.0
    %266 = vmatpush1.msra.mxu0 0.0
    %267 = vmatprep.subr.mxu0 0.0
    %268 = vmatpush1.msra.mxu0 0.0
    %269 = vmatprep.subr.mxu0 0.0
    %270 = vmatpush1.msra.mxu0 0.0
    %271 = vmatprep.subr.mxu0 0.0
    %272 = vmatpush1.msra.mxu0 0.0
    %273 = vmatprep.subr.mxu0 0.0
    %274 = vmatpush1.msra.mxu0 0.0
    %275 = vmatprep.subr.mxu0 0.0
    %276 = vmatpush1.msra.mxu0 0.0
    %277 = vmatprep.subr.mxu0 0.0
    %278 = vmatpush1.msra.mxu0 0.0
    %279 = vmatprep.subr.mxu0 0.0
    %280 = vmatpush1.msra.mxu0 0.0
    %281 = vmatprep.subr.mxu0 0.0
    %282 = vmatpush1.msra.mxu0 0.0
    %283 = vmatprep.subr.mxu0 0.0
    %284 = vmatpush1.msra.mxu0 0.0
    %285 = vmatprep.subr.mxu0 0.0
    %286 = vmatpush1.msra.mxu0 0.0
    %287 = vmatprep.subr.mxu0 0.0
    %288 = vmatpush1.msra.mxu0 0.0
    %289 = vmatprep.subr.mxu0 0.0
    %290 = vmatpush1.msra.mxu0 0.0
    %291 = vmatprep.subr.mxu0 0.0
    %292 = vmatpush1.msra.mxu0 0.0
    %293 = vmatprep.subr.mxu0 0.0
    %294 = vmatpush1.msra.mxu0 0.0
    %295 = vmatprep.subr.mxu0 0.0
    %296 = vmatpush1.msra.mxu0 0.0
    %297 = vmatprep.subr.mxu0 0.0
    %298 = vmatpush1.msra.mxu0 0.0
    %299 = vmatprep.subr.mxu0 0.0
    %300 = vmatpush1.msra.mxu0 0.0
    %301 = vmatprep.subr.mxu0 0.0
    %302 = vmatpush1.msra.mxu0 0.0
    %303 = vmatprep.subr.mxu0 0.0
    %304 = vmatpush1.msra.mxu0 0.0
    %305 = vmatprep.subr.mxu0 0.0
    %306 = vmatpush1.msra.mxu0 0.0
    %307 = vmatprep.subr.mxu0 0.0
    %308 = vmatpush1.msra.mxu0 0.0
    %309 = vmatprep.subr.mxu0 0.0
    %310 = vmatpush1.msra.mxu0 0.0
    %311 = vmatprep.subr.mxu0 0.0
    %312 = vmatpush1.msra.mxu0 0.0
    %313 = vmatprep.subr.mxu0 0.0
    %314 = vmatpush1.msra.mxu0 0.0
    %315 = vmatprep.subr.mxu0 0.0
    %316 = vmatpush1.msra.mxu0 0.0
    %317 = vmatprep.subr.mxu0 0.0
    %318 = vmatpush1.msra.mxu0 0.0
    %319 = vmatprep.subr.mxu0 0.0
    %320 = vmatpush1.msra.mxu0 0.0
    %321 = vmatprep.mubr.f32.mxu0 0.0
    %v322 = vand.u32 %v82, 4294901760
    %v323 = vsub.f32 %v82, %v322
    %324 = vmatmul.mubr.f32.gmra.mrb[0].mxu0 %v323
    %v325 = vpop.f32.mrb[0].mxu0
    %v326 = vadd.f32 %v246, %v325
    %v327 = vpop.f32.mrb[0].mxu0
    %328 = vmatprep.mubr.f32.mxu0 0.0
    %v329 = vand.u32 %v85, 4294901760
    %v330 = vsub.f32 %v85, %v329
    %331 = vmatmul.mubr.f32.gmra.mrb[0].mxu0 %v330
    %v332 = vpop.f32.mrb[0].mxu0
    %v333 = vadd.f32 %v252, %v332
    %v334 = vpop.f32.mrb[0].mxu0
    %335 = vdwg.mxu0
    %336 = vmatprep.subr.mxu0 0.0
    %v337 = vand.u32 %v78, 4294901760
    %338 = vmatpush1.msra.mxu0 %v337
    %339 = vmatprep.subr.mxu0 0.0
    %340 = vmatpush1.msra.mxu0 0.0
    %341 = vmatprep.subr.mxu0 0.0
    %342 = vmatpush1.msra.mxu0 0.0
    %343 = vmatprep.subr.mxu0 0.0
    %344 = vmatpush1.msra.mxu0 0.0
    %345 = vmatprep.subr.mxu0 0.0
    %346 = vmatpush1.msra.mxu0 0.0
    %347 = vmatprep.subr.mxu0 0.0
    %348 = vmatpush1.msra.mxu0 0.0
    %349 = vmatprep.subr.mxu0 0.0
    %350 = vmatpush1.msra.mxu0 0.0
    %351 = vmatprep.subr.mxu0 0.0
    %352 = vmatpush1.msra.mxu0 0.0
    %353 = vmatprep.subr.mxu0 0.0
    %354 = vmatpush1.msra.mxu0 0.0
    %355 = vmatprep.subr.mxu0 0.0
    %356 = vmatpush1.msra.mxu0 0.0
    %357 = vmatprep.subr.mxu0 0.0
    %358 = vmatpush1.msra.mxu0 0.0
    %359 = vmatprep.subr.mxu0 0.0
    %360 = vmatpush1.msra.mxu0 0.0
    %361 = vmatprep.subr.mxu0 0.0
    %362 = vmatpush1.msra.mxu0 0.0
    %363 = vmatprep.subr.mxu0 0.0
    %364 = vmatpush1.msra.mxu0 0.0
    %365 = vmatprep.subr.mxu0 0.0
    %366 = vmatpush1.msra.mxu0 0.0
    %367 = vmatprep.subr.mxu0 0.0
    %368 = vmatpush1.msra.mxu0 0.0
    %369 = vmatprep.subr.mxu0 0.0
    %370 = vmatpush1.msra.mxu0 0.0
    %371 = vmatprep.subr.mxu0 0.0
    %372 = vmatpush1.msra.mxu0 0.0
    %373 = vmatprep.subr.mxu0 0.0
    %374 = vmatpush1.msra.mxu0 0.0
    %375 = vmatprep.subr.mxu0 0.0
    %376 = vmatpush1.msra.mxu0 0.0
    %377 = vmatprep.subr.mxu0 0.0
    %378 = vmatpush1.msra.mxu0 0.0
    %379 = vmatprep.subr.mxu0 0.0
    %380 = vmatpush1.msra.mxu0 0.0
    %381 = vmatprep.subr.mxu0 0.0
    %382 = vmatpush1.msra.mxu0 0.0
    %383 = vmatprep.subr.mxu0 0.0
    %384 = vmatpush1.msra.mxu0 0.0
    %385 = vmatprep.subr.mxu0 0.0
    %386 = vmatpush1.msra.mxu0 0.0
    %387 = vmatprep.subr.mxu0 0.0
    %388 = vmatpush1.msra.mxu0 0.0
    %389 = vmatprep.subr.mxu0 0.0
    %390 = vmatpush1.msra.mxu0 0.0
    %391 = vmatprep.subr.mxu0 0.0
    %392 = vmatpush1.msra.mxu0 0.0
    %393 = vmatprep.subr.mxu0 0.0
    %394 = vmatpush1.msra.mxu0 0.0
    %395 = vmatprep.subr.mxu0 0.0
    %396 = vmatpush1.msra.mxu0 0.0
    %397 = vmatprep.subr.mxu0 0.0
    %398 = vmatpush1.msra.mxu0 0.0
    %399 = vmatprep.subr.mxu0 0.0
    %400 = vmatpush1.msra.mxu0 0.0
    %401 = vmatprep.mubr.f32.mxu0 0.0
    %v402 = vand.u32 %v82, 4294901760
    %v403 = vsub.f32 %v82, %v402
    %v404 = vand.u32 %v403, 4294901760
    %405 = vmatmul.mubr.f32.gmra.mrb[0].mxu0 %v404
    %v406 = vpop.f32.mrb[0].mxu0
    %v407 = vadd.f32 %v326, %v406
    %v408 = vpop.f32.mrb[0].mxu0
    %409 = vmatprep.mubr.f32.mxu0 0.0
    %v410 = vand.u32 %v85, 4294901760
    %v411 = vsub.f32 %v85, %v410
    %v412 = vand.u32 %v411, 4294901760
    %413 = vmatmul.mubr.f32.gmra.mrb[0].mxu0 %v412
    %v414 = vpop.f32.mrb[0].mxu0
    %v415 = vadd.f32 %v333, %v414
    %v416 = vpop.f32.mrb[0].mxu0
    %417 = vdwg.mxu0
    %418 = vmatprep.subr.mxu0 0.0
    %v419 = vand.u32 %v78, 4294901760
    %v420 = vsub.f32 %v78, %v419
    %v421 = vand.u32 %v420, 4294901760
    %422 = vmatpush1.msra.mxu0 %v421
    %423 = vmatprep.subr.mxu0 0.0
    %424 = vmatpush1.msra.mxu0 0.0
    %425 = vmatprep.subr.mxu0 0.0
    %426 = vmatpush1.msra.mxu0 0.0
    %427 = vmatprep.subr.mxu0 0.0
    %428 = vmatpush1.msra.mxu0 0.0
    %429 = vmatprep.subr.mxu0 0.0
    %430 = vmatpush1.msra.mxu0 0.0
    %431 = vmatprep.subr.mxu0 0.0
    %432 = vmatpush1.msra.mxu0 0.0
    %433 = vmatprep.subr.mxu0 0.0
    %434 = vmatpush1.msra.mxu0 0.0
    %435 = vmatprep.subr.mxu0 0.0
    %436 = vmatpush1.msra.mxu0 0.0
    %437 = vmatprep.subr.mxu0 0.0
    %438 = vmatpush1.msra.mxu0 0.0
    %439 = vmatprep.subr.mxu0 0.0
    %440 = vmatpush1.msra.mxu0 0.0
    %441 = vmatprep.subr.mxu0 0.0
    %442 = vmatpush1.msra.mxu0 0.0
    %443 = vmatprep.subr.mxu0 0.0
    %444 = vmatpush1.msra.mxu0 0.0
    %445 = vmatprep.subr.mxu0 0.0
    %446 = vmatpush1.msra.mxu0 0.0
    %447 = vmatprep.subr.mxu0 0.0
    %448 = vmatpush1.msra.mxu0 0.0
    %449 = vmatprep.subr.mxu0 0.0
    %450 = vmatpush1.msra.mxu0 0.0
    %451 = vmatprep.subr.mxu0 0.0
    %452 = vmatpush1.msra.mxu0 0.0
    %453 = vmatprep.subr.mxu0 0.0
    %454 = vmatpush1.msra.mxu0 0.0
    %455 = vmatprep.subr.mxu0 0.0
    %456 = vmatpush1.msra.mxu0 0.0
    %457 = vmatprep.subr.mxu0 0.0
    %458 = vmatpush1.msra.mxu0 0.0
    %459 = vmatprep.subr.mxu0 0.0
    %460 = vmatpush1.msra.mxu0 0.0
    %461 = vmatprep.subr.mxu0 0.0
    %462 = vmatpush1.msra.mxu0 0.0
    %463 = vmatprep.subr.mxu0 0.0
    %464 = vmatpush1.msra.mxu0 0.0
    %465 = vmatprep.subr.mxu0 0.0
    %466 = vmatpush1.msra.mxu0 0.0
    %467 = vmatprep.subr.mxu0 0.0
    %468 = vmatpush1.msra.mxu0 0.0
    %469 = vmatprep.subr.mxu0 0.0
    %470 = vmatpush1.msra.mxu0 0.0
    %471 = vmatprep.subr.mxu0 0.0
    %472 = vmatpush1.msra.mxu0 0.0
    %473 = vmatprep.subr.mxu0 0.0
    %474 = vmatpush1.msra.mxu0 0.0
    %475 = vmatprep.subr.mxu0 0.0
    %476 = vmatpush1.msra.mxu0 0.0
    %477 = vmatprep.subr.mxu0 0.0
    %478 = vmatpush1.msra.mxu0 0.0
    %479 = vmatprep.subr.mxu0 0.0
    %480 = vmatpush1.msra.mxu0 0.0
    %481 = vmatprep.subr.mxu0 0.0
    %482 = vmatpush1.msra.mxu0 0.0
    %483 = vmatprep.subr.mxu0 0.0
    %484 = vmatpush1.msra.mxu0 0.0
    %485 = vmatprep.mubr.f32.mxu0 0.0
    %v486 = vand.u32 %v82, 4294901760
    %487 = vmatmul.mubr.f32.gmra.mrb[0].mxu0 %v486
    %v488 = vpop.f32.mrb[0].mxu0
    %v489 = vadd.f32 %v407, %v488
    %v490 = vpop.f32.mrb[0].mxu0
    %491 = vmatprep.mubr.f32.mxu0 0.0
    %v492 = vand.u32 %v85, 4294901760
    %493 = vmatmul.mubr.f32.gmra.mrb[0].mxu0 %v492
    %v494 = vpop.f32.mrb[0].mxu0
    %v495 = vadd.f32 %v415, %v494
    %v496 = vpop.f32.mrb[0].mxu0
    %497 = vdwg.mxu0
    %498 = vmatprep.subr.mxu0 0.0
    %v499 = vand.u32 %v78, 4294901760
    %500 = vmatpush1.msra.mxu0 %v499
    %501 = vmatprep.subr.mxu0 0.0
    %502 = vmatpush1.msra.mxu0 0.0
    %503 = vmatprep.subr.mxu0 0.0
    %504 = vmatpush1.msra.mxu0 0.0
    %505 = vmatprep.subr.mxu0 0.0
    %506 = vmatpush1.msra.mxu0 0.0
    %507 = vmatprep.subr.mxu0 0.0
    %508 = vmatpush1.msra.mxu0 0.0
    %509 = vmatprep.subr.mxu0 0.0
    %510 = vmatpush1.msra.mxu0 0.0
    %511 = vmatprep.subr.mxu0 0.0
    %512 = vmatpush1.msra.mxu0 0.0
    %513 = vmatprep.subr.mxu0 0.0
    %514 = vmatpush1.msra.mxu0 0.0
    %515 = vmatprep.subr.mxu0 0.0
    %516 = vmatpush1.msra.mxu0 0.0
    %517 = vmatprep.subr.mxu0 0.0
    %518 = vmatpush1.msra.mxu0 0.0
    %519 = vmatprep.subr.mxu0 0.0
    %520 = vmatpush1.msra.mxu0 0.0
    %521 = vmatprep.subr.mxu0 0.0
    %522 = vmatpush1.msra.mxu0 0.0
    %523 = vmatprep.subr.mxu0 0.0
    %524 = vmatpush1.msra.mxu0 0.0
    %525 = vmatprep.subr.mxu0 0.0
    %526 = vmatpush1.msra.mxu0 0.0
    %527 = vmatprep.subr.mxu0 0.0
    %528 = vmatpush1.msra.mxu0 0.0
    %529 = vmatprep.subr.mxu0 0.0
    %530 = vmatpush1.msra.mxu0 0.0
    %531 = vmatprep.subr.mxu0 0.0
    %532 = vmatpush1.msra.mxu0 0.0
    %533 = vmatprep.subr.mxu0 0.0
    %534 = vmatpush1.msra.mxu0 0.0
    %535 = vmatprep.subr.mxu0 0.0
    %536 = vmatpush1.msra.mxu0 0.0
    %537 = vmatprep.subr.mxu0 0.0
    %538 = vmatpush1.msra.mxu0 0.0
    %539 = vmatprep.subr.mxu0 0.0
    %540 = vmatpush1.msra.mxu0 0.0
    %541 = vmatprep.subr.mxu0 0.0
    %542 = vmatpush1.msra.mxu0 0.0
    %543 = vmatprep.subr.mxu0 0.0
    %544 = vmatpush1.msra.mxu0 0.0
    %545 = vmatprep.subr.mxu0 0.0
    %546 = vmatpush1.msra.mxu0 0.0
    %547 = vmatprep.subr.mxu0 0.0
    %548 = vmatpush1.msra.mxu0 0.0
    %549 = vmatprep.subr.mxu0 0.0
    %550 = vmatpush1.msra.mxu0 0.0
    %551 = vmatprep.subr.mxu0 0.0
    %552 = vmatpush1.msra.mxu0 0.0
    %553 = vmatprep.subr.mxu0 0.0
    %554 = vmatpush1.msra.mxu0 0.0
    %555 = vmatprep.subr.mxu0 0.0
    %556 = vmatpush1.msra.mxu0 0.0
    %557 = vmatprep.subr.mxu0 0.0
    %558 = vmatpush1.msra.mxu0 0.0
    %559 = vmatprep.subr.mxu0 0.0
    %560 = vmatpush1.msra.mxu0 0.0
    %561 = vmatprep.subr.mxu0 0.0
    %562 = vmatpush1.msra.mxu0 0.0
    %563 = vmatprep.mubr.f32.mxu0 0.0
    %v564 = vand.u32 %v82, 4294901760
    %565 = vmatmul.mubr.f32.gmra.mrb[0].mxu0 %v564
    %v566 = vpop.f32.mrb[0].mxu0
    %v567 = vadd.f32 %v489, %v566
    %v568 = vpop.f32.mrb[0].mxu0
    %569 = vmatprep.mubr.f32.mxu0 0.0
    %v570 = vand.u32 %v85, 4294901760
    %571 = vmatmul.mubr.f32.gmra.mrb[0].mxu0 %v570
    %v572 = vpop.f32.mrb[0].mxu0
    %v573 = vadd.f32 %v495, %v572
    %v574 = vpop.f32.mrb[0].mxu0
    %575 = vdwg.mxu0
    %v577 = vlaneseq
    %v578 = vshrl.u32 %v577, 7
    %v579 = vsub.s32 0, %v578
    %v580 = vrot.slane %v79, %v579
    %vm582 = vcmask 130048
    %v584 = vsel %vm582, %v74, 0
    %v587 = vsel %vm582, %v75, 0
    %589 = vmatprep.subr.mxu0 0.0
    %v590 = vand.u32 %v567, 4294901760
    %591 = vmatpush1.msra.mxu0 %v590
    %592 = vmatprep.subr.mxu0 0.0
    %v593 = vand.u32 %v573, 4294901760
    %594 = vmatpush1.msra.mxu0 %v593
    %595 = vmatprep.subr.mxu0 0.0
    %596 = vmatpush1.msra.mxu0 0.0
    %597 = vmatprep.subr.mxu0 0.0
    %598 = vmatpush1.msra.mxu0 0.0
    %599 = vmatprep.subr.mxu0 0.0
    %600 = vmatpush1.msra.mxu0 0.0
    %601 = vmatprep.subr.mxu0 0.0
    %602 = vmatpush1.msra.mxu0 0.0
    %603 = vmatprep.subr.mxu0 0.0
    %604 = vmatpush1.msra.mxu0 0.0
    %605 = vmatprep.subr.mxu0 0.0
    %606 = vmatpush1.msra.mxu0 0.0
    %607 = vmatprep.subr.mxu0 0.0
    %608 = vmatpush1.msra.mxu0 0.0
    %609 = vmatprep.subr.mxu0 0.0
    %610 = vmatpush1.msra.mxu0 0.0
    %611 = vmatprep.subr.mxu0 0.0
    %612 = vmatpush1.msra.mxu0 0.0
    %613 = vmatprep.subr.mxu0 0.0
    %614 = vmatpush1.msra.mxu0 0.0
    %615 = vmatprep.subr.mxu0 0.0
    %616 = vmatpush1.msra.mxu0 0.0
    %617 = vmatprep.subr.mxu0 0.0
    %618 = vmatpush1.msra.mxu0 0.0
    %619 = vmatprep.subr.mxu0 0.0
    %620 = vmatpush1.msra.mxu0 0.0
    %621 = vmatprep.subr.mxu0 0.0
    %622 = vmatpush1.msra.mxu0 0.0
    %623 = vmatprep.subr.mxu0 0.0
    %624 = vmatpush1.msra.mxu0 0.0
    %625 = vmatprep.subr.mxu0 0.0
    %626 = vmatpush1.msra.mxu0 0.0
    %627 = vmatprep.subr.mxu0 0.0
    %628 = vmatpush1.msra.mxu0 0.0
    %629 = vmatprep.subr.mxu0 0.0
    %630 = vmatpush1.msra.mxu0 0.0
    %631 = vmatprep.subr.mxu0 0.0
    %632 = vmatpush1.msra.mxu0 0.0
    %633 = vmatprep.subr.mxu0 0.0
    %634 = vmatpush1.msra.mxu0 0.0
    %635 = vmatprep.subr.mxu0 0.0
    %636 = vmatpush1.msra.mxu0 0.0
    %637 = vmatprep.subr.mxu0 0.0
    %638 = vmatpush1.msra.mxu0 0.0
    %639 = vmatprep.subr.mxu0 0.0
    %640 = vmatpush1.msra.mxu0 0.0
    %641 = vmatprep.subr.mxu0 0.0
    %642 = vmatpush1.msra.mxu0 0.0
    %643 = vmatprep.subr.mxu0 0.0
    %644 = vmatpush1.msra.mxu0 0.0
    %645 = vmatprep.subr.mxu0 0.0
    %646 = vmatpush1.msra.mxu0 0.0
    %647 = vmatprep.subr.mxu0 0.0
    %648 = vmatpush1.msra.mxu0 0.0
    %649 = vmatprep.subr.mxu0 0.0
    %650 = vmatpush1.msra.mxu0 0.0
    %651 = vmatprep.subr.mxu0 0.0
    %652 = vmatpush1.msra.mxu0 0.0
    %653 = vmatprep.subr.mxu0 0.0
    %654 = vmatpush1.msra.mxu0 0.0
    %655 = vmatprep.mubr.f32.mxu0 0.0
    %v656 = vand.u32 %v584, 4294901760
    %v657 = vsub.f32 %v584, %v656
    %v658 = vand.u32 %v657, 4294901760
    %v659 = vsub.f32 %v657, %v658
    %v660 = vand.u32 %v659, 4294901760
    %661 = vmatmul.mubr.f32.gmra.mrb[0].mxu0 %v660
    %v662 = vpop.f32.mrb[0].mxu0
    %v663 = vadd.f32 %v580, %v662
    %v664 = vpop.f32.mrb[0].mxu0
    %665 = vmatprep.mubr.f32.mxu0 0.0
    %v666 = vand.u32 %v587, 4294901760
    %v667 = vsub.f32 %v587, %v666
    %v668 = vand.u32 %v667, 4294901760
    %v669 = vsub.f32 %v667, %v668
    %v670 = vand.u32 %v669, 4294901760
    %671 = vmatmul.mubr.f32.gmra.mrb[0].mxu0 %v670
    %v672 = vpop.f32.mrb[0].mxu0
    %v673 = vadd.f32 %v580, %v672
    %v674 = vpop.f32.mrb[0].mxu0
    %675 = vdwg.mxu0
    %676 = vmatprep.subr.mxu0 0.0
    %v677 = vand.u32 %v567, 4294901760
    %v678 = vsub.f32 %v567, %v677
    %v679 = vand.u32 %v678, 4294901760
    %v680 = vsub.f32 %v678, %v679
    %v681 = vand.u32 %v680, 4294901760
    %682 = vmatpush1.msra.mxu0 %v681
    %683 = vmatprep.subr.mxu0 0.0
    %v684 = vand.u32 %v573, 4294901760
    %v685 = vsub.f32 %v573, %v684
    %v686 = vand.u32 %v685, 4294901760
    %v687 = vsub.f32 %v685, %v686
    %v688 = vand.u32 %v687, 4294901760
    %689 = vmatpush1.msra.mxu0 %v688
    %690 = vmatprep.subr.mxu0 0.0
    %691 = vmatpush1.msra.mxu0 0.0
    %692 = vmatprep.subr.mxu0 0.0
    %693 = vmatpush1.msra.mxu0 0.0
    %694 = vmatprep.subr.mxu0 0.0
    %695 = vmatpush1.msra.mxu0 0.0
    %696 = vmatprep.subr.mxu0 0.0
    %697 = vmatpush1.msra.mxu0 0.0
    %698 = vmatprep.subr.mxu0 0.0
    %699 = vmatpush1.msra.mxu0 0.0
    %700 = vmatprep.subr.mxu0 0.0
    %701 = vmatpush1.msra.mxu0 0.0
    %702 = vmatprep.subr.mxu0 0.0
    %703 = vmatpush1.msra.mxu0 0.0
    %704 = vmatprep.subr.mxu0 0.0
    %705 = vmatpush1.msra.mxu0 0.0
    %706 = vmatprep.subr.mxu0 0.0
    %707 = vmatpush1.msra.mxu0 0.0
    %708 = vmatprep.subr.mxu0 0.0
    %709 = vmatpush1.msra.mxu0 0.0
    %710 = vmatprep.subr.mxu0 0.0
    %711 = vmatpush1.msra.mxu0 0.0
    %712 = vmatprep.subr.mxu0 0.0
    %713 = vmatpush1.msra.mxu0 0.0
    %714 = vmatprep.subr.mxu0 0.0
    %715 = vmatpush1.msra.mxu0 0.0
    %716 = vmatprep.subr.mxu0 0.0
    %717 = vmatpush1.msra.mxu0 0.0
    %718 = vmatprep.subr.mxu0 0.0
    %719 = vmatpush1.msra.mxu0 0.0
    %720 = vmatprep.subr.mxu0 0.0
    %721 = vmatpush1.msra.mxu0 0.0
    %722 = vmatprep.subr.mxu0 0.0
    %723 = vmatpush1.msra.mxu0 0.0
    %724 = vmatprep.subr.mxu0 0.0
    %725 = vmatpush1.msra.mxu0 0.0
    %726 = vmatprep.subr.mxu0 0.0
    %727 = vmatpush1.msra.mxu0 0.0
    %728 = vmatprep.subr.mxu0 0.0
    %729 = vmatpush1.msra.mxu0 0.0
    %730 = vmatprep.subr.mxu0 0.0
    %731 = vmatpush1.msra.mxu0 0.0
    %732 = vmatprep.subr.mxu0 0.0
    %733 = vmatpush1.msra.mxu0 0.0
    %734 = vmatprep.subr.mxu0 0.0
    %735 = vmatpush1.msra.mxu0 0.0
    %736 = vmatprep.subr.mxu0 0.0
    %737 = vmatpush1.msra.mxu0 0.0
    %738 = vmatprep.subr.mxu0 0.0
    %739 = vmatpush1.msra.mxu0 0.0
    %740 = vmatprep.subr.mxu0 0.0
    %741 = vmatpush1.msra.mxu0 0.0
    %742 = vmatprep.subr.mxu0 0.0
    %743 = vmatpush1.msra.mxu0 0.0
    %744 = vmatprep.subr.mxu0 0.0
    %745 = vmatpush1.msra.mxu0 0.0
    %746 = vmatprep.subr.mxu0 0.0
    %747 = vmatpush1.msra.mxu0 0.0
    %748 = vmatprep.subr.mxu0 0.0
    %749 = vmatpush1.msra.mxu0 0.0
    %750 = vmatprep.mubr.f32.mxu0 0.0
    %v751 = vand.u32 %v584, 4294901760
    %752 = vmatmul.mubr.f32.gmra.mrb[0].mxu0 %v751
    %v753 = vpop.f32.mrb[0].mxu0
    %v754 = vadd.f32 %v663, %v753
    %v755 = vpop.f32.mrb[0].mxu0
    %756 = vmatprep.mubr.f32.mxu0 0.0
    %v757 = vand.u32 %v587, 4294901760
    %758 = vmatmul.mubr.f32.gmra.mrb[0].mxu0 %v757
    %v759 = vpop.f32.mrb[0].mxu0
    %v760 = vadd.f32 %v673, %v759
    %v761 = vpop.f32.mrb[0].mxu0
    %762 = vdwg.mxu0
    %763 = vmatprep.subr.mxu0 0.0
    %v764 = vand.u32 %v567, 4294901760
    %v765 = vsub.f32 %v567, %v764
    %766 = vmatpush1.msra.mxu0 %v765
    %767 = vmatprep.subr.mxu0 0.0
    %v768 = vand.u32 %v573, 4294901760
    %v769 = vsub.f32 %v573, %v768
    %770 = vmatpush1.msra.mxu0 %v769
    %771 = vmatprep.subr.mxu0 0.0
    %772 = vmatpush1.msra.mxu0 0.0
    %773 = vmatprep.subr.mxu0 0.0
    %774 = vmatpush1.msra.mxu0 0.0
    %775 = vmatprep.subr.mxu0 0.0
    %776 = vmatpush1.msra.mxu0 0.0
    %777 = vmatprep.subr.mxu0 0.0
    %778 = vmatpush1.msra.mxu0 0.0
    %779 = vmatprep.subr.mxu0 0.0
    %780 = vmatpush1.msra.mxu0 0.0
    %781 = vmatprep.subr.mxu0 0.0
    %782 = vmatpush1.msra.mxu0 0.0
    %783 = vmatprep.subr.mxu0 0.0
    %784 = vmatpush1.msra.mxu0 0.0
    %785 = vmatprep.subr.mxu0 0.0
    %786 = vmatpush1.msra.mxu0 0.0
    %787 = vmatprep.subr.mxu0 0.0
    %788 = vmatpush1.msra.mxu0 0.0
    %789 = vmatprep.subr.mxu0 0.0
    %790 = vmatpush1.msra.mxu0 0.0
    %791 = vmatprep.subr.mxu0 0.0
    %792 = vmatpush1.msra.mxu0 0.0
    %793 = vmatprep.subr.mxu0 0.0
    %794 = vmatpush1.msra.mxu0 0.0
    %795 = vmatprep.subr.mxu0 0.0
    %796 = vmatpush1.msra.mxu0 0.0
    %797 = vmatprep.subr.mxu0 0.0
    %798 = vmatpush1.msra.mxu0 0.0
    %799 = vmatprep.subr.mxu0 0.0
    %800 = vmatpush1.msra.mxu0 0.0
    %801 = vmatprep.subr.mxu0 0.0
    %802 = vmatpush1.msra.mxu0 0.0
    %803 = vmatprep.subr.mxu0 0.0
    %804 = vmatpush1.msra.mxu0 0.0
    %805 = vmatprep.subr.mxu0 0.0
    %806 = vmatpush1.msra.mxu0 0.0
    %807 = vmatprep.subr.mxu0 0.0
    %808 = vmatpush1.msra.mxu0 0.0
    %809 = vmatprep.subr.mxu0 0.0
    %810 = vmatpush1.msra.mxu0 0.0
    %811 = vmatprep.subr.mxu0 0.0
    %812 = vmatpush1.msra.mxu0 0.0
    %813 = vmatprep.subr.mxu0 0.0
    %814 = vmatpush1.msra.mxu0 0.0
    %815 = vmatprep.subr.mxu0 0.0
    %816 = vmatpush1.msra.mxu0 0.0
    %817 = vmatprep.subr.mxu0 0.0
    %818 = vmatpush1.msra.mxu0 0.0
    %819 = vmatprep.subr.mxu0 0.0
    %820 = vmatpush1.msra.mxu0 0.0
    %821 = vmatprep.subr.mxu0 0.0
    %822 = vmatpush1.msra.mxu0 0.0
    %823 = vmatprep.subr.mxu0 0.0
    %824 = vmatpush1.msra.mxu0 0.0
    %825 = vmatprep.subr.mxu0 0.0
    %826 = vmatpush1.msra.mxu0 0.0
    %827 = vmatprep.subr.mxu0 0.0
    %828 = vmatpush1.msra.mxu0 0.0
    %829 = vmatprep.subr.mxu0 0.0
    %830 = vmatpush1.msra.mxu0 0.0
    %831 = vmatprep.mubr.f32.mxu0 0.0
    %v832 = vand.u32 %v584, 4294901760
    %v833 = vsub.f32 %v584, %v832
    %834 = vmatmul.mubr.f32.gmra.mrb[0].mxu0 %v833
    %v835 = vpop.f32.mrb[0].mxu0
    %v836 = vadd.f32 %v754, %v835
    %v837 = vpop.f32.mrb[0].mxu0
    %838 = vmatprep.mubr.f32.mxu0 0.0
    %v839 = vand.u32 %v587, 4294901760
    %v840 = vsub.f32 %v587, %v839
    %841 = vmatmul.mubr.f32.gmra.mrb[0].mxu0 %v840
    %v842 = vpop.f32.mrb[0].mxu0
    %v843 = vadd.f32 %v760, %v842
    %v844 = vpop.f32.mrb[0].mxu0
    %845 = vdwg.mxu0
    %846 = vmatprep.subr.mxu0 0.0
    %v847 = vand.u32 %v567, 4294901760
    %848 = vmatpush1.msra.mxu0 %v847
    %849 = vmatprep.subr.mxu0 0.0
    %v850 = vand.u32 %v573, 4294901760
    %851 = vmatpush1.msra.mxu0 %v850
    %852 = vmatprep.subr.mxu0 0.0
    %853 = vmatpush1.msra.mxu0 0.0
    %854 = vmatprep.subr.mxu0 0.0
    %855 = vmatpush1.msra.mxu0 0.0
    %856 = vmatprep.subr.mxu0 0.0
    %857 = vmatpush1.msra.mxu0 0.0
    %858 = vmatprep.subr.mxu0 0.0
    %859 = vmatpush1.msra.mxu0 0.0
    %860 = vmatprep.subr.mxu0 0.0
    %861 = vmatpush1.msra.mxu0 0.0
    %862 = vmatprep.subr.mxu0 0.0
    %863 = vmatpush1.msra.mxu0 0.0
    %864 = vmatprep.subr.mxu0 0.0
    %865 = vmatpush1.msra.mxu0 0.0
    %866 = vmatprep.subr.mxu0 0.0
    %867 = vmatpush1.msra.mxu0 0.0
    %868 = vmatprep.subr.mxu0 0.0
    %869 = vmatpush1.msra.mxu0 0.0
    %870 = vmatprep.subr.mxu0 0.0
    %871 = vmatpush1.msra.mxu0 0.0
    %872 = vmatprep.subr.mxu0 0.0
    %873 = vmatpush1.msra.mxu0 0.0
    %874 = vmatprep.subr.mxu0 0.0
    %875 = vmatpush1.msra.mxu0 0.0
    %876 = vmatprep.subr.mxu0 0.0
    %877 = vmatpush1.msra.mxu0 0.0
    %878 = vmatprep.subr.mxu0 0.0
    %879 = vmatpush1.msra.mxu0 0.0
    %880 = vmatprep.subr.mxu0 0.0
    %881 = vmatpush1.msra.mxu0 0.0
    %882 = vmatprep.subr.mxu0 0.0
    %883 = vmatpush1.msra.mxu0 0.0
    %884 = vmatprep.subr.mxu0 0.0
    %885 = vmatpush1.msra.mxu0 0.0
    %886 = vmatprep.subr.mxu0 0.0
    %887 = vmatpush1.msra.mxu0 0.0
    %888 = vmatprep.subr.mxu0 0.0
    %889 = vmatpush1.msra.mxu0 0.0
    %890 = vmatprep.subr.mxu0 0.0
    %891 = vmatpush1.msra.mxu0 0.0
    %892 = vmatprep.subr.mxu0 0.0
    %893 = vmatpush1.msra.mxu0 0.0
    %894 = vmatprep.subr.mxu0 0.0
    %895 = vmatpush1.msra.mxu0 0.0
    %896 = vmatprep.subr.mxu0 0.0
    %897 = vmatpush1.msra.mxu0 0.0
    %898 = vmatprep.subr.mxu0 0.0
    %899 = vmatpush1.msra.mxu0 0.0
    %900 = vmatprep.subr.mxu0 0.0
    %901 = vmatpush1.msra.mxu0 0.0
    %902 = vmatprep.subr.mxu0 0.0
    %903 = vmatpush1.msra.mxu0 0.0
    %904 = vmatprep.subr.mxu0 0.0
    %905 = vmatpush1.msra.mxu0 0.0
    %906 = vmatprep.subr.mxu0 0.0
    %907 = vmatpush1.msra.mxu0 0.0
    %908 = vmatprep.subr.mxu0 0.0
    %909 = vmatpush1.msra.mxu0 0.0
    %910 = vmatprep.subr.mxu0 0.0
    %911 = vmatpush1.msra.mxu0 0.0
    %912 = vmatprep.mubr.f32.mxu0 0.0
    %v913 = vand.u32 %v584, 4294901760
    %v914 = vsub.f32 %v584, %v913
    %v915 = vand.u32 %v914, 4294901760
    %916 = vmatmul.mubr.f32.gmra.mrb[0].mxu0 %v915
    %v917 = vpop.f32.mrb[0].mxu0
    %v918 = vadd.f32 %v836, %v917
    %v919 = vpop.f32.mrb[0].mxu0
    %920 = vmatprep.mubr.f32.mxu0 0.0
    %v921 = vand.u32 %v587, 4294901760
    %v922 = vsub.f32 %v587, %v921
    %v923 = vand.u32 %v922, 4294901760
    %924 = vmatmul.mubr.f32.gmra.mrb[0].mxu0 %v923
    %v925 = vpop.f32.mrb[0].mxu0
    %v926 = vadd.f32 %v843, %v925
    %v927 = vpop.f32.mrb[0].mxu0
    %928 = vdwg.mxu0
    %929 = vmatprep.subr.mxu0 0.0
    %v930 = vand.u32 %v567, 4294901760
    %v931 = vsub.f32 %v567, %v930
    %v932 = vand.u32 %v931, 4294901760
    %933 = vmatpush1.msra.mxu0 %v932
    %934 = vmatprep.subr.mxu0 0.0
    %v935 = vand.u32 %v573, 4294901760
    %v936 = vsub.f32 %v573, %v935
    %v937 = vand.u32 %v936, 4294901760
    %938 = vmatpush1.msra.mxu0 %v937
    %939 = vmatprep.subr.mxu0 0.0
    %940 = vmatpush1.msra.mxu0 0.0
    %941 = vmatprep.subr.mxu0 0.0
    %942 = vmatpush1.msra.mxu0 0.0
    %943 = vmatprep.subr.mxu0 0.0
    %944 = vmatpush1.msra.mxu0 0.0
    %945 = vmatprep.subr.mxu0 0.0
    %946 = vmatpush1.msra.mxu0 0.0
    %947 = vmatprep.subr.mxu0 0.0
    %948 = vmatpush1.msra.mxu0 0.0
    %949 = vmatprep.subr.mxu0 0.0
    %950 = vmatpush1.msra.mxu0 0.0
    %951 = vmatprep.subr.mxu0 0.0
    %952 = vmatpush1.msra.mxu0 0.0
    %953 = vmatprep.subr.mxu0 0.0
    %954 = vmatpush1.msra.mxu0 0.0
    %955 = vmatprep.subr.mxu0 0.0
    %956 = vmatpush1.msra.mxu0 0.0
    %957 = vmatprep.subr.mxu0 0.0
    %958 = vmatpush1.msra.mxu0 0.0
    %959 = vmatprep.subr.mxu0 0.0
    %960 = vmatpush1.msra.mxu0 0.0
    %961 = vmatprep.subr.mxu0 0.0
    %962 = vmatpush1.msra.mxu0 0.0
    %963 = vmatprep.subr.mxu0 0.0
    %964 = vmatpush1.msra.mxu0 0.0
    %965 = vmatprep.subr.mxu0 0.0
    %966 = vmatpush1.msra.mxu0 0.0
    %967 = vmatprep.subr.mxu0 0.0
    %968 = vmatpush1.msra.mxu0 0.0
    %969 = vmatprep.subr.mxu0 0.0
    %970 = vmatpush1.msra.mxu0 0.0
    %971 = vmatprep.subr.mxu0 0.0
    %972 = vmatpush1.msra.mxu0 0.0
    %973 = vmatprep.subr.mxu0 0.0
    %974 = vmatpush1.msra.mxu0 0.0
    %975 = vmatprep.subr.mxu0 0.0
    %976 = vmatpush1.msra.mxu0 0.0
    %977 = vmatprep.subr.mxu0 0.0
    %978 = vmatpush1.msra.mxu0 0.0
    %979 = vmatprep.subr.mxu0 0.0
    %980 = vmatpush1.msra.mxu0 0.0
    %981 = vmatprep.subr.mxu0 0.0
    %982 = vmatpush1.msra.mxu0 0.0
    %983 = vmatprep.subr.mxu0 0.0
    %984 = vmatpush1.msra.mxu0 0.0
    %985 = vmatprep.subr.mxu0 0.0
    %986 = vmatpush1.msra.mxu0 0.0
    %987 = vmatprep.subr.mxu0 0.0
    %988 = vmatpush1.msra.mxu0 0.0
    %989 = vmatprep.subr.mxu0 0.0
    %990 = vmatpush1.msra.mxu0 0.0
    %991 = vmatprep.subr.mxu0 0.0
    %992 = vmatpush1.msra.mxu0 0.0
    %993 = vmatprep.subr.mxu0 0.0
    %994 = vmatpush1.msra.mxu0 0.0
    %995 = vmatprep.subr.mxu0 0.0
    %996 = vmatpush1.msra.mxu0 0.0
    %997 = vmatprep.subr.mxu0 0.0
    %998 = vmatpush1.msra.mxu0 0.0
    %999 = vmatprep.mubr.f32.mxu0 0.0
    %v1000 = vand.u32 %v584, 4294901760
    %1001 = vmatmul.mubr.f32.gmra.mrb[0].mxu0 %v1000
    %v1002 = vpop.f32.mrb[0].mxu0
    %v1003 = vadd.f32 %v918, %v1002
    %v1004 = vpop.f32.mrb[0].mxu0
    %1005 = vmatprep.mubr.f32.mxu0 0.0
    %v1006 = vand.u32 %v587, 4294901760
    %1007 = vmatmul.mubr.f32.gmra.mrb[0].mxu0 %v1006
    %v1008 = vpop.f32.mrb[0].mxu0
    %v1009 = vadd.f32 %v926, %v1008
    %v1010 = vpop.f32.mrb[0].mxu0
    %1011 = vdwg.mxu0
    %1012 = vmatprep.subr.mxu0 0.0
    %v1013 = vand.u32 %v567, 4294901760
    %1014 = vmatpush1.msra.mxu0 %v1013
    %1015 = vmatprep.subr.mxu0 0.0
    %v1016 = vand.u32 %v573, 4294901760
    %1017 = vmatpush1.msra.mxu0 %v1016
    %1018 = vmatprep.subr.mxu0 0.0
    %1019 = vmatpush1.msra.mxu0 0.0
    %1020 = vmatprep.subr.mxu0 0.0
    %1021 = vmatpush1.msra.mxu0 0.0
    %1022 = vmatprep.subr.mxu0 0.0
    %1023 = vmatpush1.msra.mxu0 0.0
    %1024 = vmatprep.subr.mxu0 0.0
    %1025 = vmatpush1.msra.mxu0 0.0
    %1026 = vmatprep.subr.mxu0 0.0
    %1027 = vmatpush1.msra.mxu0 0.0
    %1028 = vmatprep.subr.mxu0 0.0
    %1029 = vmatpush1.msra.mxu0 0.0
    %1030 = vmatprep.subr.mxu0 0.0
    %1031 = vmatpush1.msra.mxu0 0.0
    %1032 = vmatprep.subr.mxu0 0.0
    %1033 = vmatpush1.msra.mxu0 0.0
    %1034 = vmatprep.subr.mxu0 0.0
    %1035 = vmatpush1.msra.mxu0 0.0
    %1036 = vmatprep.subr.mxu0 0.0
    %1037 = vmatpush1.msra.mxu0 0.0
    %1038 = vmatprep.subr.mxu0 0.0
    %1039 = vmatpush1.msra.mxu0 0.0
    %1040 = vmatprep.subr.mxu0 0.0
    %1041 = vmatpush1.msra.mxu0 0.0
    %1042 = vmatprep.subr.mxu0 0.0
    %1043 = vmatpush1.msra.mxu0 0.0
    %1044 = vmatprep.subr.mxu0 0.0
    %1045 = vmatpush1.msra.mxu0 0.0
    %1046 = vmatprep.subr.mxu0 0.0
    %1047 = vmatpush1.msra.mxu0 0.0
    %1048 = vmatprep.subr.mxu0 0.0
    %1049 = vmatpush1.msra.mxu0 0.0
    %1050 = vmatprep.subr.mxu0 0.0
    %1051 = vmatpush1.msra.mxu0 0.0
    %1052 = vmatprep.subr.mxu0 0.0
    %1053 = vmatpush1.msra.mxu0 0.0
    %1054 = vmatprep.subr.mxu0 0.0
    %1055 = vmatpush1.msra.mxu0 0.0
    %1056 = vmatprep.subr.mxu0 0.0
    %1057 = vmatpush1.msra.mxu0 0.0
    %1058 = vmatprep.subr.mxu0 0.0
    %1059 = vmatpush1.msra.mxu0 0.0
    %1060 = vmatprep.subr.mxu0 0.0
    %1061 = vmatpush1.msra.mxu0 0.0
    %1062 = vmatprep.subr.mxu0 0.0
    %1063 = vmatpush1.msra.mxu0 0.0
    %1064 = vmatprep.subr.mxu0 0.0
    %1065 = vmatpush1.msra.mxu0 0.0
    %1066 = vmatprep.subr.mxu0 0.0
    %1067 = vmatpush1.msra.mxu0 0.0
    %1068 = vmatprep.subr.mxu0 0.0
    %1069 = vmatpush1.msra.mxu0 0.0
    %1070 = vmatprep.subr.mxu0 0.0
    %1071 = vmatpush1.msra.mxu0 0.0
    %1072 = vmatprep.subr.mxu0 0.0
    %1073 = vmatpush1.msra.mxu0 0.0
    %1074 = vmatprep.subr.mxu0 0.0
    %1075 = vmatpush1.msra.mxu0 0.0
    %1076 = vmatprep.subr.mxu0 0.0
    %1077 = vmatpush1.msra.mxu0 0.0
    %1078 = vmatprep.mubr.f32.mxu0 0.0
    %v1079 = vand.u32 %v584, 4294901760
    %1080 = vmatmul.mubr.f32.gmra.mrb[0].mxu0 %v1079
    %v1081 = vpop.f32.mrb[0].mxu0
    %v1082 = vadd.f32 %v1003, %v1081
    %v1083 = vpop.f32.mrb[0].mxu0
    %1084 = vmatprep.mubr.f32.mxu0 0.0
    %v1085 = vand.u32 %v587, 4294901760
    %1086 = vmatmul.mubr.f32.gmra.mrb[0].mxu0 %v1085
    %v1087 = vpop.f32.mrb[0].mxu0
    %v1088 = vadd.f32 %v1009, %v1087
    %v1089 = vpop.f32.mrb[0].mxu0
    %1090 = vdwg.mxu0
    %v1091 = vmax.f32 %v1082, 0.0
    %v1092 = vmax.f32 %v1088, 0.0
    %v1093 = vld [vmem:[#allocation5] sm:$0xff]
    %v1094 = vld [vmem:[#allocation5 + $0x8] sm:$0xff]
    %v1095 = vld [vmem:[#allocation5 + $0x10] sm:$0xff]
    %v1096 = vld [vmem:[#allocation5 + $0x18] sm:$0xff]
    %v1097 = vld [vmem:[%s5] sm:$0x1]
    %vm1098 = vcmask 261120
    %v1100 = vsel %vm1098, %v1091, 0
    %v1103 = vsel %vm1098, %v1092, 0
    %1105 = vmatprep.subr.mxu0 0.0
    %v1106 = vand.u32 %v1093, 4294901760
    %1107 = vmatpush1.msra.mxu0 %v1106
    %1108 = vmatprep.subr.mxu0 0.0
    %v1109 = vand.u32 %v1094, 4294901760
    %1110 = vmatpush1.msra.mxu0 %v1109
    %1111 = vmatprep.subr.mxu0 0.0
    %v1112 = vand.u32 %v1095, 4294901760
    %1113 = vmatpush1.msra.mxu0 %v1112
    %1114 = vmatprep.subr.mxu0 0.0
    %v1115 = vand.u32 %v1096, 4294901760
    %1116 = vmatpush1.msra.mxu0 %v1115
    %1117 = vmatprep.subr.mxu0 0.0
    %1118 = vmatpush1.msra.mxu0 0.0
    %1119 = vmatprep.subr.mxu0 0.0
    %1120 = vmatpush1.msra.mxu0 0.0
    %1121 = vmatprep.subr.mxu0 0.0
    %1122 = vmatpush1.msra.mxu0 0.0
    %1123 = vmatprep.subr.mxu0 0.0
    %1124 = vmatpush1.msra.mxu0 0.0
    %1125 = vmatprep.subr.mxu0 0.0
    %1126 = vmatpush1.msra.mxu0 0.0
    %1127 = vmatprep.subr.mxu0 0.0
    %1128 = vmatpush1.msra.mxu0 0.0
    %1129 = vmatprep.subr.mxu0 0.0
    %1130 = vmatpush1.msra.mxu0 0.0
    %1131 = vmatprep.subr.mxu0 0.0
    %1132 = vmatpush1.msra.mxu0 0.0
    %1133 = vmatprep.subr.mxu0 0.0
    %1134 = vmatpush1.msra.mxu0 0.0
    %1135 = vmatprep.subr.mxu0 0.0
    %1136 = vmatpush1.msra.mxu0 0.0
    %1137 = vmatprep.subr.mxu0 0.0
    %1138 = vmatpush1.msra.mxu0 0.0
    %1139 = vmatprep.subr.mxu0 0.0
    %1140 = vmatpush1.msra.mxu0 0.0
    %1141 = vmatprep.subr.mxu0 0.0
    %1142 = vmatpush1.msra.mxu0 0.0
    %1143 = vmatprep.subr.mxu0 0.0
    %1144 = vmatpush1.msra.mxu0 0.0
    %1145 = vmatprep.subr.mxu0 0.0
    %1146 = vmatpush1.msra.mxu0 0.0
    %1147 = vmatprep.subr.mxu0 0.0
    %1148 = vmatpush1.msra.mxu0 0.0
    %1149 = vmatprep.subr.mxu0 0.0
    %1150 = vmatpush1.msra.mxu0 0.0
    %1151 = vmatprep.subr.mxu0 0.0
    %1152 = vmatpush1.msra.mxu0 0.0
    %1153 = vmatprep.subr.mxu0 0.0
    %1154 = vmatpush1.msra.mxu0 0.0
    %1155 = vmatprep.subr.mxu0 0.0
    %1156 = vmatpush1.msra.mxu0 0.0
    %1157 = vmatprep.subr.mxu0 0.0
    %1158 = vmatpush1.msra.mxu0 0.0
    %1159 = vmatprep.subr.mxu0 0.0
    %1160 = vmatpush1.msra.mxu0 0.0
    %1161 = vmatprep.subr.mxu0 0.0
    %1162 = vmatpush1.msra.mxu0 0.0
    %1163 = vmatprep.subr.mxu0 0.0
    %1164 = vmatpush1.msra.mxu0 0.0
    %1165 = vmatprep.subr.mxu0 0.0
    %1166 = vmatpush1.msra.mxu0 0.0
    %1167 = vmatprep.subr.mxu0 0.0
    %1168 = vmatpush1.msra.mxu0 0.0
    %1169 = vmatprep.subr.mxu0 0.0
    %1170 = vmatpush1.msra.mxu0 0.0
    %1171 = vmatprep.subr.mxu0 0.0
    %1172 = vmatpush1.msra.mxu0 0.0
    %1173 = vmatprep.mubr.f32.mxu0 0.0
    %v1174 = vand.u32 %v1100, 4294901760
    %v1175 = vsub.f32 %v1100, %v1174
    %v1176 = vand.u32 %v1175, 4294901760
    %v1177 = vsub.f32 %v1175, %v1176
    %v1178 = vand.u32 %v1177, 4294901760
    %1179 = vmatmul.mubr.f32.gmra.mrb[0].mxu0 %v1178
    %v1180 = vpop.f32.mrb[0].mxu0
    %v1181 = vadd.f32 0.0, %v1180
    %v1182 = vpop.f32.mrb[0].mxu0
    %1183 = vmatprep.mubr.f32.mxu0 0.0
    %v1184 = vand.u32 %v1103, 4294901760
    %v1185 = vsub.f32 %v1103, %v1184
    %v1186 = vand.u32 %v1185, 4294901760
    %v1187 = vsub.f32 %v1185, %v1186
    %v1188 = vand.u32 %v1187, 4294901760
    %1189 = vmatmul.mubr.f32.gmra.mrb[0].mxu0 %v1188
    %v1190 = vpop.f32.mrb[0].mxu0
    %v1191 = vadd.f32 0.0, %v1190
    %v1192 = vpop.f32.mrb[0].mxu0
    %1193 = vdwg.mxu0
    %1194 = vmatprep.subr.mxu0 0.0
    %v1195 = vand.u32 %v1093, 4294901760
    %v1196 = vsub.f32 %v1093, %v1195
    %v1197 = vand.u32 %v1196, 4294901760
    %v1198 = vsub.f32 %v1196, %v1197
    %v1199 = vand.u32 %v1198, 4294901760
    %1200 = vmatpush1.msra.mxu0 %v1199
    %1201 = vmatprep.subr.mxu0 0.0
    %v1202 = vand.u32 %v1094, 4294901760
    %v1203 = vsub.f32 %v1094, %v1202
    %v1204 = vand.u32 %v1203, 4294901760
    %v1205 = vsub.f32 %v1203, %v1204
    %v1206 = vand.u32 %v1205, 4294901760
    %1207 = vmatpush1.msra.mxu0 %v1206
    %1208 = vmatprep.subr.mxu0 0.0
    %v1209 = vand.u32 %v1095, 4294901760
    %v1210 = vsub.f32 %v1095, %v1209
    %v1211 = vand.u32 %v1210, 4294901760
    %v1212 = vsub.f32 %v1210, %v1211
    %v1213 = vand.u32 %v1212, 4294901760
    %1214 = vmatpush1.msra.mxu0 %v1213
    %1215 = vmatprep.subr.mxu0 0.0
    %v1216 = vand.u32 %v1096, 4294901760
    %v1217 = vsub.f32 %v1096, %v1216
    %v1218 = vand.u32 %v1217, 4294901760
    %v1219 = vsub.f32 %v1217, %v1218
    %v1220 = vand.u32 %v1219, 4294901760
    %1221 = vmatpush1.msra.mxu0 %v1220
    %1222 = vmatprep.subr.mxu0 0.0
    %1223 = vmatpush1.msra.mxu0 0.0
    %1224 = vmatprep.subr.mxu0 0.0
    %1225 = vmatpush1.msra.mxu0 0.0
    %1226 = vmatprep.subr.mxu0 0.0
    %1227 = vmatpush1.msra.mxu0 0.0
    %1228 = vmatprep.subr.mxu0 0.0
    %1229 = vmatpush1.msra.mxu0 0.0
    %1230 = vmatprep.subr.mxu0 0.0
    %1231 = vmatpush1.msra.mxu0 0.0
    %1232 = vmatprep.subr.mxu0 0.0
    %1233 = vmatpush1.msra.mxu0 0.0
    %1234 = vmatprep.subr.mxu0 0.0
    %1235 = vmatpush1.msra.mxu0 0.0
    %1236 = vmatprep.subr.mxu0 0.0
    %1237 = vmatpush1.msra.mxu0 0.0
    %1238 = vmatprep.subr.mxu0 0.0
    %1239 = vmatpush1.msra.mxu0 0.0
    %1240 = vmatprep.subr.mxu0 0.0
    %1241 = vmatpush1.msra.mxu0 0.0
    %1242 = vmatprep.subr.mxu0 0.0
    %1243 = vmatpush1.msra.mxu0 0.0
    %1244 = vmatprep.subr.mxu0 0.0
    %1245 = vmatpush1.msra.mxu0 0.0
    %1246 = vmatprep.subr.mxu0 0.0
    %1247 = vmatpush1.msra.mxu0 0.0
    %1248 = vmatprep.subr.mxu0 0.0
    %1249 = vmatpush1.msra.mxu0 0.0
    %1250 = vmatprep.subr.mxu0 0.0
    %1251 = vmatpush1.msra.mxu0 0.0
    %1252 = vmatprep.subr.mxu0 0.0
    %1253 = vmatpush1.msra.mxu0 0.0
    %1254 = vmatprep.subr.mxu0 0.0
    %1255 = vmatpush1.msra.mxu0 0.0
    %1256 = vmatprep.subr.mxu0 0.0
    %1257 = vmatpush1.msra.mxu0 0.0
    %1258 = vmatprep.subr.mxu0 0.0
    %1259 = vmatpush1.msra.mxu0 0.0
    %1260 = vmatprep.subr.mxu0 0.0
    %1261 = vmatpush1.msra.mxu0 0.0
    %1262 = vmatprep.subr.mxu0 0.0
    %1263 = vmatpush1.msra.mxu0 0.0
    %1264 = vmatprep.subr.mxu0 0.0
    %1265 = vmatpush1.msra.mxu0 0.0
    %1266 = vmatprep.subr.mxu0 0.0
    %1267 = vmatpush1.msra.mxu0 0.0
    %1268 = vmatprep.subr.mxu0 0.0
    %1269 = vmatpush1.msra.mxu0 0.0
    %1270 = vmatprep.subr.mxu0 0.0
    %1271 = vmatpush1.msra.mxu0 0.0
    %1272 = vmatprep.subr.mxu0 0.0
    %1273 = vmatpush1.msra.mxu0 0.0
    %1274 = vmatprep.subr.mxu0 0.0
    %1275 = vmatpush1.msra.mxu0 0.0
    %1276 = vmatprep.subr.mxu0 0.0
    %1277 = vmatpush1.msra.mxu0 0.0
    %1278 = vmatprep.mubr.f32.mxu0 0.0
    %v1279 = vand.u32 %v1100, 4294901760
    %1280 = vmatmul.mubr.f32.gmra.mrb[0].mxu0 %v1279
    %v1281 = vpop.f32.mrb[0].mxu0
    %v1282 = vadd.f32 %v1181, %v1281
    %v1283 = vpop.f32.mrb[0].mxu0
    %1284 = vmatprep.mubr.f32.mxu0 0.0
    %v1285 = vand.u32 %v1103, 4294901760
    %1286 = vmatmul.mubr.f32.gmra.mrb[0].mxu0 %v1285
    %v1287 = vpop.f32.mrb[0].mxu0
    %v1288 = vadd.f32 %v1191, %v1287
    %v1289 = vpop.f32.mrb[0].mxu0
    %1290 = vdwg.mxu0
    %1291 = vmatprep.subr.mxu0 0.0
    %v1292 = vand.u32 %v1093, 4294901760
    %v1293 = vsub.f32 %v1093, %v1292
    %1294 = vmatpush1.msra.mxu0 %v1293
    %1295 = vmatprep.subr.mxu0 0.0
    %v1296 = vand.u32 %v1094, 4294901760
    %v1297 = vsub.f32 %v1094, %v1296
    %1298 = vmatpush1.msra.mxu0 %v1297
    %1299 = vmatprep.subr.mxu0 0.0
    %v1300 = vand.u32 %v1095, 4294901760
    %v1301 = vsub.f32 %v1095, %v1300
    %1302 = vmatpush1.msra.mxu0 %v1301
    %1303 = vmatprep.subr.mxu0 0.0
    %v1304 = vand.u32 %v1096, 4294901760
    %v1305 = vsub.f32 %v1096, %v1304
    %1306 = vmatpush1.msra.mxu0 %v1305
    %1307 = vmatprep.subr.mxu0 0.0
    %1308 = vmatpush1.msra.mxu0 0.0
    %1309 = vmatprep.subr.mxu0 0.0
    %1310 = vmatpush1.msra.mxu0 0.0
    %1311 = vmatprep.subr.mxu0 0.0
    %1312 = vmatpush1.msra.mxu0 0.0
    %1313 = vmatprep.subr.mxu0 0.0
    %1314 = vmatpush1.msra.mxu0 0.0
    %1315 = vmatprep.subr.mxu0 0.0
    %1316 = vmatpush1.msra.mxu0 0.0
    %1317 = vmatprep.subr.mxu0 0.0
    %1318 = vmatpush1.msra.mxu0 0.0
    %1319 = vmatprep.subr.mxu0 0.0
    %1320 = vmatpush1.msra.mxu0 0.0
    %1321 = vmatprep.subr.mxu0 0.0
    %1322 = vmatpush1.msra.mxu0 0.0
    %1323 = vmatprep.subr.mxu0 0.0
    %1324 = vmatpush1.msra.mxu0 0.0
    %1325 = vmatprep.subr.mxu0 0.0
    %1326 = vmatpush1.msra.mxu0 0.0
    %1327 = vmatprep.subr.mxu0 0.0
    %1328 = vmatpush1.msra.mxu0 0.0
    %1329 = vmatprep.subr.mxu0 0.0
    %1330 = vmatpush1.msra.mxu0 0.0
    %1331 = vmatprep.subr.mxu0 0.0
    %1332 = vmatpush1.msra.mxu0 0.0
    %1333 = vmatprep.subr.mxu0 0.0
    %1334 = vmatpush1.msra.mxu0 0.0
    %1335 = vmatprep.subr.mxu0 0.0
    %1336 = vmatpush1.msra.mxu0 0.0
    %1337 = vmatprep.subr.mxu0 0.0
    %1338 = vmatpush1.msra.mxu0 0.0
    %1339 = vmatprep.subr.mxu0 0.0
    %1340 = vmatpush1.msra.mxu0 0.0
    %1341 = vmatprep.subr.mxu0 0.0
    %1342 = vmatpush1.msra.mxu0 0.0
    %1343 = vmatprep.subr.mxu0 0.0
    %1344 = vmatpush1.msra.mxu0 0.0
    %1345 = vmatprep.subr.mxu0 0.0
    %1346 = vmatpush1.msra.mxu0 0.0
    %1347 = vmatprep.subr.mxu0 0.0
    %1348 = vmatpush1.msra.mxu0 0.0
    %1349 = vmatprep.subr.mxu0 0.0
    %1350 = vmatpush1.msra.mxu0 0.0
    %1351 = vmatprep.subr.mxu0 0.0
    %1352 = vmatpush1.msra.mxu0 0.0
    %1353 = vmatprep.subr.mxu0 0.0
    %1354 = vmatpush1.msra.mxu0 0.0
    %1355 = vmatprep.subr.mxu0 0.0
    %1356 = vmatpush1.msra.mxu0 0.0
    %1357 = vmatprep.subr.mxu0 0.0
    %1358 = vmatpush1.msra.mxu0 0.0
    %1359 = vmatprep.subr.mxu0 0.0
    %1360 = vmatpush1.msra.mxu0 0.0
    %1361 = vmatprep.subr.mxu0 0.0
    %1362 = vmatpush1.msra.mxu0 0.0
    %1363 = vmatprep.mubr.f32.mxu0 0.0
    %v1364 = vand.u32 %v1100, 4294901760
    %v1365 = vsub.f32 %v1100, %v1364
    %1366 = vmatmul.mubr.f32.gmra.mrb[0].mxu0 %v1365
    %v1367 = vpop.f32.mrb[0].mxu0
    %v1368 = vadd.f32 %v1282, %v1367
    %v1369 = vpop.f32.mrb[0].mxu0
    %1370 = vmatprep.mubr.f32.mxu0 0.0
    %v1371 = vand.u32 %v1103, 4294901760
    %v1372 = vsub.f32 %v1103, %v1371
    %1373 = vmatmul.mubr.f32.gmra.mrb[0].mxu0 %v1372
    %v1374 = vpop.f32.mrb[0].mxu0
    %v1375 = vadd.f32 %v1288, %v1374
    %v1376 = vpop.f32.mrb[0].mxu0
    %1377 = vdwg.mxu0
    %1378 = vmatprep.subr.mxu0 0.0
    %v1379 = vand.u32 %v1093, 4294901760
    %1380 = vmatpush1.msra.mxu0 %v1379
    %1381 = vmatprep.subr.mxu0 0.0
    %v1382 = vand.u32 %v1094, 4294901760
    %1383 = vmatpush1.msra.mxu0 %v1382
    %1384 = vmatprep.subr.mxu0 0.0
    %v1385 = vand.u32 %v1095, 4294901760
    %1386 = vmatpush1.msra.mxu0 %v1385
    %1387 = vmatprep.subr.mxu0 0.0
    %v1388 = vand.u32 %v1096, 4294901760
    %1389 = vmatpush1.msra.mxu0 %v1388
    %1390 = vmatprep.subr.mxu0 0.0
    %1391 = vmatpush1.msra.mxu0 0.0
    %1392 = vmatprep.subr.mxu0 0.0
    %1393 = vmatpush1.msra.mxu0 0.0
    %1394 = vmatprep.subr.mxu0 0.0
    %1395 = vmatpush1.msra.mxu0 0.0
    %1396 = vmatprep.subr.mxu0 0.0
    %1397 = vmatpush1.msra.mxu0 0.0
    %1398 = vmatprep.subr.mxu0 0.0
    %1399 = vmatpush1.msra.mxu0 0.0
    %1400 = vmatprep.subr.mxu0 0.0
    %1401 = vmatpush1.msra.mxu0 0.0
    %1402 = vmatprep.subr.mxu0 0.0
    %1403 = vmatpush1.msra.mxu0 0.0
    %1404 = vmatprep.subr.mxu0 0.0
    %1405 = vmatpush1.msra.mxu0 0.0
    %1406 = vmatprep.subr.mxu0 0.0
    %1407 = vmatpush1.msra.mxu0 0.0
    %1408 = vmatprep.subr.mxu0 0.0
    %1409 = vmatpush1.msra.mxu0 0.0
    %1410 = vmatprep.subr.mxu0 0.0
    %1411 = vmatpush1.msra.mxu0 0.0
    %1412 = vmatprep.subr.mxu0 0.0
    %1413 = vmatpush1.msra.mxu0 0.0
    %1414 = vmatprep.subr.mxu0 0.0
    %1415 = vmatpush1.msra.mxu0 0.0
    %1416 = vmatprep.subr.mxu0 0.0
    %1417 = vmatpush1.msra.mxu0 0.0
    %1418 = vmatprep.subr.mxu0 0.0
    %1419 = vmatpush1.msra.mxu0 0.0
    %1420 = vmatprep.subr.mxu0 0.0
    %1421 = vmatpush1.msra.mxu0 0.0
    %1422 = vmatprep.subr.mxu0 0.0
    %1423 = vmatpush1.msra.mxu0 0.0
    %1424 = vmatprep.subr.mxu0 0.0
    %1425 = vmatpush1.msra.mxu0 0.0
    %1426 = vmatprep.subr.mxu0 0.0
    %1427 = vmatpush1.msra.mxu0 0.0
    %1428 = vmatprep.subr.mxu0 0.0
    %1429 = vmatpush1.msra.mxu0 0.0
    %1430 = vmatprep.subr.mxu0 0.0
    %1431 = vmatpush1.msra.mxu0 0.0
    %1432 = vmatprep.subr.mxu0 0.0
    %1433 = vmatpush1.msra.mxu0 0.0
    %1434 = vmatprep.subr.mxu0 0.0
    %1435 = vmatpush1.msra.mxu0 0.0
    %1436 = vmatprep.subr.mxu0 0.0
    %1437 = vmatpush1.msra.mxu0 0.0
    %1438 = vmatprep.subr.mxu0 0.0
    %1439 = vmatpush1.msra.mxu0 0.0
    %1440 = vmatprep.subr.mxu0 0.0
    %1441 = vmatpush1.msra.mxu0 0.0
    %1442 = vmatprep.subr.mxu0 0.0
    %1443 = vmatpush1.msra.mxu0 0.0
    %1444 = vmatprep.subr.mxu0 0.0
    %1445 = vmatpush1.msra.mxu0 0.0
    %1446 = vmatprep.mubr.f32.mxu0 0.0
    %v1447 = vand.u32 %v1100, 4294901760
    %v1448 = vsub.f32 %v1100, %v1447
    %v1449 = vand.u32 %v1448, 4294901760
    %1450 = vmatmul.mubr.f32.gmra.mrb[0].mxu0 %v1449
    %v1451 = vpop.f32.mrb[0].mxu0
    %v1452 = vadd.f32 %v1368, %v1451
    %v1453 = vpop.f32.mrb[0].mxu0
    %1454 = vmatprep.mubr.f32.mxu0 0.0
    %v1455 = vand.u32 %v1103, 4294901760
    %v1456 = vsub.f32 %v1103, %v1455
    %v1457 = vand.u32 %v1456, 4294901760
    %1458 = vmatmul.mubr.f32.gmra.mrb[0].mxu0 %v1457
    %v1459 = vpop.f32.mrb[0].mxu0
    %v1460 = vadd.f32 %v1375, %v1459
    %v1461 = vpop.f32.mrb[0].mxu0
    %1462 = vdwg.mxu0
    %1463 = vmatprep.subr.mxu0 0.0
    %v1464 = vand.u32 %v1093, 4294901760
    %v1465 = vsub.f32 %v1093, %v1464
    %v1466 = vand.u32 %v1465, 4294901760
    %1467 = vmatpush1.msra.mxu0 %v1466
    %1468 = vmatprep.subr.mxu0 0.0
    %v1469 = vand.u32 %v1094, 4294901760
    %v1470 = vsub.f32 %v1094, %v1469
    %v1471 = vand.u32 %v1470, 4294901760
    %1472 = vmatpush1.msra.mxu0 %v1471
    %1473 = vmatprep.subr.mxu0 0.0
    %v1474 = vand.u32 %v1095, 4294901760
    %v1475 = vsub.f32 %v1095, %v1474
    %v1476 = vand.u32 %v1475, 4294901760
    %1477 = vmatpush1.msra.mxu0 %v1476
    %1478 = vmatprep.subr.mxu0 0.0
    %v1479 = vand.u32 %v1096, 4294901760
    %v1480 = vsub.f32 %v1096, %v1479
    %v1481 = vand.u32 %v1480, 4294901760
    %1482 = vmatpush1.msra.mxu0 %v1481
    %1483 = vmatprep.subr.mxu0 0.0
    %1484 = vmatpush1.msra.mxu0 0.0
    %1485 = vmatprep.subr.mxu0 0.0
    %1486 = vmatpush1.msra.mxu0 0.0
    %1487 = vmatprep.subr.mxu0 0.0
    %1488 = vmatpush1.msra.mxu0 0.0
    %1489 = vmatprep.subr.mxu0 0.0
    %1490 = vmatpush1.msra.mxu0 0.0
    %1491 = vmatprep.subr.mxu0 0.0
    %1492 = vmatpush1.msra.mxu0 0.0
    %1493 = vmatprep.subr.mxu0 0.0
    %1494 = vmatpush1.msra.mxu0 0.0
    %1495 = vmatprep.subr.mxu0 0.0
    %1496 = vmatpush1.msra.mxu0 0.0
    %1497 = vmatprep.subr.mxu0 0.0
    %1498 = vmatpush1.msra.mxu0 0.0
    %1499 = vmatprep.subr.mxu0 0.0
    %1500 = vmatpush1.msra.mxu0 0.0
    %1501 = vmatprep.subr.mxu0 0.0
    %1502 = vmatpush1.msra.mxu0 0.0
    %1503 = vmatprep.subr.mxu0 0.0
    %1504 = vmatpush1.msra.mxu0 0.0
    %1505 = vmatprep.subr.mxu0 0.0
    %1506 = vmatpush1.msra.mxu0 0.0
    %1507 = vmatprep.subr.mxu0 0.0
    %1508 = vmatpush1.msra.mxu0 0.0
    %1509 = vmatprep.subr.mxu0 0.0
    %1510 = vmatpush1.msra.mxu0 0.0
    %1511 = vmatprep.subr.mxu0 0.0
    %1512 = vmatpush1.msra.mxu0 0.0
    %1513 = vmatprep.subr.mxu0 0.0
    %1514 = vmatpush1.msra.mxu0 0.0
    %1515 = vmatprep.subr.mxu0 0.0
    %1516 = vmatpush1.msra.mxu0 0.0
    %1517 = vmatprep.subr.mxu0 0.0
    %1518 = vmatpush1.msra.mxu0 0.0
    %1519 = vmatprep.subr.mxu0 0.0
    %1520 = vmatpush1.msra.mxu0 0.0
    %1521 = vmatprep.subr.mxu0 0.0
    %1522 = vmatpush1.msra.mxu0 0.0
    %1523 = vmatprep.subr.mxu0 0.0
    %1524 = vmatpush1.msra.mxu0 0.0
    %1525 = vmatprep.subr.mxu0 0.0
    %1526 = vmatpush1.msra.mxu0 0.0
    %1527 = vmatprep.subr.mxu0 0.0
    %1528 = vmatpush1.msra.mxu0 0.0
    %1529 = vmatprep.subr.mxu0 0.0
    %1530 = vmatpush1.msra.mxu0 0.0
    %1531 = vmatprep.subr.mxu0 0.0
    %1532 = vmatpush1.msra.mxu0 0.0
    %1533 = vmatprep.subr.mxu0 0.0
    %1534 = vmatpush1.msra.mxu0 0.0
    %1535 = vmatprep.subr.mxu0 0.0
    %1536 = vmatpush1.msra.mxu0 0.0
    %1537 = vmatprep.subr.mxu0 0.0
    %1538 = vmatpush1.msra.mxu0 0.0
    %1539 = vmatprep.mubr.f32.mxu0 0.0
    %v1540 = vand.u32 %v1100, 4294901760
    %1541 = vmatmul.mubr.f32.gmra.mrb[0].mxu0 %v1540
    %v1542 = vpop.f32.mrb[0].mxu0
    %v1543 = vadd.f32 %v1452, %v1542
    %v1544 = vpop.f32.mrb[0].mxu0
    %1545 = vmatprep.mubr.f32.mxu0 0.0
    %v1546 = vand.u32 %v1103, 4294901760
    %1547 = vmatmul.mubr.f32.gmra.mrb[0].mxu0 %v1546
    %v1548 = vpop.f32.mrb[0].mxu0
    %v1549 = vadd.f32 %v1460, %v1548
    %v1550 = vpop.f32.mrb[0].mxu0
    %1551 = vdwg.mxu0
    %1552 = vmatprep.subr.mxu0 0.0
    %v1553 = vand.u32 %v1093, 4294901760
    %1554 = vmatpush1.msra.mxu0 %v1553
    %1555 = vmatprep.subr.mxu0 0.0
    %v1556 = vand.u32 %v1094, 4294901760
    %1557 = vmatpush1.msra.mxu0 %v1556
    %1558 = vmatprep.subr.mxu0 0.0
    %v1559 = vand.u32 %v1095, 4294901760
    %1560 = vmatpush1.msra.mxu0 %v1559
    %1561 = vmatprep.subr.mxu0 0.0
    %v1562 = vand.u32 %v1096, 4294901760
    %1563 = vmatpush1.msra.mxu0 %v1562
    %1564 = vmatprep.subr.mxu0 0.0
    %1565 = vmatpush1.msra.mxu0 0.0
    %1566 = vmatprep.subr.mxu0 0.0
    %1567 = vmatpush1.msra.mxu0 0.0
    %1568 = vmatprep.subr.mxu0 0.0
    %1569 = vmatpush1.msra.mxu0 0.0
    %1570 = vmatprep.subr.mxu0 0.0
    %1571 = vmatpush1.msra.mxu0 0.0
    %1572 = vmatprep.subr.mxu0 0.0
    %1573 = vmatpush1.msra.mxu0 0.0
    %1574 = vmatprep.subr.mxu0 0.0
    %1575 = vmatpush1.msra.mxu0 0.0
    %1576 = vmatprep.subr.mxu0 0.0
    %1577 = vmatpush1.msra.mxu0 0.0
    %1578 = vmatprep.subr.mxu0 0.0
    %1579 = vmatpush1.msra.mxu0 0.0
    %1580 = vmatprep.subr.mxu0 0.0
    %1581 = vmatpush1.msra.mxu0 0.0
    %1582 = vmatprep.subr.mxu0 0.0
    %1583 = vmatpush1.msra.mxu0 0.0
    %1584 = vmatprep.subr.mxu0 0.0
    %1585 = vmatpush1.msra.mxu0 0.0
    %1586 = vmatprep.subr.mxu0 0.0
    %1587 = vmatpush1.msra.mxu0 0.0
    %1588 = vmatprep.subr.mxu0 0.0
    %1589 = vmatpush1.msra.mxu0 0.0
    %1590 = vmatprep.subr.mxu0 0.0
    %1591 = vmatpush1.msra.mxu0 0.0
    %1592 = vmatprep.subr.mxu0 0.0
    %1593 = vmatpush1.msra.mxu0 0.0
    %1594 = vmatprep.subr.mxu0 0.0
    %1595 = vmatpush1.msra.mxu0 0.0
    %1596 = vmatprep.subr.mxu0 0.0
    %1597 = vmatpush1.msra.mxu0 0.0
    %1598 = vmatprep.subr.mxu0 0.0
    %1599 = vmatpush1.msra.mxu0 0.0
    %1600 = vmatprep.subr.mxu0 0.0
    %1601 = vmatpush1.msra.mxu0 0.0
    %1602 = vmatprep.subr.mxu0 0.0
    %1603 = vmatpush1.msra.mxu0 0.0
    %1604 = vmatprep.subr.mxu0 0.0
    %1605 = vmatpush1.msra.mxu0 0.0
    %1606 = vmatprep.subr.mxu0 0.0
    %1607 = vmatpush1.msra.mxu0 0.0
    %1608 = vmatprep.subr.mxu0 0.0
    %1609 = vmatpush1.msra.mxu0 0.0
    %1610 = vmatprep.subr.mxu0 0.0
    %1611 = vmatpush1.msra.mxu0 0.0
    %1612 = vmatprep.subr.mxu0 0.0
    %1613 = vmatpush1.msra.mxu0 0.0
    %1614 = vmatprep.subr.mxu0 0.0
    %1615 = vmatpush1.msra.mxu0 0.0
    %1616 = vmatprep.subr.mxu0 0.0
    %1617 = vmatpush1.msra.mxu0 0.0
    %1618 = vmatprep.subr.mxu0 0.0
    %1619 = vmatpush1.msra.mxu0 0.0
    %1620 = vmatprep.mubr.f32.mxu0 0.0
    %v1621 = vand.u32 %v1100, 4294901760
    %1622 = vmatmul.mubr.f32.gmra.mrb[0].mxu0 %v1621
    %v1623 = vpop.f32.mrb[0].mxu0
    %v1624 = vadd.f32 %v1543, %v1623
    %v1625 = vpop.f32.mrb[0].mxu0
    %1626 = vmatprep.mubr.f32.mxu0 0.0
    %v1627 = vand.u32 %v1103, 4294901760
    %1628 = vmatmul.mubr.f32.gmra.mrb[0].mxu0 %v1627
    %v1629 = vpop.f32.mrb[0].mxu0
    %v1630 = vadd.f32 %v1549, %v1629
    %v1631 = vpop.f32.mrb[0].mxu0
    %1632 = vdwg.mxu0
    %v1634 = vlaneseq
    %v1635 = vshrl.u32 %v1634, 7
    %v1636 = vsub.s32 0, %v1635
    %v1637 = vrot.slane %v1097, %v1636
    %1639 = vmatprep.subr.mxu0 0.0
    %v1640 = vand.u32 %v1624, 4294901760
    %1641 = vmatpush1.msra.mxu0 %v1640
    %1642 = vmatprep.subr.mxu0 0.0
    %v1643 = vand.u32 %v1630, 4294901760
    %1644 = vmatpush1.msra.mxu0 %v1643
    %1645 = vmatprep.subr.mxu0 0.0
    %1646 = vmatpush1.msra.mxu0 0.0
    %1647 = vmatprep.subr.mxu0 0.0
    %1648 = vmatpush1.msra.mxu0 0.0
    %1649 = vmatprep.subr.mxu0 0.0
    %1650 = vmatpush1.msra.mxu0 0.0
    %1651 = vmatprep.subr.mxu0 0.0
    %1652 = vmatpush1.msra.mxu0 0.0
    %1653 = vmatprep.subr.mxu0 0.0
    %1654 = vmatpush1.msra.mxu0 0.0
    %1655 = vmatprep.subr.mxu0 0.0
    %1656 = vmatpush1.msra.mxu0 0.0
    %1657 = vmatprep.subr.mxu0 0.0
    %1658 = vmatpush1.msra.mxu0 0.0
    %1659 = vmatprep.subr.mxu0 0.0
    %1660 = vmatpush1.msra.mxu0 0.0
    %1661 = vmatprep.subr.mxu0 0.0
    %1662 = vmatpush1.msra.mxu0 0.0
    %1663 = vmatprep.subr.mxu0 0.0
    %1664 = vmatpush1.msra.mxu0 0.0
    %1665 = vmatprep.subr.mxu0 0.0
    %1666 = vmatpush1.msra.mxu0 0.0
    %1667 = vmatprep.subr.mxu0 0.0
    %1668 = vmatpush1.msra.mxu0 0.0
    %1669 = vmatprep.subr.mxu0 0.0
    %1670 = vmatpush1.msra.mxu0 0.0
    %1671 = vmatprep.subr.mxu0 0.0
    %1672 = vmatpush1.msra.mxu0 0.0
    %1673 = vmatprep.subr.mxu0 0.0
    %1674 = vmatpush1.msra.mxu0 0.0
    %1675 = vmatprep.subr.mxu0 0.0
    %1676 = vmatpush1.msra.mxu0 0.0
    %1677 = vmatprep.subr.mxu0 0.0
    %1678 = vmatpush1.msra.mxu0 0.0
    %1679 = vmatprep.subr.mxu0 0.0
    %1680 = vmatpush1.msra.mxu0 0.0
    %1681 = vmatprep.subr.mxu0 0.0
    %1682 = vmatpush1.msra.mxu0 0.0
    %1683 = vmatprep.subr.mxu0 0.0
    %1684 = vmatpush1.msra.mxu0 0.0
    %1685 = vmatprep.subr.mxu0 0.0
    %1686 = vmatpush1.msra.mxu0 0.0
    %1687 = vmatprep.subr.mxu0 0.0
    %1688 = vmatpush1.msra.mxu0 0.0
    %1689 = vmatprep.subr.mxu0 0.0
    %1690 = vmatpush1.msra.mxu0 0.0
    %1691 = vmatprep.subr.mxu0 0.0
    %1692 = vmatpush1.msra.mxu0 0.0
    %1693 = vmatprep.subr.mxu0 0.0
    %1694 = vmatpush1.msra.mxu0 0.0
    %1695 = vmatprep.subr.mxu0 0.0
    %1696 = vmatpush1.msra.mxu0 0.0
    %1697 = vmatprep.subr.mxu0 0.0
    %1698 = vmatpush1.msra.mxu0 0.0
    %1699 = vmatprep.subr.mxu0 0.0
    %1700 = vmatpush1.msra.mxu0 0.0
    %1701 = vmatprep.subr.mxu0 0.0
    %1702 = vmatpush1.msra.mxu0 0.0
    %1703 = vmatprep.subr.mxu0 0.0
    %1704 = vmatpush1.msra.mxu0 0.0
    %1705 = vmatprep.mubr.f32.mxu0 0.0
    %v1706 = vand.u32 %v584, 4294901760
    %v1707 = vsub.f32 %v584, %v1706
    %v1708 = vand.u32 %v1707, 4294901760
    %v1709 = vsub.f32 %v1707, %v1708
    %v1710 = vand.u32 %v1709, 4294901760
    %1711 = vmatmul.mubr.f32.gmra.mrb[0].mxu0 %v1710
    %v1712 = vpop.f32.mrb[0].mxu0
    %v1713 = vadd.f32 %v1637, %v1712
    %v1714 = vpop.f32.mrb[0].mxu0
    %1715 = vmatprep.mubr.f32.mxu0 0.0
    %v1716 = vand.u32 %v587, 4294901760
    %v1717 = vsub.f32 %v587, %v1716
    %v1718 = vand.u32 %v1717, 4294901760
    %v1719 = vsub.f32 %v1717, %v1718
    %v1720 = vand.u32 %v1719, 4294901760
    %1721 = vmatmul.mubr.f32.gmra.mrb[0].mxu0 %v1720
    %v1722 = vpop.f32.mrb[0].mxu0
    %v1723 = vadd.f32 %v1637, %v1722
    %v1724 = vpop.f32.mrb[0].mxu0
    %1725 = vdwg.mxu0
    %1726 = vmatprep.subr.mxu0 0.0
    %v1727 = vand.u32 %v1624, 4294901760
    %v1728 = vsub.f32 %v1624, %v1727
    %v1729 = vand.u32 %v1728, 4294901760
    %v1730 = vsub.f32 %v1728, %v1729
    %v1731 = vand.u32 %v1730, 4294901760
    %1732 = vmatpush1.msra.mxu0 %v1731
    %1733 = vmatprep.subr.mxu0 0.0
    %v1734 = vand.u32 %v1630, 4294901760
    %v1735 = vsub.f32 %v1630, %v1734
    %v1736 = vand.u32 %v1735, 4294901760
    %v1737 = vsub.f32 %v1735, %v1736
    %v1738 = vand.u32 %v1737, 4294901760
    %1739 = vmatpush1.msra.mxu0 %v1738
    %1740 = vmatprep.subr.mxu0 0.0
    %1741 = vmatpush1.msra.mxu0 0.0
    %1742 = vmatprep.subr.mxu0 0.0
    %1743 = vmatpush1.msra.mxu0 0.0
    %1744 = vmatprep.subr.mxu0 0.0
    %1745 = vmatpush1.msra.mxu0 0.0
    %1746 = vmatprep.subr.mxu0 0.0
    %1747 = vmatpush1.msra.mxu0 0.0
    %1748 = vmatprep.subr.mxu0 0.0
    %1749 = vmatpush1.msra.mxu0 0.0
    %1750 = vmatprep.subr.mxu0 0.0
    %1751 = vmatpush1.msra.mxu0 0.0
    %1752 = vmatprep.subr.mxu0 0.0
    %1753 = vmatpush1.msra.mxu0 0.0
    %1754 = vmatprep.subr.mxu0 0.0
    %1755 = vmatpush1.msra.mxu0 0.0
    %1756 = vmatprep.subr.mxu0 0.0
    %1757 = vmatpush1.msra.mxu0 0.0
    %1758 = vmatprep.subr.mxu0 0.0
    %1759 = vmatpush1.msra.mxu0 0.0
    %1760 = vmatprep.subr.mxu0 0.0
    %1761 = vmatpush1.msra.mxu0 0.0
    %1762 = vmatprep.subr.mxu0 0.0
    %1763 = vmatpush1.msra.mxu0 0.0
    %1764 = vmatprep.subr.mxu0 0.0
    %1765 = vmatpush1.msra.mxu0 0.0
    %1766 = vmatprep.subr.mxu0 0.0
    %1767 = vmatpush1.msra.mxu0 0.0
    %1768 = vmatprep.subr.mxu0 0.0
    %1769 = vmatpush1.msra.mxu0 0.0
    %1770 = vmatprep.subr.mxu0 0.0
    %1771 = vmatpush1.msra.mxu0 0.0
    %1772 = vmatprep.subr.mxu0 0.0
    %1773 = vmatpush1.msra.mxu0 0.0
    %1774 = vmatprep.subr.mxu0 0.0
    %1775 = vmatpush1.msra.mxu0 0.0
    %1776 = vmatprep.subr.mxu0 0.0
    %1777 = vmatpush1.msra.mxu0 0.0
    %1778 = vmatprep.subr.mxu0 0.0
    %1779 = vmatpush1.msra.mxu0 0.0
    %1780 = vmatprep.subr.mxu0 0.0
    %1781 = vmatpush1.msra.mxu0 0.0
    %1782 = vmatprep.subr.mxu0 0.0
    %1783 = vmatpush1.msra.mxu0 0.0
    %1784 = vmatprep.subr.mxu0 0.0
    %1785 = vmatpush1.msra.mxu0 0.0
    %1786 = vmatprep.subr.mxu0 0.0
    %1787 = vmatpush1.msra.mxu0 0.0
    %1788 = vmatprep.subr.mxu0 0.0
    %1789 = vmatpush1.msra.mxu0 0.0
    %1790 = vmatprep.subr.mxu0 0.0
    %1791 = vmatpush1.msra.mxu0 0.0
    %1792 = vmatprep.subr.mxu0 0.0
    %1793 = vmatpush1.msra.mxu0 0.0
    %1794 = vmatprep.subr.mxu0 0.0
    %1795 = vmatpush1.msra.mxu0 0.0
    %1796 = vmatprep.subr.mxu0 0.0
    %1797 = vmatpush1.msra.mxu0 0.0
    %1798 = vmatprep.subr.mxu0 0.0
    %1799 = vmatpush1.msra.mxu0 0.0
    %1800 = vmatprep.mubr.f32.mxu0 0.0
    %v1801 = vand.u32 %v584, 4294901760
    %1802 = vmatmul.mubr.f32.gmra.mrb[0].mxu0 %v1801
    %v1803 = vpop.f32.mrb[0].mxu0
    %v1804 = vadd.f32 %v1713, %v1803
    %v1805 = vpop.f32.mrb[0].mxu0
    %1806 = vmatprep.mubr.f32.mxu0 0.0
    %v1807 = vand.u32 %v587, 4294901760
    %1808 = vmatmul.mubr.f32.gmra.mrb[0].mxu0 %v1807
    %v1809 = vpop.f32.mrb[0].mxu0
    %v1810 = vadd.f32 %v1723, %v1809
    %v1811 = vpop.f32.mrb[0].mxu0
    %1812 = vdwg.mxu0
    %1813 = vmatprep.subr.mxu0 0.0
    %v1814 = vand.u32 %v1624, 4294901760
    %v1815 = vsub.f32 %v1624, %v1814
    %1816 = vmatpush1.msra.mxu0 %v1815
    %1817 = vmatprep.subr.mxu0 0.0
    %v1818 = vand.u32 %v1630, 4294901760
    %v1819 = vsub.f32 %v1630, %v1818
    %1820 = vmatpush1.msra.mxu0 %v1819
    %1821 = vmatprep.subr.mxu0 0.0
    %1822 = vmatpush1.msra.mxu0 0.0
    %1823 = vmatprep.subr.mxu0 0.0
    %1824 = vmatpush1.msra.mxu0 0.0
    %1825 = vmatprep.subr.mxu0 0.0
    %1826 = vmatpush1.msra.mxu0 0.0
    %1827 = vmatprep.subr.mxu0 0.0
    %1828 = vmatpush1.msra.mxu0 0.0
    %1829 = vmatprep.subr.mxu0 0.0
    %1830 = vmatpush1.msra.mxu0 0.0
    %1831 = vmatprep.subr.mxu0 0.0
    %1832 = vmatpush1.msra.mxu0 0.0
    %1833 = vmatprep.subr.mxu0 0.0
    %1834 = vmatpush1.msra.mxu0 0.0
    %1835 = vmatprep.subr.mxu0 0.0
    %1836 = vmatpush1.msra.mxu0 0.0
    %1837 = vmatprep.subr.mxu0 0.0
    %1838 = vmatpush1.msra.mxu0 0.0
    %1839 = vmatprep.subr.mxu0 0.0
    %1840 = vmatpush1.msra.mxu0 0.0
    %1841 = vmatprep.subr.mxu0 0.0
    %1842 = vmatpush1.msra.mxu0 0.0
    %1843 = vmatprep.subr.mxu0 0.0
    %1844 = vmatpush1.msra.mxu0 0.0
    %1845 = vmatprep.subr.mxu0 0.0
    %1846 = vmatpush1.msra.mxu0 0.0
    %1847 = vmatprep.subr.mxu0 0.0
    %1848 = vmatpush1.msra.mxu0 0.0
    %1849 = vmatprep.subr.mxu0 0.0
    %1850 = vmatpush1.msra.mxu0 0.0
    %1851 = vmatprep.subr.mxu0 0.0
    %1852 = vmatpush1.msra.mxu0 0.0
    %1853 = vmatprep.subr.mxu0 0.0
    %1854 = vmatpush1.msra.mxu0 0.0
    %1855 = vmatprep.subr.mxu0 0.0
    %1856 = vmatpush1.msra.mxu0 0.0
    %1857 = vmatprep.subr.mxu0 0.0
    %1858 = vmatpush1.msra.mxu0 0.0
    %1859 = vmatprep.subr.mxu0 0.0
    %1860 = vmatpush1.msra.mxu0 0.0
    %1861 = vmatprep.subr.mxu0 0.0
    %1862 = vmatpush1.msra.mxu0 0.0
    %1863 = vmatprep.subr.mxu0 0.0
    %1864 = vmatpush1.msra.mxu0 0.0
    %1865 = vmatprep.subr.mxu0 0.0
    %1866 = vmatpush1.msra.mxu0 0.0
    %1867 = vmatprep.subr.mxu0 0.0
    %1868 = vmatpush1.msra.mxu0 0.0
    %1869 = vmatprep.subr.mxu0 0.0
    %1870 = vmatpush1.msra.mxu0 0.0
    %1871 = vmatprep.subr.mxu0 0.0
    %1872 = vmatpush1.msra.mxu0 0.0
    %1873 = vmatprep.subr.mxu0 0.0
    %1874 = vmatpush1.msra.mxu0 0.0
    %1875 = vmatprep.subr.mxu0 0.0
    %1876 = vmatpush1.msra.mxu0 0.0
    %1877 = vmatprep.subr.mxu0 0.0
    %1878 = vmatpush1.msra.mxu0 0.0
    %1879 = vmatprep.subr.mxu0 0.0
    %1880 = vmatpush1.msra.mxu0 0.0
    %1881 = vmatprep.mubr.f32.mxu0 0.0
    %v1882 = vand.u32 %v584, 4294901760
    %v1883 = vsub.f32 %v584, %v1882
    %1884 = vmatmul.mubr.f32.gmra.mrb[0].mxu0 %v1883
    %v1885 = vpop.f32.mrb[0].mxu0
    %v1886 = vadd.f32 %v1804, %v1885
    %v1887 = vpop.f32.mrb[0].mxu0
    %1888 = vmatprep.mubr.f32.mxu0 0.0
    %v1889 = vand.u32 %v587, 4294901760
    %v1890 = vsub.f32 %v587, %v1889
    %1891 = vmatmul.mubr.f32.gmra.mrb[0].mxu0 %v1890
    %v1892 = vpop.f32.mrb[0].mxu0
    %v1893 = vadd.f32 %v1810, %v1892
    %v1894 = vpop.f32.mrb[0].mxu0
    %1895 = vdwg.mxu0
    %1896 = vmatprep.subr.mxu0 0.0
    %v1897 = vand.u32 %v1624, 4294901760
    %1898 = vmatpush1.msra.mxu0 %v1897
    %1899 = vmatprep.subr.mxu0 0.0
    %v1900 = vand.u32 %v1630, 4294901760
    %1901 = vmatpush1.msra.mxu0 %v1900
    %1902 = vmatprep.subr.mxu0 0.0
    %1903 = vmatpush1.msra.mxu0 0.0
    %1904 = vmatprep.subr.mxu0 0.0
    %1905 = vmatpush1.msra.mxu0 0.0
    %1906 = vmatprep.subr.mxu0 0.0
    %1907 = vmatpush1.msra.mxu0 0.0
    %1908 = vmatprep.subr.mxu0 0.0
    %1909 = vmatpush1.msra.mxu0 0.0
    %1910 = vmatprep.subr.mxu0 0.0
    %1911 = vmatpush1.msra.mxu0 0.0
    %1912 = vmatprep.subr.mxu0 0.0
    %1913 = vmatpush1.msra.mxu0 0.0
    %1914 = vmatprep.subr.mxu0 0.0
    %1915 = vmatpush1.msra.mxu0 0.0
    %1916 = vmatprep.subr.mxu0 0.0
    %1917 = vmatpush1.msra.mxu0 0.0
    %1918 = vmatprep.subr.mxu0 0.0
    %1919 = vmatpush1.msra.mxu0 0.0
    %1920 = vmatprep.subr.mxu0 0.0
    %1921 = vmatpush1.msra.mxu0 0.0
    %1922 = vmatprep.subr.mxu0 0.0
    %1923 = vmatpush1.msra.mxu0 0.0
    %1924 = vmatprep.subr.mxu0 0.0
    %1925 = vmatpush1.msra.mxu0 0.0
    %1926 = vmatprep.subr.mxu0 0.0
    %1927 = vmatpush1.msra.mxu0 0.0
    %1928 = vmatprep.subr.mxu0 0.0
    %1929 = vmatpush1.msra.mxu0 0.0
    %1930 = vmatprep.subr.mxu0 0.0
    %1931 = vmatpush1.msra.mxu0 0.0
    %1932 = vmatprep.subr.mxu0 0.0
    %1933 = vmatpush1.msra.mxu0 0.0
    %1934 = vmatprep.subr.mxu0 0.0
    %1935 = vmatpush1.msra.mxu0 0.0
    %1936 = vmatprep.subr.mxu0 0.0
    %1937 = vmatpush1.msra.mxu0 0.0
    %1938 = vmatprep.subr.mxu0 0.0
    %1939 = vmatpush1.msra.mxu0 0.0
    %1940 = vmatprep.subr.mxu0 0.0
    %1941 = vmatpush1.msra.mxu0 0.0
    %1942 = vmatprep.subr.mxu0 0.0
    %1943 = vmatpush1.msra.mxu0 0.0
    %1944 = vmatprep.subr.mxu0 0.0
    %1945 = vmatpush1.msra.mxu0 0.0
    %1946 = vmatprep.subr.mxu0 0.0
    %1947 = vmatpush1.msra.mxu0 0.0
    %1948 = vmatprep.subr.mxu0 0.0
    %1949 = vmatpush1.msra.mxu0 0.0
    %1950 = vmatprep.subr.mxu0 0.0
    %1951 = vmatpush1.msra.mxu0 0.0
    %1952 = vmatprep.subr.mxu0 0.0
    %1953 = vmatpush1.msra.mxu0 0.0
    %1954 = vmatprep.subr.mxu0 0.0
    %1955 = vmatpush1.msra.mxu0 0.0
    %1956 = vmatprep.subr.mxu0 0.0
    %1957 = vmatpush1.msra.mxu0 0.0
    %1958 = vmatprep.subr.mxu0 0.0
    %1959 = vmatpush1.msra.mxu0 0.0
    %1960 = vmatprep.subr.mxu0 0.0
    %1961 = vmatpush1.msra.mxu0 0.0
    %1962 = vmatprep.mubr.f32.mxu0 0.0
    %v1963 = vand.u32 %v584, 4294901760
    %v1964 = vsub.f32 %v584, %v1963
    %v1965 = vand.u32 %v1964, 4294901760
    %1966 = vmatmul.mubr.f32.gmra.mrb[0].mxu0 %v1965
    %v1967 = vpop.f32.mrb[0].mxu0
    %v1968 = vadd.f32 %v1886, %v1967
    %v1969 = vpop.f32.mrb[0].mxu0
    %1970 = vmatprep.mubr.f32.mxu0 0.0
    %v1971 = vand.u32 %v587, 4294901760
    %v1972 = vsub.f32 %v587, %v1971
    %v1973 = vand.u32 %v1972, 4294901760
    %1974 = vmatmul.mubr.f32.gmra.mrb[0].mxu0 %v1973
    %v1975 = vpop.f32.mrb[0].mxu0
    %v1976 = vadd.f32 %v1893, %v1975
    %v1977 = vpop.f32.mrb[0].mxu0
    %1978 = vdwg.mxu0
    %1979 = vmatprep.subr.mxu0 0.0
    %v1980 = vand.u32 %v1624, 4294901760
    %v1981 = vsub.f32 %v1624, %v1980
    %v1982 = vand.u32 %v1981, 4294901760
    %1983 = vmatpush1.msra.mxu0 %v1982
    %1984 = vmatprep.subr.mxu0 0.0
    %v1985 = vand.u32 %v1630, 4294901760
    %v1986 = vsub.f32 %v1630, %v1985
    %v1987 = vand.u32 %v1986, 4294901760
    %1988 = vmatpush1.msra.mxu0 %v1987
    %1989 = vmatprep.subr.mxu0 0.0
    %1990 = vmatpush1.msra.mxu0 0.0
    %1991 = vmatprep.subr.mxu0 0.0
    %1992 = vmatpush1.msra.mxu0 0.0
    %1993 = vmatprep.subr.mxu0 0.0
    %1994 = vmatpush1.msra.mxu0 0.0
    %1995 = vmatprep.subr.mxu0 0.0
    %1996 = vmatpush1.msra.mxu0 0.0
    %1997 = vmatprep.subr.mxu0 0.0
    %1998 = vmatpush1.msra.mxu0 0.0
    %1999 = vmatprep.subr.mxu0 0.0
    %2000 = vmatpush1.msra.mxu0 0.0
    %2001 = vmatprep.subr.mxu0 0.0
    %2002 = vmatpush1.msra.mxu0 0.0
    %2003 = vmatprep.subr.mxu0 0.0
    %2004 = vmatpush1.msra.mxu0 0.0
    %2005 = vmatprep.subr.mxu0 0.0
    %2006 = vmatpush1.msra.mxu0 0.0
    %2007 = vmatprep.subr.mxu0 0.0
    %2008 = vmatpush1.msra.mxu0 0.0
    %2009 = vmatprep.subr.mxu0 0.0
    %2010 = vmatpush1.msra.mxu0 0.0
    %2011 = vmatprep.subr.mxu0 0.0
    %2012 = vmatpush1.msra.mxu0 0.0
    %2013 = vmatprep.subr.mxu0 0.0
    %2014 = vmatpush1.msra.mxu0 0.0
    %2015 = vmatprep.subr.mxu0 0.0
    %2016 = vmatpush1.msra.mxu0 0.0
    %2017 = vmatprep.subr.mxu0 0.0
    %2018 = vmatpush1.msra.mxu0 0.0
    %2019 = vmatprep.subr.mxu0 0.0
    %2020 = vmatpush1.msra.mxu0 0.0
    %2021 = vmatprep.subr.mxu0 0.0
    %2022 = vmatpush1.msra.mxu0 0.0
    %2023 = vmatprep.subr.mxu0 0.0
    %2024 = vmatpush1.msra.mxu0 0.0
    %2025 = vmatprep.subr.mxu0 0.0
    %2026 = vmatpush1.msra.mxu0 0.0
    %2027 = vmatprep.subr.mxu0 0.0
    %2028 = vmatpush1.msra.mxu0 0.0
    %2029 = vmatprep.subr.mxu0 0.0
    %2030 = vmatpush1.msra.mxu0 0.0
    %2031 = vmatprep.subr.mxu0 0.0
    %2032 = vmatpush1.msra.mxu0 0.0
    %2033 = vmatprep.subr.mxu0 0.0
    %2034 = vmatpush1.msra.mxu0 0.0
    %2035 = vmatprep.subr.mxu0 0.0
    %2036 = vmatpush1.msra.mxu0 0.0
    %2037 = vmatprep.subr.mxu0 0.0
    %2038 = vmatpush1.msra.mxu0 0.0
    %2039 = vmatprep.subr.mxu0 0.0
    %2040 = vmatpush1.msra.mxu0 0.0
    %2041 = vmatprep.subr.mxu0 0.0
    %2042 = vmatpush1.msra.mxu0 0.0
    %2043 = vmatprep.subr.mxu0 0.0
    %2044 = vmatpush1.msra.mxu0 0.0
    %2045 = vmatprep.subr.mxu0 0.0
    %2046 = vmatpush1.msra.mxu0 0.0
    %2047 = vmatprep.subr.mxu0 0.0
    %2048 = vmatpush1.msra.mxu0 0.0
    %2049 = vmatprep.mubr.f32.mxu0 0.0
    %v2050 = vand.u32 %v584, 4294901760
    %2051 = vmatmul.mubr.f32.gmra.mrb[0].mxu0 %v2050
    %v2052 = vpop.f32.mrb[0].mxu0
    %v2053 = vadd.f32 %v1968, %v2052
    %v2054 = vpop.f32.mrb[0].mxu0
    %2055 = vmatprep.mubr.f32.mxu0 0.0
    %v2056 = vand.u32 %v587, 4294901760
    %2057 = vmatmul.mubr.f32.gmra.mrb[0].mxu0 %v2056
    %v2058 = vpop.f32.mrb[0].mxu0
    %v2059 = vadd.f32 %v1976, %v2058
    %v2060 = vpop.f32.mrb[0].mxu0
    %2061 = vdwg.mxu0
    %2062 = vmatprep.subr.mxu0 0.0
    %v2063 = vand.u32 %v1624, 4294901760
    %2064 = vmatpush1.msra.mxu0 %v2063
    %2065 = vmatprep.subr.mxu0 0.0
    %v2066 = vand.u32 %v1630, 4294901760
    %2067 = vmatpush1.msra.mxu0 %v2066
    %2068 = vmatprep.subr.mxu0 0.0
    %2069 = vmatpush1.msra.mxu0 0.0
    %2070 = vmatprep.subr.mxu0 0.0
    %2071 = vmatpush1.msra.mxu0 0.0
    %2072 = vmatprep.subr.mxu0 0.0
    %2073 = vmatpush1.msra.mxu0 0.0
    %2074 = vmatprep.subr.mxu0 0.0
    %2075 = vmatpush1.msra.mxu0 0.0
    %2076 = vmatprep.subr.mxu0 0.0
    %2077 = vmatpush1.msra.mxu0 0.0
    %2078 = vmatprep.subr.mxu0 0.0
    %2079 = vmatpush1.msra.mxu0 0.0
    %2080 = vmatprep.subr.mxu0 0.0
    %2081 = vmatpush1.msra.mxu0 0.0
    %2082 = vmatprep.subr.mxu0 0.0
    %2083 = vmatpush1.msra.mxu0 0.0
    %2084 = vmatprep.subr.mxu0 0.0
    %2085 = vmatpush1.msra.mxu0 0.0
    %2086 = vmatprep.subr.mxu0 0.0
    %2087 = vmatpush1.msra.mxu0 0.0
    %2088 = vmatprep.subr.mxu0 0.0
    %2089 = vmatpush1.msra.mxu0 0.0
    %2090 = vmatprep.subr.mxu0 0.0
    %2091 = vmatpush1.msra.mxu0 0.0
    %2092 = vmatprep.subr.mxu0 0.0
    %2093 = vmatpush1.msra.mxu0 0.0
    %2094 = vmatprep.subr.mxu0 0.0
    %2095 = vmatpush1.msra.mxu0 0.0
    %2096 = vmatprep.subr.mxu0 0.0
    %2097 = vmatpush1.msra.mxu0 0.0
    %2098 = vmatprep.subr.mxu0 0.0
    %2099 = vmatpush1.msra.mxu0 0.0
    %2100 = vmatprep.subr.mxu0 0.0
    %2101 = vmatpush1.msra.mxu0 0.0
    %2102 = vmatprep.subr.mxu0 0.0
    %2103 = vmatpush1.msra.mxu0 0.0
    %2104 = vmatprep.subr.mxu0 0.0
    %2105 = vmatpush1.msra.mxu0 0.0
    %2106 = vmatprep.subr.mxu0 0.0
    %2107 = vmatpush1.msra.mxu0 0.0
    %2108 = vmatprep.subr.mxu0 0.0
    %2109 = vmatpush1.msra.mxu0 0.0
    %2110 = vmatprep.subr.mxu0 0.0
    %2111 = vmatpush1.msra.mxu0 0.0
    %2112 = vmatprep.subr.mxu0 0.0
    %2113 = vmatpush1.msra.mxu0 0.0
    %2114 = vmatprep.subr.mxu0 0.0
    %2115 = vmatpush1.msra.mxu0 0.0
    %2116 = vmatprep.subr.mxu0 0.0
    %2117 = vmatpush1.msra.mxu0 0.0
    %2118 = vmatprep.subr.mxu0 0.0
    %2119 = vmatpush1.msra.mxu0 0.0
    %2120 = vmatprep.subr.mxu0 0.0
    %2121 = vmatpush1.msra.mxu0 0.0
    %2122 = vmatprep.subr.mxu0 0.0
    %2123 = vmatpush1.msra.mxu0 0.0
    %2124 = vmatprep.subr.mxu0 0.0
    %2125 = vmatpush1.msra.mxu0 0.0
    %2126 = vmatprep.subr.mxu0 0.0
    %2127 = vmatpush1.msra.mxu0 0.0
    %2128 = vmatprep.mubr.f32.mxu0 0.0
    %v2129 = vand.u32 %v584, 4294901760
    %2130 = vmatmul.mubr.f32.gmra.mrb[0].mxu0 %v2129
    %v2131 = vpop.f32.mrb[0].mxu0
    %v2132 = vadd.f32 %v2053, %v2131
    %v2133 = vpop.f32.mrb[0].mxu0
    %2134 = vmatprep.mubr.f32.mxu0 0.0
    %v2135 = vand.u32 %v587, 4294901760
    %2136 = vmatmul.mubr.f32.gmra.mrb[0].mxu0 %v2135
    %v2137 = vpop.f32.mrb[0].mxu0
    %v2138 = vadd.f32 %v2059, %v2137
    %v2139 = vpop.f32.mrb[0].mxu0
    %2140 = vdwg.mxu0
    %v2141 = vmax.f32 %v2132, 0.0
    %v2142 = vmax.f32 %v2138, 0.0
    %s2143 = scalar_lea.vmem %s0, 16
    %v2144 = vld [vmem:[%s2143] sm:$0xff]
    %v2145 = vld [vmem:[%s2143 + $0x8] sm:$0xff]
    %s2146 = scalar_lea.vmem %s1, 16
    %v2147 = vld [vmem:[%s2146] sm:$0xff]
    %v2148 = vld [vmem:[%s2146 + $0x8] sm:$0xff]
    %s2149 = scalar_lea.vmem [#allocation2], 8
    %v2150 = vld [vmem:[%s2149] sm:$0xff]
    %s2151 = scalar_lea.vmem %s3, 1
    %v2152 = vld [vmem:[%s2151] sm:$0x1]
    %v2154 = vsel %vm80, %v2147, 0
    %v2157 = vsel %vm80, %v2148, 0
    %2159 = vmatprep.subr.mxu0 0.0
    %v2160 = vand.u32 %v2150, 4294901760
    %2161 = vmatpush1.msra.mxu0 %v2160
    %2162 = vmatprep.subr.mxu0 0.0
    %2163 = vmatpush1.msra.mxu0 0.0
    %2164 = vmatprep.subr.mxu0 0.0
    %2165 = vmatpush1.msra.mxu0 0.0
    %2166 = vmatprep.subr.mxu0 0.0
    %2167 = vmatpush1.msra.mxu0 0.0
    %2168 = vmatprep.subr.mxu0 0.0
    %2169 = vmatpush1.msra.mxu0 0.0
    %2170 = vmatprep.subr.mxu0 0.0
    %2171 = vmatpush1.msra.mxu0 0.0
    %2172 = vmatprep.subr.mxu0 0.0
    %2173 = vmatpush1.msra.mxu0 0.0
    %2174 = vmatprep.subr.mxu0 0.0
    %2175 = vmatpush1.msra.mxu0 0.0
    %2176 = vmatprep.subr.mxu0 0.0
    %2177 = vmatpush1.msra.mxu0 0.0
    %2178 = vmatprep.subr.mxu0 0.0
    %2179 = vmatpush1.msra.mxu0 0.0
    %2180 = vmatprep.subr.mxu0 0.0
    %2181 = vmatpush1.msra.mxu0 0.0
    %2182 = vmatprep.subr.mxu0 0.0
    %2183 = vmatpush1.msra.mxu0 0.0
    %2184 = vmatprep.subr.mxu0 0.0
    %2185 = vmatpush1.msra.mxu0 0.0
    %2186 = vmatprep.subr.mxu0 0.0
    %2187 = vmatpush1.msra.mxu0 0.0
    %2188 = vmatprep.subr.mxu0 0.0
    %2189 = vmatpush1.msra.mxu0 0.0
    %2190 = vmatprep.subr.mxu0 0.0
    %2191 = vmatpush1.msra.mxu0 0.0
    %2192 = vmatprep.subr.mxu0 0.0
    %2193 = vmatpush1.msra.mxu0 0.0
    %2194 = vmatprep.subr.mxu0 0.0
    %2195 = vmatpush1.msra.mxu0 0.0
    %2196 = vmatprep.subr.mxu0 0.0
    %2197 = vmatpush1.msra.mxu0 0.0
    %2198 = vmatprep.subr.mxu0 0.0
    %2199 = vmatpush1.msra.mxu0 0.0
    %2200 = vmatprep.subr.mxu0 0.0
    %2201 = vmatpush1.msra.mxu0 0.0
    %2202 = vmatprep.subr.mxu0 0.0
    %2203 = vmatpush1.msra.mxu0 0.0
    %2204 = vmatprep.subr.mxu0 0.0
    %2205 = vmatpush1.msra.mxu0 0.0
    %2206 = vmatprep.subr.mxu0 0.0
    %2207 = vmatpush1.msra.mxu0 0.0
    %2208 = vmatprep.subr.mxu0 0.0
    %2209 = vmatpush1.msra.mxu0 0.0
    %2210 = vmatprep.subr.mxu0 0.0
    %2211 = vmatpush1.msra.mxu0 0.0
    %2212 = vmatprep.subr.mxu0 0.0
    %2213 = vmatpush1.msra.mxu0 0.0
    %2214 = vmatprep.subr.mxu0 0.0
    %2215 = vmatpush1.msra.mxu0 0.0
    %2216 = vmatprep.subr.mxu0 0.0
    %2217 = vmatpush1.msra.mxu0 0.0
    %2218 = vmatprep.subr.mxu0 0.0
    %2219 = vmatpush1.msra.mxu0 0.0
    %2220 = vmatprep.subr.mxu0 0.0
    %2221 = vmatpush1.msra.mxu0 0.0
    %2222 = vmatprep.subr.mxu0 0.0
    %2223 = vmatpush1.msra.mxu0 0.0
    %2224 = vmatprep.mubr.f32.mxu0 0.0
    %v2225 = vand.u32 %v2154, 4294901760
    %v2226 = vsub.f32 %v2154, %v2225
    %v2227 = vand.u32 %v2226, 4294901760
    %v2228 = vsub.f32 %v2226, %v2227
    %v2229 = vand.u32 %v2228, 4294901760
    %2230 = vmatmul.mubr.f32.gmra.mrb[0].mxu0 %v2229
    %v2231 = vpop.f32.mrb[0].mxu0
    %v2232 = vadd.f32 0.0, %v2231
    %v2233 = vpop.f32.mrb[0].mxu0
    %2234 = vmatprep.mubr.f32.mxu0 0.0
    %v2235 = vand.u32 %v2157, 4294901760
    %v2236 = vsub.f32 %v2157, %v2235
    %v2237 = vand.u32 %v2236, 4294901760
    %v2238 = vsub.f32 %v2236, %v2237
    %v2239 = vand.u32 %v2238, 4294901760
    %2240 = vmatmul.mubr.f32.gmra.mrb[0].mxu0 %v2239
    %v2241 = vpop.f32.mrb[0].mxu0
    %v2242 = vadd.f32 0.0, %v2241
    %v2243 = vpop.f32.mrb[0].mxu0
    %2244 = vdwg.mxu0
    %2245 = vmatprep.subr.mxu0 0.0
    %v2246 = vand.u32 %v2150, 4294901760
    %v2247 = vsub.f32 %v2150, %v2246
    %v2248 = vand.u32 %v2247, 4294901760
    %v2249 = vsub.f32 %v2247, %v2248
    %v2250 = vand.u32 %v2249, 4294901760
    %2251 = vmatpush1.msra.mxu0 %v2250
    %2252 = vmatprep.subr.mxu0 0.0
    %2253 = vmatpush1.msra.mxu0 0.0
    %2254 = vmatprep.subr.mxu0 0.0
    %2255 = vmatpush1.msra.mxu0 0.0
    %2256 = vmatprep.subr.mxu0 0.0
    %2257 = vmatpush1.msra.mxu0 0.0
    %2258 = vmatprep.subr.mxu0 0.0
    %2259 = vmatpush1.msra.mxu0 0.0
    %2260 = vmatprep.subr.mxu0 0.0
    %2261 = vmatpush1.msra.mxu0 0.0
    %2262 = vmatprep.subr.mxu0 0.0
    %2263 = vmatpush1.msra.mxu0 0.0
    %2264 = vmatprep.subr.mxu0 0.0
    %2265 = vmatpush1.msra.mxu0 0.0
    %2266 = vmatprep.subr.mxu0 0.0
    %2267 = vmatpush1.msra.mxu0 0.0
    %2268 = vmatprep.subr.mxu0 0.0
    %2269 = vmatpush1.msra.mxu0 0.0
    %2270 = vmatprep.subr.mxu0 0.0
    %2271 = vmatpush1.msra.mxu0 0.0
    %2272 = vmatprep.subr.mxu0 0.0
    %2273 = vmatpush1.msra.mxu0 0.0
    %2274 = vmatprep.subr.mxu0 0.0
    %2275 = vmatpush1.msra.mxu0 0.0
    %2276 = vmatprep.subr.mxu0 0.0
    %2277 = vmatpush1.msra.mxu0 0.0
    %2278 = vmatprep.subr.mxu0 0.0
    %2279 = vmatpush1.msra.mxu0 0.0
    %2280 = vmatprep.subr.mxu0 0.0
    %2281 = vmatpush1.msra.mxu0 0.0
    %2282 = vmatprep.subr.mxu0 0.0
    %2283 = vmatpush1.msra.mxu0 0.0
    %2284 = vmatprep.subr.mxu0 0.0
    %2285 = vmatpush1.msra.mxu0 0.0
    %2286 = vmatprep.subr.mxu0 0.0
    %2287 = vmatpush1.msra.mxu0 0.0
    %2288 = vmatprep.subr.mxu0 0.0
    %2289 = vmatpush1.msra.mxu0 0.0
    %2290 = vmatprep.subr.mxu0 0.0
    %2291 = vmatpush1.msra.mxu0 0.0
    %2292 = vmatprep.subr.mxu0 0.0
    %2293 = vmatpush1.msra.mxu0 0.0
    %2294 = vmatprep.subr.mxu0 0.0
    %2295 = vmatpush1.msra.mxu0 0.0
    %2296 = vmatprep.subr.mxu0 0.0
    %2297 = vmatpush1.msra.mxu0 0.0
    %2298 = vmatprep.subr.mxu0 0.0
    %2299 = vmatpush1.msra.mxu0 0.0
    %2300 = vmatprep.subr.mxu0 0.0
    %2301 = vmatpush1.msra.mxu0 0.0
    %2302 = vmatprep.subr.mxu0 0.0
    %2303 = vmatpush1.msra.mxu0 0.0
    %2304 = vmatprep.subr.mxu0 0.0
    %2305 = vmatpush1.msra.mxu0 0.0
    %2306 = vmatprep.subr.mxu0 0.0
    %2307 = vmatpush1.msra.mxu0 0.0
    %2308 = vmatprep.subr.mxu0 0.0
    %2309 = vmatpush1.msra.mxu0 0.0
    %2310 = vmatprep.subr.mxu0 0.0
    %2311 = vmatpush1.msra.mxu0 0.0
    %2312 = vmatprep.subr.mxu0 0.0
    %2313 = vmatpush1.msra.mxu0 0.0
    %2314 = vmatprep.mubr.f32.mxu0 0.0
    %v2315 = vand.u32 %v2154, 4294901760
    %2316 = vmatmul.mubr.f32.gmra.mrb[0].mxu0 %v2315
    %v2317 = vpop.f32.mrb[0].mxu0
    %v2318 = vadd.f32 %v2232, %v2317
    %v2319 = vpop.f32.mrb[0].mxu0
    %2320 = vmatprep.mubr.f32.mxu0 0.0
    %v2321 = vand.u32 %v2157, 4294901760
    %2322 = vmatmul.mubr.f32.gmra.mrb[0].mxu0 %v2321
    %v2323 = vpop.f32.mrb[0].mxu0
    %v2324 = vadd.f32 %v2242, %v2323
    %v2325 = vpop.f32.mrb[0].mxu0
    %2326 = vdwg.mxu0
    %2327 = vmatprep.subr.mxu0 0.0
    %v2328 = vand.u32 %v2150, 4294901760
    %v2329 = vsub.f32 %v2150, %v2328
    %2330 = vmatpush1.msra.mxu0 %v2329
    %2331 = vmatprep.subr.mxu0 0.0
    %2332 = vmatpush1.msra.mxu0 0.0
    %2333 = vmatprep.subr.mxu0 0.0
    %2334 = vmatpush1.msra.mxu0 0.0
    %2335 = vmatprep.subr.mxu0 0.0
    %2336 = vmatpush1.msra.mxu0 0.0
    %2337 = vmatprep.subr.mxu0 0.0
    %2338 = vmatpush1.msra.mxu0 0.0
    %2339 = vmatprep.subr.mxu0 0.0
    %2340 = vmatpush1.msra.mxu0 0.0
    %2341 = vmatprep.subr.mxu0 0.0
    %2342 = vmatpush1.msra.mxu0 0.0
    %2343 = vmatprep.subr.mxu0 0.0
    %2344 = vmatpush1.msra.mxu0 0.0
    %2345 = vmatprep.subr.mxu0 0.0
    %2346 = vmatpush1.msra.mxu0 0.0
    %2347 = vmatprep.subr.mxu0 0.0
    %2348 = vmatpush1.msra.mxu0 0.0
    %2349 = vmatprep.subr.mxu0 0.0
    %2350 = vmatpush1.msra.mxu0 0.0
    %2351 = vmatprep.subr.mxu0 0.0
    %2352 = vmatpush1.msra.mxu0 0.0
    %2353 = vmatprep.subr.mxu0 0.0
    %2354 = vmatpush1.msra.mxu0 0.0
    %2355 = vmatprep.subr.mxu0 0.0
    %2356 = vmatpush1.msra.mxu0 0.0
    %2357 = vmatprep.subr.mxu0 0.0
    %2358 = vmatpush1.msra.mxu0 0.0
    %2359 = vmatprep.subr.mxu0 0.0
    %2360 = vmatpush1.msra.mxu0 0.0
    %2361 = vmatprep.subr.mxu0 0.0
    %2362 = vmatpush1.msra.mxu0 0.0
    %2363 = vmatprep.subr.mxu0 0.0
    %2364 = vmatpush1.msra.mxu0 0.0
    %2365 = vmatprep.subr.mxu0 0.0
    %2366 = vmatpush1.msra.mxu0 0.0
    %2367 = vmatprep.subr.mxu0 0.0
    %2368 = vmatpush1.msra.mxu0 0.0
    %2369 = vmatprep.subr.mxu0 0.0
    %2370 = vmatpush1.msra.mxu0 0.0
    %2371 = vmatprep.subr.mxu0 0.0
    %2372 = vmatpush1.msra.mxu0 0.0
    %2373 = vmatprep.subr.mxu0 0.0
    %2374 = vmatpush1.msra.mxu0 0.0
    %2375 = vmatprep.subr.mxu0 0.0
    %2376 = vmatpush1.msra.mxu0 0.0
    %2377 = vmatprep.subr.mxu0 0.0
    %2378 = vmatpush1.msra.mxu0 0.0
    %2379 = vmatprep.subr.mxu0 0.0
    %2380 = vmatpush1.msra.mxu0 0.0
    %2381 = vmatprep.subr.mxu0 0.0
    %2382 = vmatpush1.msra.mxu0 0.0
    %2383 = vmatprep.subr.mxu0 0.0
    %2384 = vmatpush1.msra.mxu0 0.0
    %2385 = vmatprep.subr.mxu0 0.0
    %2386 = vmatpush1.msra.mxu0 0.0
    %2387 = vmatprep.subr.mxu0 0.0
    %2388 = vmatpush1.msra.mxu0 0.0
    %2389 = vmatprep.subr.mxu0 0.0
    %2390 = vmatpush1.msra.mxu0 0.0
    %2391 = vmatprep.subr.mxu0 0.0
    %2392 = vmatpush1.msra.mxu0 0.0
    %2393 = vmatprep.mubr.f32.mxu0 0.0
    %v2394 = vand.u32 %v2154, 4294901760
    %v2395 = vsub.f32 %v2154, %v2394
    %2396 = vmatmul.mubr.f32.gmra.mrb[0].mxu0 %v2395
    %v2397 = vpop.f32.mrb[0].mxu0
    %v2398 = vadd.f32 %v2318, %v2397
    %v2399 = vpop.f32.mrb[0].mxu0
    %2400 = vmatprep.mubr.f32.mxu0 0.0
    %v2401 = vand.u32 %v2157, 4294901760
    %v2402 = vsub.f32 %v2157, %v2401
    %2403 = vmatmul.mubr.f32.gmra.mrb[0].mxu0 %v2402
    %v2404 = vpop.f32.mrb[0].mxu0
    %v2405 = vadd.f32 %v2324, %v2404
    %v2406 = vpop.f32.mrb[0].mxu0
    %2407 = vdwg.mxu0
    %2408 = vmatprep.subr.mxu0 0.0
    %v2409 = vand.u32 %v2150, 4294901760
    %2410 = vmatpush1.msra.mxu0 %v2409
    %2411 = vmatprep.subr.mxu0 0.0
    %2412 = vmatpush1.msra.mxu0 0.0
    %2413 = vmatprep.subr.mxu0 0.0
    %2414 = vmatpush1.msra.mxu0 0.0
    %2415 = vmatprep.subr.mxu0 0.0
    %2416 = vmatpush1.msra.mxu0 0.0
    %2417 = vmatprep.subr.mxu0 0.0
    %2418 = vmatpush1.msra.mxu0 0.0
    %2419 = vmatprep.subr.mxu0 0.0
    %2420 = vmatpush1.msra.mxu0 0.0
    %2421 = vmatprep.subr.mxu0 0.0
    %2422 = vmatpush1.msra.mxu0 0.0
    %2423 = vmatprep.subr.mxu0 0.0
    %2424 = vmatpush1.msra.mxu0 0.0
    %2425 = vmatprep.subr.mxu0 0.0
    %2426 = vmatpush1.msra.mxu0 0.0
    %2427 = vmatprep.subr.mxu0 0.0
    %2428 = vmatpush1.msra.mxu0 0.0
    %2429 = vmatprep.subr.mxu0 0.0
    %2430 = vmatpush1.msra.mxu0 0.0
    %2431 = vmatprep.subr.mxu0 0.0
    %2432 = vmatpush1.msra.mxu0 0.0
    %2433 = vmatprep.subr.mxu0 0.0
    %2434 = vmatpush1.msra.mxu0 0.0
    %2435 = vmatprep.subr.mxu0 0.0
    %2436 = vmatpush1.msra.mxu0 0.0
    %2437 = vmatprep.subr.mxu0 0.0
    %2438 = vmatpush1.msra.mxu0 0.0
    %2439 = vmatprep.subr.mxu0 0.0
    %2440 = vmatpush1.msra.mxu0 0.0
    %2441 = vmatprep.subr.mxu0 0.0
    %2442 = vmatpush1.msra.mxu0 0.0
    %2443 = vmatprep.subr.mxu0 0.0
    %2444 = vmatpush1.msra.mxu0 0.0
    %2445 = vmatprep.subr.mxu0 0.0
    %2446 = vmatpush1.msra.mxu0 0.0
    %2447 = vmatprep.subr.mxu0 0.0
    %2448 = vmatpush1.msra.mxu0 0.0
    %2449 = vmatprep.subr.mxu0 0.0
    %2450 = vmatpush1.msra.mxu0 0.0
    %2451 = vmatprep.subr.mxu0 0.0
    %2452 = vmatpush1.msra.mxu0 0.0
    %2453 = vmatprep.subr.mxu0 0.0
    %2454 = vmatpush1.msra.mxu0 0.0
    %2455 = vmatprep.subr.mxu0 0.0
    %2456 = vmatpush1.msra.mxu0 0.0
    %2457 = vmatprep.subr.mxu0 0.0
    %2458 = vmatpush1.msra.mxu0 0.0
    %2459 = vmatprep.subr.mxu0 0.0
    %2460 = vmatpush1.msra.mxu0 0.0
    %2461 = vmatprep.subr.mxu0 0.0
    %2462 = vmatpush1.msra.mxu0 0.0
    %2463 = vmatprep.subr.mxu0 0.0
    %2464 = vmatpush1.msra.mxu0 0.0
    %2465 = vmatprep.subr.mxu0 0.0
    %2466 = vmatpush1.msra.mxu0 0.0
    %2467 = vmatprep.subr.mxu0 0.0
    %2468 = vmatpush1.msra.mxu0 0.0
    %2469 = vmatprep.subr.mxu0 0.0
    %2470 = vmatpush1.msra.mxu0 0.0
    %2471 = vmatprep.subr.mxu0 0.0
    %2472 = vmatpush1.msra.mxu0 0.0
    %2473 = vmatprep.mubr.f32.mxu0 0.0
    %v2474 = vand.u32 %v2154, 4294901760
    %v2475 = vsub.f32 %v2154, %v2474
    %v2476 = vand.u32 %v2475, 4294901760
    %2477 = vmatmul.mubr.f32.gmra.mrb[0].mxu0 %v2476
    %v2478 = vpop.f32.mrb[0].mxu0
    %v2479 = vadd.f32 %v2398, %v2478
    %v2480 = vpop.f32.mrb[0].mxu0
    %2481 = vmatprep.mubr.f32.mxu0 0.0
    %v2482 = vand.u32 %v2157, 4294901760
    %v2483 = vsub.f32 %v2157, %v2482
    %v2484 = vand.u32 %v2483, 4294901760
    %2485 = vmatmul.mubr.f32.gmra.mrb[0].mxu0 %v2484
    %v2486 = vpop.f32.mrb[0].mxu0
    %v2487 = vadd.f32 %v2405, %v2486
    %v2488 = vpop.f32.mrb[0].mxu0
    %2489 = vdwg.mxu0
    %2490 = vmatprep.subr.mxu0 0.0
    %v2491 = vand.u32 %v2150, 4294901760
    %v2492 = vsub.f32 %v2150, %v2491
    %v2493 = vand.u32 %v2492, 4294901760
    %2494 = vmatpush1.msra.mxu0 %v2493
    %2495 = vmatprep.subr.mxu0 0.0
    %2496 = vmatpush1.msra.mxu0 0.0
    %2497 = vmatprep.subr.mxu0 0.0
    %2498 = vmatpush1.msra.mxu0 0.0
    %2499 = vmatprep.subr.mxu0 0.0
    %2500 = vmatpush1.msra.mxu0 0.0
    %2501 = vmatprep.subr.mxu0 0.0
    %2502 = vmatpush1.msra.mxu0 0.0
    %2503 = vmatprep.subr.mxu0 0.0
    %2504 = vmatpush1.msra.mxu0 0.0
    %2505 = vmatprep.subr.mxu0 0.0
    %2506 = vmatpush1.msra.mxu0 0.0
    %2507 = vmatprep.subr.mxu0 0.0
    %2508 = vmatpush1.msra.mxu0 0.0
    %2509 = vmatprep.subr.mxu0 0.0
    %2510 = vmatpush1.msra.mxu0 0.0
    %2511 = vmatprep.subr.mxu0 0.0
    %2512 = vmatpush1.msra.mxu0 0.0
    %2513 = vmatprep.subr.mxu0 0.0
    %2514 = vmatpush1.msra.mxu0 0.0
    %2515 = vmatprep.subr.mxu0 0.0
    %2516 = vmatpush1.msra.mxu0 0.0
    %2517 = vmatprep.subr.mxu0 0.0
    %2518 = vmatpush1.msra.mxu0 0.0
    %2519 = vmatprep.subr.mxu0 0.0
    %2520 = vmatpush1.msra.mxu0 0.0
    %2521 = vmatprep.subr.mxu0 0.0
    %2522 = vmatpush1.msra.mxu0 0.0
    %2523 = vmatprep.subr.mxu0 0.0
    %2524 = vmatpush1.msra.mxu0 0.0
    %2525 = vmatprep.subr.mxu0 0.0
    %2526 = vmatpush1.msra.mxu0 0.0
    %2527 = vmatprep.subr.mxu0 0.0
    %2528 = vmatpush1.msra.mxu0 0.0
    %2529 = vmatprep.subr.mxu0 0.0
    %2530 = vmatpush1.msra.mxu0 0.0
    %2531 = vmatprep.subr.mxu0 0.0
    %2532 = vmatpush1.msra.mxu0 0.0
    %2533 = vmatprep.subr.mxu0 0.0
    %2534 = vmatpush1.msra.mxu0 0.0
    %2535 = vmatprep.subr.mxu0 0.0
    %2536 = vmatpush1.msra.mxu0 0.0
    %2537 = vmatprep.subr.mxu0 0.0
    %2538 = vmatpush1.msra.mxu0 0.0
    %2539 = vmatprep.subr.mxu0 0.0
    %2540 = vmatpush1.msra.mxu0 0.0
    %2541 = vmatprep.subr.mxu0 0.0
    %2542 = vmatpush1.msra.mxu0 0.0
    %2543 = vmatprep.subr.mxu0 0.0
    %2544 = vmatpush1.msra.mxu0 0.0
    %2545 = vmatprep.subr.mxu0 0.0
    %2546 = vmatpush1.msra.mxu0 0.0
    %2547 = vmatprep.subr.mxu0 0.0
    %2548 = vmatpush1.msra.mxu0 0.0
    %2549 = vmatprep.subr.mxu0 0.0
    %2550 = vmatpush1.msra.mxu0 0.0
    %2551 = vmatprep.subr.mxu0 0.0
    %2552 = vmatpush1.msra.mxu0 0.0
    %2553 = vmatprep.subr.mxu0 0.0
    %2554 = vmatpush1.msra.mxu0 0.0
    %2555 = vmatprep.subr.mxu0 0.0
    %2556 = vmatpush1.msra.mxu0 0.0
    %2557 = vmatprep.mubr.f32.mxu0 0.0
    %v2558 = vand.u32 %v2154, 4294901760
    %2559 = vmatmul.mubr.f32.gmra.mrb[0].mxu0 %v2558
    %v2560 = vpop.f32.mrb[0].mxu0
    %v2561 = vadd.f32 %v2479, %v2560
    %v2562 = vpop.f32.mrb[0].mxu0
    %2563 = vmatprep.mubr.f32.mxu0 0.0
    %v2564 = vand.u32 %v2157, 4294901760
    %2565 = vmatmul.mubr.f32.gmra.mrb[0].mxu0 %v2564
    %v2566 = vpop.f32.mrb[0].mxu0
    %v2567 = vadd.f32 %v2487, %v2566
    %v2568 = vpop.f32.mrb[0].mxu0
    %2569 = vdwg.mxu0
    %2570 = vmatprep.subr.mxu0 0.0
    %v2571 = vand.u32 %v2150, 4294901760
    %2572 = vmatpush1.msra.mxu0 %v2571
    %2573 = vmatprep.subr.mxu0 0.0
    %2574 = vmatpush1.msra.mxu0 0.0
    %2575 = vmatprep.subr.mxu0 0.0
    %2576 = vmatpush1.msra.mxu0 0.0
    %2577 = vmatprep.subr.mxu0 0.0
    %2578 = vmatpush1.msra.mxu0 0.0
    %2579 = vmatprep.subr.mxu0 0.0
    %2580 = vmatpush1.msra.mxu0 0.0
    %2581 = vmatprep.subr.mxu0 0.0
    %2582 = vmatpush1.msra.mxu0 0.0
    %2583 = vmatprep.subr.mxu0 0.0
    %2584 = vmatpush1.msra.mxu0 0.0
    %2585 = vmatprep.subr.mxu0 0.0
    %2586 = vmatpush1.msra.mxu0 0.0
    %2587 = vmatprep.subr.mxu0 0.0
    %2588 = vmatpush1.msra.mxu0 0.0
    %2589 = vmatprep.subr.mxu0 0.0
    %2590 = vmatpush1.msra.mxu0 0.0
    %2591 = vmatprep.subr.mxu0 0.0
    %2592 = vmatpush1.msra.mxu0 0.0
    %2593 = vmatprep.subr.mxu0 0.0
    %2594 = vmatpush1.msra.mxu0 0.0
    %2595 = vmatprep.subr.mxu0 0.0
    %2596 = vmatpush1.msra.mxu0 0.0
    %2597 = vmatprep.subr.mxu0 0.0
    %2598 = vmatpush1.msra.mxu0 0.0
    %2599 = vmatprep.subr.mxu0 0.0
    %2600 = vmatpush1.msra.mxu0 0.0
    %2601 = vmatprep.subr.mxu0 0.0
    %2602 = vmatpush1.msra.mxu0 0.0
    %2603 = vmatprep.subr.mxu0 0.0
    %2604 = vmatpush1.msra.mxu0 0.0
    %2605 = vmatprep.subr.mxu0 0.0
    %2606 = vmatpush1.msra.mxu0 0.0
    %2607 = vmatprep.subr.mxu0 0.0
    %2608 = vmatpush1.msra.mxu0 0.0
    %2609 = vmatprep.subr.mxu0 0.0
    %2610 = vmatpush1.msra.mxu0 0.0
    %2611 = vmatprep.subr.mxu0 0.0
    %2612 = vmatpush1.msra.mxu0 0.0
    %2613 = vmatprep.subr.mxu0 0.0
    %2614 = vmatpush1.msra.mxu0 0.0
    %2615 = vmatprep.subr.mxu0 0.0
    %2616 = vmatpush1.msra.mxu0 0.0
    %2617 = vmatprep.subr.mxu0 0.0
    %2618 = vmatpush1.msra.mxu0 0.0
    %2619 = vmatprep.subr.mxu0 0.0
    %2620 = vmatpush1.msra.mxu0 0.0
    %2621 = vmatprep.subr.mxu0 0.0
    %2622 = vmatpush1.msra.mxu0 0.0
    %2623 = vmatprep.subr.mxu0 0.0
    %2624 = vmatpush1.msra.mxu0 0.0
    %2625 = vmatprep.subr.mxu0 0.0
    %2626 = vmatpush1.msra.mxu0 0.0
    %2627 = vmatprep.subr.mxu0 0.0
    %2628 = vmatpush1.msra.mxu0 0.0
    %2629 = vmatprep.subr.mxu0 0.0
    %2630 = vmatpush1.msra.mxu0 0.0
    %2631 = vmatprep.subr.mxu0 0.0
    %2632 = vmatpush1.msra.mxu0 0.0
    %2633 = vmatprep.subr.mxu0 0.0
    %2634 = vmatpush1.msra.mxu0 0.0
    %2635 = vmatprep.mubr.f32.mxu0 0.0
    %v2636 = vand.u32 %v2154, 4294901760
    %2637 = vmatmul.mubr.f32.gmra.mrb[0].mxu0 %v2636
    %v2638 = vpop.f32.mrb[0].mxu0
    %v2639 = vadd.f32 %v2561, %v2638
    %v2640 = vpop.f32.mrb[0].mxu0
    %2641 = vmatprep.mubr.f32.mxu0 0.0
    %v2642 = vand.u32 %v2157, 4294901760
    %2643 = vmatmul.mubr.f32.gmra.mrb[0].mxu0 %v2642
    %v2644 = vpop.f32.mrb[0].mxu0
    %v2645 = vadd.f32 %v2567, %v2644
    %v2646 = vpop.f32.mrb[0].mxu0
    %2647 = vdwg.mxu0
    %v2649 = vlaneseq
    %v2650 = vshrl.u32 %v2649, 7
    %v2651 = vsub.s32 0, %v2650
    %v2652 = vrot.slane %v2152, %v2651
    %v2655 = vsel %vm582, %v2144, 0
    %v2658 = vsel %vm582, %v2145, 0
    %2660 = vmatprep.subr.mxu0 0.0
    %v2661 = vand.u32 %v2639, 4294901760
    %2662 = vmatpush1.msra.mxu0 %v2661
    %2663 = vmatprep.subr.mxu0 0.0
    %v2664 = vand.u32 %v2645, 4294901760
    %2665 = vmatpush1.msra.mxu0 %v2664
    %2666 = vmatprep.subr.mxu0 0.0
    %2667 = vmatpush1.msra.mxu0 0.0
    %2668 = vmatprep.subr.mxu0 0.0
    %2669 = vmatpush1.msra.mxu0 0.0
    %2670 = vmatprep.subr.mxu0 0.0
    %2671 = vmatpush1.msra.mxu0 0.0
    %2672 = vmatprep.subr.mxu0 0.0
    %2673 = vmatpush1.msra.mxu0 0.0
    %2674 = vmatprep.subr.mxu0 0.0
    %2675 = vmatpush1.msra.mxu0 0.0
    %2676 = vmatprep.subr.mxu0 0.0
    %2677 = vmatpush1.msra.mxu0 0.0
    %2678 = vmatprep.subr.mxu0 0.0
    %2679 = vmatpush1.msra.mxu0 0.0
    %2680 = vmatprep.subr.mxu0 0.0
    %2681 = vmatpush1.msra.mxu0 0.0
    %2682 = vmatprep.subr.mxu0 0.0
    %2683 = vmatpush1.msra.mxu0 0.0
    %2684 = vmatprep.subr.mxu0 0.0
    %2685 = vmatpush1.msra.mxu0 0.0
    %2686 = vmatprep.subr.mxu0 0.0
    %2687 = vmatpush1.msra.mxu0 0.0
    %2688 = vmatprep.subr.mxu0 0.0
    %2689 = vmatpush1.msra.mxu0 0.0
    %2690 = vmatprep.subr.mxu0 0.0
    %2691 = vmatpush1.msra.mxu0 0.0
    %2692 = vmatprep.subr.mxu0 0.0
    %2693 = vmatpush1.msra.mxu0 0.0
    %2694 = vmatprep.subr.mxu0 0.0
    %2695 = vmatpush1.msra.mxu0 0.0
    %2696 = vmatprep.subr.mxu0 0.0
    %2697 = vmatpush1.msra.mxu0 0.0
    %2698 = vmatprep.subr.mxu0 0.0
    %2699 = vmatpush1.msra.mxu0 0.0
    %2700 = vmatprep.subr.mxu0 0.0
    %2701 = vmatpush1.msra.mxu0 0.0
    %2702 = vmatprep.subr.mxu0 0.0
    %2703 = vmatpush1.msra.mxu0 0.0
    %2704 = vmatprep.subr.mxu0 0.0
    %2705 = vmatpush1.msra.mxu0 0.0
    %2706 = vmatprep.subr.mxu0 0.0
    %2707 = vmatpush1.msra.mxu0 0.0
    %2708 = vmatprep.subr.mxu0 0.0
    %2709 = vmatpush1.msra.mxu0 0.0
    %2710 = vmatprep.subr.mxu0 0.0
    %2711 = vmatpush1.msra.mxu0 0.0
    %2712 = vmatprep.subr.mxu0 0.0
    %2713 = vmatpush1.msra.mxu0 0.0
    %2714 = vmatprep.subr.mxu0 0.0
    %2715 = vmatpush1.msra.mxu0 0.0
    %2716 = vmatprep.subr.mxu0 0.0
    %2717 = vmatpush1.msra.mxu0 0.0
    %2718 = vmatprep.subr.mxu0 0.0
    %2719 = vmatpush1.msra.mxu0 0.0
    %2720 = vmatprep.subr.mxu0 0.0
    %2721 = vmatpush1.msra.mxu0 0.0
    %2722 = vmatprep.subr.mxu0 0.0
    %2723 = vmatpush1.msra.mxu0 0.0
    %2724 = vmatprep.subr.mxu0 0.0
    %2725 = vmatpush1.msra.mxu0 0.0
    %2726 = vmatprep.mubr.f32.mxu0 0.0
    %v2727 = vand.u32 %v2655, 4294901760
    %v2728 = vsub.f32 %v2655, %v2727
    %v2729 = vand.u32 %v2728, 4294901760
    %v2730 = vsub.f32 %v2728, %v2729
    %v2731 = vand.u32 %v2730, 4294901760
    %2732 = vmatmul.mubr.f32.gmra.mrb[0].mxu0 %v2731
    %v2733 = vpop.f32.mrb[0].mxu0
    %v2734 = vadd.f32 %v2652, %v2733
    %v2735 = vpop.f32.mrb[0].mxu0
    %2736 = vmatprep.mubr.f32.mxu0 0.0
    %v2737 = vand.u32 %v2658, 4294901760
    %v2738 = vsub.f32 %v2658, %v2737
    %v2739 = vand.u32 %v2738, 4294901760
    %v2740 = vsub.f32 %v2738, %v2739
    %v2741 = vand.u32 %v2740, 4294901760
    %2742 = vmatmul.mubr.f32.gmra.mrb[0].mxu0 %v2741
    %v2743 = vpop.f32.mrb[0].mxu0
    %v2744 = vadd.f32 %v2652, %v2743
    %v2745 = vpop.f32.mrb[0].mxu0
    %2746 = vdwg.mxu0
    %2747 = vmatprep.subr.mxu0 0.0
    %v2748 = vand.u32 %v2639, 4294901760
    %v2749 = vsub.f32 %v2639, %v2748
    %v2750 = vand.u32 %v2749, 4294901760
    %v2751 = vsub.f32 %v2749, %v2750
    %v2752 = vand.u32 %v2751, 4294901760
    %2753 = vmatpush1.msra.mxu0 %v2752
    %2754 = vmatprep.subr.mxu0 0.0
    %v2755 = vand.u32 %v2645, 4294901760
    %v2756 = vsub.f32 %v2645, %v2755
    %v2757 = vand.u32 %v2756, 4294901760
    %v2758 = vsub.f32 %v2756, %v2757
    %v2759 = vand.u32 %v2758, 4294901760
    %2760 = vmatpush1.msra.mxu0 %v2759
    %2761 = vmatprep.subr.mxu0 0.0
    %2762 = vmatpush1.msra.mxu0 0.0
    %2763 = vmatprep.subr.mxu0 0.0
    %2764 = vmatpush1.msra.mxu0 0.0
    %2765 = vmatprep.subr.mxu0 0.0
    %2766 = vmatpush1.msra.mxu0 0.0
    %2767 = vmatprep.subr.mxu0 0.0
    %2768 = vmatpush1.msra.mxu0 0.0
    %2769 = vmatprep.subr.mxu0 0.0
    %2770 = vmatpush1.msra.mxu0 0.0
    %2771 = vmatprep.subr.mxu0 0.0
    %2772 = vmatpush1.msra.mxu0 0.0
    %2773 = vmatprep.subr.mxu0 0.0
    %2774 = vmatpush1.msra.mxu0 0.0
    %2775 = vmatprep.subr.mxu0 0.0
    %2776 = vmatpush1.msra.mxu0 0.0
    %2777 = vmatprep.subr.mxu0 0.0
    %2778 = vmatpush1.msra.mxu0 0.0
    %2779 = vmatprep.subr.mxu0 0.0
    %2780 = vmatpush1.msra.mxu0 0.0
    %2781 = vmatprep.subr.mxu0 0.0
    %2782 = vmatpush1.msra.mxu0 0.0
    %2783 = vmatprep.subr.mxu0 0.0
    %2784 = vmatpush1.msra.mxu0 0.0
    %2785 = vmatprep.subr.mxu0 0.0
    %2786 = vmatpush1.msra.mxu0 0.0
    %2787 = vmatprep.subr.mxu0 0.0
    %2788 = vmatpush1.msra.mxu0 0.0
    %2789 = vmatprep.subr.mxu0 0.0
    %2790 = vmatpush1.msra.mxu0 0.0
    %2791 = vmatprep.subr.mxu0 0.0
    %2792 = vmatpush1.msra.mxu0 0.0
    %2793 = vmatprep.subr.mxu0 0.0
    %2794 = vmatpush1.msra.mxu0 0.0
    %2795 = vmatprep.subr.mxu0 0.0
    %2796 = vmatpush1.msra.mxu0 0.0
    %2797 = vmatprep.subr.mxu0 0.0
    %2798 = vmatpush1.msra.mxu0 0.0
    %2799 = vmatprep.subr.mxu0 0.0
    %2800 = vmatpush1.msra.mxu0 0.0
    %2801 = vmatprep.subr.mxu0 0.0
    %2802 = vmatpush1.msra.mxu0 0.0
    %2803 = vmatprep.subr.mxu0 0.0
    %2804 = vmatpush1.msra.mxu0 0.0
    %2805 = vmatprep.subr.mxu0 0.0
    %2806 = vmatpush1.msra.mxu0 0.0
    %2807 = vmatprep.subr.mxu0 0.0
    %2808 = vmatpush1.msra.mxu0 0.0
    %2809 = vmatprep.subr.mxu0 0.0
    %2810 = vmatpush1.msra.mxu0 0.0
    %2811 = vmatprep.subr.mxu0 0.0
    %2812 = vmatpush1.msra.mxu0 0.0
    %2813 = vmatprep.subr.mxu0 0.0
    %2814 = vmatpush1.msra.mxu0 0.0
    %2815 = vmatprep.subr.mxu0 0.0
    %2816 = vmatpush1.msra.mxu0 0.0
    %2817 = vmatprep.subr.mxu0 0.0
    %2818 = vmatpush1.msra.mxu0 0.0
    %2819 = vmatprep.subr.mxu0 0.0
    %2820 = vmatpush1.msra.mxu0 0.0
    %2821 = vmatprep.mubr.f32.mxu0 0.0
    %v2822 = vand.u32 %v2655, 4294901760
    %2823 = vmatmul.mubr.f32.gmra.mrb[0].mxu0 %v2822
    %v2824 = vpop.f32.mrb[0].mxu0
    %v2825 = vadd.f32 %v2734, %v2824
    %v2826 = vpop.f32.mrb[0].mxu0
    %2827 = vmatprep.mubr.f32.mxu0 0.0
    %v2828 = vand.u32 %v2658, 4294901760
    %2829 = vmatmul.mubr.f32.gmra.mrb[0].mxu0 %v2828
    %v2830 = vpop.f32.mrb[0].mxu0
    %v2831 = vadd.f32 %v2744, %v2830
    %v2832 = vpop.f32.mrb[0].mxu0
    %2833 = vdwg.mxu0
    %2834 = vmatprep.subr.mxu0 0.0
    %v2835 = vand.u32 %v2639, 4294901760
    %v2836 = vsub.f32 %v2639, %v2835
    %2837 = vmatpush1.msra.mxu0 %v2836
    %2838 = vmatprep.subr.mxu0 0.0
    %v2839 = vand.u32 %v2645, 4294901760
    %v2840 = vsub.f32 %v2645, %v2839
    %2841 = vmatpush1.msra.mxu0 %v2840
    %2842 = vmatprep.subr.mxu0 0.0
    %2843 = vmatpush1.msra.mxu0 0.0
    %2844 = vmatprep.subr.mxu0 0.0
    %2845 = vmatpush1.msra.mxu0 0.0
    %2846 = vmatprep.subr.mxu0 0.0
    %2847 = vmatpush1.msra.mxu0 0.0
    %2848 = vmatprep.subr.mxu0 0.0
    %2849 = vmatpush1.msra.mxu0 0.0
    %2850 = vmatprep.subr.mxu0 0.0
    %2851 = vmatpush1.msra.mxu0 0.0
    %2852 = vmatprep.subr.mxu0 0.0
    %2853 = vmatpush1.msra.mxu0 0.0
    %2854 = vmatprep.subr.mxu0 0.0
    %2855 = vmatpush1.msra.mxu0 0.0
    %2856 = vmatprep.subr.mxu0 0.0
    %2857 = vmatpush1.msra.mxu0 0.0
    %2858 = vmatprep.subr.mxu0 0.0
    %2859 = vmatpush1.msra.mxu0 0.0
    %2860 = vmatprep.subr.mxu0 0.0
    %2861 = vmatpush1.msra.mxu0 0.0
    %2862 = vmatprep.subr.mxu0 0.0
    %2863 = vmatpush1.msra.mxu0 0.0
    %2864 = vmatprep.subr.mxu0 0.0
    %2865 = vmatpush1.msra.mxu0 0.0
    %2866 = vmatprep.subr.mxu0 0.0
    %2867 = vmatpush1.msra.mxu0 0.0
    %2868 = vmatprep.subr.mxu0 0.0
    %2869 = vmatpush1.msra.mxu0 0.0
    %2870 = vmatprep.subr.mxu0 0.0
    %2871 = vmatpush1.msra.mxu0 0.0
    %2872 = vmatprep.subr.mxu0 0.0
    %2873 = vmatpush1.msra.mxu0 0.0
    %2874 = vmatprep.subr.mxu0 0.0
    %2875 = vmatpush1.msra.mxu0 0.0
    %2876 = vmatprep.subr.mxu0 0.0
    %2877 = vmatpush1.msra.mxu0 0.0
    %2878 = vmatprep.subr.mxu0 0.0
    %2879 = vmatpush1.msra.mxu0 0.0
    %2880 = vmatprep.subr.mxu0 0.0
    %2881 = vmatpush1.msra.mxu0 0.0
    %2882 = vmatprep.subr.mxu0 0.0
    %2883 = vmatpush1.msra.mxu0 0.0
    %2884 = vmatprep.subr.mxu0 0.0
    %2885 = vmatpush1.msra.mxu0 0.0
    %2886 = vmatprep.subr.mxu0 0.0
    %2887 = vmatpush1.msra.mxu0 0.0
    %2888 = vmatprep.subr.mxu0 0.0
    %2889 = vmatpush1.msra.mxu0 0.0
    %2890 = vmatprep.subr.mxu0 0.0
    %2891 = vmatpush1.msra.mxu0 0.0
    %2892 = vmatprep.subr.mxu0 0.0
    %2893 = vmatpush1.msra.mxu0 0.0
    %2894 = vmatprep.subr.mxu0 0.0
    %2895 = vmatpush1.msra.mxu0 0.0
    %2896 = vmatprep.subr.mxu0 0.0
    %2897 = vmatpush1.msra.mxu0 0.0
    %2898 = vmatprep.subr.mxu0 0.0
    %2899 = vmatpush1.msra.mxu0 0.0
    %2900 = vmatprep.subr.mxu0 0.0
    %2901 = vmatpush1.msra.mxu0 0.0
    %2902 = vmatprep.mubr.f32.mxu0 0.0
    %v2903 = vand.u32 %v2655, 4294901760
    %v2904 = vsub.f32 %v2655, %v2903
    %2905 = vmatmul.mubr.f32.gmra.mrb[0].mxu0 %v2904
    %v2906 = vpop.f32.mrb[0].mxu0
    %v2907 = vadd.f32 %v2825, %v2906
    %v2908 = vpop.f32.mrb[0].mxu0
    %2909 = vmatprep.mubr.f32.mxu0 0.0
    %v2910 = vand.u32 %v2658, 4294901760
    %v2911 = vsub.f32 %v2658, %v2910
    %2912 = vmatmul.mubr.f32.gmra.mrb[0].mxu0 %v2911
    %v2913 = vpop.f32.mrb[0].mxu0
    %v2914 = vadd.f32 %v2831, %v2913
    %v2915 = vpop.f32.mrb[0].mxu0
    %2916 = vdwg.mxu0
    %2917 = vmatprep.subr.mxu0 0.0
    %v2918 = vand.u32 %v2639, 4294901760
    %2919 = vmatpush1.msra.mxu0 %v2918
    %2920 = vmatprep.subr.mxu0 0.0
    %v2921 = vand.u32 %v2645, 4294901760
    %2922 = vmatpush1.msra.mxu0 %v2921
    %2923 = vmatprep.subr.mxu0 0.0
    %2924 = vmatpush1.msra.mxu0 0.0
    %2925 = vmatprep.subr.mxu0 0.0
    %2926 = vmatpush1.msra.mxu0 0.0
    %2927 = vmatprep.subr.mxu0 0.0
    %2928 = vmatpush1.msra.mxu0 0.0
    %2929 = vmatprep.subr.mxu0 0.0
    %2930 = vmatpush1.msra.mxu0 0.0
    %2931 = vmatprep.subr.mxu0 0.0
    %2932 = vmatpush1.msra.mxu0 0.0
    %2933 = vmatprep.subr.mxu0 0.0
    %2934 = vmatpush1.msra.mxu0 0.0
    %2935 = vmatprep.subr.mxu0 0.0
    %2936 = vmatpush1.msra.mxu0 0.0
    %2937 = vmatprep.subr.mxu0 0.0
    %2938 = vmatpush1.msra.mxu0 0.0
    %2939 = vmatprep.subr.mxu0 0.0
    %2940 = vmatpush1.msra.mxu0 0.0
    %2941 = vmatprep.subr.mxu0 0.0
    %2942 = vmatpush1.msra.mxu0 0.0
    %2943 = vmatprep.subr.mxu0 0.0
    %2944 = vmatpush1.msra.mxu0 0.0
    %2945 = vmatprep.subr.mxu0 0.0
    %2946 = vmatpush1.msra.mxu0 0.0
    %2947 = vmatprep.subr.mxu0 0.0
    %2948 = vmatpush1.msra.mxu0 0.0
    %2949 = vmatprep.subr.mxu0 0.0
    %2950 = vmatpush1.msra.mxu0 0.0
    %2951 = vmatprep.subr.mxu0 0.0
    %2952 = vmatpush1.msra.mxu0 0.0
    %2953 = vmatprep.subr.mxu0 0.0
    %2954 = vmatpush1.msra.mxu0 0.0
    %2955 = vmatprep.subr.mxu0 0.0
    %2956 = vmatpush1.msra.mxu0 0.0
    %2957 = vmatprep.subr.mxu0 0.0
    %2958 = vmatpush1.msra.mxu0 0.0
    %2959 = vmatprep.subr.mxu0 0.0
    %2960 = vmatpush1.msra.mxu0 0.0
    %2961 = vmatprep.subr.mxu0 0.0
    %2962 = vmatpush1.msra.mxu0 0.0
    %2963 = vmatprep.subr.mxu0 0.0
    %2964 = vmatpush1.msra.mxu0 0.0
    %2965 = vmatprep.subr.mxu0 0.0
    %2966 = vmatpush1.msra.mxu0 0.0
    %2967 = vmatprep.subr.mxu0 0.0
    %2968 = vmatpush1.msra.mxu0 0.0
    %2969 = vmatprep.subr.mxu0 0.0
    %2970 = vmatpush1.msra.mxu0 0.0
    %2971 = vmatprep.subr.mxu0 0.0
    %2972 = vmatpush1.msra.mxu0 0.0
    %2973 = vmatprep.subr.mxu0 0.0
    %2974 = vmatpush1.msra.mxu0 0.0
    %2975 = vmatprep.subr.mxu0 0.0
    %2976 = vmatpush1.msra.mxu0 0.0
    %2977 = vmatprep.subr.mxu0 0.0
    %2978 = vmatpush1.msra.mxu0 0.0
    %2979 = vmatprep.subr.mxu0 0.0
    %2980 = vmatpush1.msra.mxu0 0.0
    %2981 = vmatprep.subr.mxu0 0.0
    %2982 = vmatpush1.msra.mxu0 0.0
    %2983 = vmatprep.mubr.f32.mxu0 0.0
    %v2984 = vand.u32 %v2655, 4294901760
    %v2985 = vsub.f32 %v2655, %v2984
    %v2986 = vand.u32 %v2985, 4294901760
    %2987 = vmatmul.mubr.f32.gmra.mrb[0].mxu0 %v2986
    %v2988 = vpop.f32.mrb[0].mxu0
    %v2989 = vadd.f32 %v2907, %v2988
    %v2990 = vpop.f32.mrb[0].mxu0
    %2991 = vmatprep.mubr.f32.mxu0 0.0
    %v2992 = vand.u32 %v2658, 4294901760
    %v2993 = vsub.f32 %v2658, %v2992
    %v2994 = vand.u32 %v2993, 4294901760
    %2995 = vmatmul.mubr.f32.gmra.mrb[0].mxu0 %v2994
    %v2996 = vpop.f32.mrb[0].mxu0
    %v2997 = vadd.f32 %v2914, %v2996
    %v2998 = vpop.f32.mrb[0].mxu0
    %2999 = vdwg.mxu0
    %3000 = vmatprep.subr.mxu0 0.0
    %v3001 = vand.u32 %v2639, 4294901760
    %v3002 = vsub.f32 %v2639, %v3001
    %v3003 = vand.u32 %v3002, 4294901760
    %3004 = vmatpush1.msra.mxu0 %v3003
    %3005 = vmatprep.subr.mxu0 0.0
    %v3006 = vand.u32 %v2645, 4294901760
    %v3007 = vsub.f32 %v2645, %v3006
    %v3008 = vand.u32 %v3007, 4294901760
    %3009 = vmatpush1.msra.mxu0 %v3008
    %3010 = vmatprep.subr.mxu0 0.0
    %3011 = vmatpush1.msra.mxu0 0.0
    %3012 = vmatprep.subr.mxu0 0.0
    %3013 = vmatpush1.msra.mxu0 0.0
    %3014 = vmatprep.subr.mxu0 0.0
    %3015 = vmatpush1.msra.mxu0 0.0
    %3016 = vmatprep.subr.mxu0 0.0
    %3017 = vmatpush1.msra.mxu0 0.0
    %3018 = vmatprep.subr.mxu0 0.0
    %3019 = vmatpush1.msra.mxu0 0.0
    %3020 = vmatprep.subr.mxu0 0.0
    %3021 = vmatpush1.msra.mxu0 0.0
    %3022 = vmatprep.subr.mxu0 0.0
    %3023 = vmatpush1.msra.mxu0 0.0
    %3024 = vmatprep.subr.mxu0 0.0
    %3025 = vmatpush1.msra.mxu0 0.0
    %3026 = vmatprep.subr.mxu0 0.0
    %3027 = vmatpush1.msra.mxu0 0.0
    %3028 = vmatprep.subr.mxu0 0.0
    %3029 = vmatpush1.msra.mxu0 0.0
    %3030 = vmatprep.subr.mxu0 0.0
    %3031 = vmatpush1.msra.mxu0 0.0
    %3032 = vmatprep.subr.mxu0 0.0
    %3033 = vmatpush1.msra.mxu0 0.0
    %3034 = vmatprep.subr.mxu0 0.0
    %3035 = vmatpush1.msra.mxu0 0.0
    %3036 = vmatprep.subr.mxu0 0.0
    %3037 = vmatpush1.msra.mxu0 0.0
    %3038 = vmatprep.subr.mxu0 0.0
    %3039 = vmatpush1.msra.mxu0 0.0
    %3040 = vmatprep.subr.mxu0 0.0
    %3041 = vmatpush1.msra.mxu0 0.0
    %3042 = vmatprep.subr.mxu0 0.0
    %3043 = vmatpush1.msra.mxu0 0.0
    %3044 = vmatprep.subr.mxu0 0.0
    %3045 = vmatpush1.msra.mxu0 0.0
    %3046 = vmatprep.subr.mxu0 0.0
    %3047 = vmatpush1.msra.mxu0 0.0
    %3048 = vmatprep.subr.mxu0 0.0
    %3049 = vmatpush1.msra.mxu0 0.0
    %3050 = vmatprep.subr.mxu0 0.0
    %3051 = vmatpush1.msra.mxu0 0.0
    %3052 = vmatprep.subr.mxu0 0.0
    %3053 = vmatpush1.msra.mxu0 0.0
    %3054 = vmatprep.subr.mxu0 0.0
    %3055 = vmatpush1.msra.mxu0 0.0
    %3056 = vmatprep.subr.mxu0 0.0
    %3057 = vmatpush1.msra.mxu0 0.0
    %3058 = vmatprep.subr.mxu0 0.0
    %3059 = vmatpush1.msra.mxu0 0.0
    %3060 = vmatprep.subr.mxu0 0.0
    %3061 = vmatpush1.msra.mxu0 0.0
    %3062 = vmatprep.subr.mxu0 0.0
    %3063 = vmatpush1.msra.mxu0 0.0
    %3064 = vmatprep.subr.mxu0 0.0
    %3065 = vmatpush1.msra.mxu0 0.0
    %3066 = vmatprep.subr.mxu0 0.0
    %3067 = vmatpush1.msra.mxu0 0.0
    %3068 = vmatprep.subr.mxu0 0.0
    %3069 = vmatpush1.msra.mxu0 0.0
    %3070 = vmatprep.mubr.f32.mxu0 0.0
    %v3071 = vand.u32 %v2655, 4294901760
    %3072 = vmatmul.mubr.f32.gmra.mrb[0].mxu0 %v3071
    %v3073 = vpop.f32.mrb[0].mxu0
    %v3074 = vadd.f32 %v2989, %v3073
    %v3075 = vpop.f32.mrb[0].mxu0
    %3076 = vmatprep.mubr.f32.mxu0 0.0
    %v3077 = vand.u32 %v2658, 4294901760
    %3078 = vmatmul.mubr.f32.gmra.mrb[0].mxu0 %v3077
    %v3079 = vpop.f32.mrb[0].mxu0
    %v3080 = vadd.f32 %v2997, %v3079
    %v3081 = vpop.f32.mrb[0].mxu0
    %3082 = vdwg.mxu0
    %3083 = vmatprep.subr.mxu0 0.0
    %v3084 = vand.u32 %v2639, 4294901760
    %3085 = vmatpush1.msra.mxu0 %v3084
    %3086 = vmatprep.subr.mxu0 0.0
    %v3087 = vand.u32 %v2645, 4294901760
    %3088 = vmatpush1.msra.mxu0 %v3087
    %3089 = vmatprep.subr.mxu0 0.0
    %3090 = vmatpush1.msra.mxu0 0.0
    %3091 = vmatprep.subr.mxu0 0.0
    %3092 = vmatpush1.msra.mxu0 0.0
    %3093 = vmatprep.subr.mxu0 0.0
    %3094 = vmatpush1.msra.mxu0 0.0
    %3095 = vmatprep.subr.mxu0 0.0
    %3096 = vmatpush1.msra.mxu0 0.0
    %3097 = vmatprep.subr.mxu0 0.0
    %3098 = vmatpush1.msra.mxu0 0.0
    %3099 = vmatprep.subr.mxu0 0.0
    %3100 = vmatpush1.msra.mxu0 0.0
    %3101 = vmatprep.subr.mxu0 0.0
    %3102 = vmatpush1.msra.mxu0 0.0
    %3103 = vmatprep.subr.mxu0 0.0
    %3104 = vmatpush1.msra.mxu0 0.0
    %3105 = vmatprep.subr.mxu0 0.0
    %3106 = vmatpush1.msra.mxu0 0.0
    %3107 = vmatprep.subr.mxu0 0.0
    %3108 = vmatpush1.msra.mxu0 0.0
    %3109 = vmatprep.subr.mxu0 0.0
    %3110 = vmatpush1.msra.mxu0 0.0
    %3111 = vmatprep.subr.mxu0 0.0
    %3112 = vmatpush1.msra.mxu0 0.0
    %3113 = vmatprep.subr.mxu0 0.0
    %3114 = vmatpush1.msra.mxu0 0.0
    %3115 = vmatprep.subr.mxu0 0.0
    %3116 = vmatpush1.msra.mxu0 0.0
    %3117 = vmatprep.subr.mxu0 0.0
    %3118 = vmatpush1.msra.mxu0 0.0
    %3119 = vmatprep.subr.mxu0 0.0
    %3120 = vmatpush1.msra.mxu0 0.0
    %3121 = vmatprep.subr.mxu0 0.0
    %3122 = vmatpush1.msra.mxu0 0.0
    %3123 = vmatprep.subr.mxu0 0.0
    %3124 = vmatpush1.msra.mxu0 0.0
    %3125 = vmatprep.subr.mxu0 0.0
    %3126 = vmatpush1.msra.mxu0 0.0
    %3127 = vmatprep.subr.mxu0 0.0
    %3128 = vmatpush1.msra.mxu0 0.0
    %3129 = vmatprep.subr.mxu0 0.0
    %3130 = vmatpush1.msra.mxu0 0.0
    %3131 = vmatprep.subr.mxu0 0.0
    %3132 = vmatpush1.msra.mxu0 0.0
    %3133 = vmatprep.subr.mxu0 0.0
    %3134 = vmatpush1.msra.mxu0 0.0
    %3135 = vmatprep.subr.mxu0 0.0
    %3136 = vmatpush1.msra.mxu0 0.0
    %3137 = vmatprep.subr.mxu0 0.0
    %3138 = vmatpush1.msra.mxu0 0.0
    %3139 = vmatprep.subr.mxu0 0.0
    %3140 = vmatpush1.msra.mxu0 0.0
    %3141 = vmatprep.subr.mxu0 0.0
    %3142 = vmatpush1.msra.mxu0 0.0
    %3143 = vmatprep.subr.mxu0 0.0
    %3144 = vmatpush1.msra.mxu0 0.0
    %3145 = vmatprep.subr.mxu0 0.0
    %3146 = vmatpush1.msra.mxu0 0.0
    %3147 = vmatprep.subr.mxu0 0.0
    %3148 = vmatpush1.msra.mxu0 0.0
    %3149 = vmatprep.mubr.f32.mxu0 0.0
    %v3150 = vand.u32 %v2655, 4294901760
    %3151 = vmatmul.mubr.f32.gmra.mrb[0].mxu0 %v3150
    %v3152 = vpop.f32.mrb[0].mxu0
    %v3153 = vadd.f32 %v3074, %v3152
    %v3154 = vpop.f32.mrb[0].mxu0
    %3155 = vmatprep.mubr.f32.mxu0 0.0
    %v3156 = vand.u32 %v2658, 4294901760
    %3157 = vmatmul.mubr.f32.gmra.mrb[0].mxu0 %v3156
    %v3158 = vpop.f32.mrb[0].mxu0
    %v3159 = vadd.f32 %v3080, %v3158
    %v3160 = vpop.f32.mrb[0].mxu0
    %3161 = vdwg.mxu0
    %v3162 = vmax.f32 %v3153, 0.0
    %v3163 = vmax.f32 %v3159, 0.0
    %s3164 = scalar_lea.vmem [#allocation5], 32
    %v3165 = vld [vmem:[%s3164] sm:$0xff]
    %v3166 = vld [vmem:[%s3164 + $0x8] sm:$0xff]
    %v3167 = vld [vmem:[%s3164 + $0x10] sm:$0xff]
    %v3168 = vld [vmem:[%s3164 + $0x18] sm:$0xff]
    %s3169 = scalar_lea.vmem %s5, 1
    %v3170 = vld [vmem:[%s3169] sm:$0x1]
    %v3172 = vsel %vm1098, %v3162, 0
    %v3175 = vsel %vm1098, %v3163, 0
    %3177 = vmatprep.subr.mxu0 0.0
    %v3178 = vand.u32 %v3165, 4294901760
    %3179 = vmatpush1.msra.mxu0 %v3178
    %3180 = vmatprep.subr.mxu0 0.0
    %v3181 = vand.u32 %v3166, 4294901760
    %3182 = vmatpush1.msra.mxu0 %v3181
    %3183 = vmatprep.subr.mxu0 0.0
    %v3184 = vand.u32 %v3167, 4294901760
    %3185 = vmatpush1.msra.mxu0 %v3184
    %3186 = vmatprep.subr.mxu0 0.0
    %v3187 = vand.u32 %v3168, 4294901760
    %3188 = vmatpush1.msra.mxu0 %v3187
    %3189 = vmatprep.subr.mxu0 0.0
    %3190 = vmatpush1.msra.mxu0 0.0
    %3191 = vmatprep.subr.mxu0 0.0
    %3192 = vmatpush1.msra.mxu0 0.0
    %3193 = vmatprep.subr.mxu0 0.0
    %3194 = vmatpush1.msra.mxu0 0.0
    %3195 = vmatprep.subr.mxu0 0.0
    %3196 = vmatpush1.msra.mxu0 0.0
    %3197 = vmatprep.subr.mxu0 0.0
    %3198 = vmatpush1.msra.mxu0 0.0
    %3199 = vmatprep.subr.mxu0 0.0
    %3200 = vmatpush1.msra.mxu0 0.0
    %3201 = vmatprep.subr.mxu0 0.0
    %3202 = vmatpush1.msra.mxu0 0.0
    %3203 = vmatprep.subr.mxu0 0.0
    %3204 = vmatpush1.msra.mxu0 0.0
    %3205 = vmatprep.subr.mxu0 0.0
    %3206 = vmatpush1.msra.mxu0 0.0
    %3207 = vmatprep.subr.mxu0 0.0
    %3208 = vmatpush1.msra.mxu0 0.0
    %3209 = vmatprep.subr.mxu0 0.0
    %3210 = vmatpush1.msra.mxu0 0.0
    %3211 = vmatprep.subr.mxu0 0.0
    %3212 = vmatpush1.msra.mxu0 0.0
    %3213 = vmatprep.subr.mxu0 0.0
    %3214 = vmatpush1.msra.mxu0 0.0
    %3215 = vmatprep.subr.mxu0 0.0
    %3216 = vmatpush1.msra.mxu0 0.0
    %3217 = vmatprep.subr.mxu0 0.0
    %3218 = vmatpush1.msra.mxu0 0.0
    %3219 = vmatprep.subr.mxu0 0.0
    %3220 = vmatpush1.msra.mxu0 0.0
    %3221 = vmatprep.subr.mxu0 0.0
    %3222 = vmatpush1.msra.mxu0 0.0
    %3223 = vmatprep.subr.mxu0 0.0
    %3224 = vmatpush1.msra.mxu0 0.0
    %3225 = vmatprep.subr.mxu0 0.0
    %3226 = vmatpush1.msra.mxu0 0.0
    %3227 = vmatprep.subr.mxu0 0.0
    %3228 = vmatpush1.msra.mxu0 0.0
    %3229 = vmatprep.subr.mxu0 0.0
    %3230 = vmatpush1.msra.mxu0 0.0
    %3231 = vmatprep.subr.mxu0 0.0
    %3232 = vmatpush1.msra.mxu0 0.0
    %3233 = vmatprep.subr.mxu0 0.0
    %3234 = vmatpush1.msra.mxu0 0.0
    %3235 = vmatprep.subr.mxu0 0.0
    %3236 = vmatpush1.msra.mxu0 0.0
    %3237 = vmatprep.subr.mxu0 0.0
    %3238 = vmatpush1.msra.mxu0 0.0
    %3239 = vmatprep.subr.mxu0 0.0
    %3240 = vmatpush1.msra.mxu0 0.0
    %3241 = vmatprep.subr.mxu0 0.0
    %3242 = vmatpush1.msra.mxu0 0.0
    %3243 = vmatprep.subr.mxu0 0.0
    %3244 = vmatpush1.msra.mxu0 0.0
    %3245 = vmatprep.mubr.f32.mxu0 0.0
    %v3246 = vand.u32 %v3172, 4294901760
    %v3247 = vsub.f32 %v3172, %v3246
    %v3248 = vand.u32 %v3247, 4294901760
    %v3249 = vsub.f32 %v3247, %v3248
    %v3250 = vand.u32 %v3249, 4294901760
    %3251 = vmatmul.mubr.f32.gmra.mrb[0].mxu0 %v3250
    %v3252 = vpop.f32.mrb[0].mxu0
    %v3253 = vadd.f32 0.0, %v3252
    %v3254 = vpop.f32.mrb[0].mxu0
    %3255 = vmatprep.mubr.f32.mxu0 0.0
    %v3256 = vand.u32 %v3175, 4294901760
    %v3257 = vsub.f32 %v3175, %v3256
    %v3258 = vand.u32 %v3257, 4294901760
    %v3259 = vsub.f32 %v3257, %v3258
    %v3260 = vand.u32 %v3259, 4294901760
    %3261 = vmatmul.mubr.f32.gmra.mrb[0].mxu0 %v3260
    %v3262 = vpop.f32.mrb[0].mxu0
    %v3263 = vadd.f32 0.0, %v3262
    %v3264 = vpop.f32.mrb[0].mxu0
    %3265 = vdwg.mxu0
    %3266 = vmatprep.subr.mxu0 0.0
    %v3267 = vand.u32 %v3165, 4294901760
    %v3268 = vsub.f32 %v3165, %v3267
    %v3269 = vand.u32 %v3268, 4294901760
    %v3270 = vsub.f32 %v3268, %v3269
    %v3271 = vand.u32 %v3270, 4294901760
    %3272 = vmatpush1.msra.mxu0 %v3271
    %3273 = vmatprep.subr.mxu0 0.0
    %v3274 = vand.u32 %v3166, 4294901760
    %v3275 = vsub.f32 %v3166, %v3274
    %v3276 = vand.u32 %v3275, 4294901760
    %v3277 = vsub.f32 %v3275, %v3276
    %v3278 = vand.u32 %v3277, 4294901760
    %3279 = vmatpush1.msra.mxu0 %v3278
    %3280 = vmatprep.subr.mxu0 0.0
    %v3281 = vand.u32 %v3167, 4294901760
    %v3282 = vsub.f32 %v3167, %v3281
    %v3283 = vand.u32 %v3282, 4294901760
    %v3284 = vsub.f32 %v3282, %v3283
    %v3285 = vand.u32 %v3284, 4294901760
    %3286 = vmatpush1.msra.mxu0 %v3285
    %3287 = vmatprep.subr.mxu0 0.0
    %v3288 = vand.u32 %v3168, 4294901760
    %v3289 = vsub.f32 %v3168, %v3288
    %v3290 = vand.u32 %v3289, 4294901760
    %v3291 = vsub.f32 %v3289, %v3290
    %v3292 = vand.u32 %v3291, 4294901760
    %3293 = vmatpush1.msra.mxu0 %v3292
    %3294 = vmatprep.subr.mxu0 0.0
    %3295 = vmatpush1.msra.mxu0 0.0
    %3296 = vmatprep.subr.mxu0 0.0
    %3297 = vmatpush1.msra.mxu0 0.0
    %3298 = vmatprep.subr.mxu0 0.0
    %3299 = vmatpush1.msra.mxu0 0.0
    %3300 = vmatprep.subr.mxu0 0.0
    %3301 = vmatpush1.msra.mxu0 0.0
    %3302 = vmatprep.subr.mxu0 0.0
    %3303 = vmatpush1.msra.mxu0 0.0
    %3304 = vmatprep.subr.mxu0 0.0
    %3305 = vmatpush1.msra.mxu0 0.0
    %3306 = vmatprep.subr.mxu0 0.0
    %3307 = vmatpush1.msra.mxu0 0.0
    %3308 = vmatprep.subr.mxu0 0.0
    %3309 = vmatpush1.msra.mxu0 0.0
    %3310 = vmatprep.subr.mxu0 0.0
    %3311 = vmatpush1.msra.mxu0 0.0
    %3312 = vmatprep.subr.mxu0 0.0
    %3313 = vmatpush1.msra.mxu0 0.0
    %3314 = vmatprep.subr.mxu0 0.0
    %3315 = vmatpush1.msra.mxu0 0.0
    %3316 = vmatprep.subr.mxu0 0.0
    %3317 = vmatpush1.msra.mxu0 0.0
    %3318 = vmatprep.subr.mxu0 0.0
    %3319 = vmatpush1.msra.mxu0 0.0
    %3320 = vmatprep.subr.mxu0 0.0
    %3321 = vmatpush1.msra.mxu0 0.0
    %3322 = vmatprep.subr.mxu0 0.0
    %3323 = vmatpush1.msra.mxu0 0.0
    %3324 = vmatprep.subr.mxu0 0.0
    %3325 = vmatpush1.msra.mxu0 0.0
    %3326 = vmatprep.subr.mxu0 0.0
    %3327 = vmatpush1.msra.mxu0 0.0
    %3328 = vmatprep.subr.mxu0 0.0
    %3329 = vmatpush1.msra.mxu0 0.0
    %3330 = vmatprep.subr.mxu0 0.0
    %3331 = vmatpush1.msra.mxu0 0.0
    %3332 = vmatprep.subr.mxu0 0.0
    %3333 = vmatpush1.msra.mxu0 0.0
    %3334 = vmatprep.subr.mxu0 0.0
    %3335 = vmatpush1.msra.mxu0 0.0
    %3336 = vmatprep.subr.mxu0 0.0
    %3337 = vmatpush1.msra.mxu0 0.0
    %3338 = vmatprep.subr.mxu0 0.0
    %3339 = vmatpush1.msra.mxu0 0.0
    %3340 = vmatprep.subr.mxu0 0.0
    %3341 = vmatpush1.msra.mxu0 0.0
    %3342 = vmatprep.subr.mxu0 0.0
    %3343 = vmatpush1.msra.mxu0 0.0
    %3344 = vmatprep.subr.mxu0 0.0
    %3345 = vmatpush1.msra.mxu0 0.0
    %3346 = vmatprep.subr.mxu0 0.0
    %3347 = vmatpush1.msra.mxu0 0.0
    %3348 = vmatprep.subr.mxu0 0.0
    %3349 = vmatpush1.msra.mxu0 0.0
    %3350 = vmatprep.mubr.f32.mxu0 0.0
    %v3351 = vand.u32 %v3172, 4294901760
    %3352 = vmatmul.mubr.f32.gmra.mrb[0].mxu0 %v3351
    %v3353 = vpop.f32.mrb[0].mxu0
    %v3354 = vadd.f32 %v3253, %v3353
    %v3355 = vpop.f32.mrb[0].mxu0
    %3356 = vmatprep.mubr.f32.mxu0 0.0
    %v3357 = vand.u32 %v3175, 4294901760
    %3358 = vmatmul.mubr.f32.gmra.mrb[0].mxu0 %v3357
    %v3359 = vpop.f32.mrb[0].mxu0
    %v3360 = vadd.f32 %v3263, %v3359
    %v3361 = vpop.f32.mrb[0].mxu0
    %3362 = vdwg.mxu0
    %3363 = vmatprep.subr.mxu0 0.0
    %v3364 = vand.u32 %v3165, 4294901760
    %v3365 = vsub.f32 %v3165, %v3364
    %3366 = vmatpush1.msra.mxu0 %v3365
    %3367 = vmatprep.subr.mxu0 0.0
    %v3368 = vand.u32 %v3166, 4294901760
    %v3369 = vsub.f32 %v3166, %v3368
    %3370 = vmatpush1.msra.mxu0 %v3369
    %3371 = vmatprep.subr.mxu0 0.0
    %v3372 = vand.u32 %v3167, 4294901760
    %v3373 = vsub.f32 %v3167, %v3372
    %3374 = vmatpush1.msra.mxu0 %v3373
    %3375 = vmatprep.subr.mxu0 0.0
    %v3376 = vand.u32 %v3168, 4294901760
    %v3377 = vsub.f32 %v3168, %v3376
    %3378 = vmatpush1.msra.mxu0 %v3377
    %3379 = vmatprep.subr.mxu0 0.0
    %3380 = vmatpush1.msra.mxu0 0.0
    %3381 = vmatprep.subr.mxu0 0.0
    %3382 = vmatpush1.msra.mxu0 0.0
    %3383 = vmatprep.subr.mxu0 0.0
    %3384 = vmatpush1.msra.mxu0 0.0
    %3385 = vmatprep.subr.mxu0 0.0
    %3386 = vmatpush1.msra.mxu0 0.0
    %3387 = vmatprep.subr.mxu0 0.0
    %3388 = vmatpush1.msra.mxu0 0.0
    %3389 = vmatprep.subr.mxu0 0.0
    %3390 = vmatpush1.msra.mxu0 0.0
    %3391 = vmatprep.subr.mxu0 0.0
    %3392 = vmatpush1.msra.mxu0 0.0
    %3393 = vmatprep.subr.mxu0 0.0
    %3394 = vmatpush1.msra.mxu0 0.0
    %3395 = vmatprep.subr.mxu0 0.0
    %3396 = vmatpush1.msra.mxu0 0.0
    %3397 = vmatprep.subr.mxu0 0.0
    %3398 = vmatpush1.msra.mxu0 0.0
    %3399 = vmatprep.subr.mxu0 0.0
    %3400 = vmatpush1.msra.mxu0 0.0
    %3401 = vmatprep.subr.mxu0 0.0
    %3402 = vmatpush1.msra.mxu0 0.0
    %3403 = vmatprep.subr.mxu0 0.0
    %3404 = vmatpush1.msra.mxu0 0.0
    %3405 = vmatprep.subr.mxu0 0.0
    %3406 = vmatpush1.msra.mxu0 0.0
    %3407 = vmatprep.subr.mxu0 0.0
    %3408 = vmatpush1.msra.mxu0 0.0
    %3409 = vmatprep.subr.mxu0 0.0
    %3410 = vmatpush1.msra.mxu0 0.0
    %3411 = vmatprep.subr.mxu0 0.0
    %3412 = vmatpush1.msra.mxu0 0.0
    %3413 = vmatprep.subr.mxu0 0.0
    %3414 = vmatpush1.msra.mxu0 0.0
    %3415 = vmatprep.subr.mxu0 0.0
    %3416 = vmatpush1.msra.mxu0 0.0
    %3417 = vmatprep.subr.mxu0 0.0
    %3418 = vmatpush1.msra.mxu0 0.0
    %3419 = vmatprep.subr.mxu0 0.0
    %3420 = vmatpush1.msra.mxu0 0.0
    %3421 = vmatprep.subr.mxu0 0.0
    %3422 = vmatpush1.msra.mxu0 0.0
    %3423 = vmatprep.subr.mxu0 0.0
    %3424 = vmatpush1.msra.mxu0 0.0
    %3425 = vmatprep.subr.mxu0 0.0
    %3426 = vmatpush1.msra.mxu0 0.0
    %3427 = vmatprep.subr.mxu0 0.0
    %3428 = vmatpush1.msra.mxu0 0.0
    %3429 = vmatprep.subr.mxu0 0.0
    %3430 = vmatpush1.msra.mxu0 0.0
    %3431 = vmatprep.subr.mxu0 0.0
    %3432 = vmatpush1.msra.mxu0 0.0
    %3433 = vmatprep.subr.mxu0 0.0
    %3434 = vmatpush1.msra.mxu0 0.0
    %3435 = vmatprep.mubr.f32.mxu0 0.0
    %v3436 = vand.u32 %v3172, 4294901760
    %v3437 = vsub.f32 %v3172, %v3436
    %3438 = vmatmul.mubr.f32.gmra.mrb[0].mxu0 %v3437
    %v3439 = vpop.f32.mrb[0].mxu0
    %v3440 = vadd.f32 %v3354, %v3439
    %v3441 = vpop.f32.mrb[0].mxu0
    %3442 = vmatprep.mubr.f32.mxu0 0.0
    %v3443 = vand.u32 %v3175, 4294901760
    %v3444 = vsub.f32 %v3175, %v3443
    %3445 = vmatmul.mubr.f32.gmra.mrb[0].mxu0 %v3444
    %v3446 = vpop.f32.mrb[0].mxu0
    %v3447 = vadd.f32 %v3360, %v3446
    %v3448 = vpop.f32.mrb[0].mxu0
    %3449 = vdwg.mxu0
    %3450 = vmatprep.subr.mxu0 0.0
    %v3451 = vand.u32 %v3165, 4294901760
    %3452 = vmatpush1.msra.mxu0 %v3451
    %3453 = vmatprep.subr.mxu0 0.0
    %v3454 = vand.u32 %v3166, 4294901760
    %3455 = vmatpush1.msra.mxu0 %v3454
    %3456 = vmatprep.subr.mxu0 0.0
    %v3457 = vand.u32 %v3167, 4294901760
    %3458 = vmatpush1.msra.mxu0 %v3457
    %3459 = vmatprep.subr.mxu0 0.0
    %v3460 = vand.u32 %v3168, 4294901760
    %3461 = vmatpush1.msra.mxu0 %v3460
    %3462 = vmatprep.subr.mxu0 0.0
    %3463 = vmatpush1.msra.mxu0 0.0
    %3464 = vmatprep.subr.mxu0 0.0
    %3465 = vmatpush1.msra.mxu0 0.0
    %3466 = vmatprep.subr.mxu0 0.0
    %3467 = vmatpush1.msra.mxu0 0.0
    %3468 = vmatprep.subr.mxu0 0.0
    %3469 = vmatpush1.msra.mxu0 0.0
    %3470 = vmatprep.subr.mxu0 0.0
    %3471 = vmatpush1.msra.mxu0 0.0
    %3472 = vmatprep.subr.mxu0 0.0
    %3473 = vmatpush1.msra.mxu0 0.0
    %3474 = vmatprep.subr.mxu0 0.0
    %3475 = vmatpush1.msra.mxu0 0.0
    %3476 = vmatprep.subr.mxu0 0.0
    %3477 = vmatpush1.msra.mxu0 0.0
    %3478 = vmatprep.subr.mxu0 0.0
    %3479 = vmatpush1.msra.mxu0 0.0
    %3480 = vmatprep.subr.mxu0 0.0
    %3481 = vmatpush1.msra.mxu0 0.0
    %3482 = vmatprep.subr.mxu0 0.0
    %3483 = vmatpush1.msra.mxu0 0.0
    %3484 = vmatprep.subr.mxu0 0.0
    %3485 = vmatpush1.msra.mxu0 0.0
    %3486 = vmatprep.subr.mxu0 0.0
    %3487 = vmatpush1.msra.mxu0 0.0
    %3488 = vmatprep.subr.mxu0 0.0
    %3489 = vmatpush1.msra.mxu0 0.0
    %3490 = vmatprep.subr.mxu0 0.0
    %3491 = vmatpush1.msra.mxu0 0.0
    %3492 = vmatprep.subr.mxu0 0.0
    %3493 = vmatpush1.msra.mxu0 0.0
    %3494 = vmatprep.subr.mxu0 0.0
    %3495 = vmatpush1.msra.mxu0 0.0
    %3496 = vmatprep.subr.mxu0 0.0
    %3497 = vmatpush1.msra.mxu0 0.0
    %3498 = vmatprep.subr.mxu0 0.0
    %3499 = vmatpush1.msra.mxu0 0.0
    %3500 = vmatprep.subr.mxu0 0.0
    %3501 = vmatpush1.msra.mxu0 0.0
    %3502 = vmatprep.subr.mxu0 0.0
    %3503 = vmatpush1.msra.mxu0 0.0
    %3504 = vmatprep.subr.mxu0 0.0
    %3505 = vmatpush1.msra.mxu0 0.0
    %3506 = vmatprep.subr.mxu0 0.0
    %3507 = vmatpush1.msra.mxu0 0.0
    %3508 = vmatprep.subr.mxu0 0.0
    %3509 = vmatpush1.msra.mxu0 0.0
    %3510 = vmatprep.subr.mxu0 0.0
    %3511 = vmatpush1.msra.mxu0 0.0
    %3512 = vmatprep.subr.mxu0 0.0
    %3513 = vmatpush1.msra.mxu0 0.0
    %3514 = vmatprep.subr.mxu0 0.0
    %3515 = vmatpush1.msra.mxu0 0.0
    %3516 = vmatprep.subr.mxu0 0.0
    %3517 = vmatpush1.msra.mxu0 0.0
    %3518 = vmatprep.mubr.f32.mxu0 0.0
    %v3519 = vand.u32 %v3172, 4294901760
    %v3520 = vsub.f32 %v3172, %v3519
    %v3521 = vand.u32 %v3520, 4294901760
    %3522 = vmatmul.mubr.f32.gmra.mrb[0].mxu0 %v3521
    %v3523 = vpop.f32.mrb[0].mxu0
    %v3524 = vadd.f32 %v3440, %v3523
    %v3525 = vpop.f32.mrb[0].mxu0
    %3526 = vmatprep.mubr.f32.mxu0 0.0
    %v3527 = vand.u32 %v3175, 4294901760
    %v3528 = vsub.f32 %v3175, %v3527
    %v3529 = vand.u32 %v3528, 4294901760
    %3530 = vmatmul.mubr.f32.gmra.mrb[0].mxu0 %v3529
    %v3531 = vpop.f32.mrb[0].mxu0
    %v3532 = vadd.f32 %v3447, %v3531
    %v3533 = vpop.f32.mrb[0].mxu0
    %3534 = vdwg.mxu0
    %3535 = vmatprep.subr.mxu0 0.0
    %v3536 = vand.u32 %v3165, 4294901760
    %v3537 = vsub.f32 %v3165, %v3536
    %v3538 = vand.u32 %v3537, 4294901760
    %3539 = vmatpush1.msra.mxu0 %v3538
    %3540 = vmatprep.subr.mxu0 0.0
    %v3541 = vand.u32 %v3166, 4294901760
    %v3542 = vsub.f32 %v3166, %v3541
    %v3543 = vand.u32 %v3542, 4294901760
    %3544 = vmatpush1.msra.mxu0 %v3543
    %3545 = vmatprep.subr.mxu0 0.0
    %v3546 = vand.u32 %v3167, 4294901760
    %v3547 = vsub.f32 %v3167, %v3546
    %v3548 = vand.u32 %v3547, 4294901760
    %3549 = vmatpush1.msra.mxu0 %v3548
    %3550 = vmatprep.subr.mxu0 0.0
    %v3551 = vand.u32 %v3168, 4294901760
    %v3552 = vsub.f32 %v3168, %v3551
    %v3553 = vand.u32 %v3552, 4294901760
    %3554 = vmatpush1.msra.mxu0 %v3553
    %3555 = vmatprep.subr.mxu0 0.0
    %3556 = vmatpush1.msra.mxu0 0.0
    %3557 = vmatprep.subr.mxu0 0.0
    %3558 = vmatpush1.msra.mxu0 0.0
    %3559 = vmatprep.subr.mxu0 0.0
    %3560 = vmatpush1.msra.mxu0 0.0
    %3561 = vmatprep.subr.mxu0 0.0
    %3562 = vmatpush1.msra.mxu0 0.0
    %3563 = vmatprep.subr.mxu0 0.0
    %3564 = vmatpush1.msra.mxu0 0.0
    %3565 = vmatprep.subr.mxu0 0.0
    %3566 = vmatpush1.msra.mxu0 0.0
    %3567 = vmatprep.subr.mxu0 0.0
    %3568 = vmatpush1.msra.mxu0 0.0
    %3569 = vmatprep.subr.mxu0 0.0
    %3570 = vmatpush1.msra.mxu0 0.0
    %3571 = vmatprep.subr.mxu0 0.0
    %3572 = vmatpush1.msra.mxu0 0.0
    %3573 = vmatprep.subr.mxu0 0.0
    %3574 = vmatpush1.msra.mxu0 0.0
    %3575 = vmatprep.subr.mxu0 0.0
    %3576 = vmatpush1.msra.mxu0 0.0
    %3577 = vmatprep.subr.mxu0 0.0
    %3578 = vmatpush1.msra.mxu0 0.0
    %3579 = vmatprep.subr.mxu0 0.0
    %3580 = vmatpush1.msra.mxu0 0.0
    %3581 = vmatprep.subr.mxu0 0.0
    %3582 = vmatpush1.msra.mxu0 0.0
    %3583 = vmatprep.subr.mxu0 0.0
    %3584 = vmatpush1.msra.mxu0 0.0
    %3585 = vmatprep.subr.mxu0 0.0
    %3586 = vmatpush1.msra.mxu0 0.0
    %3587 = vmatprep.subr.mxu0 0.0
    %3588 = vmatpush1.msra.mxu0 0.0
    %3589 = vmatprep.subr.mxu0 0.0
    %3590 = vmatpush1.msra.mxu0 0.0
    %3591 = vmatprep.subr.mxu0 0.0
    %3592 = vmatpush1.msra.mxu0 0.0
    %3593 = vmatprep.subr.mxu0 0.0
    %3594 = vmatpush1.msra.mxu0 0.0
    %3595 = vmatprep.subr.mxu0 0.0
    %3596 = vmatpush1.msra.mxu0 0.0
    %3597 = vmatprep.subr.mxu0 0.0
    %3598 = vmatpush1.msra.mxu0 0.0
    %3599 = vmatprep.subr.mxu0 0.0
    %3600 = vmatpush1.msra.mxu0 0.0
    %3601 = vmatprep.subr.mxu0 0.0
    %3602 = vmatpush1.msra.mxu0 0.0
    %3603 = vmatprep.subr.mxu0 0.0
    %3604 = vmatpush1.msra.mxu0 0.0
    %3605 = vmatprep.subr.mxu0 0.0
    %3606 = vmatpush1.msra.mxu0 0.0
    %3607 = vmatprep.subr.mxu0 0.0
    %3608 = vmatpush1.msra.mxu0 0.0
    %3609 = vmatprep.subr.mxu0 0.0
    %3610 = vmatpush1.msra.mxu0 0.0
    %3611 = vmatprep.mubr.f32.mxu0 0.0
    %v3612 = vand.u32 %v3172, 4294901760
    %3613 = vmatmul.mubr.f32.gmra.mrb[0].mxu0 %v3612
    %v3614 = vpop.f32.mrb[0].mxu0
    %v3615 = vadd.f32 %v3524, %v3614
    %v3616 = vpop.f32.mrb[0].mxu0
    %3617 = vmatprep.mubr.f32.mxu0 0.0
    %v3618 = vand.u32 %v3175, 4294901760
    %3619 = vmatmul.mubr.f32.gmra.mrb[0].mxu0 %v3618
    %v3620 = vpop.f32.mrb[0].mxu0
    %v3621 = vadd.f32 %v3532, %v3620
    %v3622 = vpop.f32.mrb[0].mxu0
    %3623 = vdwg.mxu0
    %3624 = vmatprep.subr.mxu0 0.0
    %v3625 = vand.u32 %v3165, 4294901760
    %3626 = vmatpush1.msra.mxu0 %v3625
    %3627 = vmatprep.subr.mxu0 0.0
    %v3628 = vand.u32 %v3166, 4294901760
    %3629 = vmatpush1.msra.mxu0 %v3628
    %3630 = vmatprep.subr.mxu0 0.0
    %v3631 = vand.u32 %v3167, 4294901760
    %3632 = vmatpush1.msra.mxu0 %v3631
    %3633 = vmatprep.subr.mxu0 0.0
    %v3634 = vand.u32 %v3168, 4294901760
    %3635 = vmatpush1.msra.mxu0 %v3634
    %3636 = vmatprep.subr.mxu0 0.0
    %3637 = vmatpush1.msra.mxu0 0.0
    %3638 = vmatprep.subr.mxu0 0.0
    %3639 = vmatpush1.msra.mxu0 0.0
    %3640 = vmatprep.subr.mxu0 0.0
    %3641 = vmatpush1.msra.mxu0 0.0
    %3642 = vmatprep.subr.mxu0 0.0
    %3643 = vmatpush1.msra.mxu0 0.0
    %3644 = vmatprep.subr.mxu0 0.0
    %3645 = vmatpush1.msra.mxu0 0.0
    %3646 = vmatprep.subr.mxu0 0.0
    %3647 = vmatpush1.msra.mxu0 0.0
    %3648 = vmatprep.subr.mxu0 0.0
    %3649 = vmatpush1.msra.mxu0 0.0
    %3650 = vmatprep.subr.mxu0 0.0
    %3651 = vmatpush1.msra.mxu0 0.0
    %3652 = vmatprep.subr.mxu0 0.0
    %3653 = vmatpush1.msra.mxu0 0.0
    %3654 = vmatprep.subr.mxu0 0.0
    %3655 = vmatpush1.msra.mxu0 0.0
    %3656 = vmatprep.subr.mxu0 0.0
    %3657 = vmatpush1.msra.mxu0 0.0
    %3658 = vmatprep.subr.mxu0 0.0
    %3659 = vmatpush1.msra.mxu0 0.0
    %3660 = vmatprep.subr.mxu0 0.0
    %3661 = vmatpush1.msra.mxu0 0.0
    %3662 = vmatprep.subr.mxu0 0.0
    %3663 = vmatpush1.msra.mxu0 0.0
    %3664 = vmatprep.subr.mxu0 0.0
    %3665 = vmatpush1.msra.mxu0 0.0
    %3666 = vmatprep.subr.mxu0 0.0
    %3667 = vmatpush1.msra.mxu0 0.0
    %3668 = vmatprep.subr.mxu0 0.0
    %3669 = vmatpush1.msra.mxu0 0.0
    %3670 = vmatprep.subr.mxu0 0.0
    %3671 = vmatpush1.msra.mxu0 0.0
    %3672 = vmatprep.subr.mxu0 0.0
    %3673 = vmatpush1.msra.mxu0 0.0
    %3674 = vmatprep.subr.mxu0 0.0
    %3675 = vmatpush1.msra.mxu0 0.0
    %3676 = vmatprep.subr.mxu0 0.0
    %3677 = vmatpush1.msra.mxu0 0.0
    %3678 = vmatprep.subr.mxu0 0.0
    %3679 = vmatpush1.msra.mxu0 0.0
    %3680 = vmatprep.subr.mxu0 0.0
    %3681 = vmatpush1.msra.mxu0 0.0
    %3682 = vmatprep.subr.mxu0 0.0
    %3683 = vmatpush1.msra.mxu0 0.0
    %3684 = vmatprep.subr.mxu0 0.0
    %3685 = vmatpush1.msra.mxu0 0.0
    %3686 = vmatprep.subr.mxu0 0.0
    %3687 = vmatpush1.msra.mxu0 0.0
    %3688 = vmatprep.subr.mxu0 0.0
    %3689 = vmatpush1.msra.mxu0 0.0
    %3690 = vmatprep.subr.mxu0 0.0
    %3691 = vmatpush1.msra.mxu0 0.0
    %3692 = vmatprep.mubr.f32.mxu0 0.0
    %v3693 = vand.u32 %v3172, 4294901760
    %3694 = vmatmul.mubr.f32.gmra.mrb[0].mxu0 %v3693
    %v3695 = vpop.f32.mrb[0].mxu0
    %v3696 = vadd.f32 %v3615, %v3695
    %v3697 = vpop.f32.mrb[0].mxu0
    %3698 = vmatprep.mubr.f32.mxu0 0.0
    %v3699 = vand.u32 %v3175, 4294901760
    %3700 = vmatmul.mubr.f32.gmra.mrb[0].mxu0 %v3699
    %v3701 = vpop.f32.mrb[0].mxu0
    %v3702 = vadd.f32 %v3621, %v3701
    %v3703 = vpop.f32.mrb[0].mxu0
    %3704 = vdwg.mxu0
    %v3706 = vlaneseq
    %v3707 = vshrl.u32 %v3706, 7
    %v3708 = vsub.s32 0, %v3707
    %v3709 = vrot.slane %v3170, %v3708
    %3711 = vmatprep.subr.mxu0 0.0
    %v3712 = vand.u32 %v3696, 4294901760
    %3713 = vmatpush1.msra.mxu0 %v3712
    %3714 = vmatprep.subr.mxu0 0.0
    %v3715 = vand.u32 %v3702, 4294901760
    %3716 = vmatpush1.msra.mxu0 %v3715
    %3717 = vmatprep.subr.mxu0 0.0
    %3718 = vmatpush1.msra.mxu0 0.0
    %3719 = vmatprep.subr.mxu0 0.0
    %3720 = vmatpush1.msra.mxu0 0.0
    %3721 = vmatprep.subr.mxu0 0.0
    %3722 = vmatpush1.msra.mxu0 0.0
    %3723 = vmatprep.subr.mxu0 0.0
    %3724 = vmatpush1.msra.mxu0 0.0
    %3725 = vmatprep.subr.mxu0 0.0
    %3726 = vmatpush1.msra.mxu0 0.0
    %3727 = vmatprep.subr.mxu0 0.0
    %3728 = vmatpush1.msra.mxu0 0.0
    %3729 = vmatprep.subr.mxu0 0.0
    %3730 = vmatpush1.msra.mxu0 0.0
    %3731 = vmatprep.subr.mxu0 0.0
    %3732 = vmatpush1.msra.mxu0 0.0
    %3733 = vmatprep.subr.mxu0 0.0
    %3734 = vmatpush1.msra.mxu0 0.0
    %3735 = vmatprep.subr.mxu0 0.0
    %3736 = vmatpush1.msra.mxu0 0.0
    %3737 = vmatprep.subr.mxu0 0.0
    %3738 = vmatpush1.msra.mxu0 0.0
    %3739 = vmatprep.subr.mxu0 0.0
    %3740 = vmatpush1.msra.mxu0 0.0
    %3741 = vmatprep.subr.mxu0 0.0
    %3742 = vmatpush1.msra.mxu0 0.0
    %3743 = vmatprep.subr.mxu0 0.0
    %3744 = vmatpush1.msra.mxu0 0.0
    %3745 = vmatprep.subr.mxu0 0.0
    %3746 = vmatpush1.msra.mxu0 0.0
    %3747 = vmatprep.subr.mxu0 0.0
    %3748 = vmatpush1.msra.mxu0 0.0
    %3749 = vmatprep.subr.mxu0 0.0
    %3750 = vmatpush1.msra.mxu0 0.0
    %3751 = vmatprep.subr.mxu0 0.0
    %3752 = vmatpush1.msra.mxu0 0.0
    %3753 = vmatprep.subr.mxu0 0.0
    %3754 = vmatpush1.msra.mxu0 0.0
    %3755 = vmatprep.subr.mxu0 0.0
    %3756 = vmatpush1.msra.mxu0 0.0
    %3757 = vmatprep.subr.mxu0 0.0
    %3758 = vmatpush1.msra.mxu0 0.0
    %3759 = vmatprep.subr.mxu0 0.0
    %3760 = vmatpush1.msra.mxu0 0.0
    %3761 = vmatprep.subr.mxu0 0.0
    %3762 = vmatpush1.msra.mxu0 0.0
    %3763 = vmatprep.subr.mxu0 0.0
    %3764 = vmatpush1.msra.mxu0 0.0
    %3765 = vmatprep.subr.mxu0 0.0
    %3766 = vmatpush1.msra.mxu0 0.0
    %3767 = vmatprep.subr.mxu0 0.0
    %3768 = vmatpush1.msra.mxu0 0.0
    %3769 = vmatprep.subr.mxu0 0.0
    %3770 = vmatpush1.msra.mxu0 0.0
    %3771 = vmatprep.subr.mxu0 0.0
    %3772 = vmatpush1.msra.mxu0 0.0
    %3773 = vmatprep.subr.mxu0 0.0
    %3774 = vmatpush1.msra.mxu0 0.0
    %3775 = vmatprep.subr.mxu0 0.0
    %3776 = vmatpush1.msra.mxu0 0.0
    %3777 = vmatprep.mubr.f32.mxu0 0.0
    %v3778 = vand.u32 %v2655, 4294901760
    %v3779 = vsub.f32 %v2655, %v3778
    %v3780 = vand.u32 %v3779, 4294901760
    %v3781 = vsub.f32 %v3779, %v3780
    %v3782 = vand.u32 %v3781, 4294901760
    %3783 = vmatmul.mubr.f32.gmra.mrb[0].mxu0 %v3782
    %v3784 = vpop.f32.mrb[0].mxu0
    %v3785 = vadd.f32 %v3709, %v3784
    %v3786 = vpop.f32.mrb[0].mxu0
    %3787 = vmatprep.mubr.f32.mxu0 0.0
    %v3788 = vand.u32 %v2658, 4294901760
    %v3789 = vsub.f32 %v2658, %v3788
    %v3790 = vand.u32 %v3789, 4294901760
    %v3791 = vsub.f32 %v3789, %v3790
    %v3792 = vand.u32 %v3791, 4294901760
    %3793 = vmatmul.mubr.f32.gmra.mrb[0].mxu0 %v3792
    %v3794 = vpop.f32.mrb[0].mxu0
    %v3795 = vadd.f32 %v3709, %v3794
    %v3796 = vpop.f32.mrb[0].mxu0
    %3797 = vdwg.mxu0
    %3798 = vmatprep.subr.mxu0 0.0
    %v3799 = vand.u32 %v3696, 4294901760
    %v3800 = vsub.f32 %v3696, %v3799
    %v3801 = vand.u32 %v3800, 4294901760
    %v3802 = vsub.f32 %v3800, %v3801
    %v3803 = vand.u32 %v3802, 4294901760
    %3804 = vmatpush1.msra.mxu0 %v3803
    %3805 = vmatprep.subr.mxu0 0.0
    %v3806 = vand.u32 %v3702, 4294901760
    %v3807 = vsub.f32 %v3702, %v3806
    %v3808 = vand.u32 %v3807, 4294901760
    %v3809 = vsub.f32 %v3807, %v3808
    %v3810 = vand.u32 %v3809, 4294901760
    %3811 = vmatpush1.msra.mxu0 %v3810
    %3812 = vmatprep.subr.mxu0 0.0
    %3813 = vmatpush1.msra.mxu0 0.0
    %3814 = vmatprep.subr.mxu0 0.0
    %3815 = vmatpush1.msra.mxu0 0.0
    %3816 = vmatprep.subr.mxu0 0.0
    %3817 = vmatpush1.msra.mxu0 0.0
    %3818 = vmatprep.subr.mxu0 0.0
    %3819 = vmatpush1.msra.mxu0 0.0
    %3820 = vmatprep.subr.mxu0 0.0
    %3821 = vmatpush1.msra.mxu0 0.0
    %3822 = vmatprep.subr.mxu0 0.0
    %3823 = vmatpush1.msra.mxu0 0.0
    %3824 = vmatprep.subr.mxu0 0.0
    %3825 = vmatpush1.msra.mxu0 0.0
    %3826 = vmatprep.subr.mxu0 0.0
    %3827 = vmatpush1.msra.mxu0 0.0
    %3828 = vmatprep.subr.mxu0 0.0
    %3829 = vmatpush1.msra.mxu0 0.0
    %3830 = vmatprep.subr.mxu0 0.0
    %3831 = vmatpush1.msra.mxu0 0.0
    %3832 = vmatprep.subr.mxu0 0.0
    %3833 = vmatpush1.msra.mxu0 0.0
    %3834 = vmatprep.subr.mxu0 0.0
    %3835 = vmatpush1.msra.mxu0 0.0
    %3836 = vmatprep.subr.mxu0 0.0
    %3837 = vmatpush1.msra.mxu0 0.0
    %3838 = vmatprep.subr.mxu0 0.0
    %3839 = vmatpush1.msra.mxu0 0.0
    %3840 = vmatprep.subr.mxu0 0.0
    %3841 = vmatpush1.msra.mxu0 0.0
    %3842 = vmatprep.subr.mxu0 0.0
    %3843 = vmatpush1.msra.mxu0 0.0
    %3844 = vmatprep.subr.mxu0 0.0
    %3845 = vmatpush1.msra.mxu0 0.0
    %3846 = vmatprep.subr.mxu0 0.0
    %3847 = vmatpush1.msra.mxu0 0.0
    %3848 = vmatprep.subr.mxu0 0.0
    %3849 = vmatpush1.msra.mxu0 0.0
    %3850 = vmatprep.subr.mxu0 0.0
    %3851 = vmatpush1.msra.mxu0 0.0
    %3852 = vmatprep.subr.mxu0 0.0
    %3853 = vmatpush1.msra.mxu0 0.0
    %3854 = vmatprep.subr.mxu0 0.0
    %3855 = vmatpush1.msra.mxu0 0.0
    %3856 = vmatprep.subr.mxu0 0.0
    %3857 = vmatpush1.msra.mxu0 0.0
    %3858 = vmatprep.subr.mxu0 0.0
    %3859 = vmatpush1.msra.mxu0 0.0
    %3860 = vmatprep.subr.mxu0 0.0
    %3861 = vmatpush1.msra.mxu0 0.0
    %3862 = vmatprep.subr.mxu0 0.0
    %3863 = vmatpush1.msra.mxu0 0.0
    %3864 = vmatprep.subr.mxu0 0.0
    %3865 = vmatpush1.msra.mxu0 0.0
    %3866 = vmatprep.subr.mxu0 0.0
    %3867 = vmatpush1.msra.mxu0 0.0
    %3868 = vmatprep.subr.mxu0 0.0
    %3869 = vmatpush1.msra.mxu0 0.0
    %3870 = vmatprep.subr.mxu0 0.0
    %3871 = vmatpush1.msra.mxu0 0.0
    %3872 = vmatprep.mubr.f32.mxu0 0.0
    %v3873 = vand.u32 %v2655, 4294901760
    %3874 = vmatmul.mubr.f32.gmra.mrb[0].mxu0 %v3873
    %v3875 = vpop.f32.mrb[0].mxu0
    %v3876 = vadd.f32 %v3785, %v3875
    %v3877 = vpop.f32.mrb[0].mxu0
    %3878 = vmatprep.mubr.f32.mxu0 0.0
    %v3879 = vand.u32 %v2658, 4294901760
    %3880 = vmatmul.mubr.f32.gmra.mrb[0].mxu0 %v3879
    %v3881 = vpop.f32.mrb[0].mxu0
    %v3882 = vadd.f32 %v3795, %v3881
    %v3883 = vpop.f32.mrb[0].mxu0
    %3884 = vdwg.mxu0
    %3885 = vmatprep.subr.mxu0 0.0
    %v3886 = vand.u32 %v3696, 4294901760
    %v3887 = vsub.f32 %v3696, %v3886
    %3888 = vmatpush1.msra.mxu0 %v3887
    %3889 = vmatprep.subr.mxu0 0.0
    %v3890 = vand.u32 %v3702, 4294901760
    %v3891 = vsub.f32 %v3702, %v3890
    %3892 = vmatpush1.msra.mxu0 %v3891
    %3893 = vmatprep.subr.mxu0 0.0
    %3894 = vmatpush1.msra.mxu0 0.0
    %3895 = vmatprep.subr.mxu0 0.0
    %3896 = vmatpush1.msra.mxu0 0.0
    %3897 = vmatprep.subr.mxu0 0.0
    %3898 = vmatpush1.msra.mxu0 0.0
    %3899 = vmatprep.subr.mxu0 0.0
    %3900 = vmatpush1.msra.mxu0 0.0
    %3901 = vmatprep.subr.mxu0 0.0
    %3902 = vmatpush1.msra.mxu0 0.0
    %3903 = vmatprep.subr.mxu0 0.0
    %3904 = vmatpush1.msra.mxu0 0.0
    %3905 = vmatprep.subr.mxu0 0.0
    %3906 = vmatpush1.msra.mxu0 0.0
    %3907 = vmatprep.subr.mxu0 0.0
    %3908 = vmatpush1.msra.mxu0 0.0
    %3909 = vmatprep.subr.mxu0 0.0
    %3910 = vmatpush1.msra.mxu0 0.0
    %3911 = vmatprep.subr.mxu0 0.0
    %3912 = vmatpush1.msra.mxu0 0.0
    %3913 = vmatprep.subr.mxu0 0.0
    %3914 = vmatpush1.msra.mxu0 0.0
    %3915 = vmatprep.subr.mxu0 0.0
    %3916 = vmatpush1.msra.mxu0 0.0
    %3917 = vmatprep.subr.mxu0 0.0
    %3918 = vmatpush1.msra.mxu0 0.0
    %3919 = vmatprep.subr.mxu0 0.0
    %3920 = vmatpush1.msra.mxu0 0.0
    %3921 = vmatprep.subr.mxu0 0.0
    %3922 = vmatpush1.msra.mxu0 0.0
    %3923 = vmatprep.subr.mxu0 0.0
    %3924 = vmatpush1.msra.mxu0 0.0
    %3925 = vmatprep.subr.mxu0 0.0
    %3926 = vmatpush1.msra.mxu0 0.0
    %3927 = vmatprep.subr.mxu0 0.0
    %3928 = vmatpush1.msra.mxu0 0.0
    %3929 = vmatprep.subr.mxu0 0.0
    %3930 = vmatpush1.msra.mxu0 0.0
    %3931 = vmatprep.subr.mxu0 0.0
    %3932 = vmatpush1.msra.mxu0 0.0
    %3933 = vmatprep.subr.mxu0 0.0
    %3934 = vmatpush1.msra.mxu0 0.0
    %3935 = vmatprep.subr.mxu0 0.0
    %3936 = vmatpush1.msra.mxu0 0.0
    %3937 = vmatprep.subr.mxu0 0.0
    %3938 = vmatpush1.msra.mxu0 0.0
    %3939 = vmatprep.subr.mxu0 0.0
    %3940 = vmatpush1.msra.mxu0 0.0
    %3941 = vmatprep.subr.mxu0 0.0
    %3942 = vmatpush1.msra.mxu0 0.0
    %3943 = vmatprep.subr.mxu0 0.0
    %3944 = vmatpush1.msra.mxu0 0.0
    %3945 = vmatprep.subr.mxu0 0.0
    %3946 = vmatpush1.msra.mxu0 0.0
    %3947 = vmatprep.subr.mxu0 0.0
    %3948 = vmatpush1.msra.mxu0 0.0
    %3949 = vmatprep.subr.mxu0 0.0
    %3950 = vmatpush1.msra.mxu0 0.0
    %3951 = vmatprep.subr.mxu0 0.0
    %3952 = vmatpush1.msra.mxu0 0.0
    %3953 = vmatprep.mubr.f32.mxu0 0.0
    %v3954 = vand.u32 %v2655, 4294901760
    %v3955 = vsub.f32 %v2655, %v3954
    %3956 = vmatmul.mubr.f32.gmra.mrb[0].mxu0 %v3955
    %v3957 = vpop.f32.mrb[0].mxu0
    %v3958 = vadd.f32 %v3876, %v3957
    %v3959 = vpop.f32.mrb[0].mxu0
    %3960 = vmatprep.mubr.f32.mxu0 0.0
    %v3961 = vand.u32 %v2658, 4294901760
    %v3962 = vsub.f32 %v2658, %v3961
    %3963 = vmatmul.mubr.f32.gmra.mrb[0].mxu0 %v3962
    %v3964 = vpop.f32.mrb[0].mxu0
    %v3965 = vadd.f32 %v3882, %v3964
    %v3966 = vpop.f32.mrb[0].mxu0
    %3967 = vdwg.mxu0
    %3968 = vmatprep.subr.mxu0 0.0
    %v3969 = vand.u32 %v3696, 4294901760
    %3970 = vmatpush1.msra.mxu0 %v3969
    %3971 = vmatprep.subr.mxu0 0.0
    %v3972 = vand.u32 %v3702, 4294901760
    %3973 = vmatpush1.msra.mxu0 %v3972
    %3974 = vmatprep.subr.mxu0 0.0
    %3975 = vmatpush1.msra.mxu0 0.0
    %3976 = vmatprep.subr.mxu0 0.0
    %3977 = vmatpush1.msra.mxu0 0.0
    %3978 = vmatprep.subr.mxu0 0.0
    %3979 = vmatpush1.msra.mxu0 0.0
    %3980 = vmatprep.subr.mxu0 0.0
    %3981 = vmatpush1.msra.mxu0 0.0
    %3982 = vmatprep.subr.mxu0 0.0
    %3983 = vmatpush1.msra.mxu0 0.0
    %3984 = vmatprep.subr.mxu0 0.0
    %3985 = vmatpush1.msra.mxu0 0.0
    %3986 = vmatprep.subr.mxu0 0.0
    %3987 = vmatpush1.msra.mxu0 0.0
    %3988 = vmatprep.subr.mxu0 0.0
    %3989 = vmatpush1.msra.mxu0 0.0
    %3990 = vmatprep.subr.mxu0 0.0
    %3991 = vmatpush1.msra.mxu0 0.0
    %3992 = vmatprep.subr.mxu0 0.0
    %3993 = vmatpush1.msra.mxu0 0.0
    %3994 = vmatprep.subr.mxu0 0.0
    %3995 = vmatpush1.msra.mxu0 0.0
    %3996 = vmatprep.subr.mxu0 0.0
    %3997 = vmatpush1.msra.mxu0 0.0
    %3998 = vmatprep.subr.mxu0 0.0
    %3999 = vmatpush1.msra.mxu0 0.0
    %4000 = vmatprep.subr.mxu0 0.0
    %4001 = vmatpush1.msra.mxu0 0.0
    %4002 = vmatprep.subr.mxu0 0.0
    %4003 = vmatpush1.msra.mxu0 0.0
    %4004 = vmatprep.subr.mxu0 0.0
    %4005 = vmatpush1.msra.mxu0 0.0
    %4006 = vmatprep.subr.mxu0 0.0
    %4007 = vmatpush1.msra.mxu0 0.0
    %4008 = vmatprep.subr.mxu0 0.0
    %4009 = vmatpush1.msra.mxu0 0.0
    %4010 = vmatprep.subr.mxu0 0.0
    %4011 = vmatpush1.msra.mxu0 0.0
    %4012 = vmatprep.subr.mxu0 0.0
    %4013 = vmatpush1.msra.mxu0 0.0
    %4014 = vmatprep.subr.mxu0 0.0
    %4015 = vmatpush1.msra.mxu0 0.0
    %4016 = vmatprep.subr.mxu0 0.0
    %4017 = vmatpush1.msra.mxu0 0.0
    %4018 = vmatprep.subr.mxu0 0.0
    %4019 = vmatpush1.msra.mxu0 0.0
    %4020 = vmatprep.subr.mxu0 0.0
    %4021 = vmatpush1.msra.mxu0 0.0
    %4022 = vmatprep.subr.mxu0 0.0
    %4023 = vmatpush1.msra.mxu0 0.0
    %4024 = vmatprep.subr.mxu0 0.0
    %4025 = vmatpush1.msra.mxu0 0.0
    %4026 = vmatprep.subr.mxu0 0.0
    %4027 = vmatpush1.msra.mxu0 0.0
    %4028 = vmatprep.subr.mxu0 0.0
    %4029 = vmatpush1.msra.mxu0 0.0
    %4030 = vmatprep.subr.mxu0 0.0
    %4031 = vmatpush1.msra.mxu0 0.0
    %4032 = vmatprep.subr.mxu0 0.0
    %4033 = vmatpush1.msra.mxu0 0.0
    %4034 = vmatprep.mubr.f32.mxu0 0.0
    %v4035 = vand.u32 %v2655, 4294901760
    %v4036 = vsub.f32 %v2655, %v4035
    %v4037 = vand.u32 %v4036, 4294901760
    %4038 = vmatmul.mubr.f32.gmra.mrb[0].mxu0 %v4037
    %v4039 = vpop.f32.mrb[0].mxu0
    %v4040 = vadd.f32 %v3958, %v4039
    %v4041 = vpop.f32.mrb[0].mxu0
    %4042 = vmatprep.mubr.f32.mxu0 0.0
    %v4043 = vand.u32 %v2658, 4294901760
    %v4044 = vsub.f32 %v2658, %v4043
    %v4045 = vand.u32 %v4044, 4294901760
    %4046 = vmatmul.mubr.f32.gmra.mrb[0].mxu0 %v4045
    %v4047 = vpop.f32.mrb[0].mxu0
    %v4048 = vadd.f32 %v3965, %v4047
    %v4049 = vpop.f32.mrb[0].mxu0
    %4050 = vdwg.mxu0
    %4051 = vmatprep.subr.mxu0 0.0
    %v4052 = vand.u32 %v3696, 4294901760
    %v4053 = vsub.f32 %v3696, %v4052
    %v4054 = vand.u32 %v4053, 4294901760
    %4055 = vmatpush1.msra.mxu0 %v4054
    %4056 = vmatprep.subr.mxu0 0.0
    %v4057 = vand.u32 %v3702, 4294901760
    %v4058 = vsub.f32 %v3702, %v4057
    %v4059 = vand.u32 %v4058, 4294901760
    %4060 = vmatpush1.msra.mxu0 %v4059
    %4061 = vmatprep.subr.mxu0 0.0
    %4062 = vmatpush1.msra.mxu0 0.0
    %4063 = vmatprep.subr.mxu0 0.0
    %4064 = vmatpush1.msra.mxu0 0.0
    %4065 = vmatprep.subr.mxu0 0.0
    %4066 = vmatpush1.msra.mxu0 0.0
    %4067 = vmatprep.subr.mxu0 0.0
    %4068 = vmatpush1.msra.mxu0 0.0
    %4069 = vmatprep.subr.mxu0 0.0
    %4070 = vmatpush1.msra.mxu0 0.0
    %4071 = vmatprep.subr.mxu0 0.0
    %4072 = vmatpush1.msra.mxu0 0.0
    %4073 = vmatprep.subr.mxu0 0.0
    %4074 = vmatpush1.msra.mxu0 0.0
    %4075 = vmatprep.subr.mxu0 0.0
    %4076 = vmatpush1.msra.mxu0 0.0
    %4077 = vmatprep.subr.mxu0 0.0
    %4078 = vmatpush1.msra.mxu0 0.0
    %4079 = vmatprep.subr.mxu0 0.0
    %4080 = vmatpush1.msra.mxu0 0.0
    %4081 = vmatprep.subr.mxu0 0.0
    %4082 = vmatpush1.msra.mxu0 0.0
    %4083 = vmatprep.subr.mxu0 0.0
    %4084 = vmatpush1.msra.mxu0 0.0
    %4085 = vmatprep.subr.mxu0 0.0
    %4086 = vmatpush1.msra.mxu0 0.0
    %4087 = vmatprep.subr.mxu0 0.0
    %4088 = vmatpush1.msra.mxu0 0.0
    %4089 = vmatprep.subr.mxu0 0.0
    %4090 = vmatpush1.msra.mxu0 0.0
    %4091 = vmatprep.subr.mxu0 0.0
    %4092 = vmatpush1.msra.mxu0 0.0
    %4093 = vmatprep.subr.mxu0 0.0
    %4094 = vmatpush1.msra.mxu0 0.0
    %4095 = vmatprep.subr.mxu0 0.0
    %4096 = vmatpush1.msra.mxu0 0.0
    %4097 = vmatprep.subr.mxu0 0.0
    %4098 = vmatpush1.msra.mxu0 0.0
    %4099 = vmatprep.subr.mxu0 0.0
    %4100 = vmatpush1.msra.mxu0 0.0
    %4101 = vmatprep.subr.mxu0 0.0
    %4102 = vmatpush1.msra.mxu0 0.0
    %4103 = vmatprep.subr.mxu0 0.0
    %4104 = vmatpush1.msra.mxu0 0.0
    %4105 = vmatprep.subr.mxu0 0.0
    %4106 = vmatpush1.msra.mxu0 0.0
    %4107 = vmatprep.subr.mxu0 0.0
    %4108 = vmatpush1.msra.mxu0 0.0
    %4109 = vmatprep.subr.mxu0 0.0
    %4110 = vmatpush1.msra.mxu0 0.0
    %4111 = vmatprep.subr.mxu0 0.0
    %4112 = vmatpush1.msra.mxu0 0.0
    %4113 = vmatprep.subr.mxu0 0.0
    %4114 = vmatpush1.msra.mxu0 0.0
    %4115 = vmatprep.subr.mxu0 0.0
    %4116 = vmatpush1.msra.mxu0 0.0
    %4117 = vmatprep.subr.mxu0 0.0
    %4118 = vmatpush1.msra.mxu0 0.0
    %4119 = vmatprep.subr.mxu0 0.0
    %4120 = vmatpush1.msra.mxu0 0.0
    %4121 = vmatprep.mubr.f32.mxu0 0.0
    %v4122 = vand.u32 %v2655, 4294901760
    %4123 = vmatmul.mubr.f32.gmra.mrb[0].mxu0 %v4122
    %v4124 = vpop.f32.mrb[0].mxu0
    %v4125 = vadd.f32 %v4040, %v4124
    %v4126 = vpop.f32.mrb[0].mxu0
    %4127 = vmatprep.mubr.f32.mxu0 0.0
    %v4128 = vand.u32 %v2658, 4294901760
    %4129 = vmatmul.mubr.f32.gmra.mrb[0].mxu0 %v4128
    %v4130 = vpop.f32.mrb[0].mxu0
    %v4131 = vadd.f32 %v4048, %v4130
    %v4132 = vpop.f32.mrb[0].mxu0
    %4133 = vdwg.mxu0
    %4134 = vmatprep.subr.mxu0 0.0
    %v4135 = vand.u32 %v3696, 4294901760
    %4136 = vmatpush1.msra.mxu0 %v4135
    %4137 = vmatprep.subr.mxu0 0.0
    %v4138 = vand.u32 %v3702, 4294901760
    %4139 = vmatpush1.msra.mxu0 %v4138
    %4140 = vmatprep.subr.mxu0 0.0
    %4141 = vmatpush1.msra.mxu0 0.0
    %4142 = vmatprep.subr.mxu0 0.0
    %4143 = vmatpush1.msra.mxu0 0.0
    %4144 = vmatprep.subr.mxu0 0.0
    %4145 = vmatpush1.msra.mxu0 0.0
    %4146 = vmatprep.subr.mxu0 0.0
    %4147 = vmatpush1.msra.mxu0 0.0
    %4148 = vmatprep.subr.mxu0 0.0
    %4149 = vmatpush1.msra.mxu0 0.0
    %4150 = vmatprep.subr.mxu0 0.0
    %4151 = vmatpush1.msra.mxu0 0.0
    %4152 = vmatprep.subr.mxu0 0.0
    %4153 = vmatpush1.msra.mxu0 0.0
    %4154 = vmatprep.subr.mxu0 0.0
    %4155 = vmatpush1.msra.mxu0 0.0
    %4156 = vmatprep.subr.mxu0 0.0
    %4157 = vmatpush1.msra.mxu0 0.0
    %4158 = vmatprep.subr.mxu0 0.0
    %4159 = vmatpush1.msra.mxu0 0.0
    %4160 = vmatprep.subr.mxu0 0.0
    %4161 = vmatpush1.msra.mxu0 0.0
    %4162 = vmatprep.subr.mxu0 0.0
    %4163 = vmatpush1.msra.mxu0 0.0
    %4164 = vmatprep.subr.mxu0 0.0
    %4165 = vmatpush1.msra.mxu0 0.0
    %4166 = vmatprep.subr.mxu0 0.0
    %4167 = vmatpush1.msra.mxu0 0.0
    %4168 = vmatprep.subr.mxu0 0.0
    %4169 = vmatpush1.msra.mxu0 0.0
    %4170 = vmatprep.subr.mxu0 0.0
    %4171 = vmatpush1.msra.mxu0 0.0
    %4172 = vmatprep.subr.mxu0 0.0
    %4173 = vmatpush1.msra.mxu0 0.0
    %4174 = vmatprep.subr.mxu0 0.0
    %4175 = vmatpush1.msra.mxu0 0.0
    %4176 = vmatprep.subr.mxu0 0.0
    %4177 = vmatpush1.msra.mxu0 0.0
    %4178 = vmatprep.subr.mxu0 0.0
    %4179 = vmatpush1.msra.mxu0 0.0
    %4180 = vmatprep.subr.mxu0 0.0
    %4181 = vmatpush1.msra.mxu0 0.0
    %4182 = vmatprep.subr.mxu0 0.0
    %4183 = vmatpush1.msra.mxu0 0.0
    %4184 = vmatprep.subr.mxu0 0.0
    %4185 = vmatpush1.msra.mxu0 0.0
    %4186 = vmatprep.subr.mxu0 0.0
    %4187 = vmatpush1.msra.mxu0 0.0
    %4188 = vmatprep.subr.mxu0 0.0
    %4189 = vmatpush1.msra.mxu0 0.0
    %4190 = vmatprep.subr.mxu0 0.0
    %4191 = vmatpush1.msra.mxu0 0.0
    %4192 = vmatprep.subr.mxu0 0.0
    %4193 = vmatpush1.msra.mxu0 0.0
    %4194 = vmatprep.subr.mxu0 0.0
    %4195 = vmatpush1.msra.mxu0 0.0
    %4196 = vmatprep.subr.mxu0 0.0
    %4197 = vmatpush1.msra.mxu0 0.0
    %4198 = vmatprep.subr.mxu0 0.0
    %4199 = vmatpush1.msra.mxu0 0.0
    %4200 = vmatprep.mubr.f32.mxu0 0.0
    %v4201 = vand.u32 %v2655, 4294901760
    %4202 = vmatmul.mubr.f32.gmra.mrb[0].mxu0 %v4201
    %v4203 = vpop.f32.mrb[0].mxu0
    %v4204 = vadd.f32 %v4125, %v4203
    %v4205 = vpop.f32.mrb[0].mxu0
    %4206 = vmatprep.mubr.f32.mxu0 0.0
    %v4207 = vand.u32 %v2658, 4294901760
    %4208 = vmatmul.mubr.f32.gmra.mrb[0].mxu0 %v4207
    %v4209 = vpop.f32.mrb[0].mxu0
    %v4210 = vadd.f32 %v4131, %v4209
    %v4211 = vpop.f32.mrb[0].mxu0
    %4212 = vdwg.mxu0
    %v4213 = vmax.f32 %v4204, 0.0
    %v4214 = vmax.f32 %v4210, 0.0
    %s4215 = scalar_lea.vmem %s0, 32
    %v4216 = vld [vmem:[%s4215] sm:$0xff]
    %v4217 = vld [vmem:[%s4215 + $0x8] sm:$0xff]
    %s4218 = scalar_lea.vmem %s1, 32
    %v4219 = vld [vmem:[%s4218] sm:$0xff]
    %v4220 = vld [vmem:[%s4218 + $0x8] sm:$0xff]
    %s4221 = scalar_lea.vmem [#allocation2], 16
    %v4222 = vld [vmem:[%s4221] sm:$0xff]
    %s4223 = scalar_lea.vmem %s3, 2
    %v4224 = vld [vmem:[%s4223] sm:$0x1]
    %v4226 = vsel %vm80, %v4219, 0
    %v4229 = vsel %vm80, %v4220, 0
    %4231 = vmatprep.subr.mxu0 0.0
    %v4232 = vand.u32 %v4222, 4294901760
    %4233 = vmatpush1.msra.mxu0 %v4232
    %4234 = vmatprep.subr.mxu0 0.0
    %4235 = vmatpush1.msra.mxu0 0.0
    %4236 = vmatprep.subr.mxu0 0.0
    %4237 = vmatpush1.msra.mxu0 0.0
    %4238 = vmatprep.subr.mxu0 0.0
    %4239 = vmatpush1.msra.mxu0 0.0
    %4240 = vmatprep.subr.mxu0 0.0
    %4241 = vmatpush1.msra.mxu0 0.0
    %4242 = vmatprep.subr.mxu0 0.0
    %4243 = vmatpush1.msra.mxu0 0.0
    %4244 = vmatprep.subr.mxu0 0.0
    %4245 = vmatpush1.msra.mxu0 0.0
    %4246 = vmatprep.subr.mxu0 0.0
    %4247 = vmatpush1.msra.mxu0 0.0
    %4248 = vmatprep.subr.mxu0 0.0
    %4249 = vmatpush1.msra.mxu0 0.0
    %4250 = vmatprep.subr.mxu0 0.0
    %4251 = vmatpush1.msra.mxu0 0.0
    %4252 = vmatprep.subr.mxu0 0.0
    %4253 = vmatpush1.msra.mxu0 0.0
    %4254 = vmatprep.subr.mxu0 0.0
    %4255 = vmatpush1.msra.mxu0 0.0
    %4256 = vmatprep.subr.mxu0 0.0
    %4257 = vmatpush1.msra.mxu0 0.0
    %4258 = vmatprep.subr.mxu0 0.0
    %4259 = vmatpush1.msra.mxu0 0.0
    %4260 = vmatprep.subr.mxu0 0.0
    %4261 = vmatpush1.msra.mxu0 0.0
    %4262 = vmatprep.subr.mxu0 0.0
    %4263 = vmatpush1.msra.mxu0 0.0
    %4264 = vmatprep.subr.mxu0 0.0
    %4265 = vmatpush1.msra.mxu0 0.0
    %4266 = vmatprep.subr.mxu0 0.0
    %4267 = vmatpush1.msra.mxu0 0.0
    %4268 = vmatprep.subr.mxu0 0.0
    %4269 = vmatpush1.msra.mxu0 0.0
    %4270 = vmatprep.subr.mxu0 0.0
    %4271 = vmatpush1.msra.mxu0 0.0
    %4272 = vmatprep.subr.mxu0 0.0
    %4273 = vmatpush1.msra.mxu0 0.0
    %4274 = vmatprep.subr.mxu0 0.0
    %4275 = vmatpush1.msra.mxu0 0.0
    %4276 = vmatprep.subr.mxu0 0.0
    %4277 = vmatpush1.msra.mxu0 0.0
    %4278 = vmatprep.subr.mxu0 0.0
    %4279 = vmatpush1.msra.mxu0 0.0
    %4280 = vmatprep.subr.mxu0 0.0
    %4281 = vmatpush1.msra.mxu0 0.0
    %4282 = vmatprep.subr.mxu0 0.0
    %4283 = vmatpush1.msra.mxu0 0.0
    %4284 = vmatprep.subr.mxu0 0.0
    %4285 = vmatpush1.msra.mxu0 0.0
    %4286 = vmatprep.subr.mxu0 0.0
    %4287 = vmatpush1.msra.mxu0 0.0
    %4288 = vmatprep.subr.mxu0 0.0
    %4289 = vmatpush1.msra.mxu0 0.0
    %4290 = vmatprep.subr.mxu0 0.0
    %4291 = vmatpush1.msra.mxu0 0.0
    %4292 = vmatprep.subr.mxu0 0.0
    %4293 = vmatpush1.msra.mxu0 0.0
    %4294 = vmatprep.subr.mxu0 0.0
    %4295 = vmatpush1.msra.mxu0 0.0
    %4296 = vmatprep.mubr.f32.mxu0 0.0
    %v4297 = vand.u32 %v4226, 4294901760
    %v4298 = vsub.f32 %v4226, %v4297
    %v4299 = vand.u32 %v4298, 4294901760
    %v4300 = vsub.f32 %v4298, %v4299
    %v4301 = vand.u32 %v4300, 4294901760
    %4302 = vmatmul.mubr.f32.gmra.mrb[0].mxu0 %v4301
    %v4303 = vpop.f32.mrb[0].mxu0
    %v4304 = vadd.f32 0.0, %v4303
    %v4305 = vpop.f32.mrb[0].mxu0
    %4306 = vmatprep.mubr.f32.mxu0 0.0
    %v4307 = vand.u32 %v4229, 4294901760
    %v4308 = vsub.f32 %v4229, %v4307
    %v4309 = vand.u32 %v4308, 4294901760
    %v4310 = vsub.f32 %v4308, %v4309
    %v4311 = vand.u32 %v4310, 4294901760
    %4312 = vmatmul.mubr.f32.gmra.mrb[0].mxu0 %v4311
    %v4313 = vpop.f32.mrb[0].mxu0
    %v4314 = vadd.f32 0.0, %v4313
    %v4315 = vpop.f32.mrb[0].mxu0
    %4316 = vdwg.mxu0
    %4317 = vmatprep.subr.mxu0 0.0
    %v4318 = vand.u32 %v4222, 4294901760
    %v4319 = vsub.f32 %v4222, %v4318
    %v4320 = vand.u32 %v4319, 4294901760
    %v4321 = vsub.f32 %v4319, %v4320
    %v4322 = vand.u32 %v4321, 4294901760
    %4323 = vmatpush1.msra.mxu0 %v4322
    %4324 = vmatprep.subr.mxu0 0.0
    %4325 = vmatpush1.msra.mxu0 0.0
    %4326 = vmatprep.subr.mxu0 0.0
    %4327 = vmatpush1.msra.mxu0 0.0
    %4328 = vmatprep.subr.mxu0 0.0
    %4329 = vmatpush1.msra.mxu0 0.0
    %4330 = vmatprep.subr.mxu0 0.0
    %4331 = vmatpush1.msra.mxu0 0.0
    %4332 = vmatprep.subr.mxu0 0.0
    %4333 = vmatpush1.msra.mxu0 0.0
    %4334 = vmatprep.subr.mxu0 0.0
    %4335 = vmatpush1.msra.mxu0 0.0
    %4336 = vmatprep.subr.mxu0 0.0
    %4337 = vmatpush1.msra.mxu0 0.0
    %4338 = vmatprep.subr.mxu0 0.0
    %4339 = vmatpush1.msra.mxu0 0.0
    %4340 = vmatprep.subr.mxu0 0.0
    %4341 = vmatpush1.msra.mxu0 0.0
    %4342 = vmatprep.subr.mxu0 0.0
    %4343 = vmatpush1.msra.mxu0 0.0
    %4344 = vmatprep.subr.mxu0 0.0
    %4345 = vmatpush1.msra.mxu0 0.0
    %4346 = vmatprep.subr.mxu0 0.0
    %4347 = vmatpush1.msra.mxu0 0.0
    %4348 = vmatprep.subr.mxu0 0.0
    %4349 = vmatpush1.msra.mxu0 0.0
    %4350 = vmatprep.subr.mxu0 0.0
    %4351 = vmatpush1.msra.mxu0 0.0
    %4352 = vmatprep.subr.mxu0 0.0
    %4353 = vmatpush1.msra.mxu0 0.0
    %4354 = vmatprep.subr.mxu0 0.0
    %4355 = vmatpush1.msra.mxu0 0.0
    %4356 = vmatprep.subr.mxu0 0.0
    %4357 = vmatpush1.msra.mxu0 0.0
    %4358 = vmatprep.subr.mxu0 0.0
    %4359 = vmatpush1.msra.mxu0 0.0
    %4360 = vmatprep.subr.mxu0 0.0
    %4361 = vmatpush1.msra.mxu0 0.0
    %4362 = vmatprep.subr.mxu0 0.0
    %4363 = vmatpush1.msra.mxu0 0.0
    %4364 = vmatprep.subr.mxu0 0.0
    %4365 = vmatpush1.msra.mxu0 0.0
    %4366 = vmatprep.subr.mxu0 0.0
    %4367 = vmatpush1.msra.mxu0 0.0
    %4368 = vmatprep.subr.mxu0 0.0
    %4369 = vmatpush1.msra.mxu0 0.0
    %4370 = vmatprep.subr.mxu0 0.0
    %4371 = vmatpush1.msra.mxu0 0.0
    %4372 = vmatprep.subr.mxu0 0.0
    %4373 = vmatpush1.msra.mxu0 0.0
    %4374 = vmatprep.subr.mxu0 0.0
    %4375 = vmatpush1.msra.mxu0 0.0
    %4376 = vmatprep.subr.mxu0 0.0
    %4377 = vmatpush1.msra.mxu0 0.0
    %4378 = vmatprep.subr.mxu0 0.0
    %4379 = vmatpush1.msra.mxu0 0.0
    %4380 = vmatprep.subr.mxu0 0.0
    %4381 = vmatpush1.msra.mxu0 0.0
    %4382 = vmatprep.subr.mxu0 0.0
    %4383 = vmatpush1.msra.mxu0 0.0
    %4384 = vmatprep.subr.mxu0 0.0
    %4385 = vmatpush1.msra.mxu0 0.0
    %4386 = vmatprep.mubr.f32.mxu0 0.0
    %v4387 = vand.u32 %v4226, 4294901760
    %4388 = vmatmul.mubr.f32.gmra.mrb[0].mxu0 %v4387
    %v4389 = vpop.f32.mrb[0].mxu0
    %v4390 = vadd.f32 %v4304, %v4389
    %v4391 = vpop.f32.mrb[0].mxu0
    %4392 = vmatprep.mubr.f32.mxu0 0.0
    %v4393 = vand.u32 %v4229, 4294901760
    %4394 = vmatmul.mubr.f32.gmra.mrb[0].mxu0 %v4393
    %v4395 = vpop.f32.mrb[0].mxu0
    %v4396 = vadd.f32 %v4314, %v4395
    %v4397 = vpop.f32.mrb[0].mxu0
    %4398 = vdwg.mxu0
    %4399 = vmatprep.subr.mxu0 0.0
    %v4400 = vand.u32 %v4222, 4294901760
    %v4401 = vsub.f32 %v4222, %v4400
    %4402 = vmatpush1.msra.mxu0 %v4401
    %4403 = vmatprep.subr.mxu0 0.0
    %4404 = vmatpush1.msra.mxu0 0.0
    %4405 = vmatprep.subr.mxu0 0.0
    %4406 = vmatpush1.msra.mxu0 0.0
    %4407 = vmatprep.subr.mxu0 0.0
    %4408 = vmatpush1.msra.mxu0 0.0
    %4409 = vmatprep.subr.mxu0 0.0
    %4410 = vmatpush1.msra.mxu0 0.0
    %4411 = vmatprep.subr.mxu0 0.0
    %4412 = vmatpush1.msra.mxu0 0.0
    %4413 = vmatprep.subr.mxu0 0.0
    %4414 = vmatpush1.msra.mxu0 0.0
    %4415 = vmatprep.subr.mxu0 0.0
    %4416 = vmatpush1.msra.mxu0 0.0
    %4417 = vmatprep.subr.mxu0 0.0
    %4418 = vmatpush1.msra.mxu0 0.0
    %4419 = vmatprep.subr.mxu0 0.0
    %4420 = vmatpush1.msra.mxu0 0.0
    %4421 = vmatprep.subr.mxu0 0.0
    %4422 = vmatpush1.msra.mxu0 0.0
    %4423 = vmatprep.subr.mxu0 0.0
    %4424 = vmatpush1.msra.mxu0 0.0
    %4425 = vmatprep.subr.mxu0 0.0
    %4426 = vmatpush1.msra.mxu0 0.0
    %4427 = vmatprep.subr.mxu0 0.0
    %4428 = vmatpush1.msra.mxu0 0.0
    %4429 = vmatprep.subr.mxu0 0.0
    %4430 = vmatpush1.msra.mxu0 0.0
    %4431 = vmatprep.subr.mxu0 0.0
    %4432 = vmatpush1.msra.mxu0 0.0
    %4433 = vmatprep.subr.mxu0 0.0
    %4434 = vmatpush1.msra.mxu0 0.0
    %4435 = vmatprep.subr.mxu0 0.0
    %4436 = vmatpush1.msra.mxu0 0.0
    %4437 = vmatprep.subr.mxu0 0.0
    %4438 = vmatpush1.msra.mxu0 0.0
    %4439 = vmatprep.subr.mxu0 0.0
    %4440 = vmatpush1.msra.mxu0 0.0
    %4441 = vmatprep.subr.mxu0 0.0
    %4442 = vmatpush1.msra.mxu0 0.0
    %4443 = vmatprep.subr.mxu0 0.0
    %4444 = vmatpush1.msra.mxu0 0.0
    %4445 = vmatprep.subr.mxu0 0.0
    %4446 = vmatpush1.msra.mxu0 0.0
    %4447 = vmatprep.subr.mxu0 0.0
    %4448 = vmatpush1.msra.mxu0 0.0
    %4449 = vmatprep.subr.mxu0 0.0
    %4450 = vmatpush1.msra.mxu0 0.0
    %4451 = vmatprep.subr.mxu0 0.0
    %4452 = vmatpush1.msra.mxu0 0.0
    %4453 = vmatprep.subr.mxu0 0.0
    %4454 = vmatpush1.msra.mxu0 0.0
    %4455 = vmatprep.subr.mxu0 0.0
    %4456 = vmatpush1.msra.mxu0 0.0
    %4457 = vmatprep.subr.mxu0 0.0
    %4458 = vmatpush1.msra.mxu0 0.0
    %4459 = vmatprep.subr.mxu0 0.0
    %4460 = vmatpush1.msra.mxu0 0.0
    %4461 = vmatprep.subr.mxu0 0.0
    %4462 = vmatpush1.msra.mxu0 0.0
    %4463 = vmatprep.subr.mxu0 0.0
    %4464 = vmatpush1.msra.mxu0 0.0
    %4465 = vmatprep.mubr.f32.mxu0 0.0
    %v4466 = vand.u32 %v4226, 4294901760
    %v4467 = vsub.f32 %v4226, %v4466
    %4468 = vmatmul.mubr.f32.gmra.mrb[0].mxu0 %v4467
    %v4469 = vpop.f32.mrb[0].mxu0
    %v4470 = vadd.f32 %v4390, %v4469
    %v4471 = vpop.f32.mrb[0].mxu0
    %4472 = vmatprep.mubr.f32.mxu0 0.0
    %v4473 = vand.u32 %v4229, 4294901760
    %v4474 = vsub.f32 %v4229, %v4473
    %4475 = vmatmul.mubr.f32.gmra.mrb[0].mxu0 %v4474
    %v4476 = vpop.f32.mrb[0].mxu0
    %v4477 = vadd.f32 %v4396, %v4476
    %v4478 = vpop.f32.mrb[0].mxu0
    %4479 = vdwg.mxu0
    %4480 = vmatprep.subr.mxu0 0.0
    %v4481 = vand.u32 %v4222, 4294901760
    %4482 = vmatpush1.msra.mxu0 %v4481
    %4483 = vmatprep.subr.mxu0 0.0
    %4484 = vmatpush1.msra.mxu0 0.0
    %4485 = vmatprep.subr.mxu0 0.0
    %4486 = vmatpush1.msra.mxu0 0.0
    %4487 = vmatprep.subr.mxu0 0.0
    %4488 = vmatpush1.msra.mxu0 0.0
    %4489 = vmatprep.subr.mxu0 0.0
    %4490 = vmatpush1.msra.mxu0 0.0
    %4491 = vmatprep.subr.mxu0 0.0
    %4492 = vmatpush1.msra.mxu0 0.0
    %4493 = vmatprep.subr.mxu0 0.0
    %4494 = vmatpush1.msra.mxu0 0.0
    %4495 = vmatprep.subr.mxu0 0.0
    %4496 = vmatpush1.msra.mxu0 0.0
    %4497 = vmatprep.subr.mxu0 0.0
    %4498 = vmatpush1.msra.mxu0 0.0
    %4499 = vmatprep.subr.mxu0 0.0
    %4500 = vmatpush1.msra.mxu0 0.0
    %4501 = vmatprep.subr.mxu0 0.0
    %4502 = vmatpush1.msra.mxu0 0.0
    %4503 = vmatprep.subr.mxu0 0.0
    %4504 = vmatpush1.msra.mxu0 0.0
    %4505 = vmatprep.subr.mxu0 0.0
    %4506 = vmatpush1.msra.mxu0 0.0
    %4507 = vmatprep.subr.mxu0 0.0
    %4508 = vmatpush1.msra.mxu0 0.0
    %4509 = vmatprep.subr.mxu0 0.0
    %4510 = vmatpush1.msra.mxu0 0.0
    %4511 = vmatprep.subr.mxu0 0.0
    %4512 = vmatpush1.msra.mxu0 0.0
    %4513 = vmatprep.subr.mxu0 0.0
    %4514 = vmatpush1.msra.mxu0 0.0
    %4515 = vmatprep.subr.mxu0 0.0
    %4516 = vmatpush1.msra.mxu0 0.0
    %4517 = vmatprep.subr.mxu0 0.0
    %4518 = vmatpush1.msra.mxu0 0.0
    %4519 = vmatprep.subr.mxu0 0.0
    %4520 = vmatpush1.msra.mxu0 0.0
    %4521 = vmatprep.subr.mxu0 0.0
    %4522 = vmatpush1.msra.mxu0 0.0
    %4523 = vmatprep.subr.mxu0 0.0
    %4524 = vmatpush1.msra.mxu0 0.0
    %4525 = vmatprep.subr.mxu0 0.0
    %4526 = vmatpush1.msra.mxu0 0.0
    %4527 = vmatprep.subr.mxu0 0.0
    %4528 = vmatpush1.msra.mxu0 0.0
    %4529 = vmatprep.subr.mxu0 0.0
    %4530 = vmatpush1.msra.mxu0 0.0
    %4531 = vmatprep.subr.mxu0 0.0
    %4532 = vmatpush1.msra.mxu0 0.0
    %4533 = vmatprep.subr.mxu0 0.0
    %4534 = vmatpush1.msra.mxu0 0.0
    %4535 = vmatprep.subr.mxu0 0.0
    %4536 = vmatpush1.msra.mxu0 0.0
    %4537 = vmatprep.subr.mxu0 0.0
    %4538 = vmatpush1.msra.mxu0 0.0
    %4539 = vmatprep.subr.mxu0 0.0
    %4540 = vmatpush1.msra.mxu0 0.0
    %4541 = vmatprep.subr.mxu0 0.0
    %4542 = vmatpush1.msra.mxu0 0.0
    %4543 = vmatprep.subr.mxu0 0.0
    %4544 = vmatpush1.msra.mxu0 0.0
    %4545 = vmatprep.mubr.f32.mxu0 0.0
    %v4546 = vand.u32 %v4226, 4294901760
    %v4547 = vsub.f32 %v4226, %v4546
    %v4548 = vand.u32 %v4547, 4294901760
    %4549 = vmatmul.mubr.f32.gmra.mrb[0].mxu0 %v4548
    %v4550 = vpop.f32.mrb[0].mxu0
    %v4551 = vadd.f32 %v4470, %v4550
    %v4552 = vpop.f32.mrb[0].mxu0
    %4553 = vmatprep.mubr.f32.mxu0 0.0
    %v4554 = vand.u32 %v4229, 4294901760
    %v4555 = vsub.f32 %v4229, %v4554
    %v4556 = vand.u32 %v4555, 4294901760
    %4557 = vmatmul.mubr.f32.gmra.mrb[0].mxu0 %v4556
    %v4558 = vpop.f32.mrb[0].mxu0
    %v4559 = vadd.f32 %v4477, %v4558
    %v4560 = vpop.f32.mrb[0].mxu0
    %4561 = vdwg.mxu0
    %4562 = vmatprep.subr.mxu0 0.0
    %v4563 = vand.u32 %v4222, 4294901760
    %v4564 = vsub.f32 %v4222, %v4563
    %v4565 = vand.u32 %v4564, 4294901760
    %4566 = vmatpush1.msra.mxu0 %v4565
    %4567 = vmatprep.subr.mxu0 0.0
    %4568 = vmatpush1.msra.mxu0 0.0
    %4569 = vmatprep.subr.mxu0 0.0
    %4570 = vmatpush1.msra.mxu0 0.0
    %4571 = vmatprep.subr.mxu0 0.0
    %4572 = vmatpush1.msra.mxu0 0.0
    %4573 = vmatprep.subr.mxu0 0.0
    %4574 = vmatpush1.msra.mxu0 0.0
    %4575 = vmatprep.subr.mxu0 0.0
    %4576 = vmatpush1.msra.mxu0 0.0
    %4577 = vmatprep.subr.mxu0 0.0
    %4578 = vmatpush1.msra.mxu0 0.0
    %4579 = vmatprep.subr.mxu0 0.0
    %4580 = vmatpush1.msra.mxu0 0.0
    %4581 = vmatprep.subr.mxu0 0.0
    %4582 = vmatpush1.msra.mxu0 0.0
    %4583 = vmatprep.subr.mxu0 0.0
    %4584 = vmatpush1.msra.mxu0 0.0
    %4585 = vmatprep.subr.mxu0 0.0
    %4586 = vmatpush1.msra.mxu0 0.0
    %4587 = vmatprep.subr.mxu0 0.0
    %4588 = vmatpush1.msra.mxu0 0.0
    %4589 = vmatprep.subr.mxu0 0.0
    %4590 = vmatpush1.msra.mxu0 0.0
    %4591 = vmatprep.subr.mxu0 0.0
    %4592 = vmatpush1.msra.mxu0 0.0
    %4593 = vmatprep.subr.mxu0 0.0
    %4594 = vmatpush1.msra.mxu0 0.0
    %4595 = vmatprep.subr.mxu0 0.0
    %4596 = vmatpush1.msra.mxu0 0.0
    %4597 = vmatprep.subr.mxu0 0.0
    %4598 = vmatpush1.msra.mxu0 0.0
    %4599 = vmatprep.subr.mxu0 0.0
    %4600 = vmatpush1.msra.mxu0 0.0
    %4601 = vmatprep.subr.mxu0 0.0
    %4602 = vmatpush1.msra.mxu0 0.0
    %4603 = vmatprep.subr.mxu0 0.0
    %4604 = vmatpush1.msra.mxu0 0.0
    %4605 = vmatprep.subr.mxu0 0.0
    %4606 = vmatpush1.msra.mxu0 0.0
    %4607 = vmatprep.subr.mxu0 0.0
    %4608 = vmatpush1.msra.mxu0 0.0
    %4609 = vmatprep.subr.mxu0 0.0
    %4610 = vmatpush1.msra.mxu0 0.0
    %4611 = vmatprep.subr.mxu0 0.0
    %4612 = vmatpush1.msra.mxu0 0.0
    %4613 = vmatprep.subr.mxu0 0.0
    %4614 = vmatpush1.msra.mxu0 0.0
    %4615 = vmatprep.subr.mxu0 0.0
    %4616 = vmatpush1.msra.mxu0 0.0
    %4617 = vmatprep.subr.mxu0 0.0
    %4618 = vmatpush1.msra.mxu0 0.0
    %4619 = vmatprep.subr.mxu0 0.0
    %4620 = vmatpush1.msra.mxu0 0.0
    %4621 = vmatprep.subr.mxu0 0.0
    %4622 = vmatpush1.msra.mxu0 0.0
    %4623 = vmatprep.subr.mxu0 0.0
    %4624 = vmatpush1.msra.mxu0 0.0
    %4625 = vmatprep.subr.mxu0 0.0
    %4626 = vmatpush1.msra.mxu0 0.0
    %4627 = vmatprep.subr.mxu0 0.0
    %4628 = vmatpush1.msra.mxu0 0.0
    %4629 = vmatprep.mubr.f32.mxu0 0.0
    %v4630 = vand.u32 %v4226, 4294901760
    %4631 = vmatmul.mubr.f32.gmra.mrb[0].mxu0 %v4630
    %v4632 = vpop.f32.mrb[0].mxu0
    %v4633 = vadd.f32 %v4551, %v4632
    %v4634 = vpop.f32.mrb[0].mxu0
    %4635 = vmatprep.mubr.f32.mxu0 0.0
    %v4636 = vand.u32 %v4229, 4294901760
    %4637 = vmatmul.mubr.f32.gmra.mrb[0].mxu0 %v4636
    %v4638 = vpop.f32.mrb[0].mxu0
    %v4639 = vadd.f32 %v4559, %v4638
    %v4640 = vpop.f32.mrb[0].mxu0
    %4641 = vdwg.mxu0
    %4642 = vmatprep.subr.mxu0 0.0
    %v4643 = vand.u32 %v4222, 4294901760
    %4644 = vmatpush1.msra.mxu0 %v4643
    %4645 = vmatprep.subr.mxu0 0.0
    %4646 = vmatpush1.msra.mxu0 0.0
    %4647 = vmatprep.subr.mxu0 0.0
    %4648 = vmatpush1.msra.mxu0 0.0
    %4649 = vmatprep.subr.mxu0 0.0
    %4650 = vmatpush1.msra.mxu0 0.0
    %4651 = vmatprep.subr.mxu0 0.0
    %4652 = vmatpush1.msra.mxu0 0.0
    %4653 = vmatprep.subr.mxu0 0.0
    %4654 = vmatpush1.msra.mxu0 0.0
    %4655 = vmatprep.subr.mxu0 0.0
    %4656 = vmatpush1.msra.mxu0 0.0
    %4657 = vmatprep.subr.mxu0 0.0
    %4658 = vmatpush1.msra.mxu0 0.0
    %4659 = vmatprep.subr.mxu0 0.0
    %4660 = vmatpush1.msra.mxu0 0.0
    %4661 = vmatprep.subr.mxu0 0.0
    %4662 = vmatpush1.msra.mxu0 0.0
    %4663 = vmatprep.subr.mxu0 0.0
    %4664 = vmatpush1.msra.mxu0 0.0
    %4665 = vmatprep.subr.mxu0 0.0
    %4666 = vmatpush1.msra.mxu0 0.0
    %4667 = vmatprep.subr.mxu0 0.0
    %4668 = vmatpush1.msra.mxu0 0.0
    %4669 = vmatprep.subr.mxu0 0.0
    %4670 = vmatpush1.msra.mxu0 0.0
    %4671 = vmatprep.subr.mxu0 0.0
    %4672 = vmatpush1.msra.mxu0 0.0
    %4673 = vmatprep.subr.mxu0 0.0
    %4674 = vmatpush1.msra.mxu0 0.0
    %4675 = vmatprep.subr.mxu0 0.0
    %4676 = vmatpush1.msra.mxu0 0.0
    %4677 = vmatprep.subr.mxu0 0.0
    %4678 = vmatpush1.msra.mxu0 0.0
    %4679 = vmatprep.subr.mxu0 0.0
    %4680 = vmatpush1.msra.mxu0 0.0
    %4681 = vmatprep.subr.mxu0 0.0
    %4682 = vmatpush1.msra.mxu0 0.0
    %4683 = vmatprep.subr.mxu0 0.0
    %4684 = vmatpush1.msra.mxu0 0.0
    %4685 = vmatprep.subr.mxu0 0.0
    %4686 = vmatpush1.msra.mxu0 0.0
    %4687 = vmatprep.subr.mxu0 0.0
    %4688 = vmatpush1.msra.mxu0 0.0
    %4689 = vmatprep.subr.mxu0 0.0
    %4690 = vmatpush1.msra.mxu0 0.0
    %4691 = vmatprep.subr.mxu0 0.0
    %4692 = vmatpush1.msra.mxu0 0.0
    %4693 = vmatprep.subr.mxu0 0.0
    %4694 = vmatpush1.msra.mxu0 0.0
    %4695 = vmatprep.subr.mxu0 0.0
    %4696 = vmatpush1.msra.mxu0 0.0
    %4697 = vmatprep.subr.mxu0 0.0
    %4698 = vmatpush1.msra.mxu0 0.0
    %4699 = vmatprep.subr.mxu0 0.0
    %4700 = vmatpush1.msra.mxu0 0.0
    %4701 = vmatprep.subr.mxu0 0.0
    %4702 = vmatpush1.msra.mxu0 0.0
    %4703 = vmatprep.subr.mxu0 0.0
    %4704 = vmatpush1.msra.mxu0 0.0
    %4705 = vmatprep.subr.mxu0 0.0
    %4706 = vmatpush1.msra.mxu0 0.0
    %4707 = vmatprep.mubr.f32.mxu0 0.0
    %v4708 = vand.u32 %v4226, 4294901760
    %4709 = vmatmul.mubr.f32.gmra.mrb[0].mxu0 %v4708
    %v4710 = vpop.f32.mrb[0].mxu0
    %v4711 = vadd.f32 %v4633, %v4710
    %v4712 = vpop.f32.mrb[0].mxu0
    %4713 = vmatprep.mubr.f32.mxu0 0.0
    %v4714 = vand.u32 %v4229, 4294901760
    %4715 = vmatmul.mubr.f32.gmra.mrb[0].mxu0 %v4714
    %v4716 = vpop.f32.mrb[0].mxu0
    %v4717 = vadd.f32 %v4639, %v4716
    %v4718 = vpop.f32.mrb[0].mxu0
    %4719 = vdwg.mxu0
    %v4721 = vlaneseq
    %v4722 = vshrl.u32 %v4721, 7
    %v4723 = vsub.s32 0, %v4722
    %v4724 = vrot.slane %v4224, %v4723
    %v4727 = vsel %vm582, %v4216, 0
    %v4730 = vsel %vm582, %v4217, 0
    %4732 = vmatprep.subr.mxu0 0.0
    %v4733 = vand.u32 %v4711, 4294901760
    %4734 = vmatpush1.msra.mxu0 %v4733
    %4735 = vmatprep.subr.mxu0 0.0
    %v4736 = vand.u32 %v4717, 4294901760
    %4737 = vmatpush1.msra.mxu0 %v4736
    %4738 = vmatprep.subr.mxu0 0.0
    %4739 = vmatpush1.msra.mxu0 0.0
    %4740 = vmatprep.subr.mxu0 0.0
    %4741 = vmatpush1.msra.mxu0 0.0
    %4742 = vmatprep.subr.mxu0 0.0
    %4743 = vmatpush1.msra.mxu0 0.0
    %4744 = vmatprep.subr.mxu0 0.0
    %4745 = vmatpush1.msra.mxu0 0.0
    %4746 = vmatprep.subr.mxu0 0.0
    %4747 = vmatpush1.msra.mxu0 0.0
    %4748 = vmatprep.subr.mxu0 0.0
    %4749 = vmatpush1.msra.mxu0 0.0
    %4750 = vmatprep.subr.mxu0 0.0
    %4751 = vmatpush1.msra.mxu0 0.0
    %4752 = vmatprep.subr.mxu0 0.0
    %4753 = vmatpush1.msra.mxu0 0.0
    %4754 = vmatprep.subr.mxu0 0.0
    %4755 = vmatpush1.msra.mxu0 0.0
    %4756 = vmatprep.subr.mxu0 0.0
    %4757 = vmatpush1.msra.mxu0 0.0
    %4758 = vmatprep.subr.mxu0 0.0
    %4759 = vmatpush1.msra.mxu0 0.0
    %4760 = vmatprep.subr.mxu0 0.0
    %4761 = vmatpush1.msra.mxu0 0.0
    %4762 = vmatprep.subr.mxu0 0.0
    %4763 = vmatpush1.msra.mxu0 0.0
    %4764 = vmatprep.subr.mxu0 0.0
    %4765 = vmatpush1.msra.mxu0 0.0
    %4766 = vmatprep.subr.mxu0 0.0
    %4767 = vmatpush1.msra.mxu0 0.0
    %4768 = vmatprep.subr.mxu0 0.0
    %4769 = vmatpush1.msra.mxu0 0.0
    %4770 = vmatprep.subr.mxu0 0.0
    %4771 = vmatpush1.msra.mxu0 0.0
    %4772 = vmatprep.subr.mxu0 0.0
    %4773 = vmatpush1.msra.mxu0 0.0
    %4774 = vmatprep.subr.mxu0 0.0
    %4775 = vmatpush1.msra.mxu0 0.0
    %4776 = vmatprep.subr.mxu0 0.0
    %4777 = vmatpush1.msra.mxu0 0.0
    %4778 = vmatprep.subr.mxu0 0.0
    %4779 = vmatpush1.msra.mxu0 0.0
    %4780 = vmatprep.subr.mxu0 0.0
    %4781 = vmatpush1.msra.mxu0 0.0
    %4782 = vmatprep.subr.mxu0 0.0
    %4783 = vmatpush1.msra.mxu0 0.0
    %4784 = vmatprep.subr.mxu0 0.0
    %4785 = vmatpush1.msra.mxu0 0.0
    %4786 = vmatprep.subr.mxu0 0.0
    %4787 = vmatpush1.msra.mxu0 0.0
    %4788 = vmatprep.subr.mxu0 0.0
    %4789 = vmatpush1.msra.mxu0 0.0
    %4790 = vmatprep.subr.mxu0 0.0
    %4791 = vmatpush1.msra.mxu0 0.0
    %4792 = vmatprep.subr.mxu0 0.0
    %4793 = vmatpush1.msra.mxu0 0.0
    %4794 = vmatprep.subr.mxu0 0.0
    %4795 = vmatpush1.msra.mxu0 0.0
    %4796 = vmatprep.subr.mxu0 0.0
    %4797 = vmatpush1.msra.mxu0 0.0
    %4798 = vmatprep.mubr.f32.mxu0 0.0
    %v4799 = vand.u32 %v4727, 4294901760
    %v4800 = vsub.f32 %v4727, %v4799
    %v4801 = vand.u32 %v4800, 4294901760
    %v4802 = vsub.f32 %v4800, %v4801
    %v4803 = vand.u32 %v4802, 4294901760
    %4804 = vmatmul.mubr.f32.gmra.mrb[0].mxu0 %v4803
    %v4805 = vpop.f32.mrb[0].mxu0
    %v4806 = vadd.f32 %v4724, %v4805
    %v4807 = vpop.f32.mrb[0].mxu0
    %4808 = vmatprep.mubr.f32.mxu0 0.0
    %v4809 = vand.u32 %v4730, 4294901760
    %v4810 = vsub.f32 %v4730, %v4809
    %v4811 = vand.u32 %v4810, 4294901760
    %v4812 = vsub.f32 %v4810, %v4811
    %v4813 = vand.u32 %v4812, 4294901760
    %4814 = vmatmul.mubr.f32.gmra.mrb[0].mxu0 %v4813
    %v4815 = vpop.f32.mrb[0].mxu0
    %v4816 = vadd.f32 %v4724, %v4815
    %v4817 = vpop.f32.mrb[0].mxu0
    %4818 = vdwg.mxu0
    %4819 = vmatprep.subr.mxu0 0.0
    %v4820 = vand.u32 %v4711, 4294901760
    %v4821 = vsub.f32 %v4711, %v4820
    %v4822 = vand.u32 %v4821, 4294901760
    %v4823 = vsub.f32 %v4821, %v4822
    %v4824 = vand.u32 %v4823, 4294901760
    %4825 = vmatpush1.msra.mxu0 %v4824
    %4826 = vmatprep.subr.mxu0 0.0
    %v4827 = vand.u32 %v4717, 4294901760
    %v4828 = vsub.f32 %v4717, %v4827
    %v4829 = vand.u32 %v4828, 4294901760
    %v4830 = vsub.f32 %v4828, %v4829
    %v4831 = vand.u32 %v4830, 4294901760
    %4832 = vmatpush1.msra.mxu0 %v4831
    %4833 = vmatprep.subr.mxu0 0.0
    %4834 = vmatpush1.msra.mxu0 0.0
    %4835 = vmatprep.subr.mxu0 0.0
    %4836 = vmatpush1.msra.mxu0 0.0
    %4837 = vmatprep.subr.mxu0 0.0
    %4838 = vmatpush1.msra.mxu0 0.0
    %4839 = vmatprep.subr.mxu0 0.0
    %4840 = vmatpush1.msra.mxu0 0.0
    %4841 = vmatprep.subr.mxu0 0.0
    %4842 = vmatpush1.msra.mxu0 0.0
    %4843 = vmatprep.subr.mxu0 0.0
    %4844 = vmatpush1.msra.mxu0 0.0
    %4845 = vmatprep.subr.mxu0 0.0
    %4846 = vmatpush1.msra.mxu0 0.0
    %4847 = vmatprep.subr.mxu0 0.0
    %4848 = vmatpush1.msra.mxu0 0.0
    %4849 = vmatprep.subr.mxu0 0.0
    %4850 = vmatpush1.msra.mxu0 0.0
    %4851 = vmatprep.subr.mxu0 0.0
    %4852 = vmatpush1.msra.mxu0 0.0
    %4853 = vmatprep.subr.mxu0 0.0
    %4854 = vmatpush1.msra.mxu0 0.0
    %4855 = vmatprep.subr.mxu0 0.0
    %4856 = vmatpush1.msra.mxu0 0.0
    %4857 = vmatprep.subr.mxu0 0.0
    %4858 = vmatpush1.msra.mxu0 0.0
    %4859 = vmatprep.subr.mxu0 0.0
    %4860 = vmatpush1.msra.mxu0 0.0
    %4861 = vmatprep.subr.mxu0 0.0
    %4862 = vmatpush1.msra.mxu0 0.0
    %4863 = vmatprep.subr.mxu0 0.0
    %4864 = vmatpush1.msra.mxu0 0.0
    %4865 = vmatprep.subr.mxu0 0.0
    %4866 = vmatpush1.msra.mxu0 0.0
    %4867 = vmatprep.subr.mxu0 0.0
    %4868 = vmatpush1.msra.mxu0 0.0
    %4869 = vmatprep.subr.mxu0 0.0
    %4870 = vmatpush1.msra.mxu0 0.0
    %4871 = vmatprep.subr.mxu0 0.0
    %4872 = vmatpush1.msra.mxu0 0.0
    %4873 = vmatprep.subr.mxu0 0.0
    %4874 = vmatpush1.msra.mxu0 0.0
    %4875 = vmatprep.subr.mxu0 0.0
    %4876 = vmatpush1.msra.mxu0 0.0
    %4877 = vmatprep.subr.mxu0 0.0
    %4878 = vmatpush1.msra.mxu0 0.0
    %4879 = vmatprep.subr.mxu0 0.0
    %4880 = vmatpush1.msra.mxu0 0.0
    %4881 = vmatprep.subr.mxu0 0.0
    %4882 = vmatpush1.msra.mxu0 0.0
    %4883 = vmatprep.subr.mxu0 0.0
    %4884 = vmatpush1.msra.mxu0 0.0
    %4885 = vmatprep.subr.mxu0 0.0
    %4886 = vmatpush1.msra.mxu0 0.0
    %4887 = vmatprep.subr.mxu0 0.0
    %4888 = vmatpush1.msra.mxu0 0.0
    %4889 = vmatprep.subr.mxu0 0.0
    %4890 = vmatpush1.msra.mxu0 0.0
    %4891 = vmatprep.subr.mxu0 0.0
    %4892 = vmatpush1.msra.mxu0 0.0
    %4893 = vmatprep.mubr.f32.mxu0 0.0
    %v4894 = vand.u32 %v4727, 4294901760
    %4895 = vmatmul.mubr.f32.gmra.mrb[0].mxu0 %v4894
    %v4896 = vpop.f32.mrb[0].mxu0
    %v4897 = vadd.f32 %v4806, %v4896
    %v4898 = vpop.f32.mrb[0].mxu0
    %4899 = vmatprep.mubr.f32.mxu0 0.0
    %v4900 = vand.u32 %v4730, 4294901760
    %4901 = vmatmul.mubr.f32.gmra.mrb[0].mxu0 %v4900
    %v4902 = vpop.f32.mrb[0].mxu0
    %v4903 = vadd.f32 %v4816, %v4902
    %v4904 = vpop.f32.mrb[0].mxu0
    %4905 = vdwg.mxu0
    %4906 = vmatprep.subr.mxu0 0.0
    %v4907 = vand.u32 %v4711, 4294901760
    %v4908 = vsub.f32 %v4711, %v4907
    %4909 = vmatpush1.msra.mxu0 %v4908
    %4910 = vmatprep.subr.mxu0 0.0
    %v4911 = vand.u32 %v4717, 4294901760
    %v4912 = vsub.f32 %v4717, %v4911
    %4913 = vmatpush1.msra.mxu0 %v4912
    %4914 = vmatprep.subr.mxu0 0.0
    %4915 = vmatpush1.msra.mxu0 0.0
    %4916 = vmatprep.subr.mxu0 0.0
    %4917 = vmatpush1.msra.mxu0 0.0
    %4918 = vmatprep.subr.mxu0 0.0
    %4919 = vmatpush1.msra.mxu0 0.0
    %4920 = vmatprep.subr.mxu0 0.0
    %4921 = vmatpush1.msra.mxu0 0.0
    %4922 = vmatprep.subr.mxu0 0.0
    %4923 = vmatpush1.msra.mxu0 0.0
    %4924 = vmatprep.subr.mxu0 0.0
    %4925 = vmatpush1.msra.mxu0 0.0
    %4926 = vmatprep.subr.mxu0 0.0
    %4927 = vmatpush1.msra.mxu0 0.0
    %4928 = vmatprep.subr.mxu0 0.0
    %4929 = vmatpush1.msra.mxu0 0.0
    %4930 = vmatprep.subr.mxu0 0.0
    %4931 = vmatpush1.msra.mxu0 0.0
    %4932 = vmatprep.subr.mxu0 0.0
    %4933 = vmatpush1.msra.mxu0 0.0
    %4934 = vmatprep.subr.mxu0 0.0
    %4935 = vmatpush1.msra.mxu0 0.0
    %4936 = vmatprep.subr.mxu0 0.0
    %4937 = vmatpush1.msra.mxu0 0.0
    %4938 = vmatprep.subr.mxu0 0.0
    %4939 = vmatpush1.msra.mxu0 0.0
    %4940 = vmatprep.subr.mxu0 0.0
    %4941 = vmatpush1.msra.mxu0 0.0
    %4942 = vmatprep.subr.mxu0 0.0
    %4943 = vmatpush1.msra.mxu0 0.0
    %4944 = vmatprep.subr.mxu0 0.0
    %4945 = vmatpush1.msra.mxu0 0.0
    %4946 = vmatprep.subr.mxu0 0.0
    %4947 = vmatpush1.msra.mxu0 0.0
    %4948 = vmatprep.subr.mxu0 0.0
    %4949 = vmatpush1.msra.mxu0 0.0
    %4950 = vmatprep.subr.mxu0 0.0
    %4951 = vmatpush1.msra.mxu0 0.0
    %4952 = vmatprep.subr.mxu0 0.0
    %4953 = vmatpush1.msra.mxu0 0.0
    %4954 = vmatprep.subr.mxu0 0.0
    %4955 = vmatpush1.msra.mxu0 0.0
    %4956 = vmatprep.subr.mxu0 0.0
    %4957 = vmatpush1.msra.mxu0 0.0
    %4958 = vmatprep.subr.mxu0 0.0
    %4959 = vmatpush1.msra.mxu0 0.0
    %4960 = vmatprep.subr.mxu0 0.0
    %4961 = vmatpush1.msra.mxu0 0.0
    %4962 = vmatprep.subr.mxu0 0.0
    %4963 = vmatpush1.msra.mxu0 0.0
    %4964 = vmatprep.subr.mxu0 0.0
    %4965 = vmatpush1.msra.mxu0 0.0
    %4966 = vmatprep.subr.mxu0 0.0
    %4967 = vmatpush1.msra.mxu0 0.0
    %4968 = vmatprep.subr.mxu0 0.0
    %4969 = vmatpush1.msra.mxu0 0.0
    %4970 = vmatprep.subr.mxu0 0.0
    %4971 = vmatpush1.msra.mxu0 0.0
    %4972 = vmatprep.subr.mxu0 0.0
    %4973 = vmatpush1.msra.mxu0 0.0
    %4974 = vmatprep.mubr.f32.mxu0 0.0
    %v4975 = vand.u32 %v4727, 4294901760
    %v4976 = vsub.f32 %v4727, %v4975
    %4977 = vmatmul.mubr.f32.gmra.mrb[0].mxu0 %v4976
    %v4978 = vpop.f32.mrb[0].mxu0
    %v4979 = vadd.f32 %v4897, %v4978
    %v4980 = vpop.f32.mrb[0].mxu0
    %4981 = vmatprep.mubr.f32.mxu0 0.0
    %v4982 = vand.u32 %v4730, 4294901760
    %v4983 = vsub.f32 %v4730, %v4982
    %4984 = vmatmul.mubr.f32.gmra.mrb[0].mxu0 %v4983
    %v4985 = vpop.f32.mrb[0].mxu0
    %v4986 = vadd.f32 %v4903, %v4985
    %v4987 = vpop.f32.mrb[0].mxu0
    %4988 = vdwg.mxu0
    %4989 = vmatprep.subr.mxu0 0.0
    %v4990 = vand.u32 %v4711, 4294901760
    %4991 = vmatpush1.msra.mxu0 %v4990
    %4992 = vmatprep.subr.mxu0 0.0
    %v4993 = vand.u32 %v4717, 4294901760
    %4994 = vmatpush1.msra.mxu0 %v4993
    %4995 = vmatprep.subr.mxu0 0.0
    %4996 = vmatpush1.msra.mxu0 0.0
    %4997 = vmatprep.subr.mxu0 0.0
    %4998 = vmatpush1.msra.mxu0 0.0
    %4999 = vmatprep.subr.mxu0 0.0
    %5000 = vmatpush1.msra.mxu0 0.0
    %5001 = vmatprep.subr.mxu0 0.0
    %5002 = vmatpush1.msra.mxu0 0.0
    %5003 = vmatprep.subr.mxu0 0.0
    %5004 = vmatpush1.msra.mxu0 0.0
    %5005 = vmatprep.subr.mxu0 0.0
    %5006 = vmatpush1.msra.mxu0 0.0
    %5007 = vmatprep.subr.mxu0 0.0
    %5008 = vmatpush1.msra.mxu0 0.0
    %5009 = vmatprep.subr.mxu0 0.0
    %5010 = vmatpush1.msra.mxu0 0.0
    %5011 = vmatprep.subr.mxu0 0.0
    %5012 = vmatpush1.msra.mxu0 0.0
    %5013 = vmatprep.subr.mxu0 0.0
    %5014 = vmatpush1.msra.mxu0 0.0
    %5015 = vmatprep.subr.mxu0 0.0
    %5016 = vmatpush1.msra.mxu0 0.0
    %5017 = vmatprep.subr.mxu0 0.0
    %5018 = vmatpush1.msra.mxu0 0.0
    %5019 = vmatprep.subr.mxu0 0.0
    %5020 = vmatpush1.msra.mxu0 0.0
    %5021 = vmatprep.subr.mxu0 0.0
    %5022 = vmatpush1.msra.mxu0 0.0
    %5023 = vmatprep.subr.mxu0 0.0
    %5024 = vmatpush1.msra.mxu0 0.0
    %5025 = vmatprep.subr.mxu0 0.0
    %5026 = vmatpush1.msra.mxu0 0.0
    %5027 = vmatprep.subr.mxu0 0.0
    %5028 = vmatpush1.msra.mxu0 0.0
    %5029 = vmatprep.subr.mxu0 0.0
    %5030 = vmatpush1.msra.mxu0 0.0
    %5031 = vmatprep.subr.mxu0 0.0
    %5032 = vmatpush1.msra.mxu0 0.0
    %5033 = vmatprep.subr.mxu0 0.0
    %5034 = vmatpush1.msra.mxu0 0.0
    %5035 = vmatprep.subr.mxu0 0.0
    %5036 = vmatpush1.msra.mxu0 0.0
    %5037 = vmatprep.subr.mxu0 0.0
    %5038 = vmatpush1.msra.mxu0 0.0
    %5039 = vmatprep.subr.mxu0 0.0
    %5040 = vmatpush1.msra.mxu0 0.0
    %5041 = vmatprep.subr.mxu0 0.0
    %5042 = vmatpush1.msra.mxu0 0.0
    %5043 = vmatprep.subr.mxu0 0.0
    %5044 = vmatpush1.msra.mxu0 0.0
    %5045 = vmatprep.subr.mxu0 0.0
    %5046 = vmatpush1.msra.mxu0 0.0
    %5047 = vmatprep.subr.mxu0 0.0
    %5048 = vmatpush1.msra.mxu0 0.0
    %5049 = vmatprep.subr.mxu0 0.0
    %5050 = vmatpush1.msra.mxu0 0.0
    %5051 = vmatprep.subr.mxu0 0.0
    %5052 = vmatpush1.msra.mxu0 0.0
    %5053 = vmatprep.subr.mxu0 0.0
    %5054 = vmatpush1.msra.mxu0 0.0
    %5055 = vmatprep.mubr.f32.mxu0 0.0
    %v5056 = vand.u32 %v4727, 4294901760
    %v5057 = vsub.f32 %v4727, %v5056
    %v5058 = vand.u32 %v5057, 4294901760
    %5059 = vmatmul.mubr.f32.gmra.mrb[0].mxu0 %v5058
    %v5060 = vpop.f32.mrb[0].mxu0
    %v5061 = vadd.f32 %v4979, %v5060
    %v5062 = vpop.f32.mrb[0].mxu0
    %5063 = vmatprep.mubr.f32.mxu0 0.0
    %v5064 = vand.u32 %v4730, 4294901760
    %v5065 = vsub.f32 %v4730, %v5064
    %v5066 = vand.u32 %v5065, 4294901760
    %5067 = vmatmul.mubr.f32.gmra.mrb[0].mxu0 %v5066
    %v5068 = vpop.f32.mrb[0].mxu0
    %v5069 = vadd.f32 %v4986, %v5068
    %v5070 = vpop.f32.mrb[0].mxu0
    %5071 = vdwg.mxu0
    %5072 = vmatprep.subr.mxu0 0.0
    %v5073 = vand.u32 %v4711, 4294901760
    %v5074 = vsub.f32 %v4711, %v5073
    %v5075 = vand.u32 %v5074, 4294901760
    %5076 = vmatpush1.msra.mxu0 %v5075
    %5077 = vmatprep.subr.mxu0 0.0
    %v5078 = vand.u32 %v4717, 4294901760
    %v5079 = vsub.f32 %v4717, %v5078
    %v5080 = vand.u32 %v5079, 4294901760
    %5081 = vmatpush1.msra.mxu0 %v5080
    %5082 = vmatprep.subr.mxu0 0.0
    %5083 = vmatpush1.msra.mxu0 0.0
    %5084 = vmatprep.subr.mxu0 0.0
    %5085 = vmatpush1.msra.mxu0 0.0
    %5086 = vmatprep.subr.mxu0 0.0
    %5087 = vmatpush1.msra.mxu0 0.0
    %5088 = vmatprep.subr.mxu0 0.0
    %5089 = vmatpush1.msra.mxu0 0.0
    %5090 = vmatprep.subr.mxu0 0.0
    %5091 = vmatpush1.msra.mxu0 0.0
    %5092 = vmatprep.subr.mxu0 0.0
    %5093 = vmatpush1.msra.mxu0 0.0
    %5094 = vmatprep.subr.mxu0 0.0
    %5095 = vmatpush1.msra.mxu0 0.0
    %5096 = vmatprep.subr.mxu0 0.0
    %5097 = vmatpush1.msra.mxu0 0.0
    %5098 = vmatprep.subr.mxu0 0.0
    %5099 = vmatpush1.msra.mxu0 0.0
    %5100 = vmatprep.subr.mxu0 0.0
    %5101 = vmatpush1.msra.mxu0 0.0
    %5102 = vmatprep.subr.mxu0 0.0
    %5103 = vmatpush1.msra.mxu0 0.0
    %5104 = vmatprep.subr.mxu0 0.0
    %5105 = vmatpush1.msra.mxu0 0.0
    %5106 = vmatprep.subr.mxu0 0.0
    %5107 = vmatpush1.msra.mxu0 0.0
    %5108 = vmatprep.subr.mxu0 0.0
    %5109 = vmatpush1.msra.mxu0 0.0
    %5110 = vmatprep.subr.mxu0 0.0
    %5111 = vmatpush1.msra.mxu0 0.0
    %5112 = vmatprep.subr.mxu0 0.0
    %5113 = vmatpush1.msra.mxu0 0.0
    %5114 = vmatprep.subr.mxu0 0.0
    %5115 = vmatpush1.msra.mxu0 0.0
    %5116 = vmatprep.subr.mxu0 0.0
    %5117 = vmatpush1.msra.mxu0 0.0
    %5118 = vmatprep.subr.mxu0 0.0
    %5119 = vmatpush1.msra.mxu0 0.0
    %5120 = vmatprep.subr.mxu0 0.0
    %5121 = vmatpush1.msra.mxu0 0.0
    %5122 = vmatprep.subr.mxu0 0.0
    %5123 = vmatpush1.msra.mxu0 0.0
    %5124 = vmatprep.subr.mxu0 0.0
    %5125 = vmatpush1.msra.mxu0 0.0
    %5126 = vmatprep.subr.mxu0 0.0
    %5127 = vmatpush1.msra.mxu0 0.0
    %5128 = vmatprep.subr.mxu0 0.0
    %5129 = vmatpush1.msra.mxu0 0.0
    %5130 = vmatprep.subr.mxu0 0.0
    %5131 = vmatpush1.msra.mxu0 0.0
    %5132 = vmatprep.subr.mxu0 0.0
    %5133 = vmatpush1.msra.mxu0 0.0
    %5134 = vmatprep.subr.mxu0 0.0
    %5135 = vmatpush1.msra.mxu0 0.0
    %5136 = vmatprep.subr.mxu0 0.0
    %5137 = vmatpush1.msra.mxu0 0.0
    %5138 = vmatprep.subr.mxu0 0.0
    %5139 = vmatpush1.msra.mxu0 0.0
    %5140 = vmatprep.subr.mxu0 0.0
    %5141 = vmatpush1.msra.mxu0 0.0
    %5142 = vmatprep.mubr.f32.mxu0 0.0
    %v5143 = vand.u32 %v4727, 4294901760
    %5144 = vmatmul.mubr.f32.gmra.mrb[0].mxu0 %v5143
    %v5145 = vpop.f32.mrb[0].mxu0
    %v5146 = vadd.f32 %v5061, %v5145
    %v5147 = vpop.f32.mrb[0].mxu0
    %5148 = vmatprep.mubr.f32.mxu0 0.0
    %v5149 = vand.u32 %v4730, 4294901760
    %5150 = vmatmul.mubr.f32.gmra.mrb[0].mxu0 %v5149
    %v5151 = vpop.f32.mrb[0].mxu0
    %v5152 = vadd.f32 %v5069, %v5151
    %v5153 = vpop.f32.mrb[0].mxu0
    %5154 = vdwg.mxu0
    %5155 = vmatprep.subr.mxu0 0.0
    %v5156 = vand.u32 %v4711, 4294901760
    %5157 = vmatpush1.msra.mxu0 %v5156
    %5158 = vmatprep.subr.mxu0 0.0
    %v5159 = vand.u32 %v4717, 4294901760
    %5160 = vmatpush1.msra.mxu0 %v5159
    %5161 = vmatprep.subr.mxu0 0.0
    %5162 = vmatpush1.msra.mxu0 0.0
    %5163 = vmatprep.subr.mxu0 0.0
    %5164 = vmatpush1.msra.mxu0 0.0
    %5165 = vmatprep.subr.mxu0 0.0
    %5166 = vmatpush1.msra.mxu0 0.0
    %5167 = vmatprep.subr.mxu0 0.0
    %5168 = vmatpush1.msra.mxu0 0.0
    %5169 = vmatprep.subr.mxu0 0.0
    %5170 = vmatpush1.msra.mxu0 0.0
    %5171 = vmatprep.subr.mxu0 0.0
    %5172 = vmatpush1.msra.mxu0 0.0
    %5173 = vmatprep.subr.mxu0 0.0
    %5174 = vmatpush1.msra.mxu0 0.0
    %5175 = vmatprep.subr.mxu0 0.0
    %5176 = vmatpush1.msra.mxu0 0.0
    %5177 = vmatprep.subr.mxu0 0.0
    %5178 = vmatpush1.msra.mxu0 0.0
    %5179 = vmatprep.subr.mxu0 0.0
    %5180 = vmatpush1.msra.mxu0 0.0
    %5181 = vmatprep.subr.mxu0 0.0
    %5182 = vmatpush1.msra.mxu0 0.0
    %5183 = vmatprep.subr.mxu0 0.0
    %5184 = vmatpush1.msra.mxu0 0.0
    %5185 = vmatprep.subr.mxu0 0.0
    %5186 = vmatpush1.msra.mxu0 0.0
    %5187 = vmatprep.subr.mxu0 0.0
    %5188 = vmatpush1.msra.mxu0 0.0
    %5189 = vmatprep.subr.mxu0 0.0
    %5190 = vmatpush1.msra.mxu0 0.0
    %5191 = vmatprep.subr.mxu0 0.0
    %5192 = vmatpush1.msra.mxu0 0.0
    %5193 = vmatprep.subr.mxu0 0.0
    %5194 = vmatpush1.msra.mxu0 0.0
    %5195 = vmatprep.subr.mxu0 0.0
    %5196 = vmatpush1.msra.mxu0 0.0
    %5197 = vmatprep.subr.mxu0 0.0
    %5198 = vmatpush1.msra.mxu0 0.0
    %5199 = vmatprep.subr.mxu0 0.0
    %5200 = vmatpush1.msra.mxu0 0.0
    %5201 = vmatprep.subr.mxu0 0.0
    %5202 = vmatpush1.msra.mxu0 0.0
    %5203 = vmatprep.subr.mxu0 0.0
    %5204 = vmatpush1.msra.mxu0 0.0
    %5205 = vmatprep.subr.mxu0 0.0
    %5206 = vmatpush1.msra.mxu0 0.0
    %5207 = vmatprep.subr.mxu0 0.0
    %5208 = vmatpush1.msra.mxu0 0.0
    %5209 = vmatprep.subr.mxu0 0.0
    %5210 = vmatpush1.msra.mxu0 0.0
    %5211 = vmatprep.subr.mxu0 0.0
    %5212 = vmatpush1.msra.mxu0 0.0
    %5213 = vmatprep.subr.mxu0 0.0
    %5214 = vmatpush1.msra.mxu0 0.0
    %5215 = vmatprep.subr.mxu0 0.0
    %5216 = vmatpush1.msra.mxu0 0.0
    %5217 = vmatprep.subr.mxu0 0.0
    %5218 = vmatpush1.msra.mxu0 0.0
    %5219 = vmatprep.subr.mxu0 0.0
    %5220 = vmatpush1.msra.mxu0 0.0
    %5221 = vmatprep.mubr.f32.mxu0 0.0
    %v5222 = vand.u32 %v4727, 4294901760
    %5223 = vmatmul.mubr.f32.gmra.mrb[0].mxu0 %v5222
    %v5224 = vpop.f32.mrb[0].mxu0
    %v5225 = vadd.f32 %v5146, %v5224
    %v5226 = vpop.f32.mrb[0].mxu0
    %5227 = vmatprep.mubr.f32.mxu0 0.0
    %v5228 = vand.u32 %v4730, 4294901760
    %5229 = vmatmul.mubr.f32.gmra.mrb[0].mxu0 %v5228
    %v5230 = vpop.f32.mrb[0].mxu0
    %v5231 = vadd.f32 %v5152, %v5230
    %v5232 = vpop.f32.mrb[0].mxu0
    %5233 = vdwg.mxu0
    %v5234 = vmax.f32 %v5225, 0.0
    %v5235 = vmax.f32 %v5231, 0.0
    %s5236 = scalar_lea.vmem [#allocation5], 64
    %v5237 = vld [vmem:[%s5236] sm:$0xff]
    %v5238 = vld [vmem:[%s5236 + $0x8] sm:$0xff]
    %v5239 = vld [vmem:[%s5236 + $0x10] sm:$0xff]
    %v5240 = vld [vmem:[%s5236 + $0x18] sm:$0xff]
    %s5241 = scalar_lea.vmem %s5, 2
    %v5242 = vld [vmem:[%s5241] sm:$0x1]
    %v5244 = vsel %vm1098, %v5234, 0
    %v5247 = vsel %vm1098, %v5235, 0
    %5249 = vmatprep.subr.mxu0 0.0
    %v5250 = vand.u32 %v5237, 4294901760
    %5251 = vmatpush1.msra.mxu0 %v5250
    %5252 = vmatprep.subr.mxu0 0.0
    %v5253 = vand.u32 %v5238, 4294901760
    %5254 = vmatpush1.msra.mxu0 %v5253
    %5255 = vmatprep.subr.mxu0 0.0
    %v5256 = vand.u32 %v5239, 4294901760
    %5257 = vmatpush1.msra.mxu0 %v5256
    %5258 = vmatprep.subr.mxu0 0.0
    %v5259 = vand.u32 %v5240, 4294901760
    %5260 = vmatpush1.msra.mxu0 %v5259
    %5261 = vmatprep.subr.mxu0 0.0
    %5262 = vmatpush1.msra.mxu0 0.0
    %5263 = vmatprep.subr.mxu0 0.0
    %5264 = vmatpush1.msra.mxu0 0.0
    %5265 = vmatprep.subr.mxu0 0.0
    %5266 = vmatpush1.msra.mxu0 0.0
    %5267 = vmatprep.subr.mxu0 0.0
    %5268 = vmatpush1.msra.mxu0 0.0
    %5269 = vmatprep.subr.mxu0 0.0
    %5270 = vmatpush1.msra.mxu0 0.0
    %5271 = vmatprep.subr.mxu0 0.0
    %5272 = vmatpush1.msra.mxu0 0.0
    %5273 = vmatprep.subr.mxu0 0.0
    %5274 = vmatpush1.msra.mxu0 0.0
    %5275 = vmatprep.subr.mxu0 0.0
    %5276 = vmatpush1.msra.mxu0 0.0
    %5277 = vmatprep.subr.mxu0 0.0
    %5278 = vmatpush1.msra.mxu0 0.0
    %5279 = vmatprep.subr.mxu0 0.0
    %5280 = vmatpush1.msra.mxu0 0.0
    %5281 = vmatprep.subr.mxu0 0.0
    %5282 = vmatpush1.msra.mxu0 0.0
    %5283 = vmatprep.subr.mxu0 0.0
    %5284 = vmatpush1.msra.mxu0 0.0
    %5285 = vmatprep.subr.mxu0 0.0
    %5286 = vmatpush1.msra.mxu0 0.0
    %5287 = vmatprep.subr.mxu0 0.0
    %5288 = vmatpush1.msra.mxu0 0.0
    %5289 = vmatprep.subr.mxu0 0.0
    %5290 = vmatpush1.msra.mxu0 0.0
    %5291 = vmatprep.subr.mxu0 0.0
    %5292 = vmatpush1.msra.mxu0 0.0
    %5293 = vmatprep.subr.mxu0 0.0
    %5294 = vmatpush1.msra.mxu0 0.0
    %5295 = vmatprep.subr.mxu0 0.0
    %5296 = vmatpush1.msra.mxu0 0.0
    %5297 = vmatprep.subr.mxu0 0.0
    %5298 = vmatpush1.msra.mxu0 0.0
    %5299 = vmatprep.subr.mxu0 0.0
    %5300 = vmatpush1.msra.mxu0 0.0
    %5301 = vmatprep.subr.mxu0 0.0
    %5302 = vmatpush1.msra.mxu0 0.0
    %5303 = vmatprep.subr.mxu0 0.0
    %5304 = vmatpush1.msra.mxu0 0.0
    %5305 = vmatprep.subr.mxu0 0.0
    %5306 = vmatpush1.msra.mxu0 0.0
    %5307 = vmatprep.subr.mxu0 0.0
    %5308 = vmatpush1.msra.mxu0 0.0
    %5309 = vmatprep.subr.mxu0 0.0
    %5310 = vmatpush1.msra.mxu0 0.0
    %5311 = vmatprep.subr.mxu0 0.0
    %5312 = vmatpush1.msra.mxu0 0.0
    %5313 = vmatprep.subr.mxu0 0.0
    %5314 = vmatpush1.msra.mxu0 0.0
    %5315 = vmatprep.subr.mxu0 0.0
    %5316 = vmatpush1.msra.mxu0 0.0
    %5317 = vmatprep.mubr.f32.mxu0 0.0
    %v5318 = vand.u32 %v5244, 4294901760
    %v5319 = vsub.f32 %v5244, %v5318
    %v5320 = vand.u32 %v5319, 4294901760
    %v5321 = vsub.f32 %v5319, %v5320
    %v5322 = vand.u32 %v5321, 4294901760
    %5323 = vmatmul.mubr.f32.gmra.mrb[0].mxu0 %v5322
    %v5324 = vpop.f32.mrb[0].mxu0
    %v5325 = vadd.f32 0.0, %v5324
    %v5326 = vpop.f32.mrb[0].mxu0
    %5327 = vmatprep.mubr.f32.mxu0 0.0
    %v5328 = vand.u32 %v5247, 4294901760
    %v5329 = vsub.f32 %v5247, %v5328
    %v5330 = vand.u32 %v5329, 4294901760
    %v5331 = vsub.f32 %v5329, %v5330
    %v5332 = vand.u32 %v5331, 4294901760
    %5333 = vmatmul.mubr.f32.gmra.mrb[0].mxu0 %v5332
    %v5334 = vpop.f32.mrb[0].mxu0
    %v5335 = vadd.f32 0.0, %v5334
    %v5336 = vpop.f32.mrb[0].mxu0
    %5337 = vdwg.mxu0
    %5338 = vmatprep.subr.mxu0 0.0
    %v5339 = vand.u32 %v5237, 4294901760
    %v5340 = vsub.f32 %v5237, %v5339
    %v5341 = vand.u32 %v5340, 4294901760
    %v5342 = vsub.f32 %v5340, %v5341
    %v5343 = vand.u32 %v5342, 4294901760
    %5344 = vmatpush1.msra.mxu0 %v5343
    %5345 = vmatprep.subr.mxu0 0.0
    %v5346 = vand.u32 %v5238, 4294901760
    %v5347 = vsub.f32 %v5238, %v5346
    %v5348 = vand.u32 %v5347, 4294901760
    %v5349 = vsub.f32 %v5347, %v5348
    %v5350 = vand.u32 %v5349, 4294901760
    %5351 = vmatpush1.msra.mxu0 %v5350
    %5352 = vmatprep.subr.mxu0 0.0
    %v5353 = vand.u32 %v5239, 4294901760
    %v5354 = vsub.f32 %v5239, %v5353
    %v5355 = vand.u32 %v5354, 4294901760
    %v5356 = vsub.f32 %v5354, %v5355
    %v5357 = vand.u32 %v5356, 4294901760
    %5358 = vmatpush1.msra.mxu0 %v5357
    %5359 = vmatprep.subr.mxu0 0.0
    %v5360 = vand.u32 %v5240, 4294901760
    %v5361 = vsub.f32 %v5240, %v5360
    %v5362 = vand.u32 %v5361, 4294901760
    %v5363 = vsub.f32 %v5361, %v5362
    %v5364 = vand.u32 %v5363, 4294901760
    %5365 = vmatpush1.msra.mxu0 %v5364
    %5366 = vmatprep.subr.mxu0 0.0
    %5367 = vmatpush1.msra.mxu0 0.0
    %5368 = vmatprep.subr.mxu0 0.0
    %5369 = vmatpush1.msra.mxu0 0.0
    %5370 = vmatprep.subr.mxu0 0.0
    %5371 = vmatpush1.msra.mxu0 0.0
    %5372 = vmatprep.subr.mxu0 0.0
    %5373 = vmatpush1.msra.mxu0 0.0
    %5374 = vmatprep.subr.mxu0 0.0
    %5375 = vmatpush1.msra.mxu0 0.0
    %5376 = vmatprep.subr.mxu0 0.0
    %5377 = vmatpush1.msra.mxu0 0.0
    %5378 = vmatprep.subr.mxu0 0.0
    %5379 = vmatpush1.msra.mxu0 0.0
    %5380 = vmatprep.subr.mxu0 0.0
    %5381 = vmatpush1.msra.mxu0 0.0
    %5382 = vmatprep.subr.mxu0 0.0
    %5383 = vmatpush1.msra.mxu0 0.0
    %5384 = vmatprep.subr.mxu0 0.0
    %5385 = vmatpush1.msra.mxu0 0.0
    %5386 = vmatprep.subr.mxu0 0.0
    %5387 = vmatpush1.msra.mxu0 0.0
    %5388 = vmatprep.subr.mxu0 0.0
    %5389 = vmatpush1.msra.mxu0 0.0
    %5390 = vmatprep.subr.mxu0 0.0
    %5391 = vmatpush1.msra.mxu0 0.0
    %5392 = vmatprep.subr.mxu0 0.0
    %5393 = vmatpush1.msra.mxu0 0.0
    %5394 = vmatprep.subr.mxu0 0.0
    %5395 = vmatpush1.msra.mxu0 0.0
    %5396 = vmatprep.subr.mxu0 0.0
    %5397 = vmatpush1.msra.mxu0 0.0
    %5398 = vmatprep.subr.mxu0 0.0
    %5399 = vmatpush1.msra.mxu0 0.0
    %5400 = vmatprep.subr.mxu0 0.0
    %5401 = vmatpush1.msra.mxu0 0.0
    %5402 = vmatprep.subr.mxu0 0.0
    %5403 = vmatpush1.msra.mxu0 0.0
    %5404 = vmatprep.subr.mxu0 0.0
    %5405 = vmatpush1.msra.mxu0 0.0
    %5406 = vmatprep.subr.mxu0 0.0
    %5407 = vmatpush1.msra.mxu0 0.0
    %5408 = vmatprep.subr.mxu0 0.0
    %5409 = vmatpush1.msra.mxu0 0.0
    %5410 = vmatprep.subr.mxu0 0.0
    %5411 = vmatpush1.msra.mxu0 0.0
    %5412 = vmatprep.subr.mxu0 0.0
    %5413 = vmatpush1.msra.mxu0 0.0
    %5414 = vmatprep.subr.mxu0 0.0
    %5415 = vmatpush1.msra.mxu0 0.0
    %5416 = vmatprep.subr.mxu0 0.0
    %5417 = vmatpush1.msra.mxu0 0.0
    %5418 = vmatprep.subr.mxu0 0.0
    %5419 = vmatpush1.msra.mxu0 0.0
    %5420 = vmatprep.subr.mxu0 0.0
    %5421 = vmatpush1.msra.mxu0 0.0
    %5422 = vmatprep.mubr.f32.mxu0 0.0
    %v5423 = vand.u32 %v5244, 4294901760
    %5424 = vmatmul.mubr.f32.gmra.mrb[0].mxu0 %v5423
    %v5425 = vpop.f32.mrb[0].mxu0
    %v5426 = vadd.f32 %v5325, %v5425
    %v5427 = vpop.f32.mrb[0].mxu0
    %5428 = vmatprep.mubr.f32.mxu0 0.0
    %v5429 = vand.u32 %v5247, 4294901760
    %5430 = vmatmul.mubr.f32.gmra.mrb[0].mxu0 %v5429
    %v5431 = vpop.f32.mrb[0].mxu0
    %v5432 = vadd.f32 %v5335, %v5431
    %v5433 = vpop.f32.mrb[0].mxu0
    %5434 = vdwg.mxu0
    %5435 = vmatprep.subr.mxu0 0.0
    %v5436 = vand.u32 %v5237, 4294901760
    %v5437 = vsub.f32 %v5237, %v5436
    %5438 = vmatpush1.msra.mxu0 %v5437
    %5439 = vmatprep.subr.mxu0 0.0
    %v5440 = vand.u32 %v5238, 4294901760
    %v5441 = vsub.f32 %v5238, %v5440
    %5442 = vmatpush1.msra.mxu0 %v5441
    %5443 = vmatprep.subr.mxu0 0.0
    %v5444 = vand.u32 %v5239, 4294901760
    %v5445 = vsub.f32 %v5239, %v5444
    %5446 = vmatpush1.msra.mxu0 %v5445
    %5447 = vmatprep.subr.mxu0 0.0
    %v5448 = vand.u32 %v5240, 4294901760
    %v5449 = vsub.f32 %v5240, %v5448
    %5450 = vmatpush1.msra.mxu0 %v5449
    %5451 = vmatprep.subr.mxu0 0.0
    %5452 = vmatpush1.msra.mxu0 0.0
    %5453 = vmatprep.subr.mxu0 0.0
    %5454 = vmatpush1.msra.mxu0 0.0
    %5455 = vmatprep.subr.mxu0 0.0
    %5456 = vmatpush1.msra.mxu0 0.0
    %5457 = vmatprep.subr.mxu0 0.0
    %5458 = vmatpush1.msra.mxu0 0.0
    %5459 = vmatprep.subr.mxu0 0.0
    %5460 = vmatpush1.msra.mxu0 0.0
    %5461 = vmatprep.subr.mxu0 0.0
    %5462 = vmatpush1.msra.mxu0 0.0
    %5463 = vmatprep.subr.mxu0 0.0
    %5464 = vmatpush1.msra.mxu0 0.0
    %5465 = vmatprep.subr.mxu0 0.0
    %5466 = vmatpush1.msra.mxu0 0.0
    %5467 = vmatprep.subr.mxu0 0.0
    %5468 = vmatpush1.msra.mxu0 0.0
    %5469 = vmatprep.subr.mxu0 0.0
    %5470 = vmatpush1.msra.mxu0 0.0
    %5471 = vmatprep.subr.mxu0 0.0
    %5472 = vmatpush1.msra.mxu0 0.0
    %5473 = vmatprep.subr.mxu0 0.0
    %5474 = vmatpush1.msra.mxu0 0.0
    %5475 = vmatprep.subr.mxu0 0.0
    %5476 = vmatpush1.msra.mxu0 0.0
    %5477 = vmatprep.subr.mxu0 0.0
    %5478 = vmatpush1.msra.mxu0 0.0
    %5479 = vmatprep.subr.mxu0 0.0
    %5480 = vmatpush1.msra.mxu0 0.0
    %5481 = vmatprep.subr.mxu0 0.0
    %5482 = vmatpush1.msra.mxu0 0.0
    %5483 = vmatprep.subr.mxu0 0.0
    %5484 = vmatpush1.msra.mxu0 0.0
    %5485 = vmatprep.subr.mxu0 0.0
    %5486 = vmatpush1.msra.mxu0 0.0
    %5487 = vmatprep.subr.mxu0 0.0
    %5488 = vmatpush1.msra.mxu0 0.0
    %5489 = vmatprep.subr.mxu0 0.0
    %5490 = vmatpush1.msra.mxu0 0.0
    %5491 = vmatprep.subr.mxu0 0.0
    %5492 = vmatpush1.msra.mxu0 0.0
    %5493 = vmatprep.subr.mxu0 0.0
    %5494 = vmatpush1.msra.mxu0 0.0
    %5495 = vmatprep.subr.mxu0 0.0
    %5496 = vmatpush1.msra.mxu0 0.0
    %5497 = vmatprep.subr.mxu0 0.0
    %5498 = vmatpush1.msra.mxu0 0.0
    %5499 = vmatprep.subr.mxu0 0.0
    %5500 = vmatpush1.msra.mxu0 0.0
    %5501 = vmatprep.subr.mxu0 0.0
    %5502 = vmatpush1.msra.mxu0 0.0
    %5503 = vmatprep.subr.mxu0 0.0
    %5504 = vmatpush1.msra.mxu0 0.0
    %5505 = vmatprep.subr.mxu0 0.0
    %5506 = vmatpush1.msra.mxu0 0.0
    %5507 = vmatprep.mubr.f32.mxu0 0.0
    %v5508 = vand.u32 %v5244, 4294901760
    %v5509 = vsub.f32 %v5244, %v5508
    %5510 = vmatmul.mubr.f32.gmra.mrb[0].mxu0 %v5509
    %v5511 = vpop.f32.mrb[0].mxu0
    %v5512 = vadd.f32 %v5426, %v5511
    %v5513 = vpop.f32.mrb[0].mxu0
    %5514 = vmatprep.mubr.f32.mxu0 0.0
    %v5515 = vand.u32 %v5247, 4294901760
    %v5516 = vsub.f32 %v5247, %v5515
    %5517 = vmatmul.mubr.f32.gmra.mrb[0].mxu0 %v5516
    %v5518 = vpop.f32.mrb[0].mxu0
    %v5519 = vadd.f32 %v5432, %v5518
    %v5520 = vpop.f32.mrb[0].mxu0
    %5521 = vdwg.mxu0
    %5522 = vmatprep.subr.mxu0 0.0
    %v5523 = vand.u32 %v5237, 4294901760
    %5524 = vmatpush1.msra.mxu0 %v5523
    %5525 = vmatprep.subr.mxu0 0.0
    %v5526 = vand.u32 %v5238, 4294901760
    %5527 = vmatpush1.msra.mxu0 %v5526
    %5528 = vmatprep.subr.mxu0 0.0
    %v5529 = vand.u32 %v5239, 4294901760
    %5530 = vmatpush1.msra.mxu0 %v5529
    %5531 = vmatprep.subr.mxu0 0.0
    %v5532 = vand.u32 %v5240, 4294901760
    %5533 = vmatpush1.msra.mxu0 %v5532
    %5534 = vmatprep.subr.mxu0 0.0
    %5535 = vmatpush1.msra.mxu0 0.0
    %5536 = vmatprep.subr.mxu0 0.0
    %5537 = vmatpush1.msra.mxu0 0.0
    %5538 = vmatprep.subr.mxu0 0.0
    %5539 = vmatpush1.msra.mxu0 0.0
    %5540 = vmatprep.subr.mxu0 0.0
    %5541 = vmatpush1.msra.mxu0 0.0
    %5542 = vmatprep.subr.mxu0 0.0
    %5543 = vmatpush1.msra.mxu0 0.0
    %5544 = vmatprep.subr.mxu0 0.0
    %5545 = vmatpush1.msra.mxu0 0.0
    %5546 = vmatprep.subr.mxu0 0.0
    %5547 = vmatpush1.msra.mxu0 0.0
    %5548 = vmatprep.subr.mxu0 0.0
    %5549 = vmatpush1.msra.mxu0 0.0
    %5550 = vmatprep.subr.mxu0 0.0
    %5551 = vmatpush1.msra.mxu0 0.0
    %5552 = vmatprep.subr.mxu0 0.0
    %5553 = vmatpush1.msra.mxu0 0.0
    %5554 = vmatprep.subr.mxu0 0.0
    %5555 = vmatpush1.msra.mxu0 0.0
    %5556 = vmatprep.subr.mxu0 0.0
    %5557 = vmatpush1.msra.mxu0 0.0
    %5558 = vmatprep.subr.mxu0 0.0
    %5559 = vmatpush1.msra.mxu0 0.0
    %5560 = vmatprep.subr.mxu0 0.0
    %5561 = vmatpush1.msra.mxu0 0.0
    %5562 = vmatprep.subr.mxu0 0.0
    %5563 = vmatpush1.msra.mxu0 0.0
    %5564 = vmatprep.subr.mxu0 0.0
    %5565 = vmatpush1.msra.mxu0 0.0
    %5566 = vmatprep.subr.mxu0 0.0
    %5567 = vmatpush1.msra.mxu0 0.0
    %5568 = vmatprep.subr.mxu0 0.0
    %5569 = vmatpush1.msra.mxu0 0.0
    %5570 = vmatprep.subr.mxu0 0.0
    %5571 = vmatpush1.msra.mxu0 0.0
    %5572 = vmatprep.subr.mxu0 0.0
    %5573 = vmatpush1.msra.mxu0 0.0
    %5574 = vmatprep.subr.mxu0 0.0
    %5575 = vmatpush1.msra.mxu0 0.0
    %5576 = vmatprep.subr.mxu0 0.0
    %5577 = vmatpush1.msra.mxu0 0.0
    %5578 = vmatprep.subr.mxu0 0.0
    %5579 = vmatpush1.msra.mxu0 0.0
    %5580 = vmatprep.subr.mxu0 0.0
    %5581 = vmatpush1.msra.mxu0 0.0
    %5582 = vmatprep.subr.mxu0 0.0
    %5583 = vmatpush1.msra.mxu0 0.0
    %5584 = vmatprep.subr.mxu0 0.0
    %5585 = vmatpush1.msra.mxu0 0.0
    %5586 = vmatprep.subr.mxu0 0.0
    %5587 = vmatpush1.msra.mxu0 0.0
    %5588 = vmatprep.subr.mxu0 0.0
    %5589 = vmatpush1.msra.mxu0 0.0
    %5590 = vmatprep.mubr.f32.mxu0 0.0
    %v5591 = vand.u32 %v5244, 4294901760
    %v5592 = vsub.f32 %v5244, %v5591
    %v5593 = vand.u32 %v5592, 4294901760
    %5594 = vmatmul.mubr.f32.gmra.mrb[0].mxu0 %v5593
    %v5595 = vpop.f32.mrb[0].mxu0
    %v5596 = vadd.f32 %v5512, %v5595
    %v5597 = vpop.f32.mrb[0].mxu0
    %5598 = vmatprep.mubr.f32.mxu0 0.0
    %v5599 = vand.u32 %v5247, 4294901760
    %v5600 = vsub.f32 %v5247, %v5599
    %v5601 = vand.u32 %v5600, 4294901760
    %5602 = vmatmul.mubr.f32.gmra.mrb[0].mxu0 %v5601
    %v5603 = vpop.f32.mrb[0].mxu0
    %v5604 = vadd.f32 %v5519, %v5603
    %v5605 = vpop.f32.mrb[0].mxu0
    %5606 = vdwg.mxu0
    %5607 = vmatprep.subr.mxu0 0.0
    %v5608 = vand.u32 %v5237, 4294901760
    %v5609 = vsub.f32 %v5237, %v5608
    %v5610 = vand.u32 %v5609, 4294901760
    %5611 = vmatpush1.msra.mxu0 %v5610
    %5612 = vmatprep.subr.mxu0 0.0
    %v5613 = vand.u32 %v5238, 4294901760
    %v5614 = vsub.f32 %v5238, %v5613
    %v5615 = vand.u32 %v5614, 4294901760
    %5616 = vmatpush1.msra.mxu0 %v5615
    %5617 = vmatprep.subr.mxu0 0.0
    %v5618 = vand.u32 %v5239, 4294901760
    %v5619 = vsub.f32 %v5239, %v5618
    %v5620 = vand.u32 %v5619, 4294901760
    %5621 = vmatpush1.msra.mxu0 %v5620
    %5622 = vmatprep.subr.mxu0 0.0
    %v5623 = vand.u32 %v5240, 4294901760
    %v5624 = vsub.f32 %v5240, %v5623
    %v5625 = vand.u32 %v5624, 4294901760
    %5626 = vmatpush1.msra.mxu0 %v5625
    %5627 = vmatprep.subr.mxu0 0.0
    %5628 = vmatpush1.msra.mxu0 0.0
    %5629 = vmatprep.subr.mxu0 0.0
    %5630 = vmatpush1.msra.mxu0 0.0
    %5631 = vmatprep.subr.mxu0 0.0
    %5632 = vmatpush1.msra.mxu0 0.0
    %5633 = vmatprep.subr.mxu0 0.0
    %5634 = vmatpush1.msra.mxu0 0.0
    %5635 = vmatprep.subr.mxu0 0.0
    %5636 = vmatpush1.msra.mxu0 0.0
    %5637 = vmatprep.subr.mxu0 0.0
    %5638 = vmatpush1.msra.mxu0 0.0
    %5639 = vmatprep.subr.mxu0 0.0
    %5640 = vmatpush1.msra.mxu0 0.0
    %5641 = vmatprep.subr.mxu0 0.0
    %5642 = vmatpush1.msra.mxu0 0.0
    %5643 = vmatprep.subr.mxu0 0.0
    %5644 = vmatpush1.msra.mxu0 0.0
    %5645 = vmatprep.subr.mxu0 0.0
    %5646 = vmatpush1.msra.mxu0 0.0
    %5647 = vmatprep.subr.mxu0 0.0
    %5648 = vmatpush1.msra.mxu0 0.0
    %5649 = vmatprep.subr.mxu0 0.0
    %5650 = vmatpush1.msra.mxu0 0.0
    %5651 = vmatprep.subr.mxu0 0.0
    %5652 = vmatpush1.msra.mxu0 0.0
    %5653 = vmatprep.subr.mxu0 0.0
    %5654 = vmatpush1.msra.mxu0 0.0
    %5655 = vmatprep.subr.mxu0 0.0
    %5656 = vmatpush1.msra.mxu0 0.0
    %5657 = vmatprep.subr.mxu0 0.0
    %5658 = vmatpush1.msra.mxu0 0.0
    %5659 = vmatprep.subr.mxu0 0.0
    %5660 = vmatpush1.msra.mxu0 0.0
    %5661 = vmatprep.subr.mxu0 0.0
    %5662 = vmatpush1.msra.mxu0 0.0
    %5663 = vmatprep.subr.mxu0 0.0
    %5664 = vmatpush1.msra.mxu0 0.0
    %5665 = vmatprep.subr.mxu0 0.0
    %5666 = vmatpush1.msra.mxu0 0.0
    %5667 = vmatprep.subr.mxu0 0.0
    %5668 = vmatpush1.msra.mxu0 0.0
    %5669 = vmatprep.subr.mxu0 0.0
    %5670 = vmatpush1.msra.mxu0 0.0
    %5671 = vmatprep.subr.mxu0 0.0
    %5672 = vmatpush1.msra.mxu0 0.0
    %5673 = vmatprep.subr.mxu0 0.0
    %5674 = vmatpush1.msra.mxu0 0.0
    %5675 = vmatprep.subr.mxu0 0.0
    %5676 = vmatpush1.msra.mxu0 0.0
    %5677 = vmatprep.subr.mxu0 0.0
    %5678 = vmatpush1.msra.mxu0 0.0
    %5679 = vmatprep.subr.mxu0 0.0
    %5680 = vmatpush1.msra.mxu0 0.0
    %5681 = vmatprep.subr.mxu0 0.0
    %5682 = vmatpush1.msra.mxu0 0.0
    %5683 = vmatprep.mubr.f32.mxu0 0.0
    %v5684 = vand.u32 %v5244, 4294901760
    %5685 = vmatmul.mubr.f32.gmra.mrb[0].mxu0 %v5684
    %v5686 = vpop.f32.mrb[0].mxu0
    %v5687 = vadd.f32 %v5596, %v5686
    %v5688 = vpop.f32.mrb[0].mxu0
    %5689 = vmatprep.mubr.f32.mxu0 0.0
    %v5690 = vand.u32 %v5247, 4294901760
    %5691 = vmatmul.mubr.f32.gmra.mrb[0].mxu0 %v5690
    %v5692 = vpop.f32.mrb[0].mxu0
    %v5693 = vadd.f32 %v5604, %v5692
    %v5694 = vpop.f32.mrb[0].mxu0
    %5695 = vdwg.mxu0
    %5696 = vmatprep.subr.mxu0 0.0
    %v5697 = vand.u32 %v5237, 4294901760
    %5698 = vmatpush1.msra.mxu0 %v5697
    %5699 = vmatprep.subr.mxu0 0.0
    %v5700 = vand.u32 %v5238, 4294901760
    %5701 = vmatpush1.msra.mxu0 %v5700
    %5702 = vmatprep.subr.mxu0 0.0
    %v5703 = vand.u32 %v5239, 4294901760
    %5704 = vmatpush1.msra.mxu0 %v5703
    %5705 = vmatprep.subr.mxu0 0.0
    %v5706 = vand.u32 %v5240, 4294901760
    %5707 = vmatpush1.msra.mxu0 %v5706
    %5708 = vmatprep.subr.mxu0 0.0
    %5709 = vmatpush1.msra.mxu0 0.0
    %5710 = vmatprep.subr.mxu0 0.0
    %5711 = vmatpush1.msra.mxu0 0.0
    %5712 = vmatprep.subr.mxu0 0.0
    %5713 = vmatpush1.msra.mxu0 0.0
    %5714 = vmatprep.subr.mxu0 0.0
    %5715 = vmatpush1.msra.mxu0 0.0
    %5716 = vmatprep.subr.mxu0 0.0
    %5717 = vmatpush1.msra.mxu0 0.0
    %5718 = vmatprep.subr.mxu0 0.0
    %5719 = vmatpush1.msra.mxu0 0.0
    %5720 = vmatprep.subr.mxu0 0.0
    %5721 = vmatpush1.msra.mxu0 0.0
    %5722 = vmatprep.subr.mxu0 0.0
    %5723 = vmatpush1.msra.mxu0 0.0
    %5724 = vmatprep.subr.mxu0 0.0
    %5725 = vmatpush1.msra.mxu0 0.0
    %5726 = vmatprep.subr.mxu0 0.0
    %5727 = vmatpush1.msra.mxu0 0.0
    %5728 = vmatprep.subr.mxu0 0.0
    %5729 = vmatpush1.msra.mxu0 0.0
    %5730 = vmatprep.subr.mxu0 0.0
    %5731 = vmatpush1.msra.mxu0 0.0
    %5732 = vmatprep.subr.mxu0 0.0
    %5733 = vmatpush1.msra.mxu0 0.0
    %5734 = vmatprep.subr.mxu0 0.0
    %5735 = vmatpush1.msra.mxu0 0.0
    %5736 = vmatprep.subr.mxu0 0.0
    %5737 = vmatpush1.msra.mxu0 0.0
    %5738 = vmatprep.subr.mxu0 0.0
    %5739 = vmatpush1.msra.mxu0 0.0
    %5740 = vmatprep.subr.mxu0 0.0
    %5741 = vmatpush1.msra.mxu0 0.0
    %5742 = vmatprep.subr.mxu0 0.0
    %5743 = vmatpush1.msra.mxu0 0.0
    %5744 = vmatprep.subr.mxu0 0.0
    %5745 = vmatpush1.msra.mxu0 0.0
    %5746 = vmatprep.subr.mxu0 0.0
    %5747 = vmatpush1.msra.mxu0 0.0
    %5748 = vmatprep.subr.mxu0 0.0
    %5749 = vmatpush1.msra.mxu0 0.0
    %5750 = vmatprep.subr.mxu0 0.0
    %5751 = vmatpush1.msra.mxu0 0.0
    %5752 = vmatprep.subr.mxu0 0.0
    %5753 = vmatpush1.msra.mxu0 0.0
    %5754 = vmatprep.subr.mxu0 0.0
    %5755 = vmatpush1.msra.mxu0 0.0
    %5756 = vmatprep.subr.mxu0 0.0
    %5757 = vmatpush1.msra.mxu0 0.0
    %5758 = vmatprep.subr.mxu0 0.0
    %5759 = vmatpush1.msra.mxu0 0.0
    %5760 = vmatprep.subr.mxu0 0.0
    %5761 = vmatpush1.msra.mxu0 0.0
    %5762 = vmatprep.subr.mxu0 0.0
    %5763 = vmatpush1.msra.mxu0 0.0
    %5764 = vmatprep.mubr.f32.mxu0 0.0
    %v5765 = vand.u32 %v5244, 4294901760
    %5766 = vmatmul.mubr.f32.gmra.mrb[0].mxu0 %v5765
    %v5767 = vpop.f32.mrb[0].mxu0
    %v5768 = vadd.f32 %v5687, %v5767
    %v5769 = vpop.f32.mrb[0].mxu0
    %5770 = vmatprep.mubr.f32.mxu0 0.0
    %v5771 = vand.u32 %v5247, 4294901760
    %5772 = vmatmul.mubr.f32.gmra.mrb[0].mxu0 %v5771
    %v5773 = vpop.f32.mrb[0].mxu0
    %v5774 = vadd.f32 %v5693, %v5773
    %v5775 = vpop.f32.mrb[0].mxu0
    %5776 = vdwg.mxu0
    %v5778 = vlaneseq
    %v5779 = vshrl.u32 %v5778, 7
    %v5780 = vsub.s32 0, %v5779
    %v5781 = vrot.slane %v5242, %v5780
    %5783 = vmatprep.subr.mxu0 0.0
    %v5784 = vand.u32 %v5768, 4294901760
    %5785 = vmatpush1.msra.mxu0 %v5784
    %5786 = vmatprep.subr.mxu0 0.0
    %v5787 = vand.u32 %v5774, 4294901760
    %5788 = vmatpush1.msra.mxu0 %v5787
    %5789 = vmatprep.subr.mxu0 0.0
    %5790 = vmatpush1.msra.mxu0 0.0
    %5791 = vmatprep.subr.mxu0 0.0
    %5792 = vmatpush1.msra.mxu0 0.0
    %5793 = vmatprep.subr.mxu0 0.0
    %5794 = vmatpush1.msra.mxu0 0.0
    %5795 = vmatprep.subr.mxu0 0.0
    %5796 = vmatpush1.msra.mxu0 0.0
    %5797 = vmatprep.subr.mxu0 0.0
    %5798 = vmatpush1.msra.mxu0 0.0
    %5799 = vmatprep.subr.mxu0 0.0
    %5800 = vmatpush1.msra.mxu0 0.0
    %5801 = vmatprep.subr.mxu0 0.0
    %5802 = vmatpush1.msra.mxu0 0.0
    %5803 = vmatprep.subr.mxu0 0.0
    %5804 = vmatpush1.msra.mxu0 0.0
    %5805 = vmatprep.subr.mxu0 0.0
    %5806 = vmatpush1.msra.mxu0 0.0
    %5807 = vmatprep.subr.mxu0 0.0
    %5808 = vmatpush1.msra.mxu0 0.0
    %5809 = vmatprep.subr.mxu0 0.0
    %5810 = vmatpush1.msra.mxu0 0.0
    %5811 = vmatprep.subr.mxu0 0.0
    %5812 = vmatpush1.msra.mxu0 0.0
    %5813 = vmatprep.subr.mxu0 0.0
    %5814 = vmatpush1.msra.mxu0 0.0
    %5815 = vmatprep.subr.mxu0 0.0
    %5816 = vmatpush1.msra.mxu0 0.0
    %5817 = vmatprep.subr.mxu0 0.0
    %5818 = vmatpush1.msra.mxu0 0.0
    %5819 = vmatprep.subr.mxu0 0.0
    %5820 = vmatpush1.msra.mxu0 0.0
    %5821 = vmatprep.subr.mxu0 0.0
    %5822 = vmatpush1.msra.mxu0 0.0
    %5823 = vmatprep.subr.mxu0 0.0
    %5824 = vmatpush1.msra.mxu0 0.0
    %5825 = vmatprep.subr.mxu0 0.0
    %5826 = vmatpush1.msra.mxu0 0.0
    %5827 = vmatprep.subr.mxu0 0.0
    %5828 = vmatpush1.msra.mxu0 0.0
    %5829 = vmatprep.subr.mxu0 0.0
    %5830 = vmatpush1.msra.mxu0 0.0
    %5831 = vmatprep.subr.mxu0 0.0
    %5832 = vmatpush1.msra.mxu0 0.0
    %5833 = vmatprep.subr.mxu0 0.0
    %5834 = vmatpush1.msra.mxu0 0.0
    %5835 = vmatprep.subr.mxu0 0.0
    %5836 = vmatpush1.msra.mxu0 0.0
    %5837 = vmatprep.subr.mxu0 0.0
    %5838 = vmatpush1.msra.mxu0 0.0
    %5839 = vmatprep.subr.mxu0 0.0
    %5840 = vmatpush1.msra.mxu0 0.0
    %5841 = vmatprep.subr.mxu0 0.0
    %5842 = vmatpush1.msra.mxu0 0.0
    %5843 = vmatprep.subr.mxu0 0.0
    %5844 = vmatpush1.msra.mxu0 0.0
    %5845 = vmatprep.subr.mxu0 0.0
    %5846 = vmatpush1.msra.mxu0 0.0
    %5847 = vmatprep.subr.mxu0 0.0
    %5848 = vmatpush1.msra.mxu0 0.0
    %5849 = vmatprep.mubr.f32.mxu0 0.0
    %v5850 = vand.u32 %v4727, 4294901760
    %v5851 = vsub.f32 %v4727, %v5850
    %v5852 = vand.u32 %v5851, 4294901760
    %v5853 = vsub.f32 %v5851, %v5852
    %v5854 = vand.u32 %v5853, 4294901760
    %5855 = vmatmul.mubr.f32.gmra.mrb[0].mxu0 %v5854
    %v5856 = vpop.f32.mrb[0].mxu0
    %v5857 = vadd.f32 %v5781, %v5856
    %v5858 = vpop.f32.mrb[0].mxu0
    %5859 = vmatprep.mubr.f32.mxu0 0.0
    %v5860 = vand.u32 %v4730, 4294901760
    %v5861 = vsub.f32 %v4730, %v5860
    %v5862 = vand.u32 %v5861, 4294901760
    %v5863 = vsub.f32 %v5861, %v5862
    %v5864 = vand.u32 %v5863, 4294901760
    %5865 = vmatmul.mubr.f32.gmra.mrb[0].mxu0 %v5864
    %v5866 = vpop.f32.mrb[0].mxu0
    %v5867 = vadd.f32 %v5781, %v5866
    %v5868 = vpop.f32.mrb[0].mxu0
    %5869 = vdwg.mxu0
    %5870 = vmatprep.subr.mxu0 0.0
    %v5871 = vand.u32 %v5768, 4294901760
    %v5872 = vsub.f32 %v5768, %v5871
    %v5873 = vand.u32 %v5872, 4294901760
    %v5874 = vsub.f32 %v5872, %v5873
    %v5875 = vand.u32 %v5874, 4294901760
    %5876 = vmatpush1.msra.mxu0 %v5875
    %5877 = vmatprep.subr.mxu0 0.0
    %v5878 = vand.u32 %v5774, 4294901760
    %v5879 = vsub.f32 %v5774, %v5878
    %v5880 = vand.u32 %v5879, 4294901760
    %v5881 = vsub.f32 %v5879, %v5880
    %v5882 = vand.u32 %v5881, 4294901760
    %5883 = vmatpush1.msra.mxu0 %v5882
    %5884 = vmatprep.subr.mxu0 0.0
    %5885 = vmatpush1.msra.mxu0 0.0
    %5886 = vmatprep.subr.mxu0 0.0
    %5887 = vmatpush1.msra.mxu0 0.0
    %5888 = vmatprep.subr.mxu0 0.0
    %5889 = vmatpush1.msra.mxu0 0.0
    %5890 = vmatprep.subr.mxu0 0.0
    %5891 = vmatpush1.msra.mxu0 0.0
    %5892 = vmatprep.subr.mxu0 0.0
    %5893 = vmatpush1.msra.mxu0 0.0
    %5894 = vmatprep.subr.mxu0 0.0
    %5895 = vmatpush1.msra.mxu0 0.0
    %5896 = vmatprep.subr.mxu0 0.0
    %5897 = vmatpush1.msra.mxu0 0.0
    %5898 = vmatprep.subr.mxu0 0.0
    %5899 = vmatpush1.msra.mxu0 0.0
    %5900 = vmatprep.subr.mxu0 0.0
    %5901 = vmatpush1.msra.mxu0 0.0
    %5902 = vmatprep.subr.mxu0 0.0
    %5903 = vmatpush1.msra.mxu0 0.0
    %5904 = vmatprep.subr.mxu0 0.0
    %5905 = vmatpush1.msra.mxu0 0.0
    %5906 = vmatprep.subr.mxu0 0.0
    %5907 = vmatpush1.msra.mxu0 0.0
    %5908 = vmatprep.subr.mxu0 0.0
    %5909 = vmatpush1.msra.mxu0 0.0
    %5910 = vmatprep.subr.mxu0 0.0
    %5911 = vmatpush1.msra.mxu0 0.0
    %5912 = vmatprep.subr.mxu0 0.0
    %5913 = vmatpush1.msra.mxu0 0.0
    %5914 = vmatprep.subr.mxu0 0.0
    %5915 = vmatpush1.msra.mxu0 0.0
    %5916 = vmatprep.subr.mxu0 0.0
    %5917 = vmatpush1.msra.mxu0 0.0
    %5918 = vmatprep.subr.mxu0 0.0
    %5919 = vmatpush1.msra.mxu0 0.0
    %5920 = vmatprep.subr.mxu0 0.0
    %5921 = vmatpush1.msra.mxu0 0.0
    %5922 = vmatprep.subr.mxu0 0.0
    %5923 = vmatpush1.msra.mxu0 0.0
    %5924 = vmatprep.subr.mxu0 0.0
    %5925 = vmatpush1.msra.mxu0 0.0
    %5926 = vmatprep.subr.mxu0 0.0
    %5927 = vmatpush1.msra.mxu0 0.0
    %5928 = vmatprep.subr.mxu0 0.0
    %5929 = vmatpush1.msra.mxu0 0.0
    %5930 = vmatprep.subr.mxu0 0.0
    %5931 = vmatpush1.msra.mxu0 0.0
    %5932 = vmatprep.subr.mxu0 0.0
    %5933 = vmatpush1.msra.mxu0 0.0
    %5934 = vmatprep.subr.mxu0 0.0
    %5935 = vmatpush1.msra.mxu0 0.0
    %5936 = vmatprep.subr.mxu0 0.0
    %5937 = vmatpush1.msra.mxu0 0.0
    %5938 = vmatprep.subr.mxu0 0.0
    %5939 = vmatpush1.msra.mxu0 0.0
    %5940 = vmatprep.subr.mxu0 0.0
    %5941 = vmatpush1.msra.mxu0 0.0
    %5942 = vmatprep.subr.mxu0 0.0
    %5943 = vmatpush1.msra.mxu0 0.0
    %5944 = vmatprep.mubr.f32.mxu0 0.0
    %v5945 = vand.u32 %v4727, 4294901760
    %5946 = vmatmul.mubr.f32.gmra.mrb[0].mxu0 %v5945
    %v5947 = vpop.f32.mrb[0].mxu0
    %v5948 = vadd.f32 %v5857, %v5947
    %v5949 = vpop.f32.mrb[0].mxu0
    %5950 = vmatprep.mubr.f32.mxu0 0.0
    %v5951 = vand.u32 %v4730, 4294901760
    %5952 = vmatmul.mubr.f32.gmra.mrb[0].mxu0 %v5951
    %v5953 = vpop.f32.mrb[0].mxu0
    %v5954 = vadd.f32 %v5867, %v5953
    %v5955 = vpop.f32.mrb[0].mxu0
    %5956 = vdwg.mxu0
    %5957 = vmatprep.subr.mxu0 0.0
    %v5958 = vand.u32 %v5768, 4294901760
    %v5959 = vsub.f32 %v5768, %v5958
    %5960 = vmatpush1.msra.mxu0 %v5959
    %5961 = vmatprep.subr.mxu0 0.0
    %v5962 = vand.u32 %v5774, 4294901760
    %v5963 = vsub.f32 %v5774, %v5962
    %5964 = vmatpush1.msra.mxu0 %v5963
    %5965 = vmatprep.subr.mxu0 0.0
    %5966 = vmatpush1.msra.mxu0 0.0
    %5967 = vmatprep.subr.mxu0 0.0
    %5968 = vmatpush1.msra.mxu0 0.0
    %5969 = vmatprep.subr.mxu0 0.0
    %5970 = vmatpush1.msra.mxu0 0.0
    %5971 = vmatprep.subr.mxu0 0.0
    %5972 = vmatpush1.msra.mxu0 0.0
    %5973 = vmatprep.subr.mxu0 0.0
    %5974 = vmatpush1.msra.mxu0 0.0
    %5975 = vmatprep.subr.mxu0 0.0
    %5976 = vmatpush1.msra.mxu0 0.0
    %5977 = vmatprep.subr.mxu0 0.0
    %5978 = vmatpush1.msra.mxu0 0.0
    %5979 = vmatprep.subr.mxu0 0.0
    %5980 = vmatpush1.msra.mxu0 0.0
    %5981 = vmatprep.subr.mxu0 0.0
    %5982 = vmatpush1.msra.mxu0 0.0
    %5983 = vmatprep.subr.mxu0 0.0
    %5984 = vmatpush1.msra.mxu0 0.0
    %5985 = vmatprep.subr.mxu0 0.0
    %5986 = vmatpush1.msra.mxu0 0.0
    %5987 = vmatprep.subr.mxu0 0.0
    %5988 = vmatpush1.msra.mxu0 0.0
    %5989 = vmatprep.subr.mxu0 0.0
    %5990 = vmatpush1.msra.mxu0 0.0
    %5991 = vmatprep.subr.mxu0 0.0
    %5992 = vmatpush1.msra.mxu0 0.0
    %5993 = vmatprep.subr.mxu0 0.0
    %5994 = vmatpush1.msra.mxu0 0.0
    %5995 = vmatprep.subr.mxu0 0.0
    %5996 = vmatpush1.msra.mxu0 0.0
    %5997 = vmatprep.subr.mxu0 0.0
    %5998 = vmatpush1.msra.mxu0 0.0
    %5999 = vmatprep.subr.mxu0 0.0
    %6000 = vmatpush1.msra.mxu0 0.0
    %6001 = vmatprep.subr.mxu0 0.0
    %6002 = vmatpush1.msra.mxu0 0.0
    %6003 = vmatprep.subr.mxu0 0.0
    %6004 = vmatpush1.msra.mxu0 0.0
    %6005 = vmatprep.subr.mxu0 0.0
    %6006 = vmatpush1.msra.mxu0 0.0
    %6007 = vmatprep.subr.mxu0 0.0
    %6008 = vmatpush1.msra.mxu0 0.0
    %6009 = vmatprep.subr.mxu0 0.0
    %6010 = vmatpush1.msra.mxu0 0.0
    %6011 = vmatprep.subr.mxu0 0.0
    %6012 = vmatpush1.msra.mxu0 0.0
    %6013 = vmatprep.subr.mxu0 0.0
    %6014 = vmatpush1.msra.mxu0 0.0
    %6015 = vmatprep.subr.mxu0 0.0
    %6016 = vmatpush1.msra.mxu0 0.0
    %6017 = vmatprep.subr.mxu0 0.0
    %6018 = vmatpush1.msra.mxu0 0.0
    %6019 = vmatprep.subr.mxu0 0.0
    %6020 = vmatpush1.msra.mxu0 0.0
    %6021 = vmatprep.subr.mxu0 0.0
    %6022 = vmatpush1.msra.mxu0 0.0
    %6023 = vmatprep.subr.mxu0 0.0
    %6024 = vmatpush1.msra.mxu0 0.0
    %6025 = vmatprep.mubr.f32.mxu0 0.0
    %v6026 = vand.u32 %v4727, 4294901760
    %v6027 = vsub.f32 %v4727, %v6026
    %6028 = vmatmul.mubr.f32.gmra.mrb[0].mxu0 %v6027
    %v6029 = vpop.f32.mrb[0].mxu0
    %v6030 = vadd.f32 %v5948, %v6029
    %v6031 = vpop.f32.mrb[0].mxu0
    %6032 = vmatprep.mubr.f32.mxu0 0.0
    %v6033 = vand.u32 %v4730, 4294901760
    %v6034 = vsub.f32 %v4730, %v6033
    %6035 = vmatmul.mubr.f32.gmra.mrb[0].mxu0 %v6034
    %v6036 = vpop.f32.mrb[0].mxu0
    %v6037 = vadd.f32 %v5954, %v6036
    %v6038 = vpop.f32.mrb[0].mxu0
    %6039 = vdwg.mxu0
    %6040 = vmatprep.subr.mxu0 0.0
    %v6041 = vand.u32 %v5768, 4294901760
    %6042 = vmatpush1.msra.mxu0 %v6041
    %6043 = vmatprep.subr.mxu0 0.0
    %v6044 = vand.u32 %v5774, 4294901760
    %6045 = vmatpush1.msra.mxu0 %v6044
    %6046 = vmatprep.subr.mxu0 0.0
    %6047 = vmatpush1.msra.mxu0 0.0
    %6048 = vmatprep.subr.mxu0 0.0
    %6049 = vmatpush1.msra.mxu0 0.0
    %6050 = vmatprep.subr.mxu0 0.0
    %6051 = vmatpush1.msra.mxu0 0.0
    %6052 = vmatprep.subr.mxu0 0.0
    %6053 = vmatpush1.msra.mxu0 0.0
    %6054 = vmatprep.subr.mxu0 0.0
    %6055 = vmatpush1.msra.mxu0 0.0
    %6056 = vmatprep.subr.mxu0 0.0
    %6057 = vmatpush1.msra.mxu0 0.0
    %6058 = vmatprep.subr.mxu0 0.0
    %6059 = vmatpush1.msra.mxu0 0.0
    %6060 = vmatprep.subr.mxu0 0.0
    %6061 = vmatpush1.msra.mxu0 0.0
    %6062 = vmatprep.subr.mxu0 0.0
    %6063 = vmatpush1.msra.mxu0 0.0
    %6064 = vmatprep.subr.mxu0 0.0
    %6065 = vmatpush1.msra.mxu0 0.0
    %6066 = vmatprep.subr.mxu0 0.0
    %6067 = vmatpush1.msra.mxu0 0.0
    %6068 = vmatprep.subr.mxu0 0.0
    %6069 = vmatpush1.msra.mxu0 0.0
    %6070 = vmatprep.subr.mxu0 0.0
    %6071 = vmatpush1.msra.mxu0 0.0
    %6072 = vmatprep.subr.mxu0 0.0
    %6073 = vmatpush1.msra.mxu0 0.0
    %6074 = vmatprep.subr.mxu0 0.0
    %6075 = vmatpush1.msra.mxu0 0.0
    %6076 = vmatprep.subr.mxu0 0.0
    %6077 = vmatpush1.msra.mxu0 0.0
    %6078 = vmatprep.subr.mxu0 0.0
    %6079 = vmatpush1.msra.mxu0 0.0
    %6080 = vmatprep.subr.mxu0 0.0
    %6081 = vmatpush1.msra.mxu0 0.0
    %6082 = vmatprep.subr.mxu0 0.0
    %6083 = vmatpush1.msra.mxu0 0.0
    %6084 = vmatprep.subr.mxu0 0.0
    %6085 = vmatpush1.msra.mxu0 0.0
    %6086 = vmatprep.subr.mxu0 0.0
    %6087 = vmatpush1.msra.mxu0 0.0
    %6088 = vmatprep.subr.mxu0 0.0
    %6089 = vmatpush1.msra.mxu0 0.0
    %6090 = vmatprep.subr.mxu0 0.0
    %6091 = vmatpush1.msra.mxu0 0.0
    %6092 = vmatprep.subr.mxu0 0.0
    %6093 = vmatpush1.msra.mxu0 0.0
    %6094 = vmatprep.subr.mxu0 0.0
    %6095 = vmatpush1.msra.mxu0 0.0
    %6096 = vmatprep.subr.mxu0 0.0
    %6097 = vmatpush1.msra.mxu0 0.0
    %6098 = vmatprep.subr.mxu0 0.0
    %6099 = vmatpush1.msra.mxu0 0.0
    %6100 = vmatprep.subr.mxu0 0.0
    %6101 = vmatpush1.msra.mxu0 0.0
    %6102 = vmatprep.subr.mxu0 0.0
    %6103 = vmatpush1.msra.mxu0 0.0
    %6104 = vmatprep.subr.mxu0 0.0
    %6105 = vmatpush1.msra.mxu0 0.0
    %6106 = vmatprep.mubr.f32.mxu0 0.0
    %v6107 = vand.u32 %v4727, 4294901760
    %v6108 = vsub.f32 %v4727, %v6107
    %v6109 = vand.u32 %v6108, 4294901760
    %6110 = vmatmul.mubr.f32.gmra.mrb[0].mxu0 %v6109
    %v6111 = vpop.f32.mrb[0].mxu0
    %v6112 = vadd.f32 %v6030, %v6111
    %v6113 = vpop.f32.mrb[0].mxu0
    %6114 = vmatprep.mubr.f32.mxu0 0.0
    %v6115 = vand.u32 %v4730, 4294901760
    %v6116 = vsub.f32 %v4730, %v6115
    %v6117 = vand.u32 %v6116, 4294901760
    %6118 = vmatmul.mubr.f32.gmra.mrb[0].mxu0 %v6117
    %v6119 = vpop.f32.mrb[0].mxu0
    %v6120 = vadd.f32 %v6037, %v6119
    %v6121 = vpop.f32.mrb[0].mxu0
    %6122 = vdwg.mxu0
    %6123 = vmatprep.subr.mxu0 0.0
    %v6124 = vand.u32 %v5768, 4294901760
    %v6125 = vsub.f32 %v5768, %v6124
    %v6126 = vand.u32 %v6125, 4294901760
    %6127 = vmatpush1.msra.mxu0 %v6126
    %6128 = vmatprep.subr.mxu0 0.0
    %v6129 = vand.u32 %v5774, 4294901760
    %v6130 = vsub.f32 %v5774, %v6129
    %v6131 = vand.u32 %v6130, 4294901760
    %6132 = vmatpush1.msra.mxu0 %v6131
    %6133 = vmatprep.subr.mxu0 0.0
    %6134 = vmatpush1.msra.mxu0 0.0
    %6135 = vmatprep.subr.mxu0 0.0
    %6136 = vmatpush1.msra.mxu0 0.0
    %6137 = vmatprep.subr.mxu0 0.0
    %6138 = vmatpush1.msra.mxu0 0.0
    %6139 = vmatprep.subr.mxu0 0.0
    %6140 = vmatpush1.msra.mxu0 0.0
    %6141 = vmatprep.subr.mxu0 0.0
    %6142 = vmatpush1.msra.mxu0 0.0
    %6143 = vmatprep.subr.mxu0 0.0
    %6144 = vmatpush1.msra.mxu0 0.0
    %6145 = vmatprep.subr.mxu0 0.0
    %6146 = vmatpush1.msra.mxu0 0.0
    %6147 = vmatprep.subr.mxu0 0.0
    %6148 = vmatpush1.msra.mxu0 0.0
    %6149 = vmatprep.subr.mxu0 0.0
    %6150 = vmatpush1.msra.mxu0 0.0
    %6151 = vmatprep.subr.mxu0 0.0
    %6152 = vmatpush1.msra.mxu0 0.0
    %6153 = vmatprep.subr.mxu0 0.0
    %6154 = vmatpush1.msra.mxu0 0.0
    %6155 = vmatprep.subr.mxu0 0.0
    %6156 = vmatpush1.msra.mxu0 0.0
    %6157 = vmatprep.subr.mxu0 0.0
    %6158 = vmatpush1.msra.mxu0 0.0
    %6159 = vmatprep.subr.mxu0 0.0
    %6160 = vmatpush1.msra.mxu0 0.0
    %6161 = vmatprep.subr.mxu0 0.0
    %6162 = vmatpush1.msra.mxu0 0.0
    %6163 = vmatprep.subr.mxu0 0.0
    %6164 = vmatpush1.msra.mxu0 0.0
    %6165 = vmatprep.subr.mxu0 0.0
    %6166 = vmatpush1.msra.mxu0 0.0
    %6167 = vmatprep.subr.mxu0 0.0
    %6168 = vmatpush1.msra.mxu0 0.0
    %6169 = vmatprep.subr.mxu0 0.0
    %6170 = vmatpush1.msra.mxu0 0.0
    %6171 = vmatprep.subr.mxu0 0.0
    %6172 = vmatpush1.msra.mxu0 0.0
    %6173 = vmatprep.subr.mxu0 0.0
    %6174 = vmatpush1.msra.mxu0 0.0
    %6175 = vmatprep.subr.mxu0 0.0
    %6176 = vmatpush1.msra.mxu0 0.0
    %6177 = vmatprep.subr.mxu0 0.0
    %6178 = vmatpush1.msra.mxu0 0.0
    %6179 = vmatprep.subr.mxu0 0.0
    %6180 = vmatpush1.msra.mxu0 0.0
    %6181 = vmatprep.subr.mxu0 0.0
    %6182 = vmatpush1.msra.mxu0 0.0
    %6183 = vmatprep.subr.mxu0 0.0
    %6184 = vmatpush1.msra.mxu0 0.0
    %6185 = vmatprep.subr.mxu0 0.0
    %6186 = vmatpush1.msra.mxu0 0.0
    %6187 = vmatprep.subr.mxu0 0.0
    %6188 = vmatpush1.msra.mxu0 0.0
    %6189 = vmatprep.subr.mxu0 0.0
    %6190 = vmatpush1.msra.mxu0 0.0
    %6191 = vmatprep.subr.mxu0 0.0
    %6192 = vmatpush1.msra.mxu0 0.0
    %6193 = vmatprep.mubr.f32.mxu0 0.0
    %v6194 = vand.u32 %v4727, 4294901760
    %6195 = vmatmul.mubr.f32.gmra.mrb[0].mxu0 %v6194
    %v6196 = vpop.f32.mrb[0].mxu0
    %v6197 = vadd.f32 %v6112, %v6196
    %v6198 = vpop.f32.mrb[0].mxu0
    %6199 = vmatprep.mubr.f32.mxu0 0.0
    %v6200 = vand.u32 %v4730, 4294901760
    %6201 = vmatmul.mubr.f32.gmra.mrb[0].mxu0 %v6200
    %v6202 = vpop.f32.mrb[0].mxu0
    %v6203 = vadd.f32 %v6120, %v6202
    %v6204 = vpop.f32.mrb[0].mxu0
    %6205 = vdwg.mxu0
    %6206 = vmatprep.subr.mxu0 0.0
    %v6207 = vand.u32 %v5768, 4294901760
    %6208 = vmatpush1.msra.mxu0 %v6207
    %6209 = vmatprep.subr.mxu0 0.0
    %v6210 = vand.u32 %v5774, 4294901760
    %6211 = vmatpush1.msra.mxu0 %v6210
    %6212 = vmatprep.subr.mxu0 0.0
    %6213 = vmatpush1.msra.mxu0 0.0
    %6214 = vmatprep.subr.mxu0 0.0
    %6215 = vmatpush1.msra.mxu0 0.0
    %6216 = vmatprep.subr.mxu0 0.0
    %6217 = vmatpush1.msra.mxu0 0.0
    %6218 = vmatprep.subr.mxu0 0.0
    %6219 = vmatpush1.msra.mxu0 0.0
    %6220 = vmatprep.subr.mxu0 0.0
    %6221 = vmatpush1.msra.mxu0 0.0
    %6222 = vmatprep.subr.mxu0 0.0
    %6223 = vmatpush1.msra.mxu0 0.0
    %6224 = vmatprep.subr.mxu0 0.0
    %6225 = vmatpush1.msra.mxu0 0.0
    %6226 = vmatprep.subr.mxu0 0.0
    %6227 = vmatpush1.msra.mxu0 0.0
    %6228 = vmatprep.subr.mxu0 0.0
    %6229 = vmatpush1.msra.mxu0 0.0
    %6230 = vmatprep.subr.mxu0 0.0
    %6231 = vmatpush1.msra.mxu0 0.0
    %6232 = vmatprep.subr.mxu0 0.0
    %6233 = vmatpush1.msra.mxu0 0.0
    %6234 = vmatprep.subr.mxu0 0.0
    %6235 = vmatpush1.msra.mxu0 0.0
    %6236 = vmatprep.subr.mxu0 0.0
    %6237 = vmatpush1.msra.mxu0 0.0
    %6238 = vmatprep.subr.mxu0 0.0
    %6239 = vmatpush1.msra.mxu0 0.0
    %6240 = vmatprep.subr.mxu0 0.0
    %6241 = vmatpush1.msra.mxu0 0.0
    %6242 = vmatprep.subr.mxu0 0.0
    %6243 = vmatpush1.msra.mxu0 0.0
    %6244 = vmatprep.subr.mxu0 0.0
    %6245 = vmatpush1.msra.mxu0 0.0
    %6246 = vmatprep.subr.mxu0 0.0
    %6247 = vmatpush1.msra.mxu0 0.0
    %6248 = vmatprep.subr.mxu0 0.0
    %6249 = vmatpush1.msra.mxu0 0.0
    %6250 = vmatprep.subr.mxu0 0.0
    %6251 = vmatpush1.msra.mxu0 0.0
    %6252 = vmatprep.subr.mxu0 0.0
    %6253 = vmatpush1.msra.mxu0 0.0
    %6254 = vmatprep.subr.mxu0 0.0
    %6255 = vmatpush1.msra.mxu0 0.0
    %6256 = vmatprep.subr.mxu0 0.0
    %6257 = vmatpush1.msra.mxu0 0.0
    %6258 = vmatprep.subr.mxu0 0.0
    %6259 = vmatpush1.msra.mxu0 0.0
    %6260 = vmatprep.subr.mxu0 0.0
    %6261 = vmatpush1.msra.mxu0 0.0
    %6262 = vmatprep.subr.mxu0 0.0
    %6263 = vmatpush1.msra.mxu0 0.0
    %6264 = vmatprep.subr.mxu0 0.0
    %6265 = vmatpush1.msra.mxu0 0.0
    %6266 = vmatprep.subr.mxu0 0.0
    %6267 = vmatpush1.msra.mxu0 0.0
    %6268 = vmatprep.subr.mxu0 0.0
    %6269 = vmatpush1.msra.mxu0 0.0
    %6270 = vmatprep.subr.mxu0 0.0
    %6271 = vmatpush1.msra.mxu0 0.0
    %6272 = vmatprep.mubr.f32.mxu0 0.0
    %v6273 = vand.u32 %v4727, 4294901760
    %6274 = vmatmul.mubr.f32.gmra.mrb[0].mxu0 %v6273
    %v6275 = vpop.f32.mrb[0].mxu0
    %v6276 = vadd.f32 %v6197, %v6275
    %v6277 = vpop.f32.mrb[0].mxu0
    %6278 = vmatprep.mubr.f32.mxu0 0.0
    %v6279 = vand.u32 %v4730, 4294901760
    %6280 = vmatmul.mubr.f32.gmra.mrb[0].mxu0 %v6279
    %v6281 = vpop.f32.mrb[0].mxu0
    %v6282 = vadd.f32 %v6203, %v6281
    %v6283 = vpop.f32.mrb[0].mxu0
    %6284 = vdwg.mxu0
    %v6285 = vmax.f32 %v6276, 0.0
    %v6286 = vmax.f32 %v6282, 0.0
    %v6287 = vld [vmem:[%s6] sm:$0xff]
    %v6288 = vld [vmem:[%s6 + $0x8] sm:$0xff]
    %v6289 = vld [vmem:[%s6 + $0x10] sm:$0xff]
    %v6290 = vld [vmem:[%s6 + $0x18] sm:$0xff]
    %v6291 = vld [vmem:[%s8] sm:$0x1]
    %v6293 = vlaneseq
    %v6294 = vshrl.u32 %v6293, 7
    %v6295 = vsub.s32 0, %v6294
    %v6296 = vrot.slane %v6291, %v6295
    %v6299 = vsel %vm1098, %v2141, 0
    %v6302 = vsel %vm1098, %v2142, 0
    %v6305 = vsel %vm1098, %v4213, 0
    %v6308 = vsel %vm1098, %v4214, 0
    %v6311 = vsel %vm1098, %v6285, 0
    %v6314 = vsel %vm1098, %v6286, 0
    %6316 = vmatprep.subr.mxu0 0.0
    %v6317 = vand.u32 %v6287, 4294901760
    %6318 = vmatpush1.msra.mxu0 %v6317
    %6319 = vmatprep.subr.mxu0 0.0
    %v6320 = vand.u32 %v6288, 4294901760
    %6321 = vmatpush1.msra.mxu0 %v6320
    %6322 = vmatprep.subr.mxu0 0.0
    %v6323 = vand.u32 %v6289, 4294901760
    %6324 = vmatpush1.msra.mxu0 %v6323
    %6325 = vmatprep.subr.mxu0 0.0
    %v6326 = vand.u32 %v6290, 4294901760
    %6327 = vmatpush1.msra.mxu0 %v6326
    %6328 = vmatprep.subr.mxu0 0.0
    %6329 = vmatpush1.msra.mxu0 0.0
    %6330 = vmatprep.subr.mxu0 0.0
    %6331 = vmatpush1.msra.mxu0 0.0
    %6332 = vmatprep.subr.mxu0 0.0
    %6333 = vmatpush1.msra.mxu0 0.0
    %6334 = vmatprep.subr.mxu0 0.0
    %6335 = vmatpush1.msra.mxu0 0.0
    %6336 = vmatprep.subr.mxu0 0.0
    %6337 = vmatpush1.msra.mxu0 0.0
    %6338 = vmatprep.subr.mxu0 0.0
    %6339 = vmatpush1.msra.mxu0 0.0
    %6340 = vmatprep.subr.mxu0 0.0
    %6341 = vmatpush1.msra.mxu0 0.0
    %6342 = vmatprep.subr.mxu0 0.0
    %6343 = vmatpush1.msra.mxu0 0.0
    %6344 = vmatprep.subr.mxu0 0.0
    %6345 = vmatpush1.msra.mxu0 0.0
    %6346 = vmatprep.subr.mxu0 0.0
    %6347 = vmatpush1.msra.mxu0 0.0
    %6348 = vmatprep.subr.mxu0 0.0
    %6349 = vmatpush1.msra.mxu0 0.0
    %6350 = vmatprep.subr.mxu0 0.0
    %6351 = vmatpush1.msra.mxu0 0.0
    %6352 = vmatprep.subr.mxu0 0.0
    %6353 = vmatpush1.msra.mxu0 0.0
    %6354 = vmatprep.subr.mxu0 0.0
    %6355 = vmatpush1.msra.mxu0 0.0
    %6356 = vmatprep.subr.mxu0 0.0
    %6357 = vmatpush1.msra.mxu0 0.0
    %6358 = vmatprep.subr.mxu0 0.0
    %6359 = vmatpush1.msra.mxu0 0.0
    %6360 = vmatprep.subr.mxu0 0.0
    %6361 = vmatpush1.msra.mxu0 0.0
    %6362 = vmatprep.subr.mxu0 0.0
    %6363 = vmatpush1.msra.mxu0 0.0
    %6364 = vmatprep.subr.mxu0 0.0
    %6365 = vmatpush1.msra.mxu0 0.0
    %6366 = vmatprep.subr.mxu0 0.0
    %6367 = vmatpush1.msra.mxu0 0.0
    %6368 = vmatprep.subr.mxu0 0.0
    %6369 = vmatpush1.msra.mxu0 0.0
    %6370 = vmatprep.subr.mxu0 0.0
    %6371 = vmatpush1.msra.mxu0 0.0
    %6372 = vmatprep.subr.mxu0 0.0
    %6373 = vmatpush1.msra.mxu0 0.0
    %6374 = vmatprep.subr.mxu0 0.0
    %6375 = vmatpush1.msra.mxu0 0.0
    %6376 = vmatprep.subr.mxu0 0.0
    %6377 = vmatpush1.msra.mxu0 0.0
    %6378 = vmatprep.subr.mxu0 0.0
    %6379 = vmatpush1.msra.mxu0 0.0
    %6380 = vmatprep.subr.mxu0 0.0
    %6381 = vmatpush1.msra.mxu0 0.0
    %6382 = vmatprep.subr.mxu0 0.0
    %6383 = vmatpush1.msra.mxu0 0.0
    %6384 = vmatprep.mubr.f32.mxu0 0.0
    %v6385 = vand.u32 %v6299, 4294901760
    %v6386 = vsub.f32 %v6299, %v6385
    %v6387 = vand.u32 %v6386, 4294901760
    %v6388 = vsub.f32 %v6386, %v6387
    %v6389 = vand.u32 %v6388, 4294901760
    %6390 = vmatmul.mubr.f32.gmra.mrb[0].mxu0 %v6389
    %v6391 = vpop.f32.mrb[0].mxu0
    %v6392 = vadd.f32 %v6296, %v6391
    %v6393 = vpop.f32.mrb[0].mxu0
    %6394 = vmatprep.mubr.f32.mxu0 0.0
    %v6395 = vand.u32 %v6302, 4294901760
    %v6396 = vsub.f32 %v6302, %v6395
    %v6397 = vand.u32 %v6396, 4294901760
    %v6398 = vsub.f32 %v6396, %v6397
    %v6399 = vand.u32 %v6398, 4294901760
    %6400 = vmatmul.mubr.f32.gmra.mrb[0].mxu0 %v6399
    %v6401 = vpop.f32.mrb[0].mxu0
    %v6402 = vadd.f32 %v6296, %v6401
    %v6403 = vpop.f32.mrb[0].mxu0
    %6404 = vmatprep.mubr.f32.mxu0 0.0
    %v6405 = vand.u32 %v6305, 4294901760
    %v6406 = vsub.f32 %v6305, %v6405
    %v6407 = vand.u32 %v6406, 4294901760
    %v6408 = vsub.f32 %v6406, %v6407
    %v6409 = vand.u32 %v6408, 4294901760
    %6410 = vmatmul.mubr.f32.gmra.mrb[0].mxu0 %v6409
    %v6411 = vpop.f32.mrb[0].mxu0
    %v6412 = vadd.f32 %v6296, %v6411
    %v6413 = vpop.f32.mrb[0].mxu0
    %6414 = vmatprep.mubr.f32.mxu0 0.0
    %v6415 = vand.u32 %v6308, 4294901760
    %v6416 = vsub.f32 %v6308, %v6415
    %v6417 = vand.u32 %v6416, 4294901760
    %v6418 = vsub.f32 %v6416, %v6417
    %v6419 = vand.u32 %v6418, 4294901760
    %6420 = vmatmul.mubr.f32.gmra.mrb[0].mxu0 %v6419
    %v6421 = vpop.f32.mrb[0].mxu0
    %v6422 = vadd.f32 %v6296, %v6421
    %v6423 = vpop.f32.mrb[0].mxu0
    %6424 = vmatprep.mubr.f32.mxu0 0.0
    %v6425 = vand.u32 %v6311, 4294901760
    %v6426 = vsub.f32 %v6311, %v6425
    %v6427 = vand.u32 %v6426, 4294901760
    %v6428 = vsub.f32 %v6426, %v6427
    %v6429 = vand.u32 %v6428, 4294901760
    %6430 = vmatmul.mubr.f32.gmra.mrb[0].mxu0 %v6429
    %v6431 = vpop.f32.mrb[0].mxu0
    %v6432 = vadd.f32 %v6296, %v6431
    %v6433 = vpop.f32.mrb[0].mxu0
    %6434 = vmatprep.mubr.f32.mxu0 0.0
    %v6435 = vand.u32 %v6314, 4294901760
    %v6436 = vsub.f32 %v6314, %v6435
    %v6437 = vand.u32 %v6436, 4294901760
    %v6438 = vsub.f32 %v6436, %v6437
    %v6439 = vand.u32 %v6438, 4294901760
    %6440 = vmatmul.mubr.f32.gmra.mrb[0].mxu0 %v6439
    %v6441 = vpop.f32.mrb[0].mxu0
    %v6442 = vadd.f32 %v6296, %v6441
    %v6443 = vpop.f32.mrb[0].mxu0
    %6444 = vdwg.mxu0
    %6445 = vmatprep.subr.mxu0 0.0
    %v6446 = vand.u32 %v6287, 4294901760
    %v6447 = vsub.f32 %v6287, %v6446
    %v6448 = vand.u32 %v6447, 4294901760
    %v6449 = vsub.f32 %v6447, %v6448
    %v6450 = vand.u32 %v6449, 4294901760
    %6451 = vmatpush1.msra.mxu0 %v6450
    %6452 = vmatprep.subr.mxu0 0.0
    %v6453 = vand.u32 %v6288, 4294901760
    %v6454 = vsub.f32 %v6288, %v6453
    %v6455 = vand.u32 %v6454, 4294901760
    %v6456 = vsub.f32 %v6454, %v6455
    %v6457 = vand.u32 %v6456, 4294901760
    %6458 = vmatpush1.msra.mxu0 %v6457
    %6459 = vmatprep.subr.mxu0 0.0
    %v6460 = vand.u32 %v6289, 4294901760
    %v6461 = vsub.f32 %v6289, %v6460
    %v6462 = vand.u32 %v6461, 4294901760
    %v6463 = vsub.f32 %v6461, %v6462
    %v6464 = vand.u32 %v6463, 4294901760
    %6465 = vmatpush1.msra.mxu0 %v6464
    %6466 = vmatprep.subr.mxu0 0.0
    %v6467 = vand.u32 %v6290, 4294901760
    %v6468 = vsub.f32 %v6290, %v6467
    %v6469 = vand.u32 %v6468, 4294901760
    %v6470 = vsub.f32 %v6468, %v6469
    %v6471 = vand.u32 %v6470, 4294901760
    %6472 = vmatpush1.msra.mxu0 %v6471
    %6473 = vmatprep.subr.mxu0 0.0
    %6474 = vmatpush1.msra.mxu0 0.0
    %6475 = vmatprep.subr.mxu0 0.0
    %6476 = vmatpush1.msra.mxu0 0.0
    %6477 = vmatprep.subr.mxu0 0.0
    %6478 = vmatpush1.msra.mxu0 0.0
    %6479 = vmatprep.subr.mxu0 0.0
    %6480 = vmatpush1.msra.mxu0 0.0
    %6481 = vmatprep.subr.mxu0 0.0
    %6482 = vmatpush1.msra.mxu0 0.0
    %6483 = vmatprep.subr.mxu0 0.0
    %6484 = vmatpush1.msra.mxu0 0.0
    %6485 = vmatprep.subr.mxu0 0.0
    %6486 = vmatpush1.msra.mxu0 0.0
    %6487 = vmatprep.subr.mxu0 0.0
    %6488 = vmatpush1.msra.mxu0 0.0
    %6489 = vmatprep.subr.mxu0 0.0
    %6490 = vmatpush1.msra.mxu0 0.0
    %6491 = vmatprep.subr.mxu0 0.0
    %6492 = vmatpush1.msra.mxu0 0.0
    %6493 = vmatprep.subr.mxu0 0.0
    %6494 = vmatpush1.msra.mxu0 0.0
    %6495 = vmatprep.subr.mxu0 0.0
    %6496 = vmatpush1.msra.mxu0 0.0
    %6497 = vmatprep.subr.mxu0 0.0
    %6498 = vmatpush1.msra.mxu0 0.0
    %6499 = vmatprep.subr.mxu0 0.0
    %6500 = vmatpush1.msra.mxu0 0.0
    %6501 = vmatprep.subr.mxu0 0.0
    %6502 = vmatpush1.msra.mxu0 0.0
    %6503 = vmatprep.subr.mxu0 0.0
    %6504 = vmatpush1.msra.mxu0 0.0
    %6505 = vmatprep.subr.mxu0 0.0
    %6506 = vmatpush1.msra.mxu0 0.0
    %6507 = vmatprep.subr.mxu0 0.0
    %6508 = vmatpush1.msra.mxu0 0.0
    %6509 = vmatprep.subr.mxu0 0.0
    %6510 = vmatpush1.msra.mxu0 0.0
    %6511 = vmatprep.subr.mxu0 0.0
    %6512 = vmatpush1.msra.mxu0 0.0
    %6513 = vmatprep.subr.mxu0 0.0
    %6514 = vmatpush1.msra.mxu0 0.0
    %6515 = vmatprep.subr.mxu0 0.0
    %6516 = vmatpush1.msra.mxu0 0.0
    %6517 = vmatprep.subr.mxu0 0.0
    %6518 = vmatpush1.msra.mxu0 0.0
    %6519 = vmatprep.subr.mxu0 0.0
    %6520 = vmatpush1.msra.mxu0 0.0
    %6521 = vmatprep.subr.mxu0 0.0
    %6522 = vmatpush1.msra.mxu0 0.0
    %6523 = vmatprep.subr.mxu0 0.0
    %6524 = vmatpush1.msra.mxu0 0.0
    %6525 = vmatprep.subr.mxu0 0.0
    %6526 = vmatpush1.msra.mxu0 0.0
    %6527 = vmatprep.subr.mxu0 0.0
    %6528 = vmatpush1.msra.mxu0 0.0
    %6529 = vmatprep.mubr.f32.mxu0 0.0
    %v6530 = vand.u32 %v6299, 4294901760
    %6531 = vmatmul.mubr.f32.gmra.mrb[0].mxu0 %v6530
    %v6532 = vpop.f32.mrb[0].mxu0
    %v6533 = vadd.f32 %v6392, %v6532
    %v6534 = vpop.f32.mrb[0].mxu0
    %6535 = vmatprep.mubr.f32.mxu0 0.0
    %v6536 = vand.u32 %v6302, 4294901760
    %6537 = vmatmul.mubr.f32.gmra.mrb[0].mxu0 %v6536
    %v6538 = vpop.f32.mrb[0].mxu0
    %v6539 = vadd.f32 %v6402, %v6538
    %v6540 = vpop.f32.mrb[0].mxu0
    %6541 = vmatprep.mubr.f32.mxu0 0.0
    %v6542 = vand.u32 %v6305, 4294901760
    %6543 = vmatmul.mubr.f32.gmra.mrb[0].mxu0 %v6542
    %v6544 = vpop.f32.mrb[0].mxu0
    %v6545 = vadd.f32 %v6412, %v6544
    %v6546 = vpop.f32.mrb[0].mxu0
    %6547 = vmatprep.mubr.f32.mxu0 0.0
    %v6548 = vand.u32 %v6308, 4294901760
    %6549 = vmatmul.mubr.f32.gmra.mrb[0].mxu0 %v6548
    %v6550 = vpop.f32.mrb[0].mxu0
    %v6551 = vadd.f32 %v6422, %v6550
    %v6552 = vpop.f32.mrb[0].mxu0
    %6553 = vmatprep.mubr.f32.mxu0 0.0
    %v6554 = vand.u32 %v6311, 4294901760
    %6555 = vmatmul.mubr.f32.gmra.mrb[0].mxu0 %v6554
    %v6556 = vpop.f32.mrb[0].mxu0
    %v6557 = vadd.f32 %v6432, %v6556
    %v6558 = vpop.f32.mrb[0].mxu0
    %6559 = vmatprep.mubr.f32.mxu0 0.0
    %v6560 = vand.u32 %v6314, 4294901760
    %6561 = vmatmul.mubr.f32.gmra.mrb[0].mxu0 %v6560
    %v6562 = vpop.f32.mrb[0].mxu0
    %v6563 = vadd.f32 %v6442, %v6562
    %v6564 = vpop.f32.mrb[0].mxu0
    %6565 = vdwg.mxu0
    %6566 = vmatprep.subr.mxu0 0.0
    %v6567 = vand.u32 %v6287, 4294901760
    %v6568 = vsub.f32 %v6287, %v6567
    %6569 = vmatpush1.msra.mxu0 %v6568
    %6570 = vmatprep.subr.mxu0 0.0
    %v6571 = vand.u32 %v6288, 4294901760
    %v6572 = vsub.f32 %v6288, %v6571
    %6573 = vmatpush1.msra.mxu0 %v6572
    %6574 = vmatprep.subr.mxu0 0.0
    %v6575 = vand.u32 %v6289, 4294901760
    %v6576 = vsub.f32 %v6289, %v6575
    %6577 = vmatpush1.msra.mxu0 %v6576
    %6578 = vmatprep.subr.mxu0 0.0
    %v6579 = vand.u32 %v6290, 4294901760
    %v6580 = vsub.f32 %v6290, %v6579
    %6581 = vmatpush1.msra.mxu0 %v6580
    %6582 = vmatprep.subr.mxu0 0.0
    %6583 = vmatpush1.msra.mxu0 0.0
    %6584 = vmatprep.subr.mxu0 0.0
    %6585 = vmatpush1.msra.mxu0 0.0
    %6586 = vmatprep.subr.mxu0 0.0
    %6587 = vmatpush1.msra.mxu0 0.0
    %6588 = vmatprep.subr.mxu0 0.0
    %6589 = vmatpush1.msra.mxu0 0.0
    %6590 = vmatprep.subr.mxu0 0.0
    %6591 = vmatpush1.msra.mxu0 0.0
    %6592 = vmatprep.subr.mxu0 0.0
    %6593 = vmatpush1.msra.mxu0 0.0
    %6594 = vmatprep.subr.mxu0 0.0
    %6595 = vmatpush1.msra.mxu0 0.0
    %6596 = vmatprep.subr.mxu0 0.0
    %6597 = vmatpush1.msra.mxu0 0.0
    %6598 = vmatprep.subr.mxu0 0.0
    %6599 = vmatpush1.msra.mxu0 0.0
    %6600 = vmatprep.subr.mxu0 0.0
    %6601 = vmatpush1.msra.mxu0 0.0
    %6602 = vmatprep.subr.mxu0 0.0
    %6603 = vmatpush1.msra.mxu0 0.0
    %6604 = vmatprep.subr.mxu0 0.0
    %6605 = vmatpush1.msra.mxu0 0.0
    %6606 = vmatprep.subr.mxu0 0.0
    %6607 = vmatpush1.msra.mxu0 0.0
    %6608 = vmatprep.subr.mxu0 0.0
    %6609 = vmatpush1.msra.mxu0 0.0
    %6610 = vmatprep.subr.mxu0 0.0
    %6611 = vmatpush1.msra.mxu0 0.0
    %6612 = vmatprep.subr.mxu0 0.0
    %6613 = vmatpush1.msra.mxu0 0.0
    %6614 = vmatprep.subr.mxu0 0.0
    %6615 = vmatpush1.msra.mxu0 0.0
    %6616 = vmatprep.subr.mxu0 0.0
    %6617 = vmatpush1.msra.mxu0 0.0
    %6618 = vmatprep.subr.mxu0 0.0
    %6619 = vmatpush1.msra.mxu0 0.0
    %6620 = vmatprep.subr.mxu0 0.0
    %6621 = vmatpush1.msra.mxu0 0.0
    %6622 = vmatprep.subr.mxu0 0.0
    %6623 = vmatpush1.msra.mxu0 0.0
    %6624 = vmatprep.subr.mxu0 0.0
    %6625 = vmatpush1.msra.mxu0 0.0
    %6626 = vmatprep.subr.mxu0 0.0
    %6627 = vmatpush1.msra.mxu0 0.0
    %6628 = vmatprep.subr.mxu0 0.0
    %6629 = vmatpush1.msra.mxu0 0.0
    %6630 = vmatprep.subr.mxu0 0.0
    %6631 = vmatpush1.msra.mxu0 0.0
    %6632 = vmatprep.subr.mxu0 0.0
    %6633 = vmatpush1.msra.mxu0 0.0
    %6634 = vmatprep.subr.mxu0 0.0
    %6635 = vmatpush1.msra.mxu0 0.0
    %6636 = vmatprep.subr.mxu0 0.0
    %6637 = vmatpush1.msra.mxu0 0.0
    %6638 = vmatprep.mubr.f32.mxu0 0.0
    %v6639 = vand.u32 %v6299, 4294901760
    %v6640 = vsub.f32 %v6299, %v6639
    %6641 = vmatmul.mubr.f32.gmra.mrb[0].mxu0 %v6640
    %v6642 = vpop.f32.mrb[0].mxu0
    %v6643 = vadd.f32 %v6533, %v6642
    %v6644 = vpop.f32.mrb[0].mxu0
    %6645 = vmatprep.mubr.f32.mxu0 0.0
    %v6646 = vand.u32 %v6302, 4294901760
    %v6647 = vsub.f32 %v6302, %v6646
    %6648 = vmatmul.mubr.f32.gmra.mrb[0].mxu0 %v6647
    %v6649 = vpop.f32.mrb[0].mxu0
    %v6650 = vadd.f32 %v6539, %v6649
    %v6651 = vpop.f32.mrb[0].mxu0
    %6652 = vmatprep.mubr.f32.mxu0 0.0
    %v6653 = vand.u32 %v6305, 4294901760
    %v6654 = vsub.f32 %v6305, %v6653
    %6655 = vmatmul.mubr.f32.gmra.mrb[0].mxu0 %v6654
    %v6656 = vpop.f32.mrb[0].mxu0
    %v6657 = vadd.f32 %v6545, %v6656
    %v6658 = vpop.f32.mrb[0].mxu0
    %6659 = vmatprep.mubr.f32.mxu0 0.0
    %v6660 = vand.u32 %v6308, 4294901760
    %v6661 = vsub.f32 %v6308, %v6660
    %6662 = vmatmul.mubr.f32.gmra.mrb[0].mxu0 %v6661
    %v6663 = vpop.f32.mrb[0].mxu0
    %v6664 = vadd.f32 %v6551, %v6663
    %v6665 = vpop.f32.mrb[0].mxu0
    %6666 = vmatprep.mubr.f32.mxu0 0.0
    %v6667 = vand.u32 %v6311, 4294901760
    %v6668 = vsub.f32 %v6311, %v6667
    %6669 = vmatmul.mubr.f32.gmra.mrb[0].mxu0 %v6668
    %v6670 = vpop.f32.mrb[0].mxu0
    %v6671 = vadd.f32 %v6557, %v6670
    %v6672 = vpop.f32.mrb[0].mxu0
    %6673 = vmatprep.mubr.f32.mxu0 0.0
    %v6674 = vand.u32 %v6314, 4294901760
    %v6675 = vsub.f32 %v6314, %v6674
    %6676 = vmatmul.mubr.f32.gmra.mrb[0].mxu0 %v6675
    %v6677 = vpop.f32.mrb[0].mxu0
    %v6678 = vadd.f32 %v6563, %v6677
    %v6679 = vpop.f32.mrb[0].mxu0
    %6680 = vdwg.mxu0
    %6681 = vmatprep.subr.mxu0 0.0
    %v6682 = vand.u32 %v6287, 4294901760
    %6683 = vmatpush1.msra.mxu0 %v6682
    %6684 = vmatprep.subr.mxu0 0.0
    %v6685 = vand.u32 %v6288, 4294901760
    %6686 = vmatpush1.msra.mxu0 %v6685
    %6687 = vmatprep.subr.mxu0 0.0
    %v6688 = vand.u32 %v6289, 4294901760
    %6689 = vmatpush1.msra.mxu0 %v6688
    %6690 = vmatprep.subr.mxu0 0.0
    %v6691 = vand.u32 %v6290, 4294901760
    %6692 = vmatpush1.msra.mxu0 %v6691
    %6693 = vmatprep.subr.mxu0 0.0
    %6694 = vmatpush1.msra.mxu0 0.0
    %6695 = vmatprep.subr.mxu0 0.0
    %6696 = vmatpush1.msra.mxu0 0.0
    %6697 = vmatprep.subr.mxu0 0.0
    %6698 = vmatpush1.msra.mxu0 0.0
    %6699 = vmatprep.subr.mxu0 0.0
    %6700 = vmatpush1.msra.mxu0 0.0
    %6701 = vmatprep.subr.mxu0 0.0
    %6702 = vmatpush1.msra.mxu0 0.0
    %6703 = vmatprep.subr.mxu0 0.0
    %6704 = vmatpush1.msra.mxu0 0.0
    %6705 = vmatprep.subr.mxu0 0.0
    %6706 = vmatpush1.msra.mxu0 0.0
    %6707 = vmatprep.subr.mxu0 0.0
    %6708 = vmatpush1.msra.mxu0 0.0
    %6709 = vmatprep.subr.mxu0 0.0
    %6710 = vmatpush1.msra.mxu0 0.0
    %6711 = vmatprep.subr.mxu0 0.0
    %6712 = vmatpush1.msra.mxu0 0.0
    %6713 = vmatprep.subr.mxu0 0.0
    %6714 = vmatpush1.msra.mxu0 0.0
    %6715 = vmatprep.subr.mxu0 0.0
    %6716 = vmatpush1.msra.mxu0 0.0
    %6717 = vmatprep.subr.mxu0 0.0
    %6718 = vmatpush1.msra.mxu0 0.0
    %6719 = vmatprep.subr.mxu0 0.0
    %6720 = vmatpush1.msra.mxu0 0.0
    %6721 = vmatprep.subr.mxu0 0.0
    %6722 = vmatpush1.msra.mxu0 0.0
    %6723 = vmatprep.subr.mxu0 0.0
    %6724 = vmatpush1.msra.mxu0 0.0
    %6725 = vmatprep.subr.mxu0 0.0
    %6726 = vmatpush1.msra.mxu0 0.0
    %6727 = vmatprep.subr.mxu0 0.0
    %6728 = vmatpush1.msra.mxu0 0.0
    %6729 = vmatprep.subr.mxu0 0.0
    %6730 = vmatpush1.msra.mxu0 0.0
    %6731 = vmatprep.subr.mxu0 0.0
    %6732 = vmatpush1.msra.mxu0 0.0
    %6733 = vmatprep.subr.mxu0 0.0
    %6734 = vmatpush1.msra.mxu0 0.0
    %6735 = vmatprep.subr.mxu0 0.0
    %6736 = vmatpush1.msra.mxu0 0.0
    %6737 = vmatprep.subr.mxu0 0.0
    %6738 = vmatpush1.msra.mxu0 0.0
    %6739 = vmatprep.subr.mxu0 0.0
    %6740 = vmatpush1.msra.mxu0 0.0
    %6741 = vmatprep.subr.mxu0 0.0
    %6742 = vmatpush1.msra.mxu0 0.0
    %6743 = vmatprep.subr.mxu0 0.0
    %6744 = vmatpush1.msra.mxu0 0.0
    %6745 = vmatprep.subr.mxu0 0.0
    %6746 = vmatpush1.msra.mxu0 0.0
    %6747 = vmatprep.subr.mxu0 0.0
    %6748 = vmatpush1.msra.mxu0 0.0
    %6749 = vmatprep.mubr.f32.mxu0 0.0
    %v6750 = vand.u32 %v6299, 4294901760
    %v6751 = vsub.f32 %v6299, %v6750
    %v6752 = vand.u32 %v6751, 4294901760
    %6753 = vmatmul.mubr.f32.gmra.mrb[0].mxu0 %v6752
    %v6754 = vpop.f32.mrb[0].mxu0
    %v6755 = vadd.f32 %v6643, %v6754
    %v6756 = vpop.f32.mrb[0].mxu0
    %6757 = vmatprep.mubr.f32.mxu0 0.0
    %v6758 = vand.u32 %v6302, 4294901760
    %v6759 = vsub.f32 %v6302, %v6758
    %v6760 = vand.u32 %v6759, 4294901760
    %6761 = vmatmul.mubr.f32.gmra.mrb[0].mxu0 %v6760
    %v6762 = vpop.f32.mrb[0].mxu0
    %v6763 = vadd.f32 %v6650, %v6762
    %v6764 = vpop.f32.mrb[0].mxu0
    %6765 = vmatprep.mubr.f32.mxu0 0.0
    %v6766 = vand.u32 %v6305, 4294901760
    %v6767 = vsub.f32 %v6305, %v6766
    %v6768 = vand.u32 %v6767, 4294901760
    %6769 = vmatmul.mubr.f32.gmra.mrb[0].mxu0 %v6768
    %v6770 = vpop.f32.mrb[0].mxu0
    %v6771 = vadd.f32 %v6657, %v6770
    %v6772 = vpop.f32.mrb[0].mxu0
    %6773 = vmatprep.mubr.f32.mxu0 0.0
    %v6774 = vand.u32 %v6308, 4294901760
    %v6775 = vsub.f32 %v6308, %v6774
    %v6776 = vand.u32 %v6775, 4294901760
    %6777 = vmatmul.mubr.f32.gmra.mrb[0].mxu0 %v6776
    %v6778 = vpop.f32.mrb[0].mxu0
    %v6779 = vadd.f32 %v6664, %v6778
    %v6780 = vpop.f32.mrb[0].mxu0
    %6781 = vmatprep.mubr.f32.mxu0 0.0
    %v6782 = vand.u32 %v6311, 4294901760
    %v6783 = vsub.f32 %v6311, %v6782
    %v6784 = vand.u32 %v6783, 4294901760
    %6785 = vmatmul.mubr.f32.gmra.mrb[0].mxu0 %v6784
    %v6786 = vpop.f32.mrb[0].mxu0
    %v6787 = vadd.f32 %v6671, %v6786
    %v6788 = vpop.f32.mrb[0].mxu0
    %6789 = vmatprep.mubr.f32.mxu0 0.0
    %v6790 = vand.u32 %v6314, 4294901760
    %v6791 = vsub.f32 %v6314, %v6790
    %v6792 = vand.u32 %v6791, 4294901760
    %6793 = vmatmul.mubr.f32.gmra.mrb[0].mxu0 %v6792
    %v6794 = vpop.f32.mrb[0].mxu0
    %v6795 = vadd.f32 %v6678, %v6794
    %v6796 = vpop.f32.mrb[0].mxu0
    %6797 = vdwg.mxu0
    %6798 = vmatprep.subr.mxu0 0.0
    %v6799 = vand.u32 %v6287, 4294901760
    %v6800 = vsub.f32 %v6287, %v6799
    %v6801 = vand.u32 %v6800, 4294901760
    %6802 = vmatpush1.msra.mxu0 %v6801
    %6803 = vmatprep.subr.mxu0 0.0
    %v6804 = vand.u32 %v6288, 4294901760
    %v6805 = vsub.f32 %v6288, %v6804
    %v6806 = vand.u32 %v6805, 4294901760
    %6807 = vmatpush1.msra.mxu0 %v6806
    %6808 = vmatprep.subr.mxu0 0.0
    %v6809 = vand.u32 %v6289, 4294901760
    %v6810 = vsub.f32 %v6289, %v6809
    %v6811 = vand.u32 %v6810, 4294901760
    %6812 = vmatpush1.msra.mxu0 %v6811
    %6813 = vmatprep.subr.mxu0 0.0
    %v6814 = vand.u32 %v6290, 4294901760
    %v6815 = vsub.f32 %v6290, %v6814
    %v6816 = vand.u32 %v6815, 4294901760
    %6817 = vmatpush1.msra.mxu0 %v6816
    %6818 = vmatprep.subr.mxu0 0.0
    %6819 = vmatpush1.msra.mxu0 0.0
    %6820 = vmatprep.subr.mxu0 0.0
    %6821 = vmatpush1.msra.mxu0 0.0
    %6822 = vmatprep.subr.mxu0 0.0
    %6823 = vmatpush1.msra.mxu0 0.0
    %6824 = vmatprep.subr.mxu0 0.0
    %6825 = vmatpush1.msra.mxu0 0.0
    %6826 = vmatprep.subr.mxu0 0.0
    %6827 = vmatpush1.msra.mxu0 0.0
    %6828 = vmatprep.subr.mxu0 0.0
    %6829 = vmatpush1.msra.mxu0 0.0
    %6830 = vmatprep.subr.mxu0 0.0
    %6831 = vmatpush1.msra.mxu0 0.0
    %6832 = vmatprep.subr.mxu0 0.0
    %6833 = vmatpush1.msra.mxu0 0.0
    %6834 = vmatprep.subr.mxu0 0.0
    %6835 = vmatpush1.msra.mxu0 0.0
    %6836 = vmatprep.subr.mxu0 0.0
    %6837 = vmatpush1.msra.mxu0 0.0
    %6838 = vmatprep.subr.mxu0 0.0
    %6839 = vmatpush1.msra.mxu0 0.0
    %6840 = vmatprep.subr.mxu0 0.0
    %6841 = vmatpush1.msra.mxu0 0.0
    %6842 = vmatprep.subr.mxu0 0.0
    %6843 = vmatpush1.msra.mxu0 0.0
    %6844 = vmatprep.subr.mxu0 0.0
    %6845 = vmatpush1.msra.mxu0 0.0
    %6846 = vmatprep.subr.mxu0 0.0
    %6847 = vmatpush1.msra.mxu0 0.0
    %6848 = vmatprep.subr.mxu0 0.0
    %6849 = vmatpush1.msra.mxu0 0.0
    %6850 = vmatprep.subr.mxu0 0.0
    %6851 = vmatpush1.msra.mxu0 0.0
    %6852 = vmatprep.subr.mxu0 0.0
    %6853 = vmatpush1.msra.mxu0 0.0
    %6854 = vmatprep.subr.mxu0 0.0
    %6855 = vmatpush1.msra.mxu0 0.0
    %6856 = vmatprep.subr.mxu0 0.0
    %6857 = vmatpush1.msra.mxu0 0.0
    %6858 = vmatprep.subr.mxu0 0.0
    %6859 = vmatpush1.msra.mxu0 0.0
    %6860 = vmatprep.subr.mxu0 0.0
    %6861 = vmatpush1.msra.mxu0 0.0
    %6862 = vmatprep.subr.mxu0 0.0
    %6863 = vmatpush1.msra.mxu0 0.0
    %6864 = vmatprep.subr.mxu0 0.0
    %6865 = vmatpush1.msra.mxu0 0.0
    %6866 = vmatprep.subr.mxu0 0.0
    %6867 = vmatpush1.msra.mxu0 0.0
    %6868 = vmatprep.subr.mxu0 0.0
    %6869 = vmatpush1.msra.mxu0 0.0
    %6870 = vmatprep.subr.mxu0 0.0
    %6871 = vmatpush1.msra.mxu0 0.0
    %6872 = vmatprep.subr.mxu0 0.0
    %6873 = vmatpush1.msra.mxu0 0.0
    %6874 = vmatprep.mubr.f32.mxu0 0.0
    %v6875 = vand.u32 %v6299, 4294901760
    %6876 = vmatmul.mubr.f32.gmra.mrb[0].mxu0 %v6875
    %v6877 = vpop.f32.mrb[0].mxu0
    %v6878 = vadd.f32 %v6755, %v6877
    %v6879 = vpop.f32.mrb[0].mxu0
    %6880 = vmatprep.mubr.f32.mxu0 0.0
    %v6881 = vand.u32 %v6302, 4294901760
    %6882 = vmatmul.mubr.f32.gmra.mrb[0].mxu0 %v6881
    %v6883 = vpop.f32.mrb[0].mxu0
    %v6884 = vadd.f32 %v6763, %v6883
    %v6885 = vpop.f32.mrb[0].mxu0
    %6886 = vmatprep.mubr.f32.mxu0 0.0
    %v6887 = vand.u32 %v6305, 4294901760
    %6888 = vmatmul.mubr.f32.gmra.mrb[0].mxu0 %v6887
    %v6889 = vpop.f32.mrb[0].mxu0
    %v6890 = vadd.f32 %v6771, %v6889
    %v6891 = vpop.f32.mrb[0].mxu0
    %6892 = vmatprep.mubr.f32.mxu0 0.0
    %v6893 = vand.u32 %v6308, 4294901760
    %6894 = vmatmul.mubr.f32.gmra.mrb[0].mxu0 %v6893
    %v6895 = vpop.f32.mrb[0].mxu0
    %v6896 = vadd.f32 %v6779, %v6895
    %v6897 = vpop.f32.mrb[0].mxu0
    %6898 = vmatprep.mubr.f32.mxu0 0.0
    %v6899 = vand.u32 %v6311, 4294901760
    %6900 = vmatmul.mubr.f32.gmra.mrb[0].mxu0 %v6899
    %v6901 = vpop.f32.mrb[0].mxu0
    %v6902 = vadd.f32 %v6787, %v6901
    %v6903 = vpop.f32.mrb[0].mxu0
    %6904 = vmatprep.mubr.f32.mxu0 0.0
    %v6905 = vand.u32 %v6314, 4294901760
    %6906 = vmatmul.mubr.f32.gmra.mrb[0].mxu0 %v6905
    %v6907 = vpop.f32.mrb[0].mxu0
    %v6908 = vadd.f32 %v6795, %v6907
    %v6909 = vpop.f32.mrb[0].mxu0
    %6910 = vdwg.mxu0
    %6911 = vmatprep.subr.mxu0 0.0
    %v6912 = vand.u32 %v6287, 4294901760
    %6913 = vmatpush1.msra.mxu0 %v6912
    %6914 = vmatprep.subr.mxu0 0.0
    %v6915 = vand.u32 %v6288, 4294901760
    %6916 = vmatpush1.msra.mxu0 %v6915
    %6917 = vmatprep.subr.mxu0 0.0
    %v6918 = vand.u32 %v6289, 4294901760
    %6919 = vmatpush1.msra.mxu0 %v6918
    %6920 = vmatprep.subr.mxu0 0.0
    %v6921 = vand.u32 %v6290, 4294901760
    %6922 = vmatpush1.msra.mxu0 %v6921
    %6923 = vmatprep.subr.mxu0 0.0
    %6924 = vmatpush1.msra.mxu0 0.0
    %6925 = vmatprep.subr.mxu0 0.0
    %6926 = vmatpush1.msra.mxu0 0.0
    %6927 = vmatprep.subr.mxu0 0.0
    %6928 = vmatpush1.msra.mxu0 0.0
    %6929 = vmatprep.subr.mxu0 0.0
    %6930 = vmatpush1.msra.mxu0 0.0
    %6931 = vmatprep.subr.mxu0 0.0
    %6932 = vmatpush1.msra.mxu0 0.0
    %6933 = vmatprep.subr.mxu0 0.0
    %6934 = vmatpush1.msra.mxu0 0.0
    %6935 = vmatprep.subr.mxu0 0.0
    %6936 = vmatpush1.msra.mxu0 0.0
    %6937 = vmatprep.subr.mxu0 0.0
    %6938 = vmatpush1.msra.mxu0 0.0
    %6939 = vmatprep.subr.mxu0 0.0
    %6940 = vmatpush1.msra.mxu0 0.0
    %6941 = vmatprep.subr.mxu0 0.0
    %6942 = vmatpush1.msra.mxu0 0.0
    %6943 = vmatprep.subr.mxu0 0.0
    %6944 = vmatpush1.msra.mxu0 0.0
    %6945 = vmatprep.subr.mxu0 0.0
    %6946 = vmatpush1.msra.mxu0 0.0
    %6947 = vmatprep.subr.mxu0 0.0
    %6948 = vmatpush1.msra.mxu0 0.0
    %6949 = vmatprep.subr.mxu0 0.0
    %6950 = vmatpush1.msra.mxu0 0.0
    %6951 = vmatprep.subr.mxu0 0.0
    %6952 = vmatpush1.msra.mxu0 0.0
    %6953 = vmatprep.subr.mxu0 0.0
    %6954 = vmatpush1.msra.mxu0 0.0
    %6955 = vmatprep.subr.mxu0 0.0
    %6956 = vmatpush1.msra.mxu0 0.0
    %6957 = vmatprep.subr.mxu0 0.0
    %6958 = vmatpush1.msra.mxu0 0.0
    %6959 = vmatprep.subr.mxu0 0.0
    %6960 = vmatpush1.msra.mxu0 0.0
    %6961 = vmatprep.subr.mxu0 0.0
    %6962 = vmatpush1.msra.mxu0 0.0
    %6963 = vmatprep.subr.mxu0 0.0
    %6964 = vmatpush1.msra.mxu0 0.0
    %6965 = vmatprep.subr.mxu0 0.0
    %6966 = vmatpush1.msra.mxu0 0.0
    %6967 = vmatprep.subr.mxu0 0.0
    %6968 = vmatpush1.msra.mxu0 0.0
    %6969 = vmatprep.subr.mxu0 0.0
    %6970 = vmatpush1.msra.mxu0 0.0
    %6971 = vmatprep.subr.mxu0 0.0
    %6972 = vmatpush1.msra.mxu0 0.0
    %6973 = vmatprep.subr.mxu0 0.0
    %6974 = vmatpush1.msra.mxu0 0.0
    %6975 = vmatprep.subr.mxu0 0.0
    %6976 = vmatpush1.msra.mxu0 0.0
    %6977 = vmatprep.subr.mxu0 0.0
    %6978 = vmatpush1.msra.mxu0 0.0
    %6979 = vmatprep.mubr.f32.mxu0 0.0
    %v6980 = vand.u32 %v6299, 4294901760
    %6981 = vmatmul.mubr.f32.gmra.mrb[0].mxu0 %v6980
    %v6982 = vpop.f32.mrb[0].mxu0
    %v6983 = vadd.f32 %v6878, %v6982
    %v6984 = vpop.f32.mrb[0].mxu0
    %6985 = vmatprep.mubr.f32.mxu0 0.0
    %v6986 = vand.u32 %v6302, 4294901760
    %6987 = vmatmul.mubr.f32.gmra.mrb[0].mxu0 %v6986
    %v6988 = vpop.f32.mrb[0].mxu0
    %v6989 = vadd.f32 %v6884, %v6988
    %v6990 = vpop.f32.mrb[0].mxu0
    %6991 = vmatprep.mubr.f32.mxu0 0.0
    %v6992 = vand.u32 %v6305, 4294901760
    %6993 = vmatmul.mubr.f32.gmra.mrb[0].mxu0 %v6992
    %v6994 = vpop.f32.mrb[0].mxu0
    %v6995 = vadd.f32 %v6890, %v6994
    %v6996 = vpop.f32.mrb[0].mxu0
    %6997 = vmatprep.mubr.f32.mxu0 0.0
    %v6998 = vand.u32 %v6308, 4294901760
    %6999 = vmatmul.mubr.f32.gmra.mrb[0].mxu0 %v6998
    %v7000 = vpop.f32.mrb[0].mxu0
    %v7001 = vadd.f32 %v6896, %v7000
    %v7002 = vpop.f32.mrb[0].mxu0
    %7003 = vmatprep.mubr.f32.mxu0 0.0
    %v7004 = vand.u32 %v6311, 4294901760
    %7005 = vmatmul.mubr.f32.gmra.mrb[0].mxu0 %v7004
    %v7006 = vpop.f32.mrb[0].mxu0
    %v7007 = vadd.f32 %v6902, %v7006
    %v7008 = vpop.f32.mrb[0].mxu0
    %7009 = vmatprep.mubr.f32.mxu0 0.0
    %v7010 = vand.u32 %v6314, 4294901760
    %7011 = vmatmul.mubr.f32.gmra.mrb[0].mxu0 %v7010
    %v7012 = vpop.f32.mrb[0].mxu0
    %v7013 = vadd.f32 %v6908, %v7012
    %v7014 = vpop.f32.mrb[0].mxu0
    %7015 = vdwg.mxu0
    %v7016 = vlaneseq
    %v7017 = vand.u32 %v7016, 127
    %vm7018 = vcmp.ge.s32.totalorder %v7017, 64
    %vm7019 = vcmp.lt.s32.totalorder %v7017, 96
    %vm7020 = vmand %vm7018, %vm7019
    %v7021 = vsel %vm7020, 2.0, 1.0
    %v7022 = vsel %vm7020, -1.0, 0.0
    %v7023 = vld [vmem:[#allocation7] sm:$0xff]
    %v7024 = vld [vmem:[#allocation7 + $0x8] sm:$0xff]
    %v7025 = vld [vmem:[#allocation7 + $0x10] sm:$0xff]
    %v7026 = vld [vmem:[#allocation7 + $0x18] sm:$0xff]
    %v7028 = vsel %vm1098, 0.0, 0
    %7030 = vmatprep.subr.mxu0 0.0
    %v7031 = vand.u32 %v7023, 4294901760
    %7032 = vmatpush1.msra.mxu0 %v7031
    %7033 = vmatprep.subr.mxu0 0.0
    %v7034 = vand.u32 %v7024, 4294901760
    %7035 = vmatpush1.msra.mxu0 %v7034
    %7036 = vmatprep.subr.mxu0 0.0
    %v7037 = vand.u32 %v7025, 4294901760
    %7038 = vmatpush1.msra.mxu0 %v7037
    %7039 = vmatprep.subr.mxu0 0.0
    %v7040 = vand.u32 %v7026, 4294901760
    %7041 = vmatpush1.msra.mxu0 %v7040
    %7042 = vmatprep.subr.mxu0 0.0
    %7043 = vmatpush1.msra.mxu0 0.0
    %7044 = vmatprep.subr.mxu0 0.0
    %7045 = vmatpush1.msra.mxu0 0.0
    %7046 = vmatprep.subr.mxu0 0.0
    %7047 = vmatpush1.msra.mxu0 0.0
    %7048 = vmatprep.subr.mxu0 0.0
    %7049 = vmatpush1.msra.mxu0 0.0
    %7050 = vmatprep.subr.mxu0 0.0
    %7051 = vmatpush1.msra.mxu0 0.0
    %7052 = vmatprep.subr.mxu0 0.0
    %7053 = vmatpush1.msra.mxu0 0.0
    %7054 = vmatprep.subr.mxu0 0.0
    %7055 = vmatpush1.msra.mxu0 0.0
    %7056 = vmatprep.subr.mxu0 0.0
    %7057 = vmatpush1.msra.mxu0 0.0
    %7058 = vmatprep.subr.mxu0 0.0
    %7059 = vmatpush1.msra.mxu0 0.0
    %7060 = vmatprep.subr.mxu0 0.0
    %7061 = vmatpush1.msra.mxu0 0.0
    %7062 = vmatprep.subr.mxu0 0.0
    %7063 = vmatpush1.msra.mxu0 0.0
    %7064 = vmatprep.subr.mxu0 0.0
    %7065 = vmatpush1.msra.mxu0 0.0
    %7066 = vmatprep.subr.mxu0 0.0
    %7067 = vmatpush1.msra.mxu0 0.0
    %7068 = vmatprep.subr.mxu0 0.0
    %7069 = vmatpush1.msra.mxu0 0.0
    %7070 = vmatprep.subr.mxu0 0.0
    %7071 = vmatpush1.msra.mxu0 0.0
    %7072 = vmatprep.subr.mxu0 0.0
    %7073 = vmatpush1.msra.mxu0 0.0
    %7074 = vmatprep.subr.mxu0 0.0
    %7075 = vmatpush1.msra.mxu0 0.0
    %7076 = vmatprep.subr.mxu0 0.0
    %7077 = vmatpush1.msra.mxu0 0.0
    %7078 = vmatprep.subr.mxu0 0.0
    %7079 = vmatpush1.msra.mxu0 0.0
    %7080 = vmatprep.subr.mxu0 0.0
    %7081 = vmatpush1.msra.mxu0 0.0
    %7082 = vmatprep.subr.mxu0 0.0
    %7083 = vmatpush1.msra.mxu0 0.0
    %7084 = vmatprep.subr.mxu0 0.0
    %7085 = vmatpush1.msra.mxu0 0.0
    %7086 = vmatprep.subr.mxu0 0.0
    %7087 = vmatpush1.msra.mxu0 0.0
    %7088 = vmatprep.subr.mxu0 0.0
    %7089 = vmatpush1.msra.mxu0 0.0
    %7090 = vmatprep.subr.mxu0 0.0
    %7091 = vmatpush1.msra.mxu0 0.0
    %7092 = vmatprep.subr.mxu0 0.0
    %7093 = vmatpush1.msra.mxu0 0.0
    %7094 = vmatprep.subr.mxu0 0.0
    %7095 = vmatpush1.msra.mxu0 0.0
    %7096 = vmatprep.subr.mxu0 0.0
    %7097 = vmatpush1.msra.mxu0 0.0
    %7098 = vmatprep.mubr.f32.mxu0 0.0
    %v7099 = vand.u32 %v7028, 4294901760
    %v7100 = vsub.f32 %v7028, %v7099
    %v7101 = vand.u32 %v7100, 4294901760
    %v7102 = vsub.f32 %v7100, %v7101
    %v7103 = vand.u32 %v7102, 4294901760
    %7104 = vmatmul.mubr.f32.gmra.mrb[0].mxu0 %v7103
    %v7105 = vpop.f32.mrb[0].mxu0
    %v7106 = vadd.f32 0.0, %v7105
    %v7107 = vpop.f32.mrb[0].mxu0
    %7108 = vmatprep.mubr.f32.mxu0 0.0
    %v7109 = vand.u32 %v7028, 4294901760
    %v7110 = vsub.f32 %v7028, %v7109
    %v7111 = vand.u32 %v7110, 4294901760
    %v7112 = vsub.f32 %v7110, %v7111
    %v7113 = vand.u32 %v7112, 4294901760
    %7114 = vmatmul.mubr.f32.gmra.mrb[0].mxu0 %v7113
    %v7115 = vpop.f32.mrb[0].mxu0
    %v7116 = vadd.f32 0.0, %v7115
    %v7117 = vpop.f32.mrb[0].mxu0
    %7118 = vdwg.mxu0
    %7119 = vmatprep.subr.mxu0 0.0
    %v7120 = vand.u32 %v7023, 4294901760
    %v7121 = vsub.f32 %v7023, %v7120
    %v7122 = vand.u32 %v7121, 4294901760
    %v7123 = vsub.f32 %v7121, %v7122
    %v7124 = vand.u32 %v7123, 4294901760
    %7125 = vmatpush1.msra.mxu0 %v7124
    %7126 = vmatprep.subr.mxu0 0.0
    %v7127 = vand.u32 %v7024, 4294901760
    %v7128 = vsub.f32 %v7024, %v7127
    %v7129 = vand.u32 %v7128, 4294901760
    %v7130 = vsub.f32 %v7128, %v7129
    %v7131 = vand.u32 %v7130, 4294901760
    %7132 = vmatpush1.msra.mxu0 %v7131
    %7133 = vmatprep.subr.mxu0 0.0
    %v7134 = vand.u32 %v7025, 4294901760
    %v7135 = vsub.f32 %v7025, %v7134
    %v7136 = vand.u32 %v7135, 4294901760
    %v7137 = vsub.f32 %v7135, %v7136
    %v7138 = vand.u32 %v7137, 4294901760
    %7139 = vmatpush1.msra.mxu0 %v7138
    %7140 = vmatprep.subr.mxu0 0.0
    %v7141 = vand.u32 %v7026, 4294901760
    %v7142 = vsub.f32 %v7026, %v7141
    %v7143 = vand.u32 %v7142, 4294901760
    %v7144 = vsub.f32 %v7142, %v7143
    %v7145 = vand.u32 %v7144, 4294901760
    %7146 = vmatpush1.msra.mxu0 %v7145
    %7147 = vmatprep.subr.mxu0 0.0
    %7148 = vmatpush1.msra.mxu0 0.0
    %7149 = vmatprep.subr.mxu0 0.0
    %7150 = vmatpush1.msra.mxu0 0.0
    %7151 = vmatprep.subr.mxu0 0.0
    %7152 = vmatpush1.msra.mxu0 0.0
    %7153 = vmatprep.subr.mxu0 0.0
    %7154 = vmatpush1.msra.mxu0 0.0
    %7155 = vmatprep.subr.mxu0 0.0
    %7156 = vmatpush1.msra.mxu0 0.0
    %7157 = vmatprep.subr.mxu0 0.0
    %7158 = vmatpush1.msra.mxu0 0.0
    %7159 = vmatprep.subr.mxu0 0.0
    %7160 = vmatpush1.msra.mxu0 0.0
    %7161 = vmatprep.subr.mxu0 0.0
    %7162 = vmatpush1.msra.mxu0 0.0
    %7163 = vmatprep.subr.mxu0 0.0
    %7164 = vmatpush1.msra.mxu0 0.0
    %7165 = vmatprep.subr.mxu0 0.0
    %7166 = vmatpush1.msra.mxu0 0.0
    %7167 = vmatprep.subr.mxu0 0.0
    %7168 = vmatpush1.msra.mxu0 0.0
    %7169 = vmatprep.subr.mxu0 0.0
    %7170 = vmatpush1.msra.mxu0 0.0
    %7171 = vmatprep.subr.mxu0 0.0
    %7172 = vmatpush1.msra.mxu0 0.0
    %7173 = vmatprep.subr.mxu0 0.0
    %7174 = vmatpush1.msra.mxu0 0.0
    %7175 = vmatprep.subr.mxu0 0.0
    %7176 = vmatpush1.msra.mxu0 0.0
    %7177 = vmatprep.subr.mxu0 0.0
    %7178 = vmatpush1.msra.mxu0 0.0
    %7179 = vmatprep.subr.mxu0 0.0
    %7180 = vmatpush1.msra.mxu0 0.0
    %7181 = vmatprep.subr.mxu0 0.0
    %7182 = vmatpush1.msra.mxu0 0.0
    %7183 = vmatprep.subr.mxu0 0.0
    %7184 = vmatpush1.msra.mxu0 0.0
    %7185 = vmatprep.subr.mxu0 0.0
    %7186 = vmatpush1.msra.mxu0 0.0
    %7187 = vmatprep.subr.mxu0 0.0
    %7188 = vmatpush1.msra.mxu0 0.0
    %7189 = vmatprep.subr.mxu0 0.0
    %7190 = vmatpush1.msra.mxu0 0.0
    %7191 = vmatprep.subr.mxu0 0.0
    %7192 = vmatpush1.msra.mxu0 0.0
    %7193 = vmatprep.subr.mxu0 0.0
    %7194 = vmatpush1.msra.mxu0 0.0
    %7195 = vmatprep.subr.mxu0 0.0
    %7196 = vmatpush1.msra.mxu0 0.0
    %7197 = vmatprep.subr.mxu0 0.0
    %7198 = vmatpush1.msra.mxu0 0.0
    %7199 = vmatprep.subr.mxu0 0.0
    %7200 = vmatpush1.msra.mxu0 0.0
    %7201 = vmatprep.subr.mxu0 0.0
    %7202 = vmatpush1.msra.mxu0 0.0
    %7203 = vmatprep.mubr.f32.mxu0 0.0
    %v7204 = vand.u32 %v7028, 4294901760
    %7205 = vmatmul.mubr.f32.gmra.mrb[0].mxu0 %v7204
    %v7206 = vpop.f32.mrb[0].mxu0
    %v7207 = vadd.f32 %v7106, %v7206
    %v7208 = vpop.f32.mrb[0].mxu0
    %7209 = vmatprep.mubr.f32.mxu0 0.0
    %v7210 = vand.u32 %v7028, 4294901760
    %7211 = vmatmul.mubr.f32.gmra.mrb[0].mxu0 %v7210
    %v7212 = vpop.f32.mrb[0].mxu0
    %v7213 = vadd.f32 %v7116, %v7212
    %v7214 = vpop.f32.mrb[0].mxu0
    %7215 = vdwg.mxu0
    %7216 = vmatprep.subr.mxu0 0.0
    %v7217 = vand.u32 %v7023, 4294901760
    %v7218 = vsub.f32 %v7023, %v7217
    %7219 = vmatpush1.msra.mxu0 %v7218
    %7220 = vmatprep.subr.mxu0 0.0
    %v7221 = vand.u32 %v7024, 4294901760
    %v7222 = vsub.f32 %v7024, %v7221
    %7223 = vmatpush1.msra.mxu0 %v7222
    %7224 = vmatprep.subr.mxu0 0.0
    %v7225 = vand.u32 %v7025, 4294901760
    %v7226 = vsub.f32 %v7025, %v7225
    %7227 = vmatpush1.msra.mxu0 %v7226
    %7228 = vmatprep.subr.mxu0 0.0
    %v7229 = vand.u32 %v7026, 4294901760
    %v7230 = vsub.f32 %v7026, %v7229
    %7231 = vmatpush1.msra.mxu0 %v7230
    %7232 = vmatprep.subr.mxu0 0.0
    %7233 = vmatpush1.msra.mxu0 0.0
    %7234 = vmatprep.subr.mxu0 0.0
    %7235 = vmatpush1.msra.mxu0 0.0
    %7236 = vmatprep.subr.mxu0 0.0
    %7237 = vmatpush1.msra.mxu0 0.0
    %7238 = vmatprep.subr.mxu0 0.0
    %7239 = vmatpush1.msra.mxu0 0.0
    %7240 = vmatprep.subr.mxu0 0.0
    %7241 = vmatpush1.msra.mxu0 0.0
    %7242 = vmatprep.subr.mxu0 0.0
    %7243 = vmatpush1.msra.mxu0 0.0
    %7244 = vmatprep.subr.mxu0 0.0
    %7245 = vmatpush1.msra.mxu0 0.0
    %7246 = vmatprep.subr.mxu0 0.0
    %7247 = vmatpush1.msra.mxu0 0.0
    %7248 = vmatprep.subr.mxu0 0.0
    %7249 = vmatpush1.msra.mxu0 0.0
    %7250 = vmatprep.subr.mxu0 0.0
    %7251 = vmatpush1.msra.mxu0 0.0
    %7252 = vmatprep.subr.mxu0 0.0
    %7253 = vmatpush1.msra.mxu0 0.0
    %7254 = vmatprep.subr.mxu0 0.0
    %7255 = vmatpush1.msra.mxu0 0.0
    %7256 = vmatprep.subr.mxu0 0.0
    %7257 = vmatpush1.msra.mxu0 0.0
    %7258 = vmatprep.subr.mxu0 0.0
    %7259 = vmatpush1.msra.mxu0 0.0
    %7260 = vmatprep.subr.mxu0 0.0
    %7261 = vmatpush1.msra.mxu0 0.0
    %7262 = vmatprep.subr.mxu0 0.0
    %7263 = vmatpush1.msra.mxu0 0.0
    %7264 = vmatprep.subr.mxu0 0.0
    %7265 = vmatpush1.msra.mxu0 0.0
    %7266 = vmatprep.subr.mxu0 0.0
    %7267 = vmatpush1.msra.mxu0 0.0
    %7268 = vmatprep.subr.mxu0 0.0
    %7269 = vmatpush1.msra.mxu0 0.0
    %7270 = vmatprep.subr.mxu0 0.0
    %7271 = vmatpush1.msra.mxu0 0.0
    %7272 = vmatprep.subr.mxu0 0.0
    %7273 = vmatpush1.msra.mxu0 0.0
    %7274 = vmatprep.subr.mxu0 0.0
    %7275 = vmatpush1.msra.mxu0 0.0
    %7276 = vmatprep.subr.mxu0 0.0
    %7277 = vmatpush1.msra.mxu0 0.0
    %7278 = vmatprep.subr.mxu0 0.0
    %7279 = vmatpush1.msra.mxu0 0.0
    %7280 = vmatprep.subr.mxu0 0.0
    %7281 = vmatpush1.msra.mxu0 0.0
    %7282 = vmatprep.subr.mxu0 0.0
    %7283 = vmatpush1.msra.mxu0 0.0
    %7284 = vmatprep.subr.mxu0 0.0
    %7285 = vmatpush1.msra.mxu0 0.0
    %7286 = vmatprep.subr.mxu0 0.0
    %7287 = vmatpush1.msra.mxu0 0.0
    %7288 = vmatprep.mubr.f32.mxu0 0.0
    %v7289 = vand.u32 %v7028, 4294901760
    %v7290 = vsub.f32 %v7028, %v7289
    %7291 = vmatmul.mubr.f32.gmra.mrb[0].mxu0 %v7290
    %v7292 = vpop.f32.mrb[0].mxu0
    %v7293 = vadd.f32 %v7207, %v7292
    %v7294 = vpop.f32.mrb[0].mxu0
    %7295 = vmatprep.mubr.f32.mxu0 0.0
    %v7296 = vand.u32 %v7028, 4294901760
    %v7297 = vsub.f32 %v7028, %v7296
    %7298 = vmatmul.mubr.f32.gmra.mrb[0].mxu0 %v7297
    %v7299 = vpop.f32.mrb[0].mxu0
    %v7300 = vadd.f32 %v7213, %v7299
    %v7301 = vpop.f32.mrb[0].mxu0
    %7302 = vdwg.mxu0
    %7303 = vmatprep.subr.mxu0 0.0
    %v7304 = vand.u32 %v7023, 4294901760
    %7305 = vmatpush1.msra.mxu0 %v7304
    %7306 = vmatprep.subr.mxu0 0.0
    %v7307 = vand.u32 %v7024, 4294901760
    %7308 = vmatpush1.msra.mxu0 %v7307
    %7309 = vmatprep.subr.mxu0 0.0
    %v7310 = vand.u32 %v7025, 4294901760
    %7311 = vmatpush1.msra.mxu0 %v7310
    %7312 = vmatprep.subr.mxu0 0.0
    %v7313 = vand.u32 %v7026, 4294901760
    %7314 = vmatpush1.msra.mxu0 %v7313
    %7315 = vmatprep.subr.mxu0 0.0
    %7316 = vmatpush1.msra.mxu0 0.0
    %7317 = vmatprep.subr.mxu0 0.0
    %7318 = vmatpush1.msra.mxu0 0.0
    %7319 = vmatprep.subr.mxu0 0.0
    %7320 = vmatpush1.msra.mxu0 0.0
    %7321 = vmatprep.subr.mxu0 0.0
    %7322 = vmatpush1.msra.mxu0 0.0
    %7323 = vmatprep.subr.mxu0 0.0
    %7324 = vmatpush1.msra.mxu0 0.0
    %7325 = vmatprep.subr.mxu0 0.0
    %7326 = vmatpush1.msra.mxu0 0.0
    %7327 = vmatprep.subr.mxu0 0.0
    %7328 = vmatpush1.msra.mxu0 0.0
    %7329 = vmatprep.subr.mxu0 0.0
    %7330 = vmatpush1.msra.mxu0 0.0
    %7331 = vmatprep.subr.mxu0 0.0
    %7332 = vmatpush1.msra.mxu0 0.0
    %7333 = vmatprep.subr.mxu0 0.0
    %7334 = vmatpush1.msra.mxu0 0.0
    %7335 = vmatprep.subr.mxu0 0.0
    %7336 = vmatpush1.msra.mxu0 0.0
    %7337 = vmatprep.subr.mxu0 0.0
    %7338 = vmatpush1.msra.mxu0 0.0
    %7339 = vmatprep.subr.mxu0 0.0
    %7340 = vmatpush1.msra.mxu0 0.0
    %7341 = vmatprep.subr.mxu0 0.0
    %7342 = vmatpush1.msra.mxu0 0.0
    %7343 = vmatprep.subr.mxu0 0.0
    %7344 = vmatpush1.msra.mxu0 0.0
    %7345 = vmatprep.subr.mxu0 0.0
    %7346 = vmatpush1.msra.mxu0 0.0
    %7347 = vmatprep.subr.mxu0 0.0
    %7348 = vmatpush1.msra.mxu0 0.0
    %7349 = vmatprep.subr.mxu0 0.0
    %7350 = vmatpush1.msra.mxu0 0.0
    %7351 = vmatprep.subr.mxu0 0.0
    %7352 = vmatpush1.msra.mxu0 0.0
    %7353 = vmatprep.subr.mxu0 0.0
    %7354 = vmatpush1.msra.mxu0 0.0
    %7355 = vmatprep.subr.mxu0 0.0
    %7356 = vmatpush1.msra.mxu0 0.0
    %7357 = vmatprep.subr.mxu0 0.0
    %7358 = vmatpush1.msra.mxu0 0.0
    %7359 = vmatprep.subr.mxu0 0.0
    %7360 = vmatpush1.msra.mxu0 0.0
    %7361 = vmatprep.subr.mxu0 0.0
    %7362 = vmatpush1.msra.mxu0 0.0
    %7363 = vmatprep.subr.mxu0 0.0
    %7364 = vmatpush1.msra.mxu0 0.0
    %7365 = vmatprep.subr.mxu0 0.0
    %7366 = vmatpush1.msra.mxu0 0.0
    %7367 = vmatprep.subr.mxu0 0.0
    %7368 = vmatpush1.msra.mxu0 0.0
    %7369 = vmatprep.subr.mxu0 0.0
    %7370 = vmatpush1.msra.mxu0 0.0
    %7371 = vmatprep.mubr.f32.mxu0 0.0
    %v7372 = vand.u32 %v7028, 4294901760
    %v7373 = vsub.f32 %v7028, %v7372
    %v7374 = vand.u32 %v7373, 4294901760
    %7375 = vmatmul.mubr.f32.gmra.mrb[0].mxu0 %v7374
    %v7376 = vpop.f32.mrb[0].mxu0
    %v7377 = vadd.f32 %v7293, %v7376
    %v7378 = vpop.f32.mrb[0].mxu0
    %7379 = vmatprep.mubr.f32.mxu0 0.0
    %v7380 = vand.u32 %v7028, 4294901760
    %v7381 = vsub.f32 %v7028, %v7380
    %v7382 = vand.u32 %v7381, 4294901760
    %7383 = vmatmul.mubr.f32.gmra.mrb[0].mxu0 %v7382
    %v7384 = vpop.f32.mrb[0].mxu0
    %v7385 = vadd.f32 %v7300, %v7384
    %v7386 = vpop.f32.mrb[0].mxu0
    %7387 = vdwg.mxu0
    %7388 = vmatprep.subr.mxu0 0.0
    %v7389 = vand.u32 %v7023, 4294901760
    %v7390 = vsub.f32 %v7023, %v7389
    %v7391 = vand.u32 %v7390, 4294901760
    %7392 = vmatpush1.msra.mxu0 %v7391
    %7393 = vmatprep.subr.mxu0 0.0
    %v7394 = vand.u32 %v7024, 4294901760
    %v7395 = vsub.f32 %v7024, %v7394
    %v7396 = vand.u32 %v7395, 4294901760
    %7397 = vmatpush1.msra.mxu0 %v7396
    %7398 = vmatprep.subr.mxu0 0.0
    %v7399 = vand.u32 %v7025, 4294901760
    %v7400 = vsub.f32 %v7025, %v7399
    %v7401 = vand.u32 %v7400, 4294901760
    %7402 = vmatpush1.msra.mxu0 %v7401
    %7403 = vmatprep.subr.mxu0 0.0
    %v7404 = vand.u32 %v7026, 4294901760
    %v7405 = vsub.f32 %v7026, %v7404
    %v7406 = vand.u32 %v7405, 4294901760
    %7407 = vmatpush1.msra.mxu0 %v7406
    %7408 = vmatprep.subr.mxu0 0.0
    %7409 = vmatpush1.msra.mxu0 0.0
    %7410 = vmatprep.subr.mxu0 0.0
    %7411 = vmatpush1.msra.mxu0 0.0
    %7412 = vmatprep.subr.mxu0 0.0
    %7413 = vmatpush1.msra.mxu0 0.0
    %7414 = vmatprep.subr.mxu0 0.0
    %7415 = vmatpush1.msra.mxu0 0.0
    %7416 = vmatprep.subr.mxu0 0.0
    %7417 = vmatpush1.msra.mxu0 0.0
    %7418 = vmatprep.subr.mxu0 0.0
    %7419 = vmatpush1.msra.mxu0 0.0
    %7420 = vmatprep.subr.mxu0 0.0
    %7421 = vmatpush1.msra.mxu0 0.0
    %7422 = vmatprep.subr.mxu0 0.0
    %7423 = vmatpush1.msra.mxu0 0.0
    %7424 = vmatprep.subr.mxu0 0.0
    %7425 = vmatpush1.msra.mxu0 0.0
    %7426 = vmatprep.subr.mxu0 0.0
    %7427 = vmatpush1.msra.mxu0 0.0
    %7428 = vmatprep.subr.mxu0 0.0
    %7429 = vmatpush1.msra.mxu0 0.0
    %7430 = vmatprep.subr.mxu0 0.0
    %7431 = vmatpush1.msra.mxu0 0.0
    %7432 = vmatprep.subr.mxu0 0.0
    %7433 = vmatpush1.msra.mxu0 0.0
    %7434 = vmatprep.subr.mxu0 0.0
    %7435 = vmatpush1.msra.mxu0 0.0
    %7436 = vmatprep.subr.mxu0 0.0
    %7437 = vmatpush1.msra.mxu0 0.0
    %7438 = vmatprep.subr.mxu0 0.0
    %7439 = vmatpush1.msra.mxu0 0.0
    %7440 = vmatprep.subr.mxu0 0.0
    %7441 = vmatpush1.msra.mxu0 0.0
    %7442 = vmatprep.subr.mxu0 0.0
    %7443 = vmatpush1.msra.mxu0 0.0
    %7444 = vmatprep.subr.mxu0 0.0
    %7445 = vmatpush1.msra.mxu0 0.0
    %7446 = vmatprep.subr.mxu0 0.0
    %7447 = vmatpush1.msra.mxu0 0.0
    %7448 = vmatprep.subr.mxu0 0.0
    %7449 = vmatpush1.msra.mxu0 0.0
    %7450 = vmatprep.subr.mxu0 0.0
    %7451 = vmatpush1.msra.mxu0 0.0
    %7452 = vmatprep.subr.mxu0 0.0
    %7453 = vmatpush1.msra.mxu0 0.0
    %7454 = vmatprep.subr.mxu0 0.0
    %7455 = vmatpush1.msra.mxu0 0.0
    %7456 = vmatprep.subr.mxu0 0.0
    %7457 = vmatpush1.msra.mxu0 0.0
    %7458 = vmatprep.subr.mxu0 0.0
    %7459 = vmatpush1.msra.mxu0 0.0
    %7460 = vmatprep.subr.mxu0 0.0
    %7461 = vmatpush1.msra.mxu0 0.0
    %7462 = vmatprep.subr.mxu0 0.0
    %7463 = vmatpush1.msra.mxu0 0.0
    %7464 = vmatprep.mubr.f32.mxu0 0.0
    %v7465 = vand.u32 %v7028, 4294901760
    %7466 = vmatmul.mubr.f32.gmra.mrb[0].mxu0 %v7465
    %v7467 = vpop.f32.mrb[0].mxu0
    %v7468 = vadd.f32 %v7377, %v7467
    %v7469 = vpop.f32.mrb[0].mxu0
    %7470 = vmatprep.mubr.f32.mxu0 0.0
    %v7471 = vand.u32 %v7028, 4294901760
    %7472 = vmatmul.mubr.f32.gmra.mrb[0].mxu0 %v7471
    %v7473 = vpop.f32.mrb[0].mxu0
    %v7474 = vadd.f32 %v7385, %v7473
    %v7475 = vpop.f32.mrb[0].mxu0
    %7476 = vdwg.mxu0
    %7477 = vmatprep.subr.mxu0 0.0
    %v7478 = vand.u32 %v7023, 4294901760
    %7479 = vmatpush1.msra.mxu0 %v7478
    %7480 = vmatprep.subr.mxu0 0.0
    %v7481 = vand.u32 %v7024, 4294901760
    %7482 = vmatpush1.msra.mxu0 %v7481
    %7483 = vmatprep.subr.mxu0 0.0
    %v7484 = vand.u32 %v7025, 4294901760
    %7485 = vmatpush1.msra.mxu0 %v7484
    %7486 = vmatprep.subr.mxu0 0.0
    %v7487 = vand.u32 %v7026, 4294901760
    %7488 = vmatpush1.msra.mxu0 %v7487
    %7489 = vmatprep.subr.mxu0 0.0
    %7490 = vmatpush1.msra.mxu0 0.0
    %7491 = vmatprep.subr.mxu0 0.0
    %7492 = vmatpush1.msra.mxu0 0.0
    %7493 = vmatprep.subr.mxu0 0.0
    %7494 = vmatpush1.msra.mxu0 0.0
    %7495 = vmatprep.subr.mxu0 0.0
    %7496 = vmatpush1.msra.mxu0 0.0
    %7497 = vmatprep.subr.mxu0 0.0
    %7498 = vmatpush1.msra.mxu0 0.0
    %7499 = vmatprep.subr.mxu0 0.0
    %7500 = vmatpush1.msra.mxu0 0.0
    %7501 = vmatprep.subr.mxu0 0.0
    %7502 = vmatpush1.msra.mxu0 0.0
    %7503 = vmatprep.subr.mxu0 0.0
    %7504 = vmatpush1.msra.mxu0 0.0
    %7505 = vmatprep.subr.mxu0 0.0
    %7506 = vmatpush1.msra.mxu0 0.0
    %7507 = vmatprep.subr.mxu0 0.0
    %7508 = vmatpush1.msra.mxu0 0.0
    %7509 = vmatprep.subr.mxu0 0.0
    %7510 = vmatpush1.msra.mxu0 0.0
    %7511 = vmatprep.subr.mxu0 0.0
    %7512 = vmatpush1.msra.mxu0 0.0
    %7513 = vmatprep.subr.mxu0 0.0
    %7514 = vmatpush1.msra.mxu0 0.0
    %7515 = vmatprep.subr.mxu0 0.0
    %7516 = vmatpush1.msra.mxu0 0.0
    %7517 = vmatprep.subr.mxu0 0.0
    %7518 = vmatpush1.msra.mxu0 0.0
    %7519 = vmatprep.subr.mxu0 0.0
    %7520 = vmatpush1.msra.mxu0 0.0
    %7521 = vmatprep.subr.mxu0 0.0
    %7522 = vmatpush1.msra.mxu0 0.0
    %7523 = vmatprep.subr.mxu0 0.0
    %7524 = vmatpush1.msra.mxu0 0.0
    %7525 = vmatprep.subr.mxu0 0.0
    %7526 = vmatpush1.msra.mxu0 0.0
    %7527 = vmatprep.subr.mxu0 0.0
    %7528 = vmatpush1.msra.mxu0 0.0
    %7529 = vmatprep.subr.mxu0 0.0
    %7530 = vmatpush1.msra.mxu0 0.0
    %7531 = vmatprep.subr.mxu0 0.0
    %7532 = vmatpush1.msra.mxu0 0.0
    %7533 = vmatprep.subr.mxu0 0.0
    %7534 = vmatpush1.msra.mxu0 0.0
    %7535 = vmatprep.subr.mxu0 0.0
    %7536 = vmatpush1.msra.mxu0 0.0
    %7537 = vmatprep.subr.mxu0 0.0
    %7538 = vmatpush1.msra.mxu0 0.0
    %7539 = vmatprep.subr.mxu0 0.0
    %7540 = vmatpush1.msra.mxu0 0.0
    %7541 = vmatprep.subr.mxu0 0.0
    %7542 = vmatpush1.msra.mxu0 0.0
    %7543 = vmatprep.subr.mxu0 0.0
    %7544 = vmatpush1.msra.mxu0 0.0
    %7545 = vmatprep.mubr.f32.mxu0 0.0
    %v7546 = vand.u32 %v7028, 4294901760
    %7547 = vmatmul.mubr.f32.gmra.mrb[0].mxu0 %v7546
    %v7548 = vpop.f32.mrb[0].mxu0
    %v7549 = vadd.f32 %v7468, %v7548
    %v7550 = vpop.f32.mrb[0].mxu0
    %7551 = vmatprep.mubr.f32.mxu0 0.0
    %v7552 = vand.u32 %v7028, 4294901760
    %7553 = vmatmul.mubr.f32.gmra.mrb[0].mxu0 %v7552
    %v7554 = vpop.f32.mrb[0].mxu0
    %v7555 = vadd.f32 %v7474, %v7554
    %v7556 = vpop.f32.mrb[0].mxu0
    %7557 = vdwg.mxu0
    %v7558 = vadd.f32 %v6983, %v7549
    %v7559 = vadd.f32 %v6989, %v7555
    %v7560 = vmul.f32 %v7558, %v7021
    %v7561 = vmul.f32 %v7559, %v7021
    %v7562 = vxor.u32 %v7560, 2147483648
    %v7563 = vxor.u32 %v7561, 2147483648
    %v7564 = vmul.f32 %v7562, 1.442695
    %v7565 = vpow.pop %v7564
    %v7566 = vmul.f32 %v7563, 1.442695
    %v7567 = vpow.pop %v7566
    %v7568 = vadd.f32 %v7565, 1.0
    %v7569 = vadd.f32 %v7567, 1.0
    %v7570 = vrcp.pop %v7568
    %v7571 = vmul.f32 1.0, %v7570
    %v7572 = vrcp.pop %v7569
    %v7573 = vmul.f32 1.0, %v7572
    %v7574 = vmul.f32 %v7571, %v7021
    %v7575 = vmul.f32 %v7573, %v7021
    %v7576 = vadd.f32 %v7574, %v7022
    %v7577 = vadd.f32 %v7575, %v7022
    %v7578 = vmul.f32 %v7576, 0.0
    %v7579 = vmul.f32 %v7577, 0.0
    %7582 = vrot.lane.b32.xlu0 %v7576, 64
    %v7583 = vpop.permute.xlu0 %7582
    %7584 = vrot.lane.b32.xlu0 %v7577, 64
    %v7585 = vpop.permute.xlu0 %7584
    %v7588 = vmul.f32 %v7576, %v7583
    %v7589 = vmul.f32 %v7577, %v7585
    %7592 = vrot.lane.b32.xlu0 %v7588, 32
    %v7593 = vpop.permute.xlu0 %7592
    %7594 = vrot.lane.b32.xlu0 %v7589, 32
    %v7595 = vpop.permute.xlu0 %7594
    %v7598 = vadd.f32 %v7578, %v7593
    %v7599 = vadd.f32 %v7579, %v7595
    %v7600 = vtanh.pop %v7598
    %v7601 = vtanh.pop %v7599
    %7604 = vrot.lane.b32.xlu0 %v7600, 64
    %v7605 = vpop.permute.xlu0 %7604
    %7606 = vrot.lane.b32.xlu0 %v7601, 64
    %v7607 = vpop.permute.xlu0 %7606
    %v7610 = vmul.f32 %v7576, %v7605
    %v7611 = vmul.f32 %v7577, %v7607
    %7614 = vrot.lane.b32.xlu0 %v7610, 32
    %v7615 = vpop.permute.xlu0 %7614
    %7616 = vrot.lane.b32.xlu0 %v7611, 32
    %v7617 = vpop.permute.xlu0 %7616
    %7620 = vst.msk [vmem:[#allocation8] sm:$0xff] %vm1098, %v7615
    %7621 = vst.msk [vmem:[#allocation8 + $0x8] sm:$0xff] %vm1098, %v7617
    %v7622 = vsel %vm1098, %v7615, 0
    %v7624 = vsel %vm1098, %v7617, 0
    %7626 = vmatprep.subr.mxu0 0.0
    %v7627 = vand.u32 %v7023, 4294901760
    %7628 = vmatpush1.msra.mxu0 %v7627
    %7629 = vmatprep.subr.mxu0 0.0
    %v7630 = vand.u32 %v7024, 4294901760
    %7631 = vmatpush1.msra.mxu0 %v7630
    %7632 = vmatprep.subr.mxu0 0.0
    %v7633 = vand.u32 %v7025, 4294901760
    %7634 = vmatpush1.msra.mxu0 %v7633
    %7635 = vmatprep.subr.mxu0 0.0
    %v7636 = vand.u32 %v7026, 4294901760
    %7637 = vmatpush1.msra.mxu0 %v7636
    %7638 = vmatprep.subr.mxu0 0.0
    %7639 = vmatpush1.msra.mxu0 0.0
    %7640 = vmatprep.subr.mxu0 0.0
    %7641 = vmatpush1.msra.mxu0 0.0
    %7642 = vmatprep.subr.mxu0 0.0
    %7643 = vmatpush1.msra.mxu0 0.0
    %7644 = vmatprep.subr.mxu0 0.0
    %7645 = vmatpush1.msra.mxu0 0.0
    %7646 = vmatprep.subr.mxu0 0.0
    %7647 = vmatpush1.msra.mxu0 0.0
    %7648 = vmatprep.subr.mxu0 0.0
    %7649 = vmatpush1.msra.mxu0 0.0
    %7650 = vmatprep.subr.mxu0 0.0
    %7651 = vmatpush1.msra.mxu0 0.0
    %7652 = vmatprep.subr.mxu0 0.0
    %7653 = vmatpush1.msra.mxu0 0.0
    %7654 = vmatprep.subr.mxu0 0.0
    %7655 = vmatpush1.msra.mxu0 0.0
    %7656 = vmatprep.subr.mxu0 0.0
    %7657 = vmatpush1.msra.mxu0 0.0
    %7658 = vmatprep.subr.mxu0 0.0
    %7659 = vmatpush1.msra.mxu0 0.0
    %7660 = vmatprep.subr.mxu0 0.0
    %7661 = vmatpush1.msra.mxu0 0.0
    %7662 = vmatprep.subr.mxu0 0.0
    %7663 = vmatpush1.msra.mxu0 0.0
    %7664 = vmatprep.subr.mxu0 0.0
    %7665 = vmatpush1.msra.mxu0 0.0
    %7666 = vmatprep.subr.mxu0 0.0
    %7667 = vmatpush1.msra.mxu0 0.0
    %7668 = vmatprep.subr.mxu0 0.0
    %7669 = vmatpush1.msra.mxu0 0.0
    %7670 = vmatprep.subr.mxu0 0.0
    %7671 = vmatpush1.msra.mxu0 0.0
    %7672 = vmatprep.subr.mxu0 0.0
    %7673 = vmatpush1.msra.mxu0 0.0
    %7674 = vmatprep.subr.mxu0 0.0
    %7675 = vmatpush1.msra.mxu0 0.0
    %7676 = vmatprep.subr.mxu0 0.0
    %7677 = vmatpush1.msra.mxu0 0.0
    %7678 = vmatprep.subr.mxu0 0.0
    %7679 = vmatpush1.msra.mxu0 0.0
    %7680 = vmatprep.subr.mxu0 0.0
    %7681 = vmatpush1.msra.mxu0 0.0
    %7682 = vmatprep.subr.mxu0 0.0
    %7683 = vmatpush1.msra.mxu0 0.0
    %7684 = vmatprep.subr.mxu0 0.0
    %7685 = vmatpush1.msra.mxu0 0.0
    %7686 = vmatprep.subr.mxu0 0.0
    %7687 = vmatpush1.msra.mxu0 0.0
    %7688 = vmatprep.subr.mxu0 0.0
    %7689 = vmatpush1.msra.mxu0 0.0
    %7690 = vmatprep.subr.mxu0 0.0
    %7691 = vmatpush1.msra.mxu0 0.0
    %7692 = vmatprep.subr.mxu0 0.0
    %7693 = vmatpush1.msra.mxu0 0.0
    %7694 = vmatprep.mubr.f32.mxu0 0.0
    %v7695 = vand.u32 %v7622, 4294901760
    %v7696 = vsub.f32 %v7622, %v7695
    %v7697 = vand.u32 %v7696, 4294901760
    %v7698 = vsub.f32 %v7696, %v7697
    %v7699 = vand.u32 %v7698, 4294901760
    %7700 = vmatmul.mubr.f32.gmra.mrb[0].mxu0 %v7699
    %v7701 = vpop.f32.mrb[0].mxu0
    %v7702 = vadd.f32 0.0, %v7701
    %v7703 = vpop.f32.mrb[0].mxu0
    %7704 = vmatprep.mubr.f32.mxu0 0.0
    %v7705 = vand.u32 %v7624, 4294901760
    %v7706 = vsub.f32 %v7624, %v7705
    %v7707 = vand.u32 %v7706, 4294901760
    %v7708 = vsub.f32 %v7706, %v7707
    %v7709 = vand.u32 %v7708, 4294901760
    %7710 = vmatmul.mubr.f32.gmra.mrb[0].mxu0 %v7709
    %v7711 = vpop.f32.mrb[0].mxu0
    %v7712 = vadd.f32 0.0, %v7711
    %v7713 = vpop.f32.mrb[0].mxu0
    %7714 = vdwg.mxu0
    %7715 = vmatprep.subr.mxu0 0.0
    %v7716 = vand.u32 %v7023, 4294901760
    %v7717 = vsub.f32 %v7023, %v7716
    %v7718 = vand.u32 %v7717, 4294901760
    %v7719 = vsub.f32 %v7717, %v7718
    %v7720 = vand.u32 %v7719, 4294901760
    %7721 = vmatpush1.msra.mxu0 %v7720
    %7722 = vmatprep.subr.mxu0 0.0
    %v7723 = vand.u32 %v7024, 4294901760
    %v7724 = vsub.f32 %v7024, %v7723
    %v7725 = vand.u32 %v7724, 4294901760
    %v7726 = vsub.f32 %v7724, %v7725
    %v7727 = vand.u32 %v7726, 4294901760
    %7728 = vmatpush1.msra.mxu0 %v7727
    %7729 = vmatprep.subr.mxu0 0.0
    %v7730 = vand.u32 %v7025, 4294901760
    %v7731 = vsub.f32 %v7025, %v7730
    %v7732 = vand.u32 %v7731, 4294901760
    %v7733 = vsub.f32 %v7731, %v7732
    %v7734 = vand.u32 %v7733, 4294901760
    %7735 = vmatpush1.msra.mxu0 %v7734
    %7736 = vmatprep.subr.mxu0 0.0
    %v7737 = vand.u32 %v7026, 4294901760
    %v7738 = vsub.f32 %v7026, %v7737
    %v7739 = vand.u32 %v7738, 4294901760
    %v7740 = vsub.f32 %v7738, %v7739
    %v7741 = vand.u32 %v7740, 4294901760
    %7742 = vmatpush1.msra.mxu0 %v7741
    %7743 = vmatprep.subr.mxu0 0.0
    %7744 = vmatpush1.msra.mxu0 0.0
    %7745 = vmatprep.subr.mxu0 0.0
    %7746 = vmatpush1.msra.mxu0 0.0
    %7747 = vmatprep.subr.mxu0 0.0
    %7748 = vmatpush1.msra.mxu0 0.0
    %7749 = vmatprep.subr.mxu0 0.0
    %7750 = vmatpush1.msra.mxu0 0.0
    %7751 = vmatprep.subr.mxu0 0.0
    %7752 = vmatpush1.msra.mxu0 0.0
    %7753 = vmatprep.subr.mxu0 0.0
    %7754 = vmatpush1.msra.mxu0 0.0
    %7755 = vmatprep.subr.mxu0 0.0
    %7756 = vmatpush1.msra.mxu0 0.0
    %7757 = vmatprep.subr.mxu0 0.0
    %7758 = vmatpush1.msra.mxu0 0.0
    %7759 = vmatprep.subr.mxu0 0.0
    %7760 = vmatpush1.msra.mxu0 0.0
    %7761 = vmatprep.subr.mxu0 0.0
    %7762 = vmatpush1.msra.mxu0 0.0
    %7763 = vmatprep.subr.mxu0 0.0
    %7764 = vmatpush1.msra.mxu0 0.0
    %7765 = vmatprep.subr.mxu0 0.0
    %7766 = vmatpush1.msra.mxu0 0.0
    %7767 = vmatprep.subr.mxu0 0.0
    %7768 = vmatpush1.msra.mxu0 0.0
    %7769 = vmatprep.subr.mxu0 0.0
    %7770 = vmatpush1.msra.mxu0 0.0
    %7771 = vmatprep.subr.mxu0 0.0
    %7772 = vmatpush1.msra.mxu0 0.0
    %7773 = vmatprep.subr.mxu0 0.0
    %7774 = vmatpush1.msra.mxu0 0.0
    %7775 = vmatprep.subr.mxu0 0.0
    %7776 = vmatpush1.msra.mxu0 0.0
    %7777 = vmatprep.subr.mxu0 0.0
    %7778 = vmatpush1.msra.mxu0 0.0
    %7779 = vmatprep.subr.mxu0 0.0
    %7780 = vmatpush1.msra.mxu0 0.0
    %7781 = vmatprep.subr.mxu0 0.0
    %7782 = vmatpush1.msra.mxu0 0.0
    %7783 = vmatprep.subr.mxu0 0.0
    %7784 = vmatpush1.msra.mxu0 0.0
    %7785 = vmatprep.subr.mxu0 0.0
    %7786 = vmatpush1.msra.mxu0 0.0
    %7787 = vmatprep.subr.mxu0 0.0
    %7788 = vmatpush1.msra.mxu0 0.0
    %7789 = vmatprep.subr.mxu0 0.0
    %7790 = vmatpush1.msra.mxu0 0.0
    %7791 = vmatprep.subr.mxu0 0.0
    %7792 = vmatpush1.msra.mxu0 0.0
    %7793 = vmatprep.subr.mxu0 0.0
    %7794 = vmatpush1.msra.mxu0 0.0
    %7795 = vmatprep.subr.mxu0 0.0
    %7796 = vmatpush1.msra.mxu0 0.0
    %7797 = vmatprep.subr.mxu0 0.0
    %7798 = vmatpush1.msra.mxu0 0.0
    %7799 = vmatprep.mubr.f32.mxu0 0.0
    %v7800 = vand.u32 %v7622, 4294901760
    %7801 = vmatmul.mubr.f32.gmra.mrb[0].mxu0 %v7800
    %v7802 = vpop.f32.mrb[0].mxu0
    %v7803 = vadd.f32 %v7702, %v7802
    %v7804 = vpop.f32.mrb[0].mxu0
    %7805 = vmatprep.mubr.f32.mxu0 0.0
    %v7806 = vand.u32 %v7624, 4294901760
    %7807 = vmatmul.mubr.f32.gmra.mrb[0].mxu0 %v7806
    %v7808 = vpop.f32.mrb[0].mxu0
    %v7809 = vadd.f32 %v7712, %v7808
    %v7810 = vpop.f32.mrb[0].mxu0
    %7811 = vdwg.mxu0
    %7812 = vmatprep.subr.mxu0 0.0
    %v7813 = vand.u32 %v7023, 4294901760
    %v7814 = vsub.f32 %v7023, %v7813
    %7815 = vmatpush1.msra.mxu0 %v7814
    %7816 = vmatprep.subr.mxu0 0.0
    %v7817 = vand.u32 %v7024, 4294901760
    %v7818 = vsub.f32 %v7024, %v7817
    %7819 = vmatpush1.msra.mxu0 %v7818
    %7820 = vmatprep.subr.mxu0 0.0
    %v7821 = vand.u32 %v7025, 4294901760
    %v7822 = vsub.f32 %v7025, %v7821
    %7823 = vmatpush1.msra.mxu0 %v7822
    %7824 = vmatprep.subr.mxu0 0.0
    %v7825 = vand.u32 %v7026, 4294901760
    %v7826 = vsub.f32 %v7026, %v7825
    %7827 = vmatpush1.msra.mxu0 %v7826
    %7828 = vmatprep.subr.mxu0 0.0
    %7829 = vmatpush1.msra.mxu0 0.0
    %7830 = vmatprep.subr.mxu0 0.0
    %7831 = vmatpush1.msra.mxu0 0.0
    %7832 = vmatprep.subr.mxu0 0.0
    %7833 = vmatpush1.msra.mxu0 0.0
    %7834 = vmatprep.subr.mxu0 0.0
    %7835 = vmatpush1.msra.mxu0 0.0
    %7836 = vmatprep.subr.mxu0 0.0
    %7837 = vmatpush1.msra.mxu0 0.0
    %7838 = vmatprep.subr.mxu0 0.0
    %7839 = vmatpush1.msra.mxu0 0.0
    %7840 = vmatprep.subr.mxu0 0.0
    %7841 = vmatpush1.msra.mxu0 0.0
    %7842 = vmatprep.subr.mxu0 0.0
    %7843 = vmatpush1.msra.mxu0 0.0
    %7844 = vmatprep.subr.mxu0 0.0
    %7845 = vmatpush1.msra.mxu0 0.0
    %7846 = vmatprep.subr.mxu0 0.0
    %7847 = vmatpush1.msra.mxu0 0.0
    %7848 = vmatprep.subr.mxu0 0.0
    %7849 = vmatpush1.msra.mxu0 0.0
    %7850 = vmatprep.subr.mxu0 0.0
    %7851 = vmatpush1.msra.mxu0 0.0
    %7852 = vmatprep.subr.mxu0 0.0
    %7853 = vmatpush1.msra.mxu0 0.0
    %7854 = vmatprep.subr.mxu0 0.0
    %7855 = vmatpush1.msra.mxu0 0.0
    %7856 = vmatprep.subr.mxu0 0.0
    %7857 = vmatpush1.msra.mxu0 0.0
    %7858 = vmatprep.subr.mxu0 0.0
    %7859 = vmatpush1.msra.mxu0 0.0
    %7860 = vmatprep.subr.mxu0 0.0
    %7861 = vmatpush1.msra.mxu0 0.0
    %7862 = vmatprep.subr.mxu0 0.0
    %7863 = vmatpush1.msra.mxu0 0.0
    %7864 = vmatprep.subr.mxu0 0.0
    %7865 = vmatpush1.msra.mxu0 0.0
    %7866 = vmatprep.subr.mxu0 0.0
    %7867 = vmatpush1.msra.mxu0 0.0
    %7868 = vmatprep.subr.mxu0 0.0
    %7869 = vmatpush1.msra.mxu0 0.0
    %7870 = vmatprep.subr.mxu0 0.0
    %7871 = vmatpush1.msra.mxu0 0.0
    %7872 = vmatprep.subr.mxu0 0.0
    %7873 = vmatpush1.msra.mxu0 0.0
    %7874 = vmatprep.subr.mxu0 0.0
    %7875 = vmatpush1.msra.mxu0 0.0
    %7876 = vmatprep.subr.mxu0 0.0
    %7877 = vmatpush1.msra.mxu0 0.0
    %7878 = vmatprep.subr.mxu0 0.0
    %7879 = vmatpush1.msra.mxu0 0.0
    %7880 = vmatprep.subr.mxu0 0.0
    %7881 = vmatpush1.msra.mxu0 0.0
    %7882 = vmatprep.subr.mxu0 0.0
    %7883 = vmatpush1.msra.mxu0 0.0
    %7884 = vmatprep.mubr.f32.mxu0 0.0
    %v7885 = vand.u32 %v7622, 4294901760
    %v7886 = vsub.f32 %v7622, %v7885
    %7887 = vmatmul.mubr.f32.gmra.mrb[0].mxu0 %v7886
    %v7888 = vpop.f32.mrb[0].mxu0
    %v7889 = vadd.f32 %v7803, %v7888
    %v7890 = vpop.f32.mrb[0].mxu0
    %7891 = vmatprep.mubr.f32.mxu0 0.0
    %v7892 = vand.u32 %v7624, 4294901760
    %v7893 = vsub.f32 %v7624, %v7892
    %7894 = vmatmul.mubr.f32.gmra.mrb[0].mxu0 %v7893
    %v7895 = vpop.f32.mrb[0].mxu0
    %v7896 = vadd.f32 %v7809, %v7895
    %v7897 = vpop.f32.mrb[0].mxu0
    %7898 = vdwg.mxu0
    %7899 = vmatprep.subr.mxu0 0.0
    %v7900 = vand.u32 %v7023, 4294901760
    %7901 = vmatpush1.msra.mxu0 %v7900
    %7902 = vmatprep.subr.mxu0 0.0
    %v7903 = vand.u32 %v7024, 4294901760
    %7904 = vmatpush1.msra.mxu0 %v7903
    %7905 = vmatprep.subr.mxu0 0.0
    %v7906 = vand.u32 %v7025, 4294901760
    %7907 = vmatpush1.msra.mxu0 %v7906
    %7908 = vmatprep.subr.mxu0 0.0
    %v7909 = vand.u32 %v7026, 4294901760
    %7910 = vmatpush1.msra.mxu0 %v7909
    %7911 = vmatprep.subr.mxu0 0.0
    %7912 = vmatpush1.msra.mxu0 0.0
    %7913 = vmatprep.subr.mxu0 0.0
    %7914 = vmatpush1.msra.mxu0 0.0
    %7915 = vmatprep.subr.mxu0 0.0
    %7916 = vmatpush1.msra.mxu0 0.0
    %7917 = vmatprep.subr.mxu0 0.0
    %7918 = vmatpush1.msra.mxu0 0.0
    %7919 = vmatprep.subr.mxu0 0.0
    %7920 = vmatpush1.msra.mxu0 0.0
    %7921 = vmatprep.subr.mxu0 0.0
    %7922 = vmatpush1.msra.mxu0 0.0
    %7923 = vmatprep.subr.mxu0 0.0
    %7924 = vmatpush1.msra.mxu0 0.0
    %7925 = vmatprep.subr.mxu0 0.0
    %7926 = vmatpush1.msra.mxu0 0.0
    %7927 = vmatprep.subr.mxu0 0.0
    %7928 = vmatpush1.msra.mxu0 0.0
    %7929 = vmatprep.subr.mxu0 0.0
    %7930 = vmatpush1.msra.mxu0 0.0
    %7931 = vmatprep.subr.mxu0 0.0
    %7932 = vmatpush1.msra.mxu0 0.0
    %7933 = vmatprep.subr.mxu0 0.0
    %7934 = vmatpush1.msra.mxu0 0.0
    %7935 = vmatprep.subr.mxu0 0.0
    %7936 = vmatpush1.msra.mxu0 0.0
    %7937 = vmatprep.subr.mxu0 0.0
    %7938 = vmatpush1.msra.mxu0 0.0
    %7939 = vmatprep.subr.mxu0 0.0
    %7940 = vmatpush1.msra.mxu0 0.0
    %7941 = vmatprep.subr.mxu0 0.0
    %7942 = vmatpush1.msra.mxu0 0.0
    %7943 = vmatprep.subr.mxu0 0.0
    %7944 = vmatpush1.msra.mxu0 0.0
    %7945 = vmatprep.subr.mxu0 0.0
    %7946 = vmatpush1.msra.mxu0 0.0
    %7947 = vmatprep.subr.mxu0 0.0
    %7948 = vmatpush1.msra.mxu0 0.0
    %7949 = vmatprep.subr.mxu0 0.0
    %7950 = vmatpush1.msra.mxu0 0.0
    %7951 = vmatprep.subr.mxu0 0.0
    %7952 = vmatpush1.msra.mxu0 0.0
    %7953 = vmatprep.subr.mxu0 0.0
    %7954 = vmatpush1.msra.mxu0 0.0
    %7955 = vmatprep.subr.mxu0 0.0
    %7956 = vmatpush1.msra.mxu0 0.0
    %7957 = vmatprep.subr.mxu0 0.0
    %7958 = vmatpush1.msra.mxu0 0.0
    %7959 = vmatprep.subr.mxu0 0.0
    %7960 = vmatpush1.msra.mxu0 0.0
    %7961 = vmatprep.subr.mxu0 0.0
    %7962 = vmatpush1.msra.mxu0 0.0
    %7963 = vmatprep.subr.mxu0 0.0
    %7964 = vmatpush1.msra.mxu0 0.0
    %7965 = vmatprep.subr.mxu0 0.0
    %7966 = vmatpush1.msra.mxu0 0.0
    %7967 = vmatprep.mubr.f32.mxu0 0.0
    %v7968 = vand.u32 %v7622, 4294901760
    %v7969 = vsub.f32 %v7622, %v7968
    %v7970 = vand.u32 %v7969, 4294901760
    %7971 = vmatmul.mubr.f32.gmra.mrb[0].mxu0 %v7970
    %v7972 = vpop.f32.mrb[0].mxu0
    %v7973 = vadd.f32 %v7889, %v7972
    %v7974 = vpop.f32.mrb[0].mxu0
    %7975 = vmatprep.mubr.f32.mxu0 0.0
    %v7976 = vand.u32 %v7624, 4294901760
    %v7977 = vsub.f32 %v7624, %v7976
    %v7978 = vand.u32 %v7977, 4294901760
    %7979 = vmatmul.mubr.f32.gmra.mrb[0].mxu0 %v7978
    %v7980 = vpop.f32.mrb[0].mxu0
    %v7981 = vadd.f32 %v7896, %v7980
    %v7982 = vpop.f32.mrb[0].mxu0
    %7983 = vdwg.mxu0
    %7984 = vmatprep.subr.mxu0 0.0
    %v7985 = vand.u32 %v7023, 4294901760
    %v7986 = vsub.f32 %v7023, %v7985
    %v7987 = vand.u32 %v7986, 4294901760
    %7988 = vmatpush1.msra.mxu0 %v7987
    %7989 = vmatprep.subr.mxu0 0.0
    %v7990 = vand.u32 %v7024, 4294901760
    %v7991 = vsub.f32 %v7024, %v7990
    %v7992 = vand.u32 %v7991, 4294901760
    %7993 = vmatpush1.msra.mxu0 %v7992
    %7994 = vmatprep.subr.mxu0 0.0
    %v7995 = vand.u32 %v7025, 4294901760
    %v7996 = vsub.f32 %v7025, %v7995
    %v7997 = vand.u32 %v7996, 4294901760
    %7998 = vmatpush1.msra.mxu0 %v7997
    %7999 = vmatprep.subr.mxu0 0.0
    %v8000 = vand.u32 %v7026, 4294901760
    %v8001 = vsub.f32 %v7026, %v8000
    %v8002 = vand.u32 %v8001, 4294901760
    %8003 = vmatpush1.msra.mxu0 %v8002
    %8004 = vmatprep.subr.mxu0 0.0
    %8005 = vmatpush1.msra.mxu0 0.0
    %8006 = vmatprep.subr.mxu0 0.0
    %8007 = vmatpush1.msra.mxu0 0.0
    %8008 = vmatprep.subr.mxu0 0.0
    %8009 = vmatpush1.msra.mxu0 0.0
    %8010 = vmatprep.subr.mxu0 0.0
    %8011 = vmatpush1.msra.mxu0 0.0
    %8012 = vmatprep.subr.mxu0 0.0
    %8013 = vmatpush1.msra.mxu0 0.0
    %8014 = vmatprep.subr.mxu0 0.0
    %8015 = vmatpush1.msra.mxu0 0.0
    %8016 = vmatprep.subr.mxu0 0.0
    %8017 = vmatpush1.msra.mxu0 0.0
    %8018 = vmatprep.subr.mxu0 0.0
    %8019 = vmatpush1.msra.mxu0 0.0
    %8020 = vmatprep.subr.mxu0 0.0
    %8021 = vmatpush1.msra.mxu0 0.0
    %8022 = vmatprep.subr.mxu0 0.0
    %8023 = vmatpush1.msra.mxu0 0.0
    %8024 = vmatprep.subr.mxu0 0.0
    %8025 = vmatpush1.msra.mxu0 0.0
    %8026 = vmatprep.subr.mxu0 0.0
    %8027 = vmatpush1.msra.mxu0 0.0
    %8028 = vmatprep.subr.mxu0 0.0
    %8029 = vmatpush1.msra.mxu0 0.0
    %8030 = vmatprep.subr.mxu0 0.0
    %8031 = vmatpush1.msra.mxu0 0.0
    %8032 = vmatprep.subr.mxu0 0.0
    %8033 = vmatpush1.msra.mxu0 0.0
    %8034 = vmatprep.subr.mxu0 0.0
    %8035 = vmatpush1.msra.mxu0 0.0
    %8036 = vmatprep.subr.mxu0 0.0
    %8037 = vmatpush1.msra.mxu0 0.0
    %8038 = vmatprep.subr.mxu0 0.0
    %8039 = vmatpush1.msra.mxu0 0.0
    %8040 = vmatprep.subr.mxu0 0.0
    %8041 = vmatpush1.msra.mxu0 0.0
    %8042 = vmatprep.subr.mxu0 0.0
    %8043 = vmatpush1.msra.mxu0 0.0
    %8044 = vmatprep.subr.mxu0 0.0
    %8045 = vmatpush1.msra.mxu0 0.0
    %8046 = vmatprep.subr.mxu0 0.0
    %8047 = vmatpush1.msra.mxu0 0.0
    %8048 = vmatprep.subr.mxu0 0.0
    %8049 = vmatpush1.msra.mxu0 0.0
    %8050 = vmatprep.subr.mxu0 0.0
    %8051 = vmatpush1.msra.mxu0 0.0
    %8052 = vmatprep.subr.mxu0 0.0
    %8053 = vmatpush1.msra.mxu0 0.0
    %8054 = vmatprep.subr.mxu0 0.0
    %8055 = vmatpush1.msra.mxu0 0.0
    %8056 = vmatprep.subr.mxu0 0.0
    %8057 = vmatpush1.msra.mxu0 0.0
    %8058 = vmatprep.subr.mxu0 0.0
    %8059 = vmatpush1.msra.mxu0 0.0
    %8060 = vmatprep.mubr.f32.mxu0 0.0
    %v8061 = vand.u32 %v7622, 4294901760
    %8062 = vmatmul.mubr.f32.gmra.mrb[0].mxu0 %v8061
    %v8063 = vpop.f32.mrb[0].mxu0
    %v8064 = vadd.f32 %v7973, %v8063
    %v8065 = vpop.f32.mrb[0].mxu0
    %8066 = vmatprep.mubr.f32.mxu0 0.0
    %v8067 = vand.u32 %v7624, 4294901760
    %8068 = vmatmul.mubr.f32.gmra.mrb[0].mxu0 %v8067
    %v8069 = vpop.f32.mrb[0].mxu0
    %v8070 = vadd.f32 %v7981, %v8069
    %v8071 = vpop.f32.mrb[0].mxu0
    %8072 = vdwg.mxu0
    %8073 = vmatprep.subr.mxu0 0.0
    %v8074 = vand.u32 %v7023, 4294901760
    %8075 = vmatpush1.msra.mxu0 %v8074
    %8076 = vmatprep.subr.mxu0 0.0
    %v8077 = vand.u32 %v7024, 4294901760
    %8078 = vmatpush1.msra.mxu0 %v8077
    %8079 = vmatprep.subr.mxu0 0.0
    %v8080 = vand.u32 %v7025, 4294901760
    %8081 = vmatpush1.msra.mxu0 %v8080
    %8082 = vmatprep.subr.mxu0 0.0
    %v8083 = vand.u32 %v7026, 4294901760
    %8084 = vmatpush1.msra.mxu0 %v8083
    %8085 = vmatprep.subr.mxu0 0.0
    %8086 = vmatpush1.msra.mxu0 0.0
    %8087 = vmatprep.subr.mxu0 0.0
    %8088 = vmatpush1.msra.mxu0 0.0
    %8089 = vmatprep.subr.mxu0 0.0
    %8090 = vmatpush1.msra.mxu0 0.0
    %8091 = vmatprep.subr.mxu0 0.0
    %8092 = vmatpush1.msra.mxu0 0.0
    %8093 = vmatprep.subr.mxu0 0.0
    %8094 = vmatpush1.msra.mxu0 0.0
    %8095 = vmatprep.subr.mxu0 0.0
    %8096 = vmatpush1.msra.mxu0 0.0
    %8097 = vmatprep.subr.mxu0 0.0
    %8098 = vmatpush1.msra.mxu0 0.0
    %8099 = vmatprep.subr.mxu0 0.0
    %8100 = vmatpush1.msra.mxu0 0.0
    %8101 = vmatprep.subr.mxu0 0.0
    %8102 = vmatpush1.msra.mxu0 0.0
    %8103 = vmatprep.subr.mxu0 0.0
    %8104 = vmatpush1.msra.mxu0 0.0
    %8105 = vmatprep.subr.mxu0 0.0
    %8106 = vmatpush1.msra.mxu0 0.0
    %8107 = vmatprep.subr.mxu0 0.0
    %8108 = vmatpush1.msra.mxu0 0.0
    %8109 = vmatprep.subr.mxu0 0.0
    %8110 = vmatpush1.msra.mxu0 0.0
    %8111 = vmatprep.subr.mxu0 0.0
    %8112 = vmatpush1.msra.mxu0 0.0
    %8113 = vmatprep.subr.mxu0 0.0
    %8114 = vmatpush1.msra.mxu0 0.0
    %8115 = vmatprep.subr.mxu0 0.0
    %8116 = vmatpush1.msra.mxu0 0.0
    %8117 = vmatprep.subr.mxu0 0.0
    %8118 = vmatpush1.msra.mxu0 0.0
    %8119 = vmatprep.subr.mxu0 0.0
    %8120 = vmatpush1.msra.mxu0 0.0
    %8121 = vmatprep.subr.mxu0 0.0
    %8122 = vmatpush1.msra.mxu0 0.0
    %8123 = vmatprep.subr.mxu0 0.0
    %8124 = vmatpush1.msra.mxu0 0.0
    %8125 = vmatprep.subr.mxu0 0.0
    %8126 = vmatpush1.msra.mxu0 0.0
    %8127 = vmatprep.subr.mxu0 0.0
    %8128 = vmatpush1.msra.mxu0 0.0
    %8129 = vmatprep.subr.mxu0 0.0
    %8130 = vmatpush1.msra.mxu0 0.0
    %8131 = vmatprep.subr.mxu0 0.0
    %8132 = vmatpush1.msra.mxu0 0.0
    %8133 = vmatprep.subr.mxu0 0.0
    %8134 = vmatpush1.msra.mxu0 0.0
    %8135 = vmatprep.subr.mxu0 0.0
    %8136 = vmatpush1.msra.mxu0 0.0
    %8137 = vmatprep.subr.mxu0 0.0
    %8138 = vmatpush1.msra.mxu0 0.0
    %8139 = vmatprep.subr.mxu0 0.0
    %8140 = vmatpush1.msra.mxu0 0.0
    %8141 = vmatprep.mubr.f32.mxu0 0.0
    %v8142 = vand.u32 %v7622, 4294901760
    %8143 = vmatmul.mubr.f32.gmra.mrb[0].mxu0 %v8142
    %v8144 = vpop.f32.mrb[0].mxu0
    %v8145 = vadd.f32 %v8064, %v8144
    %v8146 = vpop.f32.mrb[0].mxu0
    %8147 = vmatprep.mubr.f32.mxu0 0.0
    %v8148 = vand.u32 %v7624, 4294901760
    %8149 = vmatmul.mubr.f32.gmra.mrb[0].mxu0 %v8148
    %v8150 = vpop.f32.mrb[0].mxu0
    %v8151 = vadd.f32 %v8070, %v8150
    %v8152 = vpop.f32.mrb[0].mxu0
    %8153 = vdwg.mxu0
    %v8154 = vadd.f32 %v6995, %v8145
    %v8155 = vadd.f32 %v7001, %v8151
    %v8156 = vmul.f32 %v8154, %v7021
    %v8157 = vmul.f32 %v8155, %v7021
    %v8158 = vxor.u32 %v8156, 2147483648
    %v8159 = vxor.u32 %v8157, 2147483648
    %v8160 = vmul.f32 %v8158, 1.442695
    %v8161 = vpow.pop %v8160
    %v8162 = vmul.f32 %v8159, 1.442695
    %v8163 = vpow.pop %v8162
    %v8164 = vadd.f32 %v8161, 1.0
    %v8165 = vadd.f32 %v8163, 1.0
    %v8166 = vrcp.pop %v8164
    %v8167 = vmul.f32 1.0, %v8166
    %v8168 = vrcp.pop %v8165
    %v8169 = vmul.f32 1.0, %v8168
    %v8170 = vmul.f32 %v8167, %v7021
    %v8171 = vmul.f32 %v8169, %v7021
    %v8172 = vadd.f32 %v8170, %v7022
    %v8173 = vadd.f32 %v8171, %v7022
    %v8174 = vmul.f32 %v8172, %v7598
    %v8175 = vmul.f32 %v8173, %v7599
    %8178 = vrot.lane.b32.xlu0 %v8172, 64
    %v8179 = vpop.permute.xlu0 %8178
    %8180 = vrot.lane.b32.xlu0 %v8173, 64
    %v8181 = vpop.permute.xlu0 %8180
    %v8184 = vmul.f32 %v8172, %v8179
    %v8185 = vmul.f32 %v8173, %v8181
    %8188 = vrot.lane.b32.xlu0 %v8184, 32
    %v8189 = vpop.permute.xlu0 %8188
    %8190 = vrot.lane.b32.xlu0 %v8185, 32
    %v8191 = vpop.permute.xlu0 %8190
    %v8194 = vadd.f32 %v8174, %v8189
    %v8195 = vadd.f32 %v8175, %v8191
    %v8196 = vtanh.pop %v8194
    %v8197 = vtanh.pop %v8195
    %8200 = vrot.lane.b32.xlu0 %v8196, 64
    %v8201 = vpop.permute.xlu0 %8200
    %8202 = vrot.lane.b32.xlu0 %v8197, 64
    %v8203 = vpop.permute.xlu0 %8202
    %v8206 = vmul.f32 %v8172, %v8201
    %v8207 = vmul.f32 %v8173, %v8203
    %8210 = vrot.lane.b32.xlu0 %v8206, 64
    %v8211 = vpop.permute.xlu0 %8210
    %8212 = vrot.lane.b32.xlu0 %v8207, 64
    %v8213 = vpop.permute.xlu0 %8212
    %vm8216 = vcmask 523520
    %8217 = vst.msk [vmem:[#allocation8] sm:$0xff] %vm8216, %v8211
    %8218 = vst.msk [vmem:[#allocation8 + $0x8] sm:$0xff] %vm8216, %v8213
    %8219 = vrot.lane.b32.xlu0 %v8206, 32
    %v8220 = vpop.permute.xlu0 %8219
    %8221 = vrot.lane.b32.xlu0 %v8207, 32
    %v8222 = vpop.permute.xlu0 %8221
    %v8223 = vsel %vm1098, %v8220, 0
    %v8225 = vsel %vm1098, %v8222, 0
    %8227 = vmatprep.subr.mxu0 0.0
    %v8228 = vand.u32 %v7023, 4294901760
    %8229 = vmatpush1.msra.mxu0 %v8228
    %8230 = vmatprep.subr.mxu0 0.0
    %v8231 = vand.u32 %v7024, 4294901760
    %8232 = vmatpush1.msra.mxu0 %v8231
    %8233 = vmatprep.subr.mxu0 0.0
    %v8234 = vand.u32 %v7025, 4294901760
    %8235 = vmatpush1.msra.mxu0 %v8234
    %8236 = vmatprep.subr.mxu0 0.0
    %v8237 = vand.u32 %v7026, 4294901760
    %8238 = vmatpush1.msra.mxu0 %v8237
    %8239 = vmatprep.subr.mxu0 0.0
    %8240 = vmatpush1.msra.mxu0 0.0
    %8241 = vmatprep.subr.mxu0 0.0
    %8242 = vmatpush1.msra.mxu0 0.0
    %8243 = vmatprep.subr.mxu0 0.0
    %8244 = vmatpush1.msra.mxu0 0.0
    %8245 = vmatprep.subr.mxu0 0.0
    %8246 = vmatpush1.msra.mxu0 0.0
    %8247 = vmatprep.subr.mxu0 0.0
    %8248 = vmatpush1.msra.mxu0 0.0
    %8249 = vmatprep.subr.mxu0 0.0
    %8250 = vmatpush1.msra.mxu0 0.0
    %8251 = vmatprep.subr.mxu0 0.0
    %8252 = vmatpush1.msra.mxu0 0.0
    %8253 = vmatprep.subr.mxu0 0.0
    %8254 = vmatpush1.msra.mxu0 0.0
    %8255 = vmatprep.subr.mxu0 0.0
    %8256 = vmatpush1.msra.mxu0 0.0
    %8257 = vmatprep.subr.mxu0 0.0
    %8258 = vmatpush1.msra.mxu0 0.0
    %8259 = vmatprep.subr.mxu0 0.0
    %8260 = vmatpush1.msra.mxu0 0.0
    %8261 = vmatprep.subr.mxu0 0.0
    %8262 = vmatpush1.msra.mxu0 0.0
    %8263 = vmatprep.subr.mxu0 0.0
    %8264 = vmatpush1.msra.mxu0 0.0
    %8265 = vmatprep.subr.mxu0 0.0
    %8266 = vmatpush1.msra.mxu0 0.0
    %8267 = vmatprep.subr.mxu0 0.0
    %8268 = vmatpush1.msra.mxu0 0.0
    %8269 = vmatprep.subr.mxu0 0.0
    %8270 = vmatpush1.msra.mxu0 0.0
    %8271 = vmatprep.subr.mxu0 0.0
    %8272 = vmatpush1.msra.mxu0 0.0
    %8273 = vmatprep.subr.mxu0 0.0
    %8274 = vmatpush1.msra.mxu0 0.0
    %8275 = vmatprep.subr.mxu0 0.0
    %8276 = vmatpush1.msra.mxu0 0.0
    %8277 = vmatprep.subr.mxu0 0.0
    %8278 = vmatpush1.msra.mxu0 0.0
    %8279 = vmatprep.subr.mxu0 0.0
    %8280 = vmatpush1.msra.mxu0 0.0
    %8281 = vmatprep.subr.mxu0 0.0
    %8282 = vmatpush1.msra.mxu0 0.0
    %8283 = vmatprep.subr.mxu0 0.0
    %8284 = vmatpush1.msra.mxu0 0.0
    %8285 = vmatprep.subr.mxu0 0.0
    %8286 = vmatpush1.msra.mxu0 0.0
    %8287 = vmatprep.subr.mxu0 0.0
    %8288 = vmatpush1.msra.mxu0 0.0
    %8289 = vmatprep.subr.mxu0 0.0
    %8290 = vmatpush1.msra.mxu0 0.0
    %8291 = vmatprep.subr.mxu0 0.0
    %8292 = vmatpush1.msra.mxu0 0.0
    %8293 = vmatprep.subr.mxu0 0.0
    %8294 = vmatpush1.msra.mxu0 0.0
    %8295 = vmatprep.mubr.f32.mxu0 0.0
    %v8296 = vand.u32 %v8223, 4294901760
    %v8297 = vsub.f32 %v8223, %v8296
    %v8298 = vand.u32 %v8297, 4294901760
    %v8299 = vsub.f32 %v8297, %v8298
    %v8300 = vand.u32 %v8299, 4294901760
    %8301 = vmatmul.mubr.f32.gmra.mrb[0].mxu0 %v8300
    %v8302 = vpop.f32.mrb[0].mxu0
    %v8303 = vadd.f32 0.0, %v8302
    %v8304 = vpop.f32.mrb[0].mxu0
    %8305 = vmatprep.mubr.f32.mxu0 0.0
    %v8306 = vand.u32 %v8225, 4294901760
    %v8307 = vsub.f32 %v8225, %v8306
    %v8308 = vand.u32 %v8307, 4294901760
    %v8309 = vsub.f32 %v8307, %v8308
    %v8310 = vand.u32 %v8309, 4294901760
    %8311 = vmatmul.mubr.f32.gmra.mrb[0].mxu0 %v8310
    %v8312 = vpop.f32.mrb[0].mxu0
    %v8313 = vadd.f32 0.0, %v8312
    %v8314 = vpop.f32.mrb[0].mxu0
    %8315 = vdwg.mxu0
    %8316 = vmatprep.subr.mxu0 0.0
    %v8317 = vand.u32 %v7023, 4294901760
    %v8318 = vsub.f32 %v7023, %v8317
    %v8319 = vand.u32 %v8318, 4294901760
    %v8320 = vsub.f32 %v8318, %v8319
    %v8321 = vand.u32 %v8320, 4294901760
    %8322 = vmatpush1.msra.mxu0 %v8321
    %8323 = vmatprep.subr.mxu0 0.0
    %v8324 = vand.u32 %v7024, 4294901760
    %v8325 = vsub.f32 %v7024, %v8324
    %v8326 = vand.u32 %v8325, 4294901760
    %v8327 = vsub.f32 %v8325, %v8326
    %v8328 = vand.u32 %v8327, 4294901760
    %8329 = vmatpush1.msra.mxu0 %v8328
    %8330 = vmatprep.subr.mxu0 0.0
    %v8331 = vand.u32 %v7025, 4294901760
    %v8332 = vsub.f32 %v7025, %v8331
    %v8333 = vand.u32 %v8332, 4294901760
    %v8334 = vsub.f32 %v8332, %v8333
    %v8335 = vand.u32 %v8334, 4294901760
    %8336 = vmatpush1.msra.mxu0 %v8335
    %8337 = vmatprep.subr.mxu0 0.0
    %v8338 = vand.u32 %v7026, 4294901760
    %v8339 = vsub.f32 %v7026, %v8338
    %v8340 = vand.u32 %v8339, 4294901760
    %v8341 = vsub.f32 %v8339, %v8340
    %v8342 = vand.u32 %v8341, 4294901760
    %8343 = vmatpush1.msra.mxu0 %v8342
    %8344 = vmatprep.subr.mxu0 0.0
    %8345 = vmatpush1.msra.mxu0 0.0
    %8346 = vmatprep.subr.mxu0 0.0
    %8347 = vmatpush1.msra.mxu0 0.0
    %8348 = vmatprep.subr.mxu0 0.0
    %8349 = vmatpush1.msra.mxu0 0.0
    %8350 = vmatprep.subr.mxu0 0.0
    %8351 = vmatpush1.msra.mxu0 0.0
    %8352 = vmatprep.subr.mxu0 0.0
    %8353 = vmatpush1.msra.mxu0 0.0
    %8354 = vmatprep.subr.mxu0 0.0
    %8355 = vmatpush1.msra.mxu0 0.0
    %8356 = vmatprep.subr.mxu0 0.0
    %8357 = vmatpush1.msra.mxu0 0.0
    %8358 = vmatprep.subr.mxu0 0.0
    %8359 = vmatpush1.msra.mxu0 0.0
    %8360 = vmatprep.subr.mxu0 0.0
    %8361 = vmatpush1.msra.mxu0 0.0
    %8362 = vmatprep.subr.mxu0 0.0
    %8363 = vmatpush1.msra.mxu0 0.0
    %8364 = vmatprep.subr.mxu0 0.0
    %8365 = vmatpush1.msra.mxu0 0.0
    %8366 = vmatprep.subr.mxu0 0.0
    %8367 = vmatpush1.msra.mxu0 0.0
    %8368 = vmatprep.subr.mxu0 0.0
    %8369 = vmatpush1.msra.mxu0 0.0
    %8370 = vmatprep.subr.mxu0 0.0
    %8371 = vmatpush1.msra.mxu0 0.0
    %8372 = vmatprep.subr.mxu0 0.0
    %8373 = vmatpush1.msra.mxu0 0.0
    %8374 = vmatprep.subr.mxu0 0.0
    %8375 = vmatpush1.msra.mxu0 0.0
    %8376 = vmatprep.subr.mxu0 0.0
    %8377 = vmatpush1.msra.mxu0 0.0
    %8378 = vmatprep.subr.mxu0 0.0
    %8379 = vmatpush1.msra.mxu0 0.0
    %8380 = vmatprep.subr.mxu0 0.0
    %8381 = vmatpush1.msra.mxu0 0.0
    %8382 = vmatprep.subr.mxu0 0.0
    %8383 = vmatpush1.msra.mxu0 0.0
    %8384 = vmatprep.subr.mxu0 0.0
    %8385 = vmatpush1.msra.mxu0 0.0
    %8386 = vmatprep.subr.mxu0 0.0
    %8387 = vmatpush1.msra.mxu0 0.0
    %8388 = vmatprep.subr.mxu0 0.0
    %8389 = vmatpush1.msra.mxu0 0.0
    %8390 = vmatprep.subr.mxu0 0.0
    %8391 = vmatpush1.msra.mxu0 0.0
    %8392 = vmatprep.subr.mxu0 0.0
    %8393 = vmatpush1.msra.mxu0 0.0
    %8394 = vmatprep.subr.mxu0 0.0
    %8395 = vmatpush1.msra.mxu0 0.0
    %8396 = vmatprep.subr.mxu0 0.0
    %8397 = vmatpush1.msra.mxu0 0.0
    %8398 = vmatprep.subr.mxu0 0.0
    %8399 = vmatpush1.msra.mxu0 0.0
    %8400 = vmatprep.mubr.f32.mxu0 0.0
    %v8401 = vand.u32 %v8223, 4294901760
    %8402 = vmatmul.mubr.f32.gmra.mrb[0].mxu0 %v8401
    %v8403 = vpop.f32.mrb[0].mxu0
    %v8404 = vadd.f32 %v8303, %v8403
    %v8405 = vpop.f32.mrb[0].mxu0
    %8406 = vmatprep.mubr.f32.mxu0 0.0
    %v8407 = vand.u32 %v8225, 4294901760
    %8408 = vmatmul.mubr.f32.gmra.mrb[0].mxu0 %v8407
    %v8409 = vpop.f32.mrb[0].mxu0
    %v8410 = vadd.f32 %v8313, %v8409
    %v8411 = vpop.f32.mrb[0].mxu0
    %8412 = vdwg.mxu0
    %8413 = vmatprep.subr.mxu0 0.0
    %v8414 = vand.u32 %v7023, 4294901760
    %v8415 = vsub.f32 %v7023, %v8414
    %8416 = vmatpush1.msra.mxu0 %v8415
    %8417 = vmatprep.subr.mxu0 0.0
    %v8418 = vand.u32 %v7024, 4294901760
    %v8419 = vsub.f32 %v7024, %v8418
    %8420 = vmatpush1.msra.mxu0 %v8419
    %8421 = vmatprep.subr.mxu0 0.0
    %v8422 = vand.u32 %v7025, 4294901760
    %v8423 = vsub.f32 %v7025, %v8422
    %8424 = vmatpush1.msra.mxu0 %v8423
    %8425 = vmatprep.subr.mxu0 0.0
    %v8426 = vand.u32 %v7026, 4294901760
    %v8427 = vsub.f32 %v7026, %v8426
    %8428 = vmatpush1.msra.mxu0 %v8427
    %8429 = vmatprep.subr.mxu0 0.0
    %8430 = vmatpush1.msra.mxu0 0.0
    %8431 = vmatprep.subr.mxu0 0.0
    %8432 = vmatpush1.msra.mxu0 0.0
    %8433 = vmatprep.subr.mxu0 0.0
    %8434 = vmatpush1.msra.mxu0 0.0
    %8435 = vmatprep.subr.mxu0 0.0
    %8436 = vmatpush1.msra.mxu0 0.0
    %8437 = vmatprep.subr.mxu0 0.0
    %8438 = vmatpush1.msra.mxu0 0.0
    %8439 = vmatprep.subr.mxu0 0.0
    %8440 = vmatpush1.msra.mxu0 0.0
    %8441 = vmatprep.subr.mxu0 0.0
    %8442 = vmatpush1.msra.mxu0 0.0
    %8443 = vmatprep.subr.mxu0 0.0
    %8444 = vmatpush1.msra.mxu0 0.0
    %8445 = vmatprep.subr.mxu0 0.0
    %8446 = vmatpush1.msra.mxu0 0.0
    %8447 = vmatprep.subr.mxu0 0.0
    %8448 = vmatpush1.msra.mxu0 0.0
    %8449 = vmatprep.subr.mxu0 0.0
    %8450 = vmatpush1.msra.mxu0 0.0
    %8451 = vmatprep.subr.mxu0 0.0
    %8452 = vmatpush1.msra.mxu0 0.0
    %8453 = vmatprep.subr.mxu0 0.0
    %8454 = vmatpush1.msra.mxu0 0.0
    %8455 = vmatprep.subr.mxu0 0.0
    %8456 = vmatpush1.msra.mxu0 0.0
    %8457 = vmatprep.subr.mxu0 0.0
    %8458 = vmatpush1.msra.mxu0 0.0
    %8459 = vmatprep.subr.mxu0 0.0
    %8460 = vmatpush1.msra.mxu0 0.0
    %8461 = vmatprep.subr.mxu0 0.0
    %8462 = vmatpush1.msra.mxu0 0.0
    %8463 = vmatprep.subr.mxu0 0.0
    %8464 = vmatpush1.msra.mxu0 0.0
    %8465 = vmatprep.subr.mxu0 0.0
    %8466 = vmatpush1.msra.mxu0 0.0
    %8467 = vmatprep.subr.mxu0 0.0
    %8468 = vmatpush1.msra.mxu0 0.0
    %8469 = vmatprep.subr.mxu0 0.0
    %8470 = vmatpush1.msra.mxu0 0.0
    %8471 = vmatprep.subr.mxu0 0.0
    %8472 = vmatpush1.msra.mxu0 0.0
    %8473 = vmatprep.subr.mxu0 0.0
    %8474 = vmatpush1.msra.mxu0 0.0
    %8475 = vmatprep.subr.mxu0 0.0
    %8476 = vmatpush1.msra.mxu0 0.0
    %8477 = vmatprep.subr.mxu0 0.0
    %8478 = vmatpush1.msra.mxu0 0.0
    %8479 = vmatprep.subr.mxu0 0.0
    %8480 = vmatpush1.msra.mxu0 0.0
    %8481 = vmatprep.subr.mxu0 0.0
    %8482 = vmatpush1.msra.mxu0 0.0
    %8483 = vmatprep.subr.mxu0 0.0
    %8484 = vmatpush1.msra.mxu0 0.0
    %8485 = vmatprep.mubr.f32.mxu0 0.0
    %v8486 = vand.u32 %v8223, 4294901760
    %v8487 = vsub.f32 %v8223, %v8486
    %8488 = vmatmul.mubr.f32.gmra.mrb[0].mxu0 %v8487
    %v8489 = vpop.f32.mrb[0].mxu0
    %v8490 = vadd.f32 %v8404, %v8489
    %v8491 = vpop.f32.mrb[0].mxu0
    %8492 = vmatprep.mubr.f32.mxu0 0.0
    %v8493 = vand.u32 %v8225, 4294901760
    %v8494 = vsub.f32 %v8225, %v8493
    %8495 = vmatmul.mubr.f32.gmra.mrb[0].mxu0 %v8494
    %v8496 = vpop.f32.mrb[0].mxu0
    %v8497 = vadd.f32 %v8410, %v8496
    %v8498 = vpop.f32.mrb[0].mxu0
    %8499 = vdwg.mxu0
    %8500 = vmatprep.subr.mxu0 0.0
    %v8501 = vand.u32 %v7023, 4294901760
    %8502 = vmatpush1.msra.mxu0 %v8501
    %8503 = vmatprep.subr.mxu0 0.0
    %v8504 = vand.u32 %v7024, 4294901760
    %8505 = vmatpush1.msra.mxu0 %v8504
    %8506 = vmatprep.subr.mxu0 0.0
    %v8507 = vand.u32 %v7025, 4294901760
    %8508 = vmatpush1.msra.mxu0 %v8507
    %8509 = vmatprep.subr.mxu0 0.0
    %v8510 = vand.u32 %v7026, 4294901760
    %8511 = vmatpush1.msra.mxu0 %v8510
    %8512 = vmatprep.subr.mxu0 0.0
    %8513 = vmatpush1.msra.mxu0 0.0
    %8514 = vmatprep.subr.mxu0 0.0
    %8515 = vmatpush1.msra.mxu0 0.0
    %8516 = vmatprep.subr.mxu0 0.0
    %8517 = vmatpush1.msra.mxu0 0.0
    %8518 = vmatprep.subr.mxu0 0.0
    %8519 = vmatpush1.msra.mxu0 0.0
    %8520 = vmatprep.subr.mxu0 0.0
    %8521 = vmatpush1.msra.mxu0 0.0
    %8522 = vmatprep.subr.mxu0 0.0
    %8523 = vmatpush1.msra.mxu0 0.0
    %8524 = vmatprep.subr.mxu0 0.0
    %8525 = vmatpush1.msra.mxu0 0.0
    %8526 = vmatprep.subr.mxu0 0.0
    %8527 = vmatpush1.msra.mxu0 0.0
    %8528 = vmatprep.subr.mxu0 0.0
    %8529 = vmatpush1.msra.mxu0 0.0
    %8530 = vmatprep.subr.mxu0 0.0
    %8531 = vmatpush1.msra.mxu0 0.0
    %8532 = vmatprep.subr.mxu0 0.0
    %8533 = vmatpush1.msra.mxu0 0.0
    %8534 = vmatprep.subr.mxu0 0.0
    %8535 = vmatpush1.msra.mxu0 0.0
    %8536 = vmatprep.subr.mxu0 0.0
    %8537 = vmatpush1.msra.mxu0 0.0
    %8538 = vmatprep.subr.mxu0 0.0
    %8539 = vmatpush1.msra.mxu0 0.0
    %8540 = vmatprep.subr.mxu0 0.0
    %8541 = vmatpush1.msra.mxu0 0.0
    %8542 = vmatprep.subr.mxu0 0.0
    %8543 = vmatpush1.msra.mxu0 0.0
    %8544 = vmatprep.subr.mxu0 0.0
    %8545 = vmatpush1.msra.mxu0 0.0
    %8546 = vmatprep.subr.mxu0 0.0
    %8547 = vmatpush1.msra.mxu0 0.0
    %8548 = vmatprep.subr.mxu0 0.0
    %8549 = vmatpush1.msra.mxu0 0.0
    %8550 = vmatprep.subr.mxu0 0.0
    %8551 = vmatpush1.msra.mxu0 0.0
    %8552 = vmatprep.subr.mxu0 0.0
    %8553 = vmatpush1.msra.mxu0 0.0
    %8554 = vmatprep.subr.mxu0 0.0
    %8555 = vmatpush1.msra.mxu0 0.0
    %8556 = vmatprep.subr.mxu0 0.0
    %8557 = vmatpush1.msra.mxu0 0.0
    %8558 = vmatprep.subr.mxu0 0.0
    %8559 = vmatpush1.msra.mxu0 0.0
    %8560 = vmatprep.subr.mxu0 0.0
    %8561 = vmatpush1.msra.mxu0 0.0
    %8562 = vmatprep.subr.mxu0 0.0
    %8563 = vmatpush1.msra.mxu0 0.0
    %8564 = vmatprep.subr.mxu0 0.0
    %8565 = vmatpush1.msra.mxu0 0.0
    %8566 = vmatprep.subr.mxu0 0.0
    %8567 = vmatpush1.msra.mxu0 0.0
    %8568 = vmatprep.mubr.f32.mxu0 0.0
    %v8569 = vand.u32 %v8223, 4294901760
    %v8570 = vsub.f32 %v8223, %v8569
    %v8571 = vand.u32 %v8570, 4294901760
    %8572 = vmatmul.mubr.f32.gmra.mrb[0].mxu0 %v8571
    %v8573 = vpop.f32.mrb[0].mxu0
    %v8574 = vadd.f32 %v8490, %v8573
    %v8575 = vpop.f32.mrb[0].mxu0
    %8576 = vmatprep.mubr.f32.mxu0 0.0
    %v8577 = vand.u32 %v8225, 4294901760
    %v8578 = vsub.f32 %v8225, %v8577
    %v8579 = vand.u32 %v8578, 4294901760
    %8580 = vmatmul.mubr.f32.gmra.mrb[0].mxu0 %v8579
    %v8581 = vpop.f32.mrb[0].mxu0
    %v8582 = vadd.f32 %v8497, %v8581
    %v8583 = vpop.f32.mrb[0].mxu0
    %8584 = vdwg.mxu0
    %8585 = vmatprep.subr.mxu0 0.0
    %v8586 = vand.u32 %v7023, 4294901760
    %v8587 = vsub.f32 %v7023, %v8586
    %v8588 = vand.u32 %v8587, 4294901760
    %8589 = vmatpush1.msra.mxu0 %v8588
    %8590 = vmatprep.subr.mxu0 0.0
    %v8591 = vand.u32 %v7024, 4294901760
    %v8592 = vsub.f32 %v7024, %v8591
    %v8593 = vand.u32 %v8592, 4294901760
    %8594 = vmatpush1.msra.mxu0 %v8593
    %8595 = vmatprep.subr.mxu0 0.0
    %v8596 = vand.u32 %v7025, 4294901760
    %v8597 = vsub.f32 %v7025, %v8596
    %v8598 = vand.u32 %v8597, 4294901760
    %8599 = vmatpush1.msra.mxu0 %v8598
    %8600 = vmatprep.subr.mxu0 0.0
    %v8601 = vand.u32 %v7026, 4294901760
    %v8602 = vsub.f32 %v7026, %v8601
    %v8603 = vand.u32 %v8602, 4294901760
    %8604 = vmatpush1.msra.mxu0 %v8603
    %8605 = vmatprep.subr.mxu0 0.0
    %8606 = vmatpush1.msra.mxu0 0.0
    %8607 = vmatprep.subr.mxu0 0.0
    %8608 = vmatpush1.msra.mxu0 0.0
    %8609 = vmatprep.subr.mxu0 0.0
    %8610 = vmatpush1.msra.mxu0 0.0
    %8611 = vmatprep.subr.mxu0 0.0
    %8612 = vmatpush1.msra.mxu0 0.0
    %8613 = vmatprep.subr.mxu0 0.0
    %8614 = vmatpush1.msra.mxu0 0.0
    %8615 = vmatprep.subr.mxu0 0.0
    %8616 = vmatpush1.msra.mxu0 0.0
    %8617 = vmatprep.subr.mxu0 0.0
    %8618 = vmatpush1.msra.mxu0 0.0
    %8619 = vmatprep.subr.mxu0 0.0
    %8620 = vmatpush1.msra.mxu0 0.0
    %8621 = vmatprep.subr.mxu0 0.0
    %8622 = vmatpush1.msra.mxu0 0.0
    %8623 = vmatprep.subr.mxu0 0.0
    %8624 = vmatpush1.msra.mxu0 0.0
    %8625 = vmatprep.subr.mxu0 0.0
    %8626 = vmatpush1.msra.mxu0 0.0
    %8627 = vmatprep.subr.mxu0 0.0
    %8628 = vmatpush1.msra.mxu0 0.0
    %8629 = vmatprep.subr.mxu0 0.0
    %8630 = vmatpush1.msra.mxu0 0.0
    %8631 = vmatprep.subr.mxu0 0.0
    %8632 = vmatpush1.msra.mxu0 0.0
    %8633 = vmatprep.subr.mxu0 0.0
    %8634 = vmatpush1.msra.mxu0 0.0
    %8635 = vmatprep.subr.mxu0 0.0
    %8636 = vmatpush1.msra.mxu0 0.0
    %8637 = vmatprep.subr.mxu0 0.0
    %8638 = vmatpush1.msra.mxu0 0.0
    %8639 = vmatprep.subr.mxu0 0.0
    %8640 = vmatpush1.msra.mxu0 0.0
    %8641 = vmatprep.subr.mxu0 0.0
    %8642 = vmatpush1.msra.mxu0 0.0
    %8643 = vmatprep.subr.mxu0 0.0
    %8644 = vmatpush1.msra.mxu0 0.0
    %8645 = vmatprep.subr.mxu0 0.0
    %8646 = vmatpush1.msra.mxu0 0.0
    %8647 = vmatprep.subr.mxu0 0.0
    %8648 = vmatpush1.msra.mxu0 0.0
    %8649 = vmatprep.subr.mxu0 0.0
    %8650 = vmatpush1.msra.mxu0 0.0
    %8651 = vmatprep.subr.mxu0 0.0
    %8652 = vmatpush1.msra.mxu0 0.0
    %8653 = vmatprep.subr.mxu0 0.0
    %8654 = vmatpush1.msra.mxu0 0.0
    %8655 = vmatprep.subr.mxu0 0.0
    %8656 = vmatpush1.msra.mxu0 0.0
    %8657 = vmatprep.subr.mxu0 0.0
    %8658 = vmatpush1.msra.mxu0 0.0
    %8659 = vmatprep.subr.mxu0 0.0
    %8660 = vmatpush1.msra.mxu0 0.0
    %8661 = vmatprep.mubr.f32.mxu0 0.0
    %v8662 = vand.u32 %v8223, 4294901760
    %8663 = vmatmul.mubr.f32.gmra.mrb[0].mxu0 %v8662
    %v8664 = vpop.f32.mrb[0].mxu0
    %v8665 = vadd.f32 %v8574, %v8664
    %v8666 = vpop.f32.mrb[0].mxu0
    %8667 = vmatprep.mubr.f32.mxu0 0.0
    %v8668 = vand.u32 %v8225, 4294901760
    %8669 = vmatmul.mubr.f32.gmra.mrb[0].mxu0 %v8668
    %v8670 = vpop.f32.mrb[0].mxu0
    %v8671 = vadd.f32 %v8582, %v8670
    %v8672 = vpop.f32.mrb[0].mxu0
    %8673 = vdwg.mxu0
    %8674 = vmatprep.subr.mxu0 0.0
    %v8675 = vand.u32 %v7023, 4294901760
    %8676 = vmatpush1.msra.mxu0 %v8675
    %8677 = vmatprep.subr.mxu0 0.0
    %v8678 = vand.u32 %v7024, 4294901760
    %8679 = vmatpush1.msra.mxu0 %v8678
    %8680 = vmatprep.subr.mxu0 0.0
    %v8681 = vand.u32 %v7025, 4294901760
    %8682 = vmatpush1.msra.mxu0 %v8681
    %8683 = vmatprep.subr.mxu0 0.0
    %v8684 = vand.u32 %v7026, 4294901760
    %8685 = vmatpush1.msra.mxu0 %v8684
    %8686 = vmatprep.subr.mxu0 0.0
    %8687 = vmatpush1.msra.mxu0 0.0
    %8688 = vmatprep.subr.mxu0 0.0
    %8689 = vmatpush1.msra.mxu0 0.0
    %8690 = vmatprep.subr.mxu0 0.0
    %8691 = vmatpush1.msra.mxu0 0.0
    %8692 = vmatprep.subr.mxu0 0.0
    %8693 = vmatpush1.msra.mxu0 0.0
    %8694 = vmatprep.subr.mxu0 0.0
    %8695 = vmatpush1.msra.mxu0 0.0
    %8696 = vmatprep.subr.mxu0 0.0
    %8697 = vmatpush1.msra.mxu0 0.0
    %8698 = vmatprep.subr.mxu0 0.0
    %8699 = vmatpush1.msra.mxu0 0.0
    %8700 = vmatprep.subr.mxu0 0.0
    %8701 = vmatpush1.msra.mxu0 0.0
    %8702 = vmatprep.subr.mxu0 0.0
    %8703 = vmatpush1.msra.mxu0 0.0
    %8704 = vmatprep.subr.mxu0 0.0
    %8705 = vmatpush1.msra.mxu0 0.0
    %8706 = vmatprep.subr.mxu0 0.0
    %8707 = vmatpush1.msra.mxu0 0.0
    %8708 = vmatprep.subr.mxu0 0.0
    %8709 = vmatpush1.msra.mxu0 0.0
    %8710 = vmatprep.subr.mxu0 0.0
    %8711 = vmatpush1.msra.mxu0 0.0
    %8712 = vmatprep.subr.mxu0 0.0
    %8713 = vmatpush1.msra.mxu0 0.0
    %8714 = vmatprep.subr.mxu0 0.0
    %8715 = vmatpush1.msra.mxu0 0.0
    %8716 = vmatprep.subr.mxu0 0.0
    %8717 = vmatpush1.msra.mxu0 0.0
    %8718 = vmatprep.subr.mxu0 0.0
    %8719 = vmatpush1.msra.mxu0 0.0
    %8720 = vmatprep.subr.mxu0 0.0
    %8721 = vmatpush1.msra.mxu0 0.0
    %8722 = vmatprep.subr.mxu0 0.0
    %8723 = vmatpush1.msra.mxu0 0.0
    %8724 = vmatprep.subr.mxu0 0.0
    %8725 = vmatpush1.msra.mxu0 0.0
    %8726 = vmatprep.subr.mxu0 0.0
    %8727 = vmatpush1.msra.mxu0 0.0
    %8728 = vmatprep.subr.mxu0 0.0
    %8729 = vmatpush1.msra.mxu0 0.0
    %8730 = vmatprep.subr.mxu0 0.0
    %8731 = vmatpush1.msra.mxu0 0.0
    %8732 = vmatprep.subr.mxu0 0.0
    %8733 = vmatpush1.msra.mxu0 0.0
    %8734 = vmatprep.subr.mxu0 0.0
    %8735 = vmatpush1.msra.mxu0 0.0
    %8736 = vmatprep.subr.mxu0 0.0
    %8737 = vmatpush1.msra.mxu0 0.0
    %8738 = vmatprep.subr.mxu0 0.0
    %8739 = vmatpush1.msra.mxu0 0.0
    %8740 = vmatprep.subr.mxu0 0.0
    %8741 = vmatpush1.msra.mxu0 0.0
    %8742 = vmatprep.mubr.f32.mxu0 0.0
    %v8743 = vand.u32 %v8223, 4294901760
    %8744 = vmatmul.mubr.f32.gmra.mrb[0].mxu0 %v8743
    %v8745 = vpop.f32.mrb[0].mxu0
    %v8746 = vadd.f32 %v8665, %v8745
    %v8747 = vpop.f32.mrb[0].mxu0
    %8748 = vmatprep.mubr.f32.mxu0 0.0
    %v8749 = vand.u32 %v8225, 4294901760
    %8750 = vmatmul.mubr.f32.gmra.mrb[0].mxu0 %v8749
    %v8751 = vpop.f32.mrb[0].mxu0
    %v8752 = vadd.f32 %v8671, %v8751
    %v8753 = vpop.f32.mrb[0].mxu0
    %8754 = vdwg.mxu0
    %v8755 = vadd.f32 %v7007, %v8746
    %v8756 = vadd.f32 %v7013, %v8752
    %v8757 = vmul.f32 %v8755, %v7021
    %v8758 = vmul.f32 %v8756, %v7021
    %v8759 = vxor.u32 %v8757, 2147483648
    %v8760 = vxor.u32 %v8758, 2147483648
    %v8761 = vmul.f32 %v8759, 1.442695
    %v8762 = vpow.pop %v8761
    %v8763 = vmul.f32 %v8760, 1.442695
    %v8764 = vpow.pop %v8763
    %v8765 = vadd.f32 %v8762, 1.0
    %v8766 = vadd.f32 %v8764, 1.0
    %v8767 = vrcp.pop %v8765
    %v8768 = vmul.f32 1.0, %v8767
    %v8769 = vrcp.pop %v8766
    %v8770 = vmul.f32 1.0, %v8769
    %v8771 = vmul.f32 %v8768, %v7021
    %v8772 = vmul.f32 %v8770, %v7021
    %v8773 = vadd.f32 %v8771, %v7022
    %v8774 = vadd.f32 %v8772, %v7022
    %v8775 = vmul.f32 %v8773, %v8194
    %v8776 = vmul.f32 %v8774, %v8195
    %8779 = vrot.lane.b32.xlu0 %v8773, 64
    %v8780 = vpop.permute.xlu0 %8779
    %8781 = vrot.lane.b32.xlu0 %v8774, 64
    %v8782 = vpop.permute.xlu0 %8781
    %v8785 = vmul.f32 %v8773, %v8780
    %v8786 = vmul.f32 %v8774, %v8782
    %8789 = vrot.lane.b32.xlu0 %v8785, 32
    %v8790 = vpop.permute.xlu0 %8789
    %8791 = vrot.lane.b32.xlu0 %v8786, 32
    %v8792 = vpop.permute.xlu0 %8791
    %v8795 = vadd.f32 %v8775, %v8790
    %v8796 = vadd.f32 %v8776, %v8792
    %v8797 = vtanh.pop %v8795
    %v8798 = vtanh.pop %v8796
    %8801 = vrot.lane.b32.xlu0 %v8797, 64
    %v8802 = vpop.permute.xlu0 %8801
    %8803 = vrot.lane.b32.xlu0 %v8798, 64
    %v8804 = vpop.permute.xlu0 %8803
    %v8807 = vmul.f32 %v8773, %v8802
    %v8808 = vmul.f32 %v8774, %v8804
    %8811 = vrot.lane.b32.xlu0 %v8807, 96
    %v8812 = vpop.permute.xlu0 %8811
    %8813 = vrot.lane.b32.xlu0 %v8808, 96
    %v8814 = vpop.permute.xlu0 %8813
    %vm8817 = vcmask 785920
    %8818 = vst.msk [vmem:[#allocation8] sm:$0xff] %vm8817, %v8812
    %8819 = vst.msk [vmem:[#allocation8 + $0x8] sm:$0xff] %vm8817, %v8814
    %v8820 = vld [vmem:[%s6] sm:$0xff]
    %v8821 = vld [vmem:[%s6 + $0x8] sm:$0xff]
    %v8822 = vld [vmem:[%s6 + $0x10] sm:$0xff]
    %v8823 = vld [vmem:[%s6 + $0x18] sm:$0xff]
    %v8824 = vld [vmem:[%s8] sm:$0x1]
    %v8826 = vlaneseq
    %v8827 = vshrl.u32 %v8826, 7
    %v8828 = vsub.s32 0, %v8827
    %v8829 = vrot.slane %v8824, %v8828
    %8831 = vrot.lane.b32.xlu0 %v8807, 32
    %v8832 = vpop.permute.xlu0 %8831
    %8833 = vrot.lane.b32.xlu0 %v8808, 32
    %v8834 = vpop.permute.xlu0 %8833
    %v8835 = vsel %vm1098, %v8832, 0
    %v8837 = vsel %vm1098, %v8834, 0
    %8839 = vmatprep.subr.mxu0 0.0
    %v8840 = vand.u32 %v8820, 4294901760
    %8841 = vmatpush1.msra.mxu0 %v8840
    %8842 = vmatprep.subr.mxu0 0.0
    %v8843 = vand.u32 %v8821, 4294901760
    %8844 = vmatpush1.msra.mxu0 %v8843
    %8845 = vmatprep.subr.mxu0 0.0
    %v8846 = vand.u32 %v8822, 4294901760
    %8847 = vmatpush1.msra.mxu0 %v8846
    %8848 = vmatprep.subr.mxu0 0.0
    %v8849 = vand.u32 %v8823, 4294901760
    %8850 = vmatpush1.msra.mxu0 %v8849
    %8851 = vmatprep.subr.mxu0 0.0
    %8852 = vmatpush1.msra.mxu0 0.0
    %8853 = vmatprep.subr.mxu0 0.0
    %8854 = vmatpush1.msra.mxu0 0.0
    %8855 = vmatprep.subr.mxu0 0.0
    %8856 = vmatpush1.msra.mxu0 0.0
    %8857 = vmatprep.subr.mxu0 0.0
    %8858 = vmatpush1.msra.mxu0 0.0
    %8859 = vmatprep.subr.mxu0 0.0
    %8860 = vmatpush1.msra.mxu0 0.0
    %8861 = vmatprep.subr.mxu0 0.0
    %8862 = vmatpush1.msra.mxu0 0.0
    %8863 = vmatprep.subr.mxu0 0.0
    %8864 = vmatpush1.msra.mxu0 0.0
    %8865 = vmatprep.subr.mxu0 0.0
    %8866 = vmatpush1.msra.mxu0 0.0
    %8867 = vmatprep.subr.mxu0 0.0
    %8868 = vmatpush1.msra.mxu0 0.0
    %8869 = vmatprep.subr.mxu0 0.0
    %8870 = vmatpush1.msra.mxu0 0.0
    %8871 = vmatprep.subr.mxu0 0.0
    %8872 = vmatpush1.msra.mxu0 0.0
    %8873 = vmatprep.subr.mxu0 0.0
    %8874 = vmatpush1.msra.mxu0 0.0
    %8875 = vmatprep.subr.mxu0 0.0
    %8876 = vmatpush1.msra.mxu0 0.0
    %8877 = vmatprep.subr.mxu0 0.0
    %8878 = vmatpush1.msra.mxu0 0.0
    %8879 = vmatprep.subr.mxu0 0.0
    %8880 = vmatpush1.msra.mxu0 0.0
    %8881 = vmatprep.subr.mxu0 0.0
    %8882 = vmatpush1.msra.mxu0 0.0
    %8883 = vmatprep.subr.mxu0 0.0
    %8884 = vmatpush1.msra.mxu0 0.0
    %8885 = vmatprep.subr.mxu0 0.0
    %8886 = vmatpush1.msra.mxu0 0.0
    %8887 = vmatprep.subr.mxu0 0.0
    %8888 = vmatpush1.msra.mxu0 0.0
    %8889 = vmatprep.subr.mxu0 0.0
    %8890 = vmatpush1.msra.mxu0 0.0
    %8891 = vmatprep.subr.mxu0 0.0
    %8892 = vmatpush1.msra.mxu0 0.0
    %8893 = vmatprep.subr.mxu0 0.0
    %8894 = vmatpush1.msra.mxu0 0.0
    %8895 = vmatprep.subr.mxu0 0.0
    %8896 = vmatpush1.msra.mxu0 0.0
    %8897 = vmatprep.subr.mxu0 0.0
    %8898 = vmatpush1.msra.mxu0 0.0
    %8899 = vmatprep.subr.mxu0 0.0
    %8900 = vmatpush1.msra.mxu0 0.0
    %8901 = vmatprep.subr.mxu0 0.0
    %8902 = vmatpush1.msra.mxu0 0.0
    %8903 = vmatprep.subr.mxu0 0.0
    %8904 = vmatpush1.msra.mxu0 0.0
    %8905 = vmatprep.subr.mxu0 0.0
    %8906 = vmatpush1.msra.mxu0 0.0
    %8907 = vmatprep.mubr.f32.mxu0 0.0
    %v8908 = vand.u32 %v8835, 4294901760
    %v8909 = vsub.f32 %v8835, %v8908
    %v8910 = vand.u32 %v8909, 4294901760
    %v8911 = vsub.f32 %v8909, %v8910
    %v8912 = vand.u32 %v8911, 4294901760
    %8913 = vmatmul.mubr.f32.gmra.mrb[0].mxu0 %v8912
    %v8914 = vpop.f32.mrb[0].mxu0
    %v8915 = vadd.f32 %v8829, %v8914
    %v8916 = vpop.f32.mrb[0].mxu0
    %8917 = vmatprep.mubr.f32.mxu0 0.0
    %v8918 = vand.u32 %v8837, 4294901760
    %v8919 = vsub.f32 %v8837, %v8918
    %v8920 = vand.u32 %v8919, 4294901760
    %v8921 = vsub.f32 %v8919, %v8920
    %v8922 = vand.u32 %v8921, 4294901760
    %8923 = vmatmul.mubr.f32.gmra.mrb[0].mxu0 %v8922
    %v8924 = vpop.f32.mrb[0].mxu0
    %v8925 = vadd.f32 %v8829, %v8924
    %v8926 = vpop.f32.mrb[0].mxu0
    %8927 = vdwg.mxu0
    %8928 = vmatprep.subr.mxu0 0.0
    %v8929 = vand.u32 %v8820, 4294901760
    %v8930 = vsub.f32 %v8820, %v8929
    %v8931 = vand.u32 %v8930, 4294901760
    %v8932 = vsub.f32 %v8930, %v8931
    %v8933 = vand.u32 %v8932, 4294901760
    %8934 = vmatpush1.msra.mxu0 %v8933
    %8935 = vmatprep.subr.mxu0 0.0
    %v8936 = vand.u32 %v8821, 4294901760
    %v8937 = vsub.f32 %v8821, %v8936
    %v8938 = vand.u32 %v8937, 4294901760
    %v8939 = vsub.f32 %v8937, %v8938
    %v8940 = vand.u32 %v8939, 4294901760
    %8941 = vmatpush1.msra.mxu0 %v8940
    %8942 = vmatprep.subr.mxu0 0.0
    %v8943 = vand.u32 %v8822, 4294901760
    %v8944 = vsub.f32 %v8822, %v8943
    %v8945 = vand.u32 %v8944, 4294901760
    %v8946 = vsub.f32 %v8944, %v8945
    %v8947 = vand.u32 %v8946, 4294901760
    %8948 = vmatpush1.msra.mxu0 %v8947
    %8949 = vmatprep.subr.mxu0 0.0
    %v8950 = vand.u32 %v8823, 4294901760
    %v8951 = vsub.f32 %v8823, %v8950
    %v8952 = vand.u32 %v8951, 4294901760
    %v8953 = vsub.f32 %v8951, %v8952
    %v8954 = vand.u32 %v8953, 4294901760
    %8955 = vmatpush1.msra.mxu0 %v8954
    %8956 = vmatprep.subr.mxu0 0.0
    %8957 = vmatpush1.msra.mxu0 0.0
    %8958 = vmatprep.subr.mxu0 0.0
    %8959 = vmatpush1.msra.mxu0 0.0
    %8960 = vmatprep.subr.mxu0 0.0
    %8961 = vmatpush1.msra.mxu0 0.0
    %8962 = vmatprep.subr.mxu0 0.0
    %8963 = vmatpush1.msra.mxu0 0.0
    %8964 = vmatprep.subr.mxu0 0.0
    %8965 = vmatpush1.msra.mxu0 0.0
    %8966 = vmatprep.subr.mxu0 0.0
    %8967 = vmatpush1.msra.mxu0 0.0
    %8968 = vmatprep.subr.mxu0 0.0
    %8969 = vmatpush1.msra.mxu0 0.0
    %8970 = vmatprep.subr.mxu0 0.0
    %8971 = vmatpush1.msra.mxu0 0.0
    %8972 = vmatprep.subr.mxu0 0.0
    %8973 = vmatpush1.msra.mxu0 0.0
    %8974 = vmatprep.subr.mxu0 0.0
    %8975 = vmatpush1.msra.mxu0 0.0
    %8976 = vmatprep.subr.mxu0 0.0
    %8977 = vmatpush1.msra.mxu0 0.0
    %8978 = vmatprep.subr.mxu0 0.0
    %8979 = vmatpush1.msra.mxu0 0.0
    %8980 = vmatprep.subr.mxu0 0.0
    %8981 = vmatpush1.msra.mxu0 0.0
    %8982 = vmatprep.subr.mxu0 0.0
    %8983 = vmatpush1.msra.mxu0 0.0
    %8984 = vmatprep.subr.mxu0 0.0
    %8985 = vmatpush1.msra.mxu0 0.0
    %8986 = vmatprep.subr.mxu0 0.0
    %8987 = vmatpush1.msra.mxu0 0.0
    %8988 = vmatprep.subr.mxu0 0.0
    %8989 = vmatpush1.msra.mxu0 0.0
    %8990 = vmatprep.subr.mxu0 0.0
    %8991 = vmatpush1.msra.mxu0 0.0
    %8992 = vmatprep.subr.mxu0 0.0
    %8993 = vmatpush1.msra.mxu0 0.0
    %8994 = vmatprep.subr.mxu0 0.0
    %8995 = vmatpush1.msra.mxu0 0.0
    %8996 = vmatprep.subr.mxu0 0.0
    %8997 = vmatpush1.msra.mxu0 0.0
    %8998 = vmatprep.subr.mxu0 0.0
    %8999 = vmatpush1.msra.mxu0 0.0
    %9000 = vmatprep.subr.mxu0 0.0
    %9001 = vmatpush1.msra.mxu0 0.0
    %9002 = vmatprep.subr.mxu0 0.0
    %9003 = vmatpush1.msra.mxu0 0.0
    %9004 = vmatprep.subr.mxu0 0.0
    %9005 = vmatpush1.msra.mxu0 0.0
    %9006 = vmatprep.subr.mxu0 0.0
    %9007 = vmatpush1.msra.mxu0 0.0
    %9008 = vmatprep.subr.mxu0 0.0
    %9009 = vmatpush1.msra.mxu0 0.0
    %9010 = vmatprep.subr.mxu0 0.0
    %9011 = vmatpush1.msra.mxu0 0.0
    %9012 = vmatprep.mubr.f32.mxu0 0.0
    %v9013 = vand.u32 %v8835, 4294901760
    %9014 = vmatmul.mubr.f32.gmra.mrb[0].mxu0 %v9013
    %v9015 = vpop.f32.mrb[0].mxu0
    %v9016 = vadd.f32 %v8915, %v9015
    %v9017 = vpop.f32.mrb[0].mxu0
    %9018 = vmatprep.mubr.f32.mxu0 0.0
    %v9019 = vand.u32 %v8837, 4294901760
    %9020 = vmatmul.mubr.f32.gmra.mrb[0].mxu0 %v9019
    %v9021 = vpop.f32.mrb[0].mxu0
    %v9022 = vadd.f32 %v8925, %v9021
    %v9023 = vpop.f32.mrb[0].mxu0
    %9024 = vdwg.mxu0
    %9025 = vmatprep.subr.mxu0 0.0
    %v9026 = vand.u32 %v8820, 4294901760
    %v9027 = vsub.f32 %v8820, %v9026
    %9028 = vmatpush1.msra.mxu0 %v9027
    %9029 = vmatprep.subr.mxu0 0.0
    %v9030 = vand.u32 %v8821, 4294901760
    %v9031 = vsub.f32 %v8821, %v9030
    %9032 = vmatpush1.msra.mxu0 %v9031
    %9033 = vmatprep.subr.mxu0 0.0
    %v9034 = vand.u32 %v8822, 4294901760
    %v9035 = vsub.f32 %v8822, %v9034
    %9036 = vmatpush1.msra.mxu0 %v9035
    %9037 = vmatprep.subr.mxu0 0.0
    %v9038 = vand.u32 %v8823, 4294901760
    %v9039 = vsub.f32 %v8823, %v9038
    %9040 = vmatpush1.msra.mxu0 %v9039
    %9041 = vmatprep.subr.mxu0 0.0
    %9042 = vmatpush1.msra.mxu0 0.0
    %9043 = vmatprep.subr.mxu0 0.0
    %9044 = vmatpush1.msra.mxu0 0.0
    %9045 = vmatprep.subr.mxu0 0.0
    %9046 = vmatpush1.msra.mxu0 0.0
    %9047 = vmatprep.subr.mxu0 0.0
    %9048 = vmatpush1.msra.mxu0 0.0
    %9049 = vmatprep.subr.mxu0 0.0
    %9050 = vmatpush1.msra.mxu0 0.0
    %9051 = vmatprep.subr.mxu0 0.0
    %9052 = vmatpush1.msra.mxu0 0.0
    %9053 = vmatprep.subr.mxu0 0.0
    %9054 = vmatpush1.msra.mxu0 0.0
    %9055 = vmatprep.subr.mxu0 0.0
    %9056 = vmatpush1.msra.mxu0 0.0
    %9057 = vmatprep.subr.mxu0 0.0
    %9058 = vmatpush1.msra.mxu0 0.0
    %9059 = vmatprep.subr.mxu0 0.0
    %9060 = vmatpush1.msra.mxu0 0.0
    %9061 = vmatprep.subr.mxu0 0.0
    %9062 = vmatpush1.msra.mxu0 0.0
    %9063 = vmatprep.subr.mxu0 0.0
    %9064 = vmatpush1.msra.mxu0 0.0
    %9065 = vmatprep.subr.mxu0 0.0
    %9066 = vmatpush1.msra.mxu0 0.0
    %9067 = vmatprep.subr.mxu0 0.0
    %9068 = vmatpush1.msra.mxu0 0.0
    %9069 = vmatprep.subr.mxu0 0.0
    %9070 = vmatpush1.msra.mxu0 0.0
    %9071 = vmatprep.subr.mxu0 0.0
    %9072 = vmatpush1.msra.mxu0 0.0
    %9073 = vmatprep.subr.mxu0 0.0
    %9074 = vmatpush1.msra.mxu0 0.0
    %9075 = vmatprep.subr.mxu0 0.0
    %9076 = vmatpush1.msra.mxu0 0.0
    %9077 = vmatprep.subr.mxu0 0.0
    %9078 = vmatpush1.msra.mxu0 0.0
    %9079 = vmatprep.subr.mxu0 0.0
    %9080 = vmatpush1.msra.mxu0 0.0
    %9081 = vmatprep.subr.mxu0 0.0
    %9082 = vmatpush1.msra.mxu0 0.0
    %9083 = vmatprep.subr.mxu0 0.0
    %9084 = vmatpush1.msra.mxu0 0.0
    %9085 = vmatprep.subr.mxu0 0.0
    %9086 = vmatpush1.msra.mxu0 0.0
    %9087 = vmatprep.subr.mxu0 0.0
    %9088 = vmatpush1.msra.mxu0 0.0
    %9089 = vmatprep.subr.mxu0 0.0
    %9090 = vmatpush1.msra.mxu0 0.0
    %9091 = vmatprep.subr.mxu0 0.0
    %9092 = vmatpush1.msra.mxu0 0.0
    %9093 = vmatprep.subr.mxu0 0.0
    %9094 = vmatpush1.msra.mxu0 0.0
    %9095 = vmatprep.subr.mxu0 0.0
    %9096 = vmatpush1.msra.mxu0 0.0
    %9097 = vmatprep.mubr.f32.mxu0 0.0
    %v9098 = vand.u32 %v8835, 4294901760
    %v9099 = vsub.f32 %v8835, %v9098
    %9100 = vmatmul.mubr.f32.gmra.mrb[0].mxu0 %v9099
    %v9101 = vpop.f32.mrb[0].mxu0
    %v9102 = vadd.f32 %v9016, %v9101
    %v9103 = vpop.f32.mrb[0].mxu0
    %9104 = vmatprep.mubr.f32.mxu0 0.0
    %v9105 = vand.u32 %v8837, 4294901760
    %v9106 = vsub.f32 %v8837, %v9105
    %9107 = vmatmul.mubr.f32.gmra.mrb[0].mxu0 %v9106
    %v9108 = vpop.f32.mrb[0].mxu0
    %v9109 = vadd.f32 %v9022, %v9108
    %v9110 = vpop.f32.mrb[0].mxu0
    %9111 = vdwg.mxu0
    %9112 = vmatprep.subr.mxu0 0.0
    %v9113 = vand.u32 %v8820, 4294901760
    %9114 = vmatpush1.msra.mxu0 %v9113
    %9115 = vmatprep.subr.mxu0 0.0
    %v9116 = vand.u32 %v8821, 4294901760
    %9117 = vmatpush1.msra.mxu0 %v9116
    %9118 = vmatprep.subr.mxu0 0.0
    %v9119 = vand.u32 %v8822, 4294901760
    %9120 = vmatpush1.msra.mxu0 %v9119
    %9121 = vmatprep.subr.mxu0 0.0
    %v9122 = vand.u32 %v8823, 4294901760
    %9123 = vmatpush1.msra.mxu0 %v9122
    %9124 = vmatprep.subr.mxu0 0.0
    %9125 = vmatpush1.msra.mxu0 0.0
    %9126 = vmatprep.subr.mxu0 0.0
    %9127 = vmatpush1.msra.mxu0 0.0
    %9128 = vmatprep.subr.mxu0 0.0
    %9129 = vmatpush1.msra.mxu0 0.0
    %9130 = vmatprep.subr.mxu0 0.0
    %9131 = vmatpush1.msra.mxu0 0.0
    %9132 = vmatprep.subr.mxu0 0.0
    %9133 = vmatpush1.msra.mxu0 0.0
    %9134 = vmatprep.subr.mxu0 0.0
    %9135 = vmatpush1.msra.mxu0 0.0
    %9136 = vmatprep.subr.mxu0 0.0
    %9137 = vmatpush1.msra.mxu0 0.0
    %9138 = vmatprep.subr.mxu0 0.0
    %9139 = vmatpush1.msra.mxu0 0.0
    %9140 = vmatprep.subr.mxu0 0.0
    %9141 = vmatpush1.msra.mxu0 0.0
    %9142 = vmatprep.subr.mxu0 0.0
    %9143 = vmatpush1.msra.mxu0 0.0
    %9144 = vmatprep.subr.mxu0 0.0
    %9145 = vmatpush1.msra.mxu0 0.0
    %9146 = vmatprep.subr.mxu0 0.0
    %9147 = vmatpush1.msra.mxu0 0.0
    %9148 = vmatprep.subr.mxu0 0.0
    %9149 = vmatpush1.msra.mxu0 0.0
    %9150 = vmatprep.subr.mxu0 0.0
    %9151 = vmatpush1.msra.mxu0 0.0
    %9152 = vmatprep.subr.mxu0 0.0
    %9153 = vmatpush1.msra.mxu0 0.0
    %9154 = vmatprep.subr.mxu0 0.0
    %9155 = vmatpush1.msra.mxu0 0.0
    %9156 = vmatprep.subr.mxu0 0.0
    %9157 = vmatpush1.msra.mxu0 0.0
    %9158 = vmatprep.subr.mxu0 0.0
    %9159 = vmatpush1.msra.mxu0 0.0
    %9160 = vmatprep.subr.mxu0 0.0
    %9161 = vmatpush1.msra.mxu0 0.0
    %9162 = vmatprep.subr.mxu0 0.0
    %9163 = vmatpush1.msra.mxu0 0.0
    %9164 = vmatprep.subr.mxu0 0.0
    %9165 = vmatpush1.msra.mxu0 0.0
    %9166 = vmatprep.subr.mxu0 0.0
    %9167 = vmatpush1.msra.mxu0 0.0
    %9168 = vmatprep.subr.mxu0 0.0
    %9169 = vmatpush1.msra.mxu0 0.0
    %9170 = vmatprep.subr.mxu0 0.0
    %9171 = vmatpush1.msra.mxu0 0.0
    %9172 = vmatprep.subr.mxu0 0.0
    %9173 = vmatpush1.msra.mxu0 0.0
    %9174 = vmatprep.subr.mxu0 0.0
    %9175 = vmatpush1.msra.mxu0 0.0
    %9176 = vmatprep.subr.mxu0 0.0
    %9177 = vmatpush1.msra.mxu0 0.0
    %9178 = vmatprep.subr.mxu0 0.0
    %9179 = vmatpush1.msra.mxu0 0.0
    %9180 = vmatprep.mubr.f32.mxu0 0.0
    %v9181 = vand.u32 %v8835, 4294901760
    %v9182 = vsub.f32 %v8835, %v9181
    %v9183 = vand.u32 %v9182, 4294901760
    %9184 = vmatmul.mubr.f32.gmra.mrb[0].mxu0 %v9183
    %v9185 = vpop.f32.mrb[0].mxu0
    %v9186 = vadd.f32 %v9102, %v9185
    %v9187 = vpop.f32.mrb[0].mxu0
    %9188 = vmatprep.mubr.f32.mxu0 0.0
    %v9189 = vand.u32 %v8837, 4294901760
    %v9190 = vsub.f32 %v8837, %v9189
    %v9191 = vand.u32 %v9190, 4294901760
    %9192 = vmatmul.mubr.f32.gmra.mrb[0].mxu0 %v9191
    %v9193 = vpop.f32.mrb[0].mxu0
    %v9194 = vadd.f32 %v9109, %v9193
    %v9195 = vpop.f32.mrb[0].mxu0
    %9196 = vdwg.mxu0
    %9197 = vmatprep.subr.mxu0 0.0
    %v9198 = vand.u32 %v8820, 4294901760
    %v9199 = vsub.f32 %v8820, %v9198
    %v9200 = vand.u32 %v9199, 4294901760
    %9201 = vmatpush1.msra.mxu0 %v9200
    %9202 = vmatprep.subr.mxu0 0.0
    %v9203 = vand.u32 %v8821, 4294901760
    %v9204 = vsub.f32 %v8821, %v9203
    %v9205 = vand.u32 %v9204, 4294901760
    %9206 = vmatpush1.msra.mxu0 %v9205
    %9207 = vmatprep.subr.mxu0 0.0
    %v9208 = vand.u32 %v8822, 4294901760
    %v9209 = vsub.f32 %v8822, %v9208
    %v9210 = vand.u32 %v9209, 4294901760
    %9211 = vmatpush1.msra.mxu0 %v9210
    %9212 = vmatprep.subr.mxu0 0.0
    %v9213 = vand.u32 %v8823, 4294901760
    %v9214 = vsub.f32 %v8823, %v9213
    %v9215 = vand.u32 %v9214, 4294901760
    %9216 = vmatpush1.msra.mxu0 %v9215
    %9217 = vmatprep.subr.mxu0 0.0
    %9218 = vmatpush1.msra.mxu0 0.0
    %9219 = vmatprep.subr.mxu0 0.0
    %9220 = vmatpush1.msra.mxu0 0.0
    %9221 = vmatprep.subr.mxu0 0.0
    %9222 = vmatpush1.msra.mxu0 0.0
    %9223 = vmatprep.subr.mxu0 0.0
    %9224 = vmatpush1.msra.mxu0 0.0
    %9225 = vmatprep.subr.mxu0 0.0
    %9226 = vmatpush1.msra.mxu0 0.0
    %9227 = vmatprep.subr.mxu0 0.0
    %9228 = vmatpush1.msra.mxu0 0.0
    %9229 = vmatprep.subr.mxu0 0.0
    %9230 = vmatpush1.msra.mxu0 0.0
    %9231 = vmatprep.subr.mxu0 0.0
    %9232 = vmatpush1.msra.mxu0 0.0
    %9233 = vmatprep.subr.mxu0 0.0
    %9234 = vmatpush1.msra.mxu0 0.0
    %9235 = vmatprep.subr.mxu0 0.0
    %9236 = vmatpush1.msra.mxu0 0.0
    %9237 = vmatprep.subr.mxu0 0.0
    %9238 = vmatpush1.msra.mxu0 0.0
    %9239 = vmatprep.subr.mxu0 0.0
    %9240 = vmatpush1.msra.mxu0 0.0
    %9241 = vmatprep.subr.mxu0 0.0
    %9242 = vmatpush1.msra.mxu0 0.0
    %9243 = vmatprep.subr.mxu0 0.0
    %9244 = vmatpush1.msra.mxu0 0.0
    %9245 = vmatprep.subr.mxu0 0.0
    %9246 = vmatpush1.msra.mxu0 0.0
    %9247 = vmatprep.subr.mxu0 0.0
    %9248 = vmatpush1.msra.mxu0 0.0
    %9249 = vmatprep.subr.mxu0 0.0
    %9250 = vmatpush1.msra.mxu0 0.0
    %9251 = vmatprep.subr.mxu0 0.0
    %9252 = vmatpush1.msra.mxu0 0.0
    %9253 = vmatprep.subr.mxu0 0.0
    %9254 = vmatpush1.msra.mxu0 0.0
    %9255 = vmatprep.subr.mxu0 0.0
    %9256 = vmatpush1.msra.mxu0 0.0
    %9257 = vmatprep.subr.mxu0 0.0
    %9258 = vmatpush1.msra.mxu0 0.0
    %9259 = vmatprep.subr.mxu0 0.0
    %9260 = vmatpush1.msra.mxu0 0.0
    %9261 = vmatprep.subr.mxu0 0.0
    %9262 = vmatpush1.msra.mxu0 0.0
    %9263 = vmatprep.subr.mxu0 0.0
    %9264 = vmatpush1.msra.mxu0 0.0
    %9265 = vmatprep.subr.mxu0 0.0
    %9266 = vmatpush1.msra.mxu0 0.0
    %9267 = vmatprep.subr.mxu0 0.0
    %9268 = vmatpush1.msra.mxu0 0.0
    %9269 = vmatprep.subr.mxu0 0.0
    %9270 = vmatpush1.msra.mxu0 0.0
    %9271 = vmatprep.subr.mxu0 0.0
    %9272 = vmatpush1.msra.mxu0 0.0
    %9273 = vmatprep.mubr.f32.mxu0 0.0
    %v9274 = vand.u32 %v8835, 4294901760
    %9275 = vmatmul.mubr.f32.gmra.mrb[0].mxu0 %v9274
    %v9276 = vpop.f32.mrb[0].mxu0
    %v9277 = vadd.f32 %v9186, %v9276
    %v9278 = vpop.f32.mrb[0].mxu0
    %9279 = vmatprep.mubr.f32.mxu0 0.0
    %v9280 = vand.u32 %v8837, 4294901760
    %9281 = vmatmul.mubr.f32.gmra.mrb[0].mxu0 %v9280
    %v9282 = vpop.f32.mrb[0].mxu0
    %v9283 = vadd.f32 %v9194, %v9282
    %v9284 = vpop.f32.mrb[0].mxu0
    %9285 = vdwg.mxu0
    %9286 = vmatprep.subr.mxu0 0.0
    %v9287 = vand.u32 %v8820, 4294901760
    %9288 = vmatpush1.msra.mxu0 %v9287
    %9289 = vmatprep.subr.mxu0 0.0
    %v9290 = vand.u32 %v8821, 4294901760
    %9291 = vmatpush1.msra.mxu0 %v9290
    %9292 = vmatprep.subr.mxu0 0.0
    %v9293 = vand.u32 %v8822, 4294901760
    %9294 = vmatpush1.msra.mxu0 %v9293
    %9295 = vmatprep.subr.mxu0 0.0
    %v9296 = vand.u32 %v8823, 4294901760
    %9297 = vmatpush1.msra.mxu0 %v9296
    %9298 = vmatprep.subr.mxu0 0.0
    %9299 = vmatpush1.msra.mxu0 0.0
    %9300 = vmatprep.subr.mxu0 0.0
    %9301 = vmatpush1.msra.mxu0 0.0
    %9302 = vmatprep.subr.mxu0 0.0
    %9303 = vmatpush1.msra.mxu0 0.0
    %9304 = vmatprep.subr.mxu0 0.0
    %9305 = vmatpush1.msra.mxu0 0.0
    %9306 = vmatprep.subr.mxu0 0.0
    %9307 = vmatpush1.msra.mxu0 0.0
    %9308 = vmatprep.subr.mxu0 0.0
    %9309 = vmatpush1.msra.mxu0 0.0
    %9310 = vmatprep.subr.mxu0 0.0
    %9311 = vmatpush1.msra.mxu0 0.0
    %9312 = vmatprep.subr.mxu0 0.0
    %9313 = vmatpush1.msra.mxu0 0.0
    %9314 = vmatprep.subr.mxu0 0.0
    %9315 = vmatpush1.msra.mxu0 0.0
    %9316 = vmatprep.subr.mxu0 0.0
    %9317 = vmatpush1.msra.mxu0 0.0
    %9318 = vmatprep.subr.mxu0 0.0
    %9319 = vmatpush1.msra.mxu0 0.0
    %9320 = vmatprep.subr.mxu0 0.0
    %9321 = vmatpush1.msra.mxu0 0.0
    %9322 = vmatprep.subr.mxu0 0.0
    %9323 = vmatpush1.msra.mxu0 0.0
    %9324 = vmatprep.subr.mxu0 0.0
    %9325 = vmatpush1.msra.mxu0 0.0
    %9326 = vmatprep.subr.mxu0 0.0
    %9327 = vmatpush1.msra.mxu0 0.0
    %9328 = vmatprep.subr.mxu0 0.0
    %9329 = vmatpush1.msra.mxu0 0.0
    %9330 = vmatprep.subr.mxu0 0.0
    %9331 = vmatpush1.msra.mxu0 0.0
    %9332 = vmatprep.subr.mxu0 0.0
    %9333 = vmatpush1.msra.mxu0 0.0
    %9334 = vmatprep.subr.mxu0 0.0
    %9335 = vmatpush1.msra.mxu0 0.0
    %9336 = vmatprep.subr.mxu0 0.0
    %9337 = vmatpush1.msra.mxu0 0.0
    %9338 = vmatprep.subr.mxu0 0.0
    %9339 = vmatpush1.msra.mxu0 0.0
    %9340 = vmatprep.subr.mxu0 0.0
    %9341 = vmatpush1.msra.mxu0 0.0
    %9342 = vmatprep.subr.mxu0 0.0
    %9343 = vmatpush1.msra.mxu0 0.0
    %9344 = vmatprep.subr.mxu0 0.0
    %9345 = vmatpush1.msra.mxu0 0.0
    %9346 = vmatprep.subr.mxu0 0.0
    %9347 = vmatpush1.msra.mxu0 0.0
    %9348 = vmatprep.subr.mxu0 0.0
    %9349 = vmatpush1.msra.mxu0 0.0
    %9350 = vmatprep.subr.mxu0 0.0
    %9351 = vmatpush1.msra.mxu0 0.0
    %9352 = vmatprep.subr.mxu0 0.0
    %9353 = vmatpush1.msra.mxu0 0.0
    %9354 = vmatprep.mubr.f32.mxu0 0.0
    %v9355 = vand.u32 %v8835, 4294901760
    %9356 = vmatmul.mubr.f32.gmra.mrb[0].mxu0 %v9355
    %v9357 = vpop.f32.mrb[0].mxu0
    %v9358 = vadd.f32 %v9277, %v9357
    %v9359 = vpop.f32.mrb[0].mxu0
    %9360 = vmatprep.mubr.f32.mxu0 0.0
    %v9361 = vand.u32 %v8837, 4294901760
    %9362 = vmatmul.mubr.f32.gmra.mrb[0].mxu0 %v9361
    %v9363 = vpop.f32.mrb[0].mxu0
    %v9364 = vadd.f32 %v9283, %v9363
    %v9365 = vpop.f32.mrb[0].mxu0
    %9366 = vdwg.mxu0
    %v9367 = vmul.f32 %v9358, %v7021
    %v9368 = vmul.f32 %v9364, %v7021
    %v9369 = vxor.u32 %v9367, 2147483648
    %v9370 = vxor.u32 %v9368, 2147483648
    %v9371 = vmul.f32 %v9369, 1.442695
    %v9372 = vpow.pop %v9371
    %v9373 = vmul.f32 %v9370, 1.442695
    %v9374 = vpow.pop %v9373
    %v9375 = vadd.f32 %v9372, 1.0
    %v9376 = vadd.f32 %v9374, 1.0
    %v9377 = vrcp.pop %v9375
    %v9378 = vmul.f32 1.0, %v9377
    %v9379 = vrcp.pop %v9376
    %v9380 = vmul.f32 1.0, %v9379
    %v9381 = vmul.f32 %v9378, %v7021
    %v9382 = vmul.f32 %v9380, %v7021
    %v9383 = vadd.f32 %v9381, %v7022
    %v9384 = vadd.f32 %v9382, %v7022
    %v9385 = vmul.f32 %v9383, %v8795
    %v9386 = vmul.f32 %v9384, %v8796
    %9389 = vrot.lane.b32.xlu0 %v9383, 64
    %v9390 = vpop.permute.xlu0 %9389
    %9391 = vrot.lane.b32.xlu0 %v9384, 64
    %v9392 = vpop.permute.xlu0 %9391
    %v9395 = vmul.f32 %v9383, %v9390
    %v9396 = vmul.f32 %v9384, %v9392
    %9399 = vrot.lane.b32.xlu0 %v9395, 32
    %v9400 = vpop.permute.xlu0 %9399
    %9401 = vrot.lane.b32.xlu0 %v9396, 32
    %v9402 = vpop.permute.xlu0 %9401
    %v9405 = vadd.f32 %v9385, %v9400
    %v9406 = vadd.f32 %v9386, %v9402
    %v9407 = vtanh.pop %v9405
    %v9408 = vtanh.pop %v9406
    %9411 = vrot.lane.b32.xlu0 %v9407, 64
    %v9412 = vpop.permute.xlu0 %9411
    %9413 = vrot.lane.b32.xlu0 %v9408, 64
    %v9414 = vpop.permute.xlu0 %9413
    %v9417 = vmul.f32 %v9383, %v9412
    %v9418 = vmul.f32 %v9384, %v9414
    %vm9419 = vcmask 1048320
    %9420 = vst.msk [vmem:[#allocation8] sm:$0xff] %vm9419, %v9417
    %9421 = vst.msk [vmem:[#allocation8 + $0x8] sm:$0xff] %vm9419, %v9418
    // Predicated region
    $region50: #{tpu_custom_call.1} parent=1 // pred_check
      _
    $region51: #{tpu_custom_call.1} parent=1 // pred_check_branch
      %9423 = sbr.rel (0) target = $region53
    $region52: #{tpu_custom_call.1} parent=1 // pred_region
      %s9425 = ssub.s32 256, 256
      %9426 = vsyncadd [#allocation4], %s9425
      %s9427 = sshll.u32 [#allocation8], 4
      %s9428 = int_to_ptr.vmem [resolvable:$true] %s9427
      %9433 = dma.vmem_to_hbm [thread:$0]  %s9428, 256, %s9, [#allocation4], 128, 128, 8
    $region53: #{tpu_custom_call.1} parent=1 // pred_fallthru
      _
    // Predicated region
    $region54: #{tpu_custom_call.1} parent=1 // pred_check
      _
    $region55: #{tpu_custom_call.1} parent=1 // pred_check_branch
      %9435 = sbr.rel (0) target = $region57
    $region56: #{tpu_custom_call.1} parent=1 // pred_region
      %9436 = dma.done [#allocation4], 256
    $region57: #{tpu_custom_call.1} parent=1 // pred_fallthru
      _
    %9437 = vsyncpa [#allocation3], 1
    %9438 = vsyncpa [#allocation6], 1
    %9439 = vsyncpa [#allocation4], 1

</llo_original>
